<compile_context>
chip_gen: v5e
topology: v5e:2x2
jax: 0.10.0
libtpu: 0.0.40
codegen_flags: <defaults>
</compile_context>

<pallas_src>
import functools

import jax
import jax.numpy as jnp
from jax.experimental import pallas as pl
from jax.experimental.pallas import tpu as pltpu


_LP_CHUNK = 256   # protein-length chunk for the pairwise attention tensor.
# TODO(synk): retune _LP_CHUNK and the batch-block size for production
# lengths (Ld~100, Lp~1000) to stay inside v7x's 64 MiB VMEM.


def _const_spec(a):
    """BlockSpec for a weight that is identical at every grid step."""
    return pl.BlockSpec(a.shape, lambda *_: (0,) * a.ndim)


# ----------------------------------------------------------------------------
# Kernel 1: fused feature extractor
#   conv stacks + attention projections + pairwise attention means + shared
#   attention linear + sigmoid gating + global max pool; Bt samples per step.
# ----------------------------------------------------------------------------
def _make_feature_kernel(bt, drug_kernel, protein_kernel):
    dk = tuple(drug_kernel)
    pk = tuple(protein_kernel)

    def conv1d_relu(xs, w_ref, b_ref, k):
        # xs: list of bt per-sample (L, Cin) f32 arrays (channels-last).
        # im2col along channels -> one (bt*Lout, K*Cin) @ (K*Cin, Cout) matmul.
        lout = xs[0].shape[0] - k + 1
        cols = jnp.concatenate(
            [jnp.concatenate([x[i:i + lout, :] for i in range(k)], axis=1)
             for x in xs],
            axis=0)                                           # (bt*lout, k*Cin)
        y = jnp.dot(cols.astype(jnp.bfloat16), w_ref[...],
                    preferred_element_type=jnp.float32) + b_ref[...]
        return jnp.maximum(y, 0.0), lout                      # f32

    def per_sample(x2d, length):
        return [x2d[b * length:(b + 1) * length, :] for b in range(bt)]

    def kernel(demb_ref, pemb_ref,
               dw1, db1, dw2, db2, dw3, db3,
               pw1, pb1, pw2, pb2, pw3, pb3,
               wd, bd, wp, bp, wa, ba,
               out_ref):
        demb = demb_ref[...]                                  # (bt, Ld0, dim)
        pemb = pemb_ref[...]                                  # (bt, Lp0, dim)

        # --- CNN stacks (all samples of the block folded into M) ------------
        d, ld = conv1d_relu([demb[b] for b in range(bt)], dw1, db1, dk[0])
        d, ld = conv1d_relu(per_sample(d, ld), dw2, db2, dk[1])
        d, ld = conv1d_relu(per_sample(d, ld), dw3, db3, dk[2])   # (bt*Ld, C)
        p, lp = conv1d_relu([pemb[b] for b in range(bt)], pw1, pb1, pk[0])
        p, lp = conv1d_relu(per_sample(p, lp), pw2, pb2, pk[1])
        p, lp = conv1d_relu(per_sample(p, lp), pw3, pb3, pk[2])   # (bt*Lp, C)
        c = d.shape[1]

        # --- attention projections (single matmul each, M = bt*L) -----------
        d_att = jnp.dot(d.astype(jnp.bfloat16), wd[...],
                        preferred_element_type=jnp.float32) + bd[...]
        p_att = jnp.dot(p.astype(jnp.bfloat16), wp[...],
                        preferred_element_type=jnp.float32) + bp[...]

        # --- pairwise relu(d_att[i] + p_att[j]) means ------------------------
        # The (C, C) attention linear + bias commutes with the means, so the
        # means of the relu'd pairwise sums are computed first (VPU/XLU work)
        # and wa is applied once to [m_d; m_p] below.
        m_d_parts, m_p_parts = [], []
        for b in range(bt):
            da = d_att[b * ld:(b + 1) * ld, :]                # (Ld, C)
            pa = p_att[b * lp:(b + 1) * lp, :]                # (Lp, C)
            md_sum = jnp.zeros((ld, c), jnp.float32)
            mp_chunks = []
            for j0 in range(0, lp, _LP_CHUNK):                # chunk over Lp
                j1 = min(j0 + _LP_CHUNK, lp)
                z = jnp.maximum(da[:, None, :] + pa[None, j0:j1, :], 0.0)
                md_sum = md_sum + jnp.sum(z, axis=1)          # sum over j
                mp_chunks.append(jnp.mean(z, axis=0))         # mean over i
            m_d_parts.append(md_sum * (1.0 / lp))
            m_p_parts.append(mp_chunks[0] if len(mp_chunks) == 1
                             else jnp.concatenate(mp_chunks, axis=0))
        m_d = m_d_parts[0] if bt == 1 else jnp.concatenate(m_d_parts, axis=0)
        m_p = m_p_parts[0] if bt == 1 else jnp.concatenate(m_p_parts, axis=0)

        # --- shared attention linear + sigmoid (one matmul for both) --------
        m_all = jnp.concatenate([m_d, m_p], axis=0)           # (bt*(Ld+Lp), C)
        att = jax.nn.sigmoid(
            jnp.dot(m_all.astype(jnp.bfloat16), wa[...],
                    preferred_element_type=jnp.float32) + ba[...])
        comp = att[:bt * ld, :]                               # (bt*Ld, C)
        prot = att[bt * ld:, :]                               # (bt*Lp, C)

        # --- gating + global max pool, lane-dense (bt, 2C) store ------------
        d_gated = d * (comp + 0.5)                            # x*0.5 + x*att
        p_gated = p * (prot + 0.5)
        rows = []
        for b in range(bt):
            dmax = jnp.max(d_gated[b * ld:(b + 1) * ld, :], axis=0,
                           keepdims=True)                     # (1, C)
            pmax = jnp.max(p_gated[b * lp:(b + 1) * lp, :], axis=0,
                           keepdims=True)                     # (1, C)
            rows.append(jnp.concatenate([dmax, pmax], axis=1))   # (1, 2C)
        out_ref[...] = rows[0] if bt == 1 else jnp.concatenate(rows, axis=0)

    return kernel


def extract_features(demb, pemb, w, drug_kernel, protein_kernel):
    b, ld0, dim = demb.shape
    _, lp0, _ = pemb.shape
    c4 = w["wd"].shape[1]

    bt = 8 if b % 8 == 0 else b          # samples fused per grid step
    kernel = _make_feature_kernel(bt, drug_kernel, protein_kernel)

    names = ("dw1", "db1", "dw2", "db2", "dw3", "db3",
             "pw1", "pb1", "pw2", "pb2", "pw3", "pb3",
             "wd", "bd", "wp", "bp", "wa", "ba")
    weight_args = [w[n] for n in names]

    in_specs = ([pl.BlockSpec((bt, ld0, dim), lambda i: (i, 0, 0)),
                 pl.BlockSpec((bt, lp0, dim), lambda i: (i, 0, 0))]
                + [_const_spec(a) for a in weight_args])

    return pl.pallas_call(
        kernel,
        out_shape=jax.ShapeDtypeStruct((b, 2 * c4), jnp.float32),
        grid=(b // bt,),
        in_specs=in_specs,
        out_specs=pl.BlockSpec((bt, 2 * c4), lambda i: (i, 0)),
        compiler_params=pltpu.CompilerParams(
            dimension_semantics=("parallel",)),   # v7x: shard blocks over 2 TCs
    )(demb, pemb, *weight_args)


# ----------------------------------------------------------------------------
# Kernel 2: MLP head (batch-tiled grid, weights resident as constant blocks)
# ----------------------------------------------------------------------------
def mlp_kernel(x_ref, w1, b1, w2, b2, w3, b3, wo, bo, out_ref):
    def lrelu(v):
        return jnp.where(v > 0, v, 0.01 * v)     # nn.LeakyReLU default slope

    x = x_ref[...]
    h = lrelu(jnp.dot(x.astype(jnp.bfloat16), w1[...],
                      preferred_element_type=jnp.float32) + b1[...])
    h = lrelu(jnp.dot(h.astype(jnp.bfloat16), w2[...],
                      preferred_element_type=jnp.float32) + b2[...])
    h = lrelu(jnp.dot(h.astype(jnp.bfloat16), w3[...],
                      preferred_element_type=jnp.float32) + b3[...])
    out_ref[...] = jnp.dot(h.astype(jnp.bfloat16), wo[...],
                           preferred_element_type=jnp.float32) + bo[...]


def mlp_head(pair, w1, b1, w2, b2, w3, b3, wo_pad, bo_pad):
    b, f = pair.shape
    n_pad = wo_pad.shape[1]
    tile_m = 256 if b % 256 == 0 else b          # VMEM-bounded row tiles
    weights = (w1, b1, w2, b2, w3, b3, wo_pad, bo_pad)
    logits = pl.pallas_call(
        mlp_kernel,
        out_shape=jax.ShapeDtypeStruct((b, n_pad), jnp.float32),
        grid=(b // tile_m,),
        in_specs=[pl.BlockSpec((tile_m, f), lambda i: (i, 0))]
                 + [_const_spec(a) for a in weights],
        out_specs=pl.BlockSpec((tile_m, n_pad), lambda i: (i, 0)),
        compiler_params=pltpu.CompilerParams(
            dimension_semantics=("parallel",)),
    )(pair, *weights)
    return logits[:, :2]                          # un-pad the 2-class head


# ----------------------------------------------------------------------------
# Full forward (embedding gather + two kernel calls)
# ----------------------------------------------------------------------------
def attention_dti_forward(p, drug_ids, protein_ids):
    bf16 = jnp.bfloat16
    # Embedding lookup (padding_idx=0 handled by zeroed row 0) -- plain-JAX glue.
    d_emb = p["drug_embed"][drug_ids]          # (B, Ld0, dim)
    p_emb = p["protein_embed"][protein_ids]    # (B, Lp0, dim)

    def flat(w):  # (K, Cin, Cout) -> (K*Cin, Cout), bf16
        k, cin, cout = w.shape
        return w.reshape(k * cin, cout).astype(bf16)

    dk = (p["dw1"].shape[0], p["dw2"].shape[0], p["dw3"].shape[0])
    pk = (p["pw1"].shape[0], p["pw2"].shape[0], p["pw3"].shape[0])

    feat_w = dict(
        dw1=flat(p["dw1"]), db1=p["db1"],
        dw2=flat(p["dw2"]), db2=p["db2"],
        dw3=flat(p["dw3"]), db3=p["db3"],
        pw1=flat(p["pw1"]), pb1=p["pb1"],
        pw2=flat(p["pw2"]), pb2=p["pb2"],
        pw3=flat(p["pw3"]), pb3=p["pb3"],
        wd=p["wd"].astype(bf16), bd=p["bd"],
        wp=p["wp"].astype(bf16), bp=p["bp"],
        wa=p["wa"].astype(bf16), ba=p["ba"])

    pair = extract_features(d_emb, p_emb, feat_w, dk, pk)     # (B, 2*C4)

    # Pad the 2-wide output head to 128 lanes (full-lane store); slice after.
    n_out = p["wo"].shape[1]
    wo_pad = jnp.zeros((p["wo"].shape[0], 128), jnp.float32).at[:, :n_out].set(p["wo"])
    bo_pad = jnp.zeros((1, 128), jnp.float32).at[:, :n_out].set(p["bo"])

    # dropout1/2/3 are identity in eval mode.
    return mlp_head(pair,
                    p["w1"].astype(bf16), p["b1"],
                    p["w2"].astype(bf16), p["b2"],
                    p["w3"].astype(bf16), p["b3"],
                    wo_pad.astype(bf16), bo_pad)


# ----------------------------------------------------------------------------
# Deterministic parameter construction + demo run
# ----------------------------------------------------------------------------
def make_params(key, char_dim, conv, drug_kernel, protein_kernel):
    c4 = conv * 4

    def nrm(k, shape, scale=0.05):
        return jax.random.normal(k, shape, jnp.float32) * scale

    keys = jax.random.split(key, 32)
    ki = iter(keys)

    p = {}
    # Embeddings (padding_idx=0 -> zero row 0).
    demb = nrm(next(ki), (65, char_dim))
    pemb = nrm(next(ki), (26, char_dim))
    p["drug_embed"] = demb.at[0].set(0.0)
    p["protein_embed"] = pemb.at[0].set(0.0)

    # Drug CNNs: dim -> conv -> 2*conv -> 4*conv (weights stored (K, Cin, Cout)).
    dk0, dk1, dk2 = drug_kernel
    p["dw1"], p["db1"] = nrm(next(ki), (dk0, char_dim, conv)), nrm(next(ki), (1, conv), 0.01)
    p["dw2"], p["db2"] = nrm(next(ki), (dk1, conv, conv * 2)), nrm(next(ki), (1, conv * 2), 0.01)
    p["dw3"], p["db3"] = nrm(next(ki), (dk2, conv * 2, c4)), nrm(next(ki), (1, c4), 0.01)

    # Protein CNNs
    pk0, pk1, pk2 = protein_kernel
    p["pw1"], p["pb1"] = nrm(next(ki), (pk0, char_dim, conv)), nrm(next(ki), (1, conv), 0.01)
    p["pw2"], p["pb2"] = nrm(next(ki), (pk1, conv, conv * 2)), nrm(next(ki), (1, conv * 2), 0.01)
    p["pw3"], p["pb3"] = nrm(next(ki), (pk2, conv * 2, c4)), nrm(next(ki), (1, c4), 0.01)

    # Attention linears (stored (in, out)).
    p["wd"], p["bd"] = nrm(next(ki), (c4, c4)), nrm(next(ki), (1, c4), 0.01)
    p["wp"], p["bp"] = nrm(next(ki), (c4, c4)), nrm(next(ki), (1, c4), 0.01)
    p["wa"], p["ba"] = nrm(next(ki), (c4, c4)), nrm(next(ki), (1, c4), 0.01)

    # MLP head: 8*conv -> 1024 -> 1024 -> 512 -> 2
    p["w1"], p["b1"] = nrm(next(ki), (conv * 8, 1024)), nrm(next(ki), (1, 1024), 0.01)
    p["w2"], p["b2"] = nrm(next(ki), (1024, 1024)), nrm(next(ki), (1, 1024), 0.01)
    p["w3"], p["b3"] = nrm(next(ki), (1024, 512)), nrm(next(ki), (1, 512), 0.01)
    p["wo"], p["bo"] = nrm(next(ki), (512, 2)), nrm(next(ki), (1, 2), 0.01)
    return p


if __name__ == "__main__":
    # hp-equivalent hyperparameters (small shapes).
    char_dim = 32
    conv = 32                       # => 4*conv = 128, 8*conv = 256
    drug_kernel = (4, 6, 8)
    protein_kernel = (4, 8, 12)
    drug_max_len = 32               # conv output length: 32 - 18 + 3 = 17
    protein_max_len = 64            # conv output length: 64 - 24 + 3 = 43
    B = 2

    key = jax.random.PRNGKey(0)
    kparams, kdrug, kprot = jax.random.split(key, 3)
    params = make_params(kparams, char_dim, conv, drug_kernel, protein_kernel)

    drug_ids = jax.random.randint(kdrug, (B, drug_max_len), 0, 65, dtype=jnp.int32)
    protein_ids = jax.random.randint(kprot, (B, protein_max_len), 0, 26, dtype=jnp.int32)

    fwd = jax.jit(attention_dti_forward)
    predict = fwd(params, drug_ids, protein_ids)     # (B, 2)
    jax.block_until_ready(predict)
    assert predict.shape == (B, 2)
    assert bool(jnp.all(jnp.isfinite(predict)))
    print("KERNEL_OK")
</pallas_src>

<mosaic_0001>
module attributes {stable_mosaic.version = 11 : i64} {
  func.func @kernel(%arg0: i32, %arg1: memref<2x32x32xf32, #tpu.memory_space<vmem>>, %arg2: memref<2x64x32xf32, #tpu.memory_space<vmem>>, %arg3: memref<128x32xbf16, #tpu.memory_space<vmem>>, %arg4: memref<1x32xf32, #tpu.memory_space<vmem>>, %arg5: memref<192x64xbf16, #tpu.memory_space<vmem>>, %arg6: memref<1x64xf32, #tpu.memory_space<vmem>>, %arg7: memref<512x128xbf16, #tpu.memory_space<vmem>>, %arg8: memref<1x128xf32, #tpu.memory_space<vmem>>, %arg9: memref<128x32xbf16, #tpu.memory_space<vmem>>, %arg10: memref<1x32xf32, #tpu.memory_space<vmem>>, %arg11: memref<256x64xbf16, #tpu.memory_space<vmem>>, %arg12: memref<1x64xf32, #tpu.memory_space<vmem>>, %arg13: memref<768x128xbf16, #tpu.memory_space<vmem>>, %arg14: memref<1x128xf32, #tpu.memory_space<vmem>>, %arg15: memref<128x128xbf16, #tpu.memory_space<vmem>>, %arg16: memref<1x128xf32, #tpu.memory_space<vmem>>, %arg17: memref<128x128xbf16, #tpu.memory_space<vmem>>, %arg18: memref<1x128xf32, #tpu.memory_space<vmem>>, %arg19: memref<128x128xbf16, #tpu.memory_space<vmem>>, %arg20: memref<1x128xf32, #tpu.memory_space<vmem>>, %arg21: memref<2x256xf32, #tpu.memory_space<vmem>>) attributes {dimension_semantics = [#tpu.dimension_semantics<parallel>], iteration_bounds = array<i64: 1>, scalar_prefetch = 0 : i64, scratch_operands = 0 : i64, tpu.core_type = #tpu.core_type<tc>, window_params = [{transform_indices = @transform_0, window_bounds = array<i64: 2, 32, 32>}, {transform_indices = @transform_1, window_bounds = array<i64: 2, 64, 32>}, {pipeline_mode = #tpu.pipeline_mode<synchronous>, transform_indices = @transform_2, window_bounds = array<i64: 128, 32>}, {pipeline_mode = #tpu.pipeline_mode<synchronous>, transform_indices = @transform_3, window_bounds = array<i64: 1, 32>}, {pipeline_mode = #tpu.pipeline_mode<synchronous>, transform_indices = @transform_4, window_bounds = array<i64: 192, 64>}, {pipeline_mode = #tpu.pipeline_mode<synchronous>, transform_indices = @transform_5, window_bounds = array<i64: 1, 64>}, {pipeline_mode = #tpu.pipeline_mode<synchronous>, transform_indices = @transform_6, window_bounds = array<i64: 512, 128>}, {pipeline_mode = #tpu.pipeline_mode<synchronous>, transform_indices = @transform_7, window_bounds = array<i64: 1, 128>}, {pipeline_mode = #tpu.pipeline_mode<synchronous>, transform_indices = @transform_8, window_bounds = array<i64: 128, 32>}, {pipeline_mode = #tpu.pipeline_mode<synchronous>, transform_indices = @transform_9, window_bounds = array<i64: 1, 32>}, {pipeline_mode = #tpu.pipeline_mode<synchronous>, transform_indices = @transform_10, window_bounds = array<i64: 256, 64>}, {pipeline_mode = #tpu.pipeline_mode<synchronous>, transform_indices = @transform_11, window_bounds = array<i64: 1, 64>}, {pipeline_mode = #tpu.pipeline_mode<synchronous>, transform_indices = @transform_12, window_bounds = array<i64: 768, 128>}, {pipeline_mode = #tpu.pipeline_mode<synchronous>, transform_indices = @transform_13, window_bounds = array<i64: 1, 128>}, {pipeline_mode = #tpu.pipeline_mode<synchronous>, transform_indices = @transform_14, window_bounds = array<i64: 128, 128>}, {pipeline_mode = #tpu.pipeline_mode<synchronous>, transform_indices = @transform_15, window_bounds = array<i64: 1, 128>}, {pipeline_mode = #tpu.pipeline_mode<synchronous>, transform_indices = @transform_16, window_bounds = array<i64: 128, 128>}, {pipeline_mode = #tpu.pipeline_mode<synchronous>, transform_indices = @transform_17, window_bounds = array<i64: 1, 128>}, {pipeline_mode = #tpu.pipeline_mode<synchronous>, transform_indices = @transform_18, window_bounds = array<i64: 128, 128>}, {pipeline_mode = #tpu.pipeline_mode<synchronous>, transform_indices = @transform_19, window_bounds = array<i64: 1, 128>}, {transform_indices = @transform_20, window_bounds = array<i64: 2, 256>}]} {
    %c0 = arith.constant 0 : index
    %c0_0 = arith.constant 0 : index
    %c0_1 = arith.constant 0 : index
    %0 = vector.load %arg1[%c0, %c0_0, %c0_1] : memref<2x32x32xf32, #tpu.memory_space<vmem>>, vector<2x32x32xf32>
    %c0_2 = arith.constant 0 : index
    %c0_3 = arith.constant 0 : index
    %c0_4 = arith.constant 0 : index
    %1 = vector.load %arg2[%c0_2, %c0_3, %c0_4] : memref<2x64x32xf32, #tpu.memory_space<vmem>>, vector<2x64x32xf32>
    %2 = vector.extract_strided_slice %0 {offsets = [0, 0, 0], sizes = [1, 32, 32], strides = [1, 1, 1]} : vector<2x32x32xf32> to vector<1x32x32xf32>
    %3 = vector.shape_cast %2 : vector<1x32x32xf32> to vector<32x32xf32>
    %4 = vector.extract_strided_slice %0 {offsets = [1, 0, 0], sizes = [1, 32, 32], strides = [1, 1, 1]} : vector<2x32x32xf32> to vector<1x32x32xf32>
    %5 = vector.shape_cast %4 : vector<1x32x32xf32> to vector<32x32xf32>
    %6 = vector.extract_strided_slice %3 {offsets = [0, 0], sizes = [29, 32], strides = [1, 1]} : vector<32x32xf32> to vector<29x32xf32>
    %7 = vector.extract_strided_slice %3 {offsets = [1, 0], sizes = [29, 32], strides = [1, 1]} : vector<32x32xf32> to vector<29x32xf32>
    %8 = vector.extract_strided_slice %3 {offsets = [2, 0], sizes = [29, 32], strides = [1, 1]} : vector<32x32xf32> to vector<29x32xf32>
    %9 = vector.extract_strided_slice %3 {offsets = [3, 0], sizes = [29, 32], strides = [1, 1]} : vector<32x32xf32> to vector<29x32xf32>
    %10 = tpu.concatenate %6, %7, %8, %9 in 1 : vector<29x32xf32>, vector<29x32xf32>, vector<29x32xf32>, vector<29x32xf32> -> vector<29x128xf32>
    %11 = vector.extract_strided_slice %5 {offsets = [0, 0], sizes = [29, 32], strides = [1, 1]} : vector<32x32xf32> to vector<29x32xf32>
    %12 = vector.extract_strided_slice %5 {offsets = [1, 0], sizes = [29, 32], strides = [1, 1]} : vector<32x32xf32> to vector<29x32xf32>
    %13 = vector.extract_strided_slice %5 {offsets = [2, 0], sizes = [29, 32], strides = [1, 1]} : vector<32x32xf32> to vector<29x32xf32>
    %14 = vector.extract_strided_slice %5 {offsets = [3, 0], sizes = [29, 32], strides = [1, 1]} : vector<32x32xf32> to vector<29x32xf32>
    %15 = tpu.concatenate %11, %12, %13, %14 in 1 : vector<29x32xf32>, vector<29x32xf32>, vector<29x32xf32>, vector<29x32xf32> -> vector<29x128xf32>
    %16 = tpu.concatenate %10, %15 in 0 : vector<29x128xf32>, vector<29x128xf32> -> vector<58x128xf32>
    %17 = arith.truncf %16 : vector<58x128xf32> to vector<58x128xbf16>
    %c0_5 = arith.constant 0 : index
    %c0_6 = arith.constant 0 : index
    %18 = vector.load %arg3[%c0_5, %c0_6] : memref<128x32xbf16, #tpu.memory_space<vmem>>, vector<128x32xbf16>
    %cst = arith.constant dense<0.000000e+00> : vector<58x32xf32>
    %19 = tpu.matmul %17, %18, %cst {dimension_numbers = #tpu.dot_dimension_numbers<[1], [0], [0], [1], [0, 0, 1, 1], [], []>} : vector<58x128xbf16>, vector<128x32xbf16>, vector<58x32xf32> -> vector<58x32xf32>
    %c0_7 = arith.constant 0 : index
    %c0_8 = arith.constant 0 : index
    %20 = vector.load %arg4[%c0_7, %c0_8] : memref<1x32xf32, #tpu.memory_space<vmem>>, vector<1x32xf32>
    %21 = vector.broadcast %20 : vector<1x32xf32> to vector<58x32xf32>
    %22 = arith.addf %19, %21 : vector<58x32xf32>
    %cst_9 = arith.constant 0.000000e+00 : f32
    %23 = vector.broadcast %cst_9 : f32 to vector<58x32xf32>
    %24 = arith.maximumf %22, %23 : vector<58x32xf32>
    %25 = vector.extract_strided_slice %24 {offsets = [0, 0], sizes = [29, 32], strides = [1, 1]} : vector<58x32xf32> to vector<29x32xf32>
    %26 = vector.extract_strided_slice %24 {offsets = [29, 0], sizes = [29, 32], strides = [1, 1]} : vector<58x32xf32> to vector<29x32xf32>
    %27 = vector.extract_strided_slice %25 {offsets = [0, 0], sizes = [24, 32], strides = [1, 1]} : vector<29x32xf32> to vector<24x32xf32>
    %28 = vector.extract_strided_slice %25 {offsets = [1, 0], sizes = [24, 32], strides = [1, 1]} : vector<29x32xf32> to vector<24x32xf32>
    %29 = vector.extract_strided_slice %25 {offsets = [2, 0], sizes = [24, 32], strides = [1, 1]} : vector<29x32xf32> to vector<24x32xf32>
    %30 = vector.extract_strided_slice %25 {offsets = [3, 0], sizes = [24, 32], strides = [1, 1]} : vector<29x32xf32> to vector<24x32xf32>
    %31 = vector.extract_strided_slice %25 {offsets = [4, 0], sizes = [24, 32], strides = [1, 1]} : vector<29x32xf32> to vector<24x32xf32>
    %32 = vector.extract_strided_slice %25 {offsets = [5, 0], sizes = [24, 32], strides = [1, 1]} : vector<29x32xf32> to vector<24x32xf32>
    %33 = tpu.concatenate %27, %28, %29, %30, %31, %32 in 1 : vector<24x32xf32>, vector<24x32xf32>, vector<24x32xf32>, vector<24x32xf32>, vector<24x32xf32>, vector<24x32xf32> -> vector<24x192xf32>
    %34 = vector.extract_strided_slice %26 {offsets = [0, 0], sizes = [24, 32], strides = [1, 1]} : vector<29x32xf32> to vector<24x32xf32>
    %35 = vector.extract_strided_slice %26 {offsets = [1, 0], sizes = [24, 32], strides = [1, 1]} : vector<29x32xf32> to vector<24x32xf32>
    %36 = vector.extract_strided_slice %26 {offsets = [2, 0], sizes = [24, 32], strides = [1, 1]} : vector<29x32xf32> to vector<24x32xf32>
    %37 = vector.extract_strided_slice %26 {offsets = [3, 0], sizes = [24, 32], strides = [1, 1]} : vector<29x32xf32> to vector<24x32xf32>
    %38 = vector.extract_strided_slice %26 {offsets = [4, 0], sizes = [24, 32], strides = [1, 1]} : vector<29x32xf32> to vector<24x32xf32>
    %39 = vector.extract_strided_slice %26 {offsets = [5, 0], sizes = [24, 32], strides = [1, 1]} : vector<29x32xf32> to vector<24x32xf32>
    %40 = tpu.concatenate %34, %35, %36, %37, %38, %39 in 1 : vector<24x32xf32>, vector<24x32xf32>, vector<24x32xf32>, vector<24x32xf32>, vector<24x32xf32>, vector<24x32xf32> -> vector<24x192xf32>
    %41 = tpu.concatenate %33, %40 in 0 : vector<24x192xf32>, vector<24x192xf32> -> vector<48x192xf32>
    %42 = arith.truncf %41 : vector<48x192xf32> to vector<48x192xbf16>
    %c0_10 = arith.constant 0 : index
    %c0_11 = arith.constant 0 : index
    %43 = vector.load %arg5[%c0_10, %c0_11] : memref<192x64xbf16, #tpu.memory_space<vmem>>, vector<192x64xbf16>
    %cst_12 = arith.constant dense<0.000000e+00> : vector<48x64xf32>
    %44 = tpu.matmul %42, %43, %cst_12 {dimension_numbers = #tpu.dot_dimension_numbers<[1], [0], [0], [1], [0, 0, 1, 1], [], []>} : vector<48x192xbf16>, vector<192x64xbf16>, vector<48x64xf32> -> vector<48x64xf32>
    %c0_13 = arith.constant 0 : index
    %c0_14 = arith.constant 0 : index
    %45 = vector.load %arg6[%c0_13, %c0_14] : memref<1x64xf32, #tpu.memory_space<vmem>>, vector<1x64xf32>
    %46 = vector.broadcast %45 : vector<1x64xf32> to vector<48x64xf32>
    %47 = arith.addf %44, %46 : vector<48x64xf32>
    %cst_15 = arith.constant 0.000000e+00 : f32
    %48 = vector.broadcast %cst_15 : f32 to vector<48x64xf32>
    %49 = arith.maximumf %47, %48 : vector<48x64xf32>
    %50 = vector.extract_strided_slice %49 {offsets = [0, 0], sizes = [24, 64], strides = [1, 1]} : vector<48x64xf32> to vector<24x64xf32>
    %51 = vector.extract_strided_slice %49 {offsets = [24, 0], sizes = [24, 64], strides = [1, 1]} : vector<48x64xf32> to vector<24x64xf32>
    %52 = vector.extract_strided_slice %50 {offsets = [0, 0], sizes = [17, 64], strides = [1, 1]} : vector<24x64xf32> to vector<17x64xf32>
    %53 = vector.extract_strided_slice %50 {offsets = [1, 0], sizes = [17, 64], strides = [1, 1]} : vector<24x64xf32> to vector<17x64xf32>
    %54 = vector.extract_strided_slice %50 {offsets = [2, 0], sizes = [17, 64], strides = [1, 1]} : vector<24x64xf32> to vector<17x64xf32>
    %55 = vector.extract_strided_slice %50 {offsets = [3, 0], sizes = [17, 64], strides = [1, 1]} : vector<24x64xf32> to vector<17x64xf32>
    %56 = vector.extract_strided_slice %50 {offsets = [4, 0], sizes = [17, 64], strides = [1, 1]} : vector<24x64xf32> to vector<17x64xf32>
    %57 = vector.extract_strided_slice %50 {offsets = [5, 0], sizes = [17, 64], strides = [1, 1]} : vector<24x64xf32> to vector<17x64xf32>
    %58 = vector.extract_strided_slice %50 {offsets = [6, 0], sizes = [17, 64], strides = [1, 1]} : vector<24x64xf32> to vector<17x64xf32>
    %59 = vector.extract_strided_slice %50 {offsets = [7, 0], sizes = [17, 64], strides = [1, 1]} : vector<24x64xf32> to vector<17x64xf32>
    %60 = tpu.concatenate %52, %53, %54, %55, %56, %57, %58, %59 in 1 : vector<17x64xf32>, vector<17x64xf32>, vector<17x64xf32>, vector<17x64xf32>, vector<17x64xf32>, vector<17x64xf32>, vector<17x64xf32>, vector<17x64xf32> -> vector<17x512xf32>
    %61 = vector.extract_strided_slice %51 {offsets = [0, 0], sizes = [17, 64], strides = [1, 1]} : vector<24x64xf32> to vector<17x64xf32>
    %62 = vector.extract_strided_slice %51 {offsets = [1, 0], sizes = [17, 64], strides = [1, 1]} : vector<24x64xf32> to vector<17x64xf32>
    %63 = vector.extract_strided_slice %51 {offsets = [2, 0], sizes = [17, 64], strides = [1, 1]} : vector<24x64xf32> to vector<17x64xf32>
    %64 = vector.extract_strided_slice %51 {offsets = [3, 0], sizes = [17, 64], strides = [1, 1]} : vector<24x64xf32> to vector<17x64xf32>
    %65 = vector.extract_strided_slice %51 {offsets = [4, 0], sizes = [17, 64], strides = [1, 1]} : vector<24x64xf32> to vector<17x64xf32>
    %66 = vector.extract_strided_slice %51 {offsets = [5, 0], sizes = [17, 64], strides = [1, 1]} : vector<24x64xf32> to vector<17x64xf32>
    %67 = vector.extract_strided_slice %51 {offsets = [6, 0], sizes = [17, 64], strides = [1, 1]} : vector<24x64xf32> to vector<17x64xf32>
    %68 = vector.extract_strided_slice %51 {offsets = [7, 0], sizes = [17, 64], strides = [1, 1]} : vector<24x64xf32> to vector<17x64xf32>
    %69 = tpu.concatenate %61, %62, %63, %64, %65, %66, %67, %68 in 1 : vector<17x64xf32>, vector<17x64xf32>, vector<17x64xf32>, vector<17x64xf32>, vector<17x64xf32>, vector<17x64xf32>, vector<17x64xf32>, vector<17x64xf32> -> vector<17x512xf32>
    %70 = tpu.concatenate %60, %69 in 0 : vector<17x512xf32>, vector<17x512xf32> -> vector<34x512xf32>
    %71 = arith.truncf %70 : vector<34x512xf32> to vector<34x512xbf16>
    %c0_16 = arith.constant 0 : index
    %c0_17 = arith.constant 0 : index
    %72 = vector.load %arg7[%c0_16, %c0_17] : memref<512x128xbf16, #tpu.memory_space<vmem>>, vector<512x128xbf16>
    %cst_18 = arith.constant dense<0.000000e+00> : vector<34x128xf32>
    %73 = tpu.matmul %71, %72, %cst_18 {dimension_numbers = #tpu.dot_dimension_numbers<[1], [0], [0], [1], [0, 0, 1, 1], [], []>} : vector<34x512xbf16>, vector<512x128xbf16>, vector<34x128xf32> -> vector<34x128xf32>
    %c0_19 = arith.constant 0 : index
    %c0_20 = arith.constant 0 : index
    %74 = vector.load %arg8[%c0_19, %c0_20] : memref<1x128xf32, #tpu.memory_space<vmem>>, vector<1x128xf32>
    %75 = vector.broadcast %74 : vector<1x128xf32> to vector<34x128xf32>
    %76 = arith.addf %73, %75 : vector<34x128xf32>
    %cst_21 = arith.constant 0.000000e+00 : f32
    %77 = vector.broadcast %cst_21 : f32 to vector<34x128xf32>
    %78 = arith.maximumf %76, %77 : vector<34x128xf32>
    %79 = vector.extract_strided_slice %1 {offsets = [0, 0, 0], sizes = [1, 64, 32], strides = [1, 1, 1]} : vector<2x64x32xf32> to vector<1x64x32xf32>
    %80 = vector.shape_cast %79 : vector<1x64x32xf32> to vector<64x32xf32>
    %81 = vector.extract_strided_slice %1 {offsets = [1, 0, 0], sizes = [1, 64, 32], strides = [1, 1, 1]} : vector<2x64x32xf32> to vector<1x64x32xf32>
    %82 = vector.shape_cast %81 : vector<1x64x32xf32> to vector<64x32xf32>
    %83 = vector.extract_strided_slice %80 {offsets = [0, 0], sizes = [61, 32], strides = [1, 1]} : vector<64x32xf32> to vector<61x32xf32>
    %84 = vector.extract_strided_slice %80 {offsets = [1, 0], sizes = [61, 32], strides = [1, 1]} : vector<64x32xf32> to vector<61x32xf32>
    %85 = vector.extract_strided_slice %80 {offsets = [2, 0], sizes = [61, 32], strides = [1, 1]} : vector<64x32xf32> to vector<61x32xf32>
    %86 = vector.extract_strided_slice %80 {offsets = [3, 0], sizes = [61, 32], strides = [1, 1]} : vector<64x32xf32> to vector<61x32xf32>
    %87 = tpu.concatenate %83, %84, %85, %86 in 1 : vector<61x32xf32>, vector<61x32xf32>, vector<61x32xf32>, vector<61x32xf32> -> vector<61x128xf32>
    %88 = vector.extract_strided_slice %82 {offsets = [0, 0], sizes = [61, 32], strides = [1, 1]} : vector<64x32xf32> to vector<61x32xf32>
    %89 = vector.extract_strided_slice %82 {offsets = [1, 0], sizes = [61, 32], strides = [1, 1]} : vector<64x32xf32> to vector<61x32xf32>
    %90 = vector.extract_strided_slice %82 {offsets = [2, 0], sizes = [61, 32], strides = [1, 1]} : vector<64x32xf32> to vector<61x32xf32>
    %91 = vector.extract_strided_slice %82 {offsets = [3, 0], sizes = [61, 32], strides = [1, 1]} : vector<64x32xf32> to vector<61x32xf32>
    %92 = tpu.concatenate %88, %89, %90, %91 in 1 : vector<61x32xf32>, vector<61x32xf32>, vector<61x32xf32>, vector<61x32xf32> -> vector<61x128xf32>
    %93 = tpu.concatenate %87, %92 in 0 : vector<61x128xf32>, vector<61x128xf32> -> vector<122x128xf32>
    %94 = arith.truncf %93 : vector<122x128xf32> to vector<122x128xbf16>
    %c0_22 = arith.constant 0 : index
    %c0_23 = arith.constant 0 : index
    %95 = vector.load %arg9[%c0_22, %c0_23] : memref<128x32xbf16, #tpu.memory_space<vmem>>, vector<128x32xbf16>
    %cst_24 = arith.constant dense<0.000000e+00> : vector<122x32xf32>
    %96 = tpu.matmul %94, %95, %cst_24 {dimension_numbers = #tpu.dot_dimension_numbers<[1], [0], [0], [1], [0, 0, 1, 1], [], []>} : vector<122x128xbf16>, vector<128x32xbf16>, vector<122x32xf32> -> vector<122x32xf32>
    %c0_25 = arith.constant 0 : index
    %c0_26 = arith.constant 0 : index
    %97 = vector.load %arg10[%c0_25, %c0_26] : memref<1x32xf32, #tpu.memory_space<vmem>>, vector<1x32xf32>
    %98 = vector.broadcast %97 : vector<1x32xf32> to vector<122x32xf32>
    %99 = arith.addf %96, %98 : vector<122x32xf32>
    %cst_27 = arith.constant 0.000000e+00 : f32
    %100 = vector.broadcast %cst_27 : f32 to vector<122x32xf32>
    %101 = arith.maximumf %99, %100 : vector<122x32xf32>
    %102 = vector.extract_strided_slice %101 {offsets = [0, 0], sizes = [61, 32], strides = [1, 1]} : vector<122x32xf32> to vector<61x32xf32>
    %103 = vector.extract_strided_slice %101 {offsets = [61, 0], sizes = [61, 32], strides = [1, 1]} : vector<122x32xf32> to vector<61x32xf32>
    %104 = vector.extract_strided_slice %102 {offsets = [0, 0], sizes = [54, 32], strides = [1, 1]} : vector<61x32xf32> to vector<54x32xf32>
    %105 = vector.extract_strided_slice %102 {offsets = [1, 0], sizes = [54, 32], strides = [1, 1]} : vector<61x32xf32> to vector<54x32xf32>
    %106 = vector.extract_strided_slice %102 {offsets = [2, 0], sizes = [54, 32], strides = [1, 1]} : vector<61x32xf32> to vector<54x32xf32>
    %107 = vector.extract_strided_slice %102 {offsets = [3, 0], sizes = [54, 32], strides = [1, 1]} : vector<61x32xf32> to vector<54x32xf32>
    %108 = vector.extract_strided_slice %102 {offsets = [4, 0], sizes = [54, 32], strides = [1, 1]} : vector<61x32xf32> to vector<54x32xf32>
    %109 = vector.extract_strided_slice %102 {offsets = [5, 0], sizes = [54, 32], strides = [1, 1]} : vector<61x32xf32> to vector<54x32xf32>
    %110 = vector.extract_strided_slice %102 {offsets = [6, 0], sizes = [54, 32], strides = [1, 1]} : vector<61x32xf32> to vector<54x32xf32>
    %111 = vector.extract_strided_slice %102 {offsets = [7, 0], sizes = [54, 32], strides = [1, 1]} : vector<61x32xf32> to vector<54x32xf32>
    %112 = tpu.concatenate %104, %105, %106, %107, %108, %109, %110, %111 in 1 : vector<54x32xf32>, vector<54x32xf32>, vector<54x32xf32>, vector<54x32xf32>, vector<54x32xf32>, vector<54x32xf32>, vector<54x32xf32>, vector<54x32xf32> -> vector<54x256xf32>
    %113 = vector.extract_strided_slice %103 {offsets = [0, 0], sizes = [54, 32], strides = [1, 1]} : vector<61x32xf32> to vector<54x32xf32>
    %114 = vector.extract_strided_slice %103 {offsets = [1, 0], sizes = [54, 32], strides = [1, 1]} : vector<61x32xf32> to vector<54x32xf32>
    %115 = vector.extract_strided_slice %103 {offsets = [2, 0], sizes = [54, 32], strides = [1, 1]} : vector<61x32xf32> to vector<54x32xf32>
    %116 = vector.extract_strided_slice %103 {offsets = [3, 0], sizes = [54, 32], strides = [1, 1]} : vector<61x32xf32> to vector<54x32xf32>
    %117 = vector.extract_strided_slice %103 {offsets = [4, 0], sizes = [54, 32], strides = [1, 1]} : vector<61x32xf32> to vector<54x32xf32>
    %118 = vector.extract_strided_slice %103 {offsets = [5, 0], sizes = [54, 32], strides = [1, 1]} : vector<61x32xf32> to vector<54x32xf32>
    %119 = vector.extract_strided_slice %103 {offsets = [6, 0], sizes = [54, 32], strides = [1, 1]} : vector<61x32xf32> to vector<54x32xf32>
    %120 = vector.extract_strided_slice %103 {offsets = [7, 0], sizes = [54, 32], strides = [1, 1]} : vector<61x32xf32> to vector<54x32xf32>
    %121 = tpu.concatenate %113, %114, %115, %116, %117, %118, %119, %120 in 1 : vector<54x32xf32>, vector<54x32xf32>, vector<54x32xf32>, vector<54x32xf32>, vector<54x32xf32>, vector<54x32xf32>, vector<54x32xf32>, vector<54x32xf32> -> vector<54x256xf32>
    %122 = tpu.concatenate %112, %121 in 0 : vector<54x256xf32>, vector<54x256xf32> -> vector<108x256xf32>
    %123 = arith.truncf %122 : vector<108x256xf32> to vector<108x256xbf16>
    %c0_28 = arith.constant 0 : index
    %c0_29 = arith.constant 0 : index
    %124 = vector.load %arg11[%c0_28, %c0_29] : memref<256x64xbf16, #tpu.memory_space<vmem>>, vector<256x64xbf16>
    %cst_30 = arith.constant dense<0.000000e+00> : vector<108x64xf32>
    %125 = tpu.matmul %123, %124, %cst_30 {dimension_numbers = #tpu.dot_dimension_numbers<[1], [0], [0], [1], [0, 0, 1, 1], [], []>} : vector<108x256xbf16>, vector<256x64xbf16>, vector<108x64xf32> -> vector<108x64xf32>
    %c0_31 = arith.constant 0 : index
    %c0_32 = arith.constant 0 : index
    %126 = vector.load %arg12[%c0_31, %c0_32] : memref<1x64xf32, #tpu.memory_space<vmem>>, vector<1x64xf32>
    %127 = vector.broadcast %126 : vector<1x64xf32> to vector<108x64xf32>
    %128 = arith.addf %125, %127 : vector<108x64xf32>
    %cst_33 = arith.constant 0.000000e+00 : f32
    %129 = vector.broadcast %cst_33 : f32 to vector<108x64xf32>
    %130 = arith.maximumf %128, %129 : vector<108x64xf32>
    %131 = vector.extract_strided_slice %130 {offsets = [0, 0], sizes = [54, 64], strides = [1, 1]} : vector<108x64xf32> to vector<54x64xf32>
    %132 = vector.extract_strided_slice %130 {offsets = [54, 0], sizes = [54, 64], strides = [1, 1]} : vector<108x64xf32> to vector<54x64xf32>
    %133 = vector.extract_strided_slice %131 {offsets = [0, 0], sizes = [43, 64], strides = [1, 1]} : vector<54x64xf32> to vector<43x64xf32>
    %134 = vector.extract_strided_slice %131 {offsets = [1, 0], sizes = [43, 64], strides = [1, 1]} : vector<54x64xf32> to vector<43x64xf32>
    %135 = vector.extract_strided_slice %131 {offsets = [2, 0], sizes = [43, 64], strides = [1, 1]} : vector<54x64xf32> to vector<43x64xf32>
    %136 = vector.extract_strided_slice %131 {offsets = [3, 0], sizes = [43, 64], strides = [1, 1]} : vector<54x64xf32> to vector<43x64xf32>
    %137 = vector.extract_strided_slice %131 {offsets = [4, 0], sizes = [43, 64], strides = [1, 1]} : vector<54x64xf32> to vector<43x64xf32>
    %138 = vector.extract_strided_slice %131 {offsets = [5, 0], sizes = [43, 64], strides = [1, 1]} : vector<54x64xf32> to vector<43x64xf32>
    %139 = vector.extract_strided_slice %131 {offsets = [6, 0], sizes = [43, 64], strides = [1, 1]} : vector<54x64xf32> to vector<43x64xf32>
    %140 = vector.extract_strided_slice %131 {offsets = [7, 0], sizes = [43, 64], strides = [1, 1]} : vector<54x64xf32> to vector<43x64xf32>
    %141 = vector.extract_strided_slice %131 {offsets = [8, 0], sizes = [43, 64], strides = [1, 1]} : vector<54x64xf32> to vector<43x64xf32>
    %142 = vector.extract_strided_slice %131 {offsets = [9, 0], sizes = [43, 64], strides = [1, 1]} : vector<54x64xf32> to vector<43x64xf32>
    %143 = vector.extract_strided_slice %131 {offsets = [10, 0], sizes = [43, 64], strides = [1, 1]} : vector<54x64xf32> to vector<43x64xf32>
    %144 = vector.extract_strided_slice %131 {offsets = [11, 0], sizes = [43, 64], strides = [1, 1]} : vector<54x64xf32> to vector<43x64xf32>
    %145 = tpu.concatenate %133, %134, %135, %136, %137, %138, %139, %140, %141, %142, %143, %144 in 1 : vector<43x64xf32>, vector<43x64xf32>, vector<43x64xf32>, vector<43x64xf32>, vector<43x64xf32>, vector<43x64xf32>, vector<43x64xf32>, vector<43x64xf32>, vector<43x64xf32>, vector<43x64xf32>, vector<43x64xf32>, vector<43x64xf32> -> vector<43x768xf32>
    %146 = vector.extract_strided_slice %132 {offsets = [0, 0], sizes = [43, 64], strides = [1, 1]} : vector<54x64xf32> to vector<43x64xf32>
    %147 = vector.extract_strided_slice %132 {offsets = [1, 0], sizes = [43, 64], strides = [1, 1]} : vector<54x64xf32> to vector<43x64xf32>
    %148 = vector.extract_strided_slice %132 {offsets = [2, 0], sizes = [43, 64], strides = [1, 1]} : vector<54x64xf32> to vector<43x64xf32>
    %149 = vector.extract_strided_slice %132 {offsets = [3, 0], sizes = [43, 64], strides = [1, 1]} : vector<54x64xf32> to vector<43x64xf32>
    %150 = vector.extract_strided_slice %132 {offsets = [4, 0], sizes = [43, 64], strides = [1, 1]} : vector<54x64xf32> to vector<43x64xf32>
    %151 = vector.extract_strided_slice %132 {offsets = [5, 0], sizes = [43, 64], strides = [1, 1]} : vector<54x64xf32> to vector<43x64xf32>
    %152 = vector.extract_strided_slice %132 {offsets = [6, 0], sizes = [43, 64], strides = [1, 1]} : vector<54x64xf32> to vector<43x64xf32>
    %153 = vector.extract_strided_slice %132 {offsets = [7, 0], sizes = [43, 64], strides = [1, 1]} : vector<54x64xf32> to vector<43x64xf32>
    %154 = vector.extract_strided_slice %132 {offsets = [8, 0], sizes = [43, 64], strides = [1, 1]} : vector<54x64xf32> to vector<43x64xf32>
    %155 = vector.extract_strided_slice %132 {offsets = [9, 0], sizes = [43, 64], strides = [1, 1]} : vector<54x64xf32> to vector<43x64xf32>
    %156 = vector.extract_strided_slice %132 {offsets = [10, 0], sizes = [43, 64], strides = [1, 1]} : vector<54x64xf32> to vector<43x64xf32>
    %157 = vector.extract_strided_slice %132 {offsets = [11, 0], sizes = [43, 64], strides = [1, 1]} : vector<54x64xf32> to vector<43x64xf32>
    %158 = tpu.concatenate %146, %147, %148, %149, %150, %151, %152, %153, %154, %155, %156, %157 in 1 : vector<43x64xf32>, vector<43x64xf32>, vector<43x64xf32>, vector<43x64xf32>, vector<43x64xf32>, vector<43x64xf32>, vector<43x64xf32>, vector<43x64xf32>, vector<43x64xf32>, vector<43x64xf32>, vector<43x64xf32>, vector<43x64xf32> -> vector<43x768xf32>
    %159 = tpu.concatenate %145, %158 in 0 : vector<43x768xf32>, vector<43x768xf32> -> vector<86x768xf32>
    %160 = arith.truncf %159 : vector<86x768xf32> to vector<86x768xbf16>
    %c0_34 = arith.constant 0 : index
    %c0_35 = arith.constant 0 : index
    %161 = vector.load %arg13[%c0_34, %c0_35] : memref<768x128xbf16, #tpu.memory_space<vmem>>, vector<768x128xbf16>
    %cst_36 = arith.constant dense<0.000000e+00> : vector<86x128xf32>
    %162 = tpu.matmul %160, %161, %cst_36 {dimension_numbers = #tpu.dot_dimension_numbers<[1], [0], [0], [1], [0, 0, 1, 1], [], []>} : vector<86x768xbf16>, vector<768x128xbf16>, vector<86x128xf32> -> vector<86x128xf32>
    %c0_37 = arith.constant 0 : index
    %c0_38 = arith.constant 0 : index
    %163 = vector.load %arg14[%c0_37, %c0_38] : memref<1x128xf32, #tpu.memory_space<vmem>>, vector<1x128xf32>
    %164 = vector.broadcast %163 : vector<1x128xf32> to vector<86x128xf32>
    %165 = arith.addf %162, %164 : vector<86x128xf32>
    %cst_39 = arith.constant 0.000000e+00 : f32
    %166 = vector.broadcast %cst_39 : f32 to vector<86x128xf32>
    %167 = arith.maximumf %165, %166 : vector<86x128xf32>
    %168 = arith.truncf %78 : vector<34x128xf32> to vector<34x128xbf16>
    %c0_40 = arith.constant 0 : index
    %c0_41 = arith.constant 0 : index
    %169 = vector.load %arg15[%c0_40, %c0_41] : memref<128x128xbf16, #tpu.memory_space<vmem>>, vector<128x128xbf16>
    %cst_42 = arith.constant dense<0.000000e+00> : vector<34x128xf32>
    %170 = tpu.matmul %168, %169, %cst_42 {dimension_numbers = #tpu.dot_dimension_numbers<[1], [0], [0], [1], [0, 0, 1, 1], [], []>} : vector<34x128xbf16>, vector<128x128xbf16>, vector<34x128xf32> -> vector<34x128xf32>
    %c0_43 = arith.constant 0 : index
    %c0_44 = arith.constant 0 : index
    %171 = vector.load %arg16[%c0_43, %c0_44] : memref<1x128xf32, #tpu.memory_space<vmem>>, vector<1x128xf32>
    %172 = vector.broadcast %171 : vector<1x128xf32> to vector<34x128xf32>
    %173 = arith.addf %170, %172 : vector<34x128xf32>
    %174 = arith.truncf %167 : vector<86x128xf32> to vector<86x128xbf16>
    %c0_45 = arith.constant 0 : index
    %c0_46 = arith.constant 0 : index
    %175 = vector.load %arg17[%c0_45, %c0_46] : memref<128x128xbf16, #tpu.memory_space<vmem>>, vector<128x128xbf16>
    %cst_47 = arith.constant dense<0.000000e+00> : vector<86x128xf32>
    %176 = tpu.matmul %174, %175, %cst_47 {dimension_numbers = #tpu.dot_dimension_numbers<[1], [0], [0], [1], [0, 0, 1, 1], [], []>} : vector<86x128xbf16>, vector<128x128xbf16>, vector<86x128xf32> -> vector<86x128xf32>
    %c0_48 = arith.constant 0 : index
    %c0_49 = arith.constant 0 : index
    %177 = vector.load %arg18[%c0_48, %c0_49] : memref<1x128xf32, #tpu.memory_space<vmem>>, vector<1x128xf32>
    %178 = vector.broadcast %177 : vector<1x128xf32> to vector<86x128xf32>
    %179 = arith.addf %176, %178 : vector<86x128xf32>
    %180 = vector.extract_strided_slice %173 {offsets = [0, 0], sizes = [17, 128], strides = [1, 1]} : vector<34x128xf32> to vector<17x128xf32>
    %181 = vector.extract_strided_slice %179 {offsets = [0, 0], sizes = [43, 128], strides = [1, 1]} : vector<86x128xf32> to vector<43x128xf32>
    %cst_50 = arith.constant 0.000000e+00 : f32
    %182 = vector.broadcast %cst_50 : f32 to vector<17x128xf32>
    %183 = vector.shape_cast %180 : vector<17x128xf32> to vector<17x1x128xf32>
    %184 = vector.shape_cast %181 : vector<43x128xf32> to vector<1x43x128xf32>
    %185 = vector.broadcast %183 : vector<17x1x128xf32> to vector<17x43x128xf32>
    %186 = vector.broadcast %184 : vector<1x43x128xf32> to vector<17x43x128xf32>
    %187 = arith.addf %185, %186 : vector<17x43x128xf32>
    %cst_51 = arith.constant 0.000000e+00 : f32
    %188 = vector.broadcast %cst_51 : f32 to vector<17x43x128xf32>
    %189 = arith.maximumf %187, %188 : vector<17x43x128xf32>
    %cst_52 = arith.constant dense<0.000000e+00> : vector<17x128xf32>
    %190 = vector.multi_reduction <add>, %189, %cst_52 [1] : vector<17x43x128xf32> to vector<17x128xf32>
    %191 = arith.addf %182, %190 : vector<17x128xf32>
    %cst_53 = arith.constant dense<0.000000e+00> : vector<43x128xf32>
    %192 = vector.multi_reduction <add>, %189, %cst_53 [0] : vector<17x43x128xf32> to vector<43x128xf32>
    %cst_54 = arith.constant 1.700000e+01 : f32
    %193 = vector.broadcast %cst_54 : f32 to vector<43x128xf32>
    %194 = arith.divf %192, %193 : vector<43x128xf32>
    %cst_55 = arith.constant 0.0232558139 : f32
    %195 = vector.broadcast %cst_55 : f32 to vector<17x128xf32>
    %196 = arith.mulf %191, %195 : vector<17x128xf32>
    %197 = vector.extract_strided_slice %173 {offsets = [17, 0], sizes = [17, 128], strides = [1, 1]} : vector<34x128xf32> to vector<17x128xf32>
    %198 = vector.extract_strided_slice %179 {offsets = [43, 0], sizes = [43, 128], strides = [1, 1]} : vector<86x128xf32> to vector<43x128xf32>
    %cst_56 = arith.constant 0.000000e+00 : f32
    %199 = vector.broadcast %cst_56 : f32 to vector<17x128xf32>
    %200 = vector.shape_cast %197 : vector<17x128xf32> to vector<17x1x128xf32>
    %201 = vector.shape_cast %198 : vector<43x128xf32> to vector<1x43x128xf32>
    %202 = vector.broadcast %200 : vector<17x1x128xf32> to vector<17x43x128xf32>
    %203 = vector.broadcast %201 : vector<1x43x128xf32> to vector<17x43x128xf32>
    %204 = arith.addf %202, %203 : vector<17x43x128xf32>
    %cst_57 = arith.constant 0.000000e+00 : f32
    %205 = vector.broadcast %cst_57 : f32 to vector<17x43x128xf32>
    %206 = arith.maximumf %204, %205 : vector<17x43x128xf32>
    %cst_58 = arith.constant dense<0.000000e+00> : vector<17x128xf32>
    %207 = vector.multi_reduction <add>, %206, %cst_58 [1] : vector<17x43x128xf32> to vector<17x128xf32>
    %208 = arith.addf %199, %207 : vector<17x128xf32>
    %cst_59 = arith.constant dense<0.000000e+00> : vector<43x128xf32>
    %209 = vector.multi_reduction <add>, %206, %cst_59 [0] : vector<17x43x128xf32> to vector<43x128xf32>
    %cst_60 = arith.constant 1.700000e+01 : f32
    %210 = vector.broadcast %cst_60 : f32 to vector<43x128xf32>
    %211 = arith.divf %209, %210 : vector<43x128xf32>
    %cst_61 = arith.constant 0.0232558139 : f32
    %212 = vector.broadcast %cst_61 : f32 to vector<17x128xf32>
    %213 = arith.mulf %208, %212 : vector<17x128xf32>
    %214 = tpu.concatenate %196, %213 in 0 : vector<17x128xf32>, vector<17x128xf32> -> vector<34x128xf32>
    %215 = tpu.concatenate %194, %211 in 0 : vector<43x128xf32>, vector<43x128xf32> -> vector<86x128xf32>
    %216 = tpu.concatenate %214, %215 in 0 : vector<34x128xf32>, vector<86x128xf32> -> vector<120x128xf32>
    %217 = arith.truncf %216 : vector<120x128xf32> to vector<120x128xbf16>
    %c0_62 = arith.constant 0 : index
    %c0_63 = arith.constant 0 : index
    %218 = vector.load %arg19[%c0_62, %c0_63] : memref<128x128xbf16, #tpu.memory_space<vmem>>, vector<128x128xbf16>
    %cst_64 = arith.constant dense<0.000000e+00> : vector<120x128xf32>
    %219 = tpu.matmul %217, %218, %cst_64 {dimension_numbers = #tpu.dot_dimension_numbers<[1], [0], [0], [1], [0, 0, 1, 1], [], []>} : vector<120x128xbf16>, vector<128x128xbf16>, vector<120x128xf32> -> vector<120x128xf32>
    %c0_65 = arith.constant 0 : index
    %c0_66 = arith.constant 0 : index
    %220 = vector.load %arg20[%c0_65, %c0_66] : memref<1x128xf32, #tpu.memory_space<vmem>>, vector<1x128xf32>
    %221 = vector.broadcast %220 : vector<1x128xf32> to vector<120x128xf32>
    %222 = arith.addf %219, %221 : vector<120x128xf32>
    %223 = arith.negf %222 : vector<120x128xf32>
    %224 = math.exp %223 : vector<120x128xf32>
    %cst_67 = arith.constant 1.000000e+00 : f32
    %225 = vector.broadcast %cst_67 : f32 to vector<120x128xf32>
    %226 = arith.addf %225, %224 : vector<120x128xf32>
    %227 = arith.divf %225, %226 : vector<120x128xf32>
    %228 = vector.extract_strided_slice %227 {offsets = [0, 0], sizes = [34, 128], strides = [1, 1]} : vector<120x128xf32> to vector<34x128xf32>
    %229 = vector.extract_strided_slice %227 {offsets = [34, 0], sizes = [86, 128], strides = [1, 1]} : vector<120x128xf32> to vector<86x128xf32>
    %cst_68 = arith.constant 5.000000e-01 : f32
    %230 = vector.broadcast %cst_68 : f32 to vector<34x128xf32>
    %231 = arith.addf %228, %230 : vector<34x128xf32>
    %232 = arith.mulf %78, %231 : vector<34x128xf32>
    %cst_69 = arith.constant 5.000000e-01 : f32
    %233 = vector.broadcast %cst_69 : f32 to vector<86x128xf32>
    %234 = arith.addf %229, %233 : vector<86x128xf32>
    %235 = arith.mulf %167, %234 : vector<86x128xf32>
    %236 = vector.extract_strided_slice %232 {offsets = [0, 0], sizes = [17, 128], strides = [1, 1]} : vector<34x128xf32> to vector<17x128xf32>
    %cst_70 = arith.constant dense<0xFF800000> : vector<128xf32>
    %237 = vector.multi_reduction <maximumf>, %236, %cst_70 [0] : vector<17x128xf32> to vector<128xf32>
    %238 = vector.shape_cast %237 : vector<128xf32> to vector<1x128xf32>
    %239 = vector.extract_strided_slice %235 {offsets = [0, 0], sizes = [43, 128], strides = [1, 1]} : vector<86x128xf32> to vector<43x128xf32>
    %cst_71 = arith.constant dense<0xFF800000> : vector<128xf32>
    %240 = vector.multi_reduction <maximumf>, %239, %cst_71 [0] : vector<43x128xf32> to vector<128xf32>
    %241 = vector.shape_cast %240 : vector<128xf32> to vector<1x128xf32>
    %242 = tpu.concatenate %238, %241 in 1 : vector<1x128xf32>, vector<1x128xf32> -> vector<1x256xf32>
    %243 = vector.extract_strided_slice %232 {offsets = [17, 0], sizes = [17, 128], strides = [1, 1]} : vector<34x128xf32> to vector<17x128xf32>
    %cst_72 = arith.constant dense<0xFF800000> : vector<128xf32>
    %244 = vector.multi_reduction <maximumf>, %243, %cst_72 [0] : vector<17x128xf32> to vector<128xf32>
    %245 = vector.shape_cast %244 : vector<128xf32> to vector<1x128xf32>
    %246 = vector.extract_strided_slice %235 {offsets = [43, 0], sizes = [43, 128], strides = [1, 1]} : vector<86x128xf32> to vector<43x128xf32>
    %cst_73 = arith.constant dense<0xFF800000> : vector<128xf32>
    %247 = vector.multi_reduction <maximumf>, %246, %cst_73 [0] : vector<43x128xf32> to vector<128xf32>
    %248 = vector.shape_cast %247 : vector<128xf32> to vector<1x128xf32>
    %249 = tpu.concatenate %245, %248 in 1 : vector<1x128xf32>, vector<1x128xf32> -> vector<1x256xf32>
    %250 = tpu.concatenate %242, %249 in 0 : vector<1x256xf32>, vector<1x256xf32> -> vector<2x256xf32>
    %c0_74 = arith.constant 0 : index
    %c0_75 = arith.constant 0 : index
    %251 = vector.load %arg21[%c0_74, %c0_75] : memref<2x256xf32, #tpu.memory_space<vmem>>, vector<2x256xf32>
    tpu.vector_store %arg21[%c0_74, %c0_75], %250 {strides = array<i32>} : memref<2x256xf32, #tpu.memory_space<vmem>>, vector<2x256xf32>,
    return
  }
  func.func @transform_0(%arg0: i32) -> (i32, i32, i32) {
    %c0_i32 = arith.constant 0 : i32
    %c0_i32_0 = arith.constant 0 : i32
    %c0_i32_1 = arith.constant 0 : i32
    return %arg0, %c0_i32, %c0_i32_0 : i32, i32, i32
  }
  func.func @transform_1(%arg0: i32) -> (i32, i32, i32) {
    %c0_i32 = arith.constant 0 : i32
    %c0_i32_0 = arith.constant 0 : i32
    %c0_i32_1 = arith.constant 0 : i32
    return %arg0, %c0_i32, %c0_i32_0 : i32, i32, i32
  }
  func.func @transform_2(%arg0: i32) -> (i32, i32) {
    %c0_i32 = arith.constant 0 : i32
    %c0_i32_0 = arith.constant 0 : i32
    %c0_i32_1 = arith.constant 0 : i32
    return %c0_i32, %c0_i32_0 : i32, i32
  }
  func.func @transform_3(%arg0: i32) -> (i32, i32) {
    %c0_i32 = arith.constant 0 : i32
    %c0_i32_0 = arith.constant 0 : i32
    %c0_i32_1 = arith.constant 0 : i32
    return %c0_i32, %c0_i32_0 : i32, i32
  }
  func.func @transform_4(%arg0: i32) -> (i32, i32) {
    %c0_i32 = arith.constant 0 : i32
    %c0_i32_0 = arith.constant 0 : i32
    %c0_i32_1 = arith.constant 0 : i32
    return %c0_i32, %c0_i32_0 : i32, i32
  }
  func.func @transform_5(%arg0: i32) -> (i32, i32) {
    %c0_i32 = arith.constant 0 : i32
    %c0_i32_0 = arith.constant 0 : i32
    %c0_i32_1 = arith.constant 0 : i32
    return %c0_i32, %c0_i32_0 : i32, i32
  }
  func.func @transform_6(%arg0: i32) -> (i32, i32) {
    %c0_i32 = arith.constant 0 : i32
    %c0_i32_0 = arith.constant 0 : i32
    %c0_i32_1 = arith.constant 0 : i32
    return %c0_i32, %c0_i32_0 : i32, i32
  }
  func.func @transform_7(%arg0: i32) -> (i32, i32) {
    %c0_i32 = arith.constant 0 : i32
    %c0_i32_0 = arith.constant 0 : i32
    %c0_i32_1 = arith.constant 0 : i32
    return %c0_i32, %c0_i32_0 : i32, i32
  }
  func.func @transform_8(%arg0: i32) -> (i32, i32) {
    %c0_i32 = arith.constant 0 : i32
    %c0_i32_0 = arith.constant 0 : i32
    %c0_i32_1 = arith.constant 0 : i32
    return %c0_i32, %c0_i32_0 : i32, i32
  }
  func.func @transform_9(%arg0: i32) -> (i32, i32) {
    %c0_i32 = arith.constant 0 : i32
    %c0_i32_0 = arith.constant 0 : i32
    %c0_i32_1 = arith.constant 0 : i32
    return %c0_i32, %c0_i32_0 : i32, i32
  }
  func.func @transform_10(%arg0: i32) -> (i32, i32) {
    %c0_i32 = arith.constant 0 : i32
    %c0_i32_0 = arith.constant 0 : i32
    %c0_i32_1 = arith.constant 0 : i32
    return %c0_i32, %c0_i32_0 : i32, i32
  }
  func.func @transform_11(%arg0: i32) -> (i32, i32) {
    %c0_i32 = arith.constant 0 : i32
    %c0_i32_0 = arith.constant 0 : i32
    %c0_i32_1 = arith.constant 0 : i32
    return %c0_i32, %c0_i32_0 : i32, i32
  }
  func.func @transform_12(%arg0: i32) -> (i32, i32) {
    %c0_i32 = arith.constant 0 : i32
    %c0_i32_0 = arith.constant 0 : i32
    %c0_i32_1 = arith.constant 0 : i32
    return %c0_i32, %c0_i32_0 : i32, i32
  }
  func.func @transform_13(%arg0: i32) -> (i32, i32) {
    %c0_i32 = arith.constant 0 : i32
    %c0_i32_0 = arith.constant 0 : i32
    %c0_i32_1 = arith.constant 0 : i32
    return %c0_i32, %c0_i32_0 : i32, i32
  }
  func.func @transform_14(%arg0: i32) -> (i32, i32) {
    %c0_i32 = arith.constant 0 : i32
    %c0_i32_0 = arith.constant 0 : i32
    %c0_i32_1 = arith.constant 0 : i32
    return %c0_i32, %c0_i32_0 : i32, i32
  }
  func.func @transform_15(%arg0: i32) -> (i32, i32) {
    %c0_i32 = arith.constant 0 : i32
    %c0_i32_0 = arith.constant 0 : i32
    %c0_i32_1 = arith.constant 0 : i32
    return %c0_i32, %c0_i32_0 : i32, i32
  }
  func.func @transform_16(%arg0: i32) -> (i32, i32) {
    %c0_i32 = arith.constant 0 : i32
    %c0_i32_0 = arith.constant 0 : i32
    %c0_i32_1 = arith.constant 0 : i32
    return %c0_i32, %c0_i32_0 : i32, i32
  }
  func.func @transform_17(%arg0: i32) -> (i32, i32) {
    %c0_i32 = arith.constant 0 : i32
    %c0_i32_0 = arith.constant 0 : i32
    %c0_i32_1 = arith.constant 0 : i32
    return %c0_i32, %c0_i32_0 : i32, i32
  }
  func.func @transform_18(%arg0: i32) -> (i32, i32) {
    %c0_i32 = arith.constant 0 : i32
    %c0_i32_0 = arith.constant 0 : i32
    %c0_i32_1 = arith.constant 0 : i32
    return %c0_i32, %c0_i32_0 : i32, i32
  }
  func.func @transform_19(%arg0: i32) -> (i32, i32) {
    %c0_i32 = arith.constant 0 : i32
    %c0_i32_0 = arith.constant 0 : i32
    %c0_i32_1 = arith.constant 0 : i32
    return %c0_i32, %c0_i32_0 : i32, i32
  }
  func.func @transform_20(%arg0: i32) -> (i32, i32) {
    %c0_i32 = arith.constant 0 : i32
    %c0_i32_0 = arith.constant 0 : i32
    return %arg0, %c0_i32 : i32, i32
  }
}

module attributes {stable_mosaic.version = 11 : i64} {
  func.func @mlp_kernel(%arg0: i32, %arg1: memref<2x256xf32, #tpu.memory_space<vmem>>, %arg2: memref<256x1024xbf16, #tpu.memory_space<vmem>>, %arg3: memref<1x1024xf32, #tpu.memory_space<vmem>>, %arg4: memref<1024x1024xbf16, #tpu.memory_space<vmem>>, %arg5: memref<1x1024xf32, #tpu.memory_space<vmem>>, %arg6: memref<1024x512xbf16, #tpu.memory_space<vmem>>, %arg7: memref<1x512xf32, #tpu.memory_space<vmem>>, %arg8: memref<512x128xbf16, #tpu.memory_space<vmem>>, %arg9: memref<1x128xf32, #tpu.memory_space<vmem>>, %arg10: memref<2x128xf32, #tpu.memory_space<vmem>>) attributes {dimension_semantics = [#tpu.dimension_semantics<parallel>], iteration_bounds = array<i64: 1>, scalar_prefetch = 0 : i64, scratch_operands = 0 : i64, tpu.core_type = #tpu.core_type<tc>, window_params = [{transform_indices = @transform_0, window_bounds = array<i64: 2, 256>}, {pipeline_mode = #tpu.pipeline_mode<synchronous>, transform_indices = @transform_1, window_bounds = array<i64: 256, 1024>}, {pipeline_mode = #tpu.pipeline_mode<synchronous>, transform_indices = @transform_2, window_bounds = array<i64: 1, 1024>}, {pipeline_mode = #tpu.pipeline_mode<synchronous>, transform_indices = @transform_3, window_bounds = array<i64: 1024, 1024>}, {pipeline_mode = #tpu.pipeline_mode<synchronous>, transform_indices = @transform_4, window_bounds = array<i64: 1, 1024>}, {pipeline_mode = #tpu.pipeline_mode<synchronous>, transform_indices = @transform_5, window_bounds = array<i64: 1024, 512>}, {pipeline_mode = #tpu.pipeline_mode<synchronous>, transform_indices = @transform_6, window_bounds = array<i64: 1, 512>}, {pipeline_mode = #tpu.pipeline_mode<synchronous>, transform_indices = @transform_7, window_bounds = array<i64: 512, 128>}, {pipeline_mode = #tpu.pipeline_mode<synchronous>, transform_indices = @transform_8, window_bounds = array<i64: 1, 128>}, {transform_indices = @transform_9, window_bounds = array<i64: 2, 128>}]} {
    %c0 = arith.constant 0 : index
    %c0_0 = arith.constant 0 : index
    %0 = vector.load %arg1[%c0, %c0_0] : memref<2x256xf32, #tpu.memory_space<vmem>>, vector<2x256xf32>
    %1 = arith.truncf %0 : vector<2x256xf32> to vector<2x256xbf16>
    %c0_1 = arith.constant 0 : index
    %c0_2 = arith.constant 0 : index
    %2 = vector.load %arg2[%c0_1, %c0_2] : memref<256x1024xbf16, #tpu.memory_space<vmem>>, vector<256x1024xbf16>
    %cst = arith.constant dense<0.000000e+00> : vector<2x1024xf32>
    %3 = tpu.matmul %1, %2, %cst {dimension_numbers = #tpu.dot_dimension_numbers<[1], [0], [0], [1], [0, 0, 1, 1], [], []>} : vector<2x256xbf16>, vector<256x1024xbf16>, vector<2x1024xf32> -> vector<2x1024xf32>
    %c0_3 = arith.constant 0 : index
    %c0_4 = arith.constant 0 : index
    %4 = vector.load %arg3[%c0_3, %c0_4] : memref<1x1024xf32, #tpu.memory_space<vmem>>, vector<1x1024xf32>
    %5 = vector.broadcast %4 : vector<1x1024xf32> to vector<2x1024xf32>
    %6 = arith.addf %3, %5 : vector<2x1024xf32>
    %cst_5 = arith.constant 0.000000e+00 : f32
    %7 = vector.broadcast %cst_5 : f32 to vector<2x1024xf32>
    %8 = arith.cmpf ogt, %6, %7 : vector<2x1024xf32>
    %cst_6 = arith.constant 0.00999999977 : f32
    %9 = vector.broadcast %cst_6 : f32 to vector<2x1024xf32>
    %10 = arith.mulf %9, %6 : vector<2x1024xf32>
    %11 = arith.select %8, %6, %10 : vector<2x1024xi1>, vector<2x1024xf32>
    %12 = arith.truncf %11 : vector<2x1024xf32> to vector<2x1024xbf16>
    %c0_7 = arith.constant 0 : index
    %c0_8 = arith.constant 0 : index
    %13 = vector.load %arg4[%c0_7, %c0_8] : memref<1024x1024xbf16, #tpu.memory_space<vmem>>, vector<1024x1024xbf16>
    %cst_9 = arith.constant dense<0.000000e+00> : vector<2x1024xf32>
    %14 = tpu.matmul %12, %13, %cst_9 {dimension_numbers = #tpu.dot_dimension_numbers<[1], [0], [0], [1], [0, 0, 1, 1], [], []>} : vector<2x1024xbf16>, vector<1024x1024xbf16>, vector<2x1024xf32> -> vector<2x1024xf32>
    %c0_10 = arith.constant 0 : index
    %c0_11 = arith.constant 0 : index
    %15 = vector.load %arg5[%c0_10, %c0_11] : memref<1x1024xf32, #tpu.memory_space<vmem>>, vector<1x1024xf32>
    %16 = vector.broadcast %15 : vector<1x1024xf32> to vector<2x1024xf32>
    %17 = arith.addf %14, %16 : vector<2x1024xf32>
    %cst_12 = arith.constant 0.000000e+00 : f32
    %18 = vector.broadcast %cst_12 : f32 to vector<2x1024xf32>
    %19 = arith.cmpf ogt, %17, %18 : vector<2x1024xf32>
    %cst_13 = arith.constant 0.00999999977 : f32
    %20 = vector.broadcast %cst_13 : f32 to vector<2x1024xf32>
    %21 = arith.mulf %20, %17 : vector<2x1024xf32>
    %22 = arith.select %19, %17, %21 : vector<2x1024xi1>, vector<2x1024xf32>
    %23 = arith.truncf %22 : vector<2x1024xf32> to vector<2x1024xbf16>
    %c0_14 = arith.constant 0 : index
    %c0_15 = arith.constant 0 : index
    %24 = vector.load %arg6[%c0_14, %c0_15] : memref<1024x512xbf16, #tpu.memory_space<vmem>>, vector<1024x512xbf16>
    %cst_16 = arith.constant dense<0.000000e+00> : vector<2x512xf32>
    %25 = tpu.matmul %23, %24, %cst_16 {dimension_numbers = #tpu.dot_dimension_numbers<[1], [0], [0], [1], [0, 0, 1, 1], [], []>} : vector<2x1024xbf16>, vector<1024x512xbf16>, vector<2x512xf32> -> vector<2x512xf32>
    %c0_17 = arith.constant 0 : index
    %c0_18 = arith.constant 0 : index
    %26 = vector.load %arg7[%c0_17, %c0_18] : memref<1x512xf32, #tpu.memory_space<vmem>>, vector<1x512xf32>
    %27 = vector.broadcast %26 : vector<1x512xf32> to vector<2x512xf32>
    %28 = arith.addf %25, %27 : vector<2x512xf32>
    %cst_19 = arith.constant 0.000000e+00 : f32
    %29 = vector.broadcast %cst_19 : f32 to vector<2x512xf32>
    %30 = arith.cmpf ogt, %28, %29 : vector<2x512xf32>
    %cst_20 = arith.constant 0.00999999977 : f32
    %31 = vector.broadcast %cst_20 : f32 to vector<2x512xf32>
    %32 = arith.mulf %31, %28 : vector<2x512xf32>
    %33 = arith.select %30, %28, %32 : vector<2x512xi1>, vector<2x512xf32>
    %34 = arith.truncf %33 : vector<2x512xf32> to vector<2x512xbf16>
    %c0_21 = arith.constant 0 : index
    %c0_22 = arith.constant 0 : index
    %35 = vector.load %arg8[%c0_21, %c0_22] : memref<512x128xbf16, #tpu.memory_space<vmem>>, vector<512x128xbf16>
    %cst_23 = arith.constant dense<0.000000e+00> : vector<2x128xf32>
    %36 = tpu.matmul %34, %35, %cst_23 {dimension_numbers = #tpu.dot_dimension_numbers<[1], [0], [0], [1], [0, 0, 1, 1], [], []>} : vector<2x512xbf16>, vector<512x128xbf16>, vector<2x128xf32> -> vector<2x128xf32>
    %c0_24 = arith.constant 0 : index
    %c0_25 = arith.constant 0 : index
    %37 = vector.load %arg9[%c0_24, %c0_25] : memref<1x128xf32, #tpu.memory_space<vmem>>, vector<1x128xf32>
    %38 = vector.broadcast %37 : vector<1x128xf32> to vector<2x128xf32>
    %39 = arith.addf %36, %38 : vector<2x128xf32>
    %c0_26 = arith.constant 0 : index
    %c0_27 = arith.constant 0 : index
    %40 = vector.load %arg10[%c0_26, %c0_27] : memref<2x128xf32, #tpu.memory_space<vmem>>, vector<2x128xf32>
    tpu.vector_store %arg10[%c0_26, %c0_27], %39 {strides = array<i32>} : memref<2x128xf32, #tpu.memory_space<vmem>>, vector<2x128xf32>,
    return
  }
  func.func @transform_0(%arg0: i32) -> (i32, i32) {
    %c0_i32 = arith.constant 0 : i32
    %c0_i32_0 = arith.constant 0 : i32
    return %arg0, %c0_i32 : i32, i32
  }
  func.func @transform_1(%arg0: i32) -> (i32, i32) {
    %c0_i32 = arith.constant 0 : i32
    %c0_i32_0 = arith.constant 0 : i32
    %c0_i32_1 = arith.constant 0 : i32
    return %c0_i32, %c0_i32_0 : i32, i32
  }
  func.func @transform_2(%arg0: i32) -> (i32, i32) {
    %c0_i32 = arith.constant 0 : i32
    %c0_i32_0 = arith.constant 0 : i32
    %c0_i32_1 = arith.constant 0 : i32
    return %c0_i32, %c0_i32_0 : i32, i32
  }
  func.func @transform_3(%arg0: i32) -> (i32, i32) {
    %c0_i32 = arith.constant 0 : i32
    %c0_i32_0 = arith.constant 0 : i32
    %c0_i32_1 = arith.constant 0 : i32
    return %c0_i32, %c0_i32_0 : i32, i32
  }
  func.func @transform_4(%arg0: i32) -> (i32, i32) {
    %c0_i32 = arith.constant 0 : i32
    %c0_i32_0 = arith.constant 0 : i32
    %c0_i32_1 = arith.constant 0 : i32
    return %c0_i32, %c0_i32_0 : i32, i32
  }
  func.func @transform_5(%arg0: i32) -> (i32, i32) {
    %c0_i32 = arith.constant 0 : i32
    %c0_i32_0 = arith.constant 0 : i32
    %c0_i32_1 = arith.constant 0 : i32
    return %c0_i32, %c0_i32_0 : i32, i32
  }
  func.func @transform_6(%arg0: i32) -> (i32, i32) {
    %c0_i32 = arith.constant 0 : i32
    %c0_i32_0 = arith.constant 0 : i32
    %c0_i32_1 = arith.constant 0 : i32
    return %c0_i32, %c0_i32_0 : i32, i32
  }
  func.func @transform_7(%arg0: i32) -> (i32, i32) {
    %c0_i32 = arith.constant 0 : i32
    %c0_i32_0 = arith.constant 0 : i32
    %c0_i32_1 = arith.constant 0 : i32
    return %c0_i32, %c0_i32_0 : i32, i32
  }
  func.func @transform_8(%arg0: i32) -> (i32, i32) {
    %c0_i32 = arith.constant 0 : i32
    %c0_i32_0 = arith.constant 0 : i32
    %c0_i32_1 = arith.constant 0 : i32
    return %c0_i32, %c0_i32_0 : i32, i32
  }
  func.func @transform_9(%arg0: i32) -> (i32, i32) {
    %c0_i32 = arith.constant 0 : i32
    %c0_i32_0 = arith.constant 0 : i32
    return %arg0, %c0_i32 : i32, i32
  }
}

</mosaic_0001>

<llo_original>
// kernel: attention_dti_forward.2
$region0: #{attention_dti_forward.2}
  #allocation0 [shape = 'u32[]', space=smem, size = 0x4, offset = 0x4, fixed_abs, tag = 'smem constant byte address 0x4 - core index']
  #allocation1 [shape = 'u32[72,128]{1,0:T(1,128)}', space=vmem, size = 0x9000, scoped, tag = 'internal scratch']
  %s0 = inlined_call_operand.vmem [shape: f32[2,32,32], index: 0, kind: input, shape index: {}]
  %s1 = inlined_call_operand.vmem [shape: f32[2,64,32], index: 1, kind: input, shape index: {}]
  %s2 = inlined_call_operand.vmem [shape: bf16[128,32], index: 2, kind: input, shape index: {}]
  %s3 = inlined_call_operand.vmem [shape: f32[1,32], index: 3, kind: input, shape index: {}]
  %s4 = inlined_call_operand.vmem [shape: bf16[192,64], index: 4, kind: input, shape index: {}]
  %s5 = inlined_call_operand.vmem [shape: f32[1,64], index: 5, kind: input, shape index: {}]
  %s6 = inlined_call_operand.vmem [shape: bf16[512,128], index: 6, kind: input, shape index: {}]
  %s7 = inlined_call_operand.vmem [shape: f32[1,128], index: 7, kind: input, shape index: {}]
  %s8 = inlined_call_operand.vmem [shape: bf16[128,32], index: 8, kind: input, shape index: {}]
  %s9 = inlined_call_operand.vmem [shape: f32[1,32], index: 9, kind: input, shape index: {}]
  %s10 = inlined_call_operand.vmem [shape: bf16[256,64], index: 10, kind: input, shape index: {}]
  %s11 = inlined_call_operand.vmem [shape: f32[1,64], index: 11, kind: input, shape index: {}]
  %s12 = inlined_call_operand.vmem [shape: bf16[768,128], index: 12, kind: input, shape index: {}]
  %s13 = inlined_call_operand.vmem [shape: f32[1,128], index: 13, kind: input, shape index: {}]
  %s14 = inlined_call_operand.vmem [shape: bf16[128,128], index: 14, kind: input, shape index: {}]
  %s15 = inlined_call_operand.vmem [shape: f32[1,128], index: 15, kind: input, shape index: {}]
  %s16 = inlined_call_operand.vmem [shape: bf16[128,128], index: 16, kind: input, shape index: {}]
  %s17 = inlined_call_operand.vmem [shape: f32[1,128], index: 17, kind: input, shape index: {}]
  %s18 = inlined_call_operand.vmem [shape: bf16[128,128], index: 18, kind: input, shape index: {}]
  %s19 = inlined_call_operand.vmem [shape: f32[1,128], index: 19, kind: input, shape index: {}]
  %s20 = inlined_call_operand.vmem [shape: f32[2,256], index: 20, kind: output, shape index: {}]
  %s21 = sld [smem:[#allocation0]]
  $region90: #{attention_dti_forward.2} parent=0
    _
  %s23 = ssub.s32 1, %s21
  %s24 = scalar_select 0, %s23, %s21
  // Predicated region
  $region2: #{attention_dti_forward.2} parent=0 // pred_check
    _
  $region3: #{attention_dti_forward.2} parent=0 // pred_check_branch
    %26 = sbr.rel (0) target = $region5
  $region4: #{attention_dti_forward.2} parent=0 // pred_region
    _
  $region5: #{attention_dti_forward.2} parent=0 // pred_fallthru
    _
  // Predicated region
  $region6: #{attention_dti_forward.2} parent=0 // pred_check
    _
  $region7: #{attention_dti_forward.2} parent=0 // pred_check_branch
    %28 = sbr.rel (0) target = $region9
  $region8: #{attention_dti_forward.2} parent=0 // pred_region
    _
  $region9: #{attention_dti_forward.2} parent=0 // pred_fallthru
    _
  // Predicated region
  $region10: #{attention_dti_forward.2} parent=0 // pred_check
    _
  $region11: #{attention_dti_forward.2} parent=0 // pred_check_branch
    %30 = sbr.rel (0) target = $region13
  $region12: #{attention_dti_forward.2} parent=0 // pred_region
    _
  $region13: #{attention_dti_forward.2} parent=0 // pred_fallthru
    _
  // Predicated region
  $region14: #{attention_dti_forward.2} parent=0 // pred_check
    _
  $region15: #{attention_dti_forward.2} parent=0 // pred_check_branch
    %32 = sbr.rel (0) target = $region17
  $region16: #{attention_dti_forward.2} parent=0 // pred_region
    _
  $region17: #{attention_dti_forward.2} parent=0 // pred_fallthru
    _
  // Predicated region
  $region18: #{attention_dti_forward.2} parent=0 // pred_check
    _
  $region19: #{attention_dti_forward.2} parent=0 // pred_check_branch
    %34 = sbr.rel (0) target = $region21
  $region20: #{attention_dti_forward.2} parent=0 // pred_region
    _
  $region21: #{attention_dti_forward.2} parent=0 // pred_fallthru
    _
  // Predicated region
  $region22: #{attention_dti_forward.2} parent=0 // pred_check
    _
  $region23: #{attention_dti_forward.2} parent=0 // pred_check_branch
    %36 = sbr.rel (0) target = $region25
  $region24: #{attention_dti_forward.2} parent=0 // pred_region
    _
  $region25: #{attention_dti_forward.2} parent=0 // pred_fallthru
    _
  // Predicated region
  $region26: #{attention_dti_forward.2} parent=0 // pred_check
    _
  $region27: #{attention_dti_forward.2} parent=0 // pred_check_branch
    %38 = sbr.rel (0) target = $region29
  $region28: #{attention_dti_forward.2} parent=0 // pred_region
    _
  $region29: #{attention_dti_forward.2} parent=0 // pred_fallthru
    _
  // Predicated region
  $region30: #{attention_dti_forward.2} parent=0 // pred_check
    _
  $region31: #{attention_dti_forward.2} parent=0 // pred_check_branch
    %40 = sbr.rel (0) target = $region33
  $region32: #{attention_dti_forward.2} parent=0 // pred_region
    _
  $region33: #{attention_dti_forward.2} parent=0 // pred_fallthru
    _
  // Predicated region
  $region34: #{attention_dti_forward.2} parent=0 // pred_check
    _
  $region35: #{attention_dti_forward.2} parent=0 // pred_check_branch
    %42 = sbr.rel (0) target = $region37
  $region36: #{attention_dti_forward.2} parent=0 // pred_region
    _
  $region37: #{attention_dti_forward.2} parent=0 // pred_fallthru
    _
  // Predicated region
  $region38: #{attention_dti_forward.2} parent=0 // pred_check
    _
  $region39: #{attention_dti_forward.2} parent=0 // pred_check_branch
    %44 = sbr.rel (0) target = $region41
  $region40: #{attention_dti_forward.2} parent=0 // pred_region
    _
  $region41: #{attention_dti_forward.2} parent=0 // pred_fallthru
    _
  // Predicated region
  $region42: #{attention_dti_forward.2} parent=0 // pred_check
    _
  $region43: #{attention_dti_forward.2} parent=0 // pred_check_branch
    %46 = sbr.rel (0) target = $region45
  $region44: #{attention_dti_forward.2} parent=0 // pred_region
    _
  $region45: #{attention_dti_forward.2} parent=0 // pred_fallthru
    _
  // Predicated region
  $region46: #{attention_dti_forward.2} parent=0 // pred_check
    _
  $region47: #{attention_dti_forward.2} parent=0 // pred_check_branch
    %48 = sbr.rel (0) target = $region49
  $region48: #{attention_dti_forward.2} parent=0 // pred_region
    _
  $region49: #{attention_dti_forward.2} parent=0 // pred_fallthru
    _
  // Predicated region
  $region50: #{attention_dti_forward.2} parent=0 // pred_check
    _
  $region51: #{attention_dti_forward.2} parent=0 // pred_check_branch
    %50 = sbr.rel (0) target = $region53
  $region52: #{attention_dti_forward.2} parent=0 // pred_region
    _
  $region53: #{attention_dti_forward.2} parent=0 // pred_fallthru
    _
  // Predicated region
  $region54: #{attention_dti_forward.2} parent=0 // pred_check
    _
  $region55: #{attention_dti_forward.2} parent=0 // pred_check_branch
    %52 = sbr.rel (0) target = $region57
  $region56: #{attention_dti_forward.2} parent=0 // pred_region
    _
  $region57: #{attention_dti_forward.2} parent=0 // pred_fallthru
    _
  // Predicated region
  $region58: #{attention_dti_forward.2} parent=0 // pred_check
    _
  $region59: #{attention_dti_forward.2} parent=0 // pred_check_branch
    %54 = sbr.rel (0) target = $region61
  $region60: #{attention_dti_forward.2} parent=0 // pred_region
    _
  $region61: #{attention_dti_forward.2} parent=0 // pred_fallthru
    _
  // Predicated region
  $region62: #{attention_dti_forward.2} parent=0 // pred_check
    _
  $region63: #{attention_dti_forward.2} parent=0 // pred_check_branch
    %56 = sbr.rel (0) target = $region65
  $region64: #{attention_dti_forward.2} parent=0 // pred_region
    _
  $region65: #{attention_dti_forward.2} parent=0 // pred_fallthru
    _
  // Predicated region
  $region66: #{attention_dti_forward.2} parent=0 // pred_check
    _
  $region67: #{attention_dti_forward.2} parent=0 // pred_check_branch
    %58 = sbr.rel (0) target = $region69
  $region68: #{attention_dti_forward.2} parent=0 // pred_region
    _
  $region69: #{attention_dti_forward.2} parent=0 // pred_fallthru
    _
  // Predicated region
  $region70: #{attention_dti_forward.2} parent=0 // pred_check
    _
  $region71: #{attention_dti_forward.2} parent=0 // pred_check_branch
    %60 = sbr.rel (0) target = $region73
  $region72: #{attention_dti_forward.2} parent=0 // pred_region
    _
  $region73: #{attention_dti_forward.2} parent=0 // pred_fallthru
    _
  // Predicated region
  $region74: #{attention_dti_forward.2} parent=0 // pred_check
    _
  $region75: #{attention_dti_forward.2} parent=0 // pred_check_branch
    %62 = sbr.rel (0) target = $region77
  $region76: #{attention_dti_forward.2} parent=0 // pred_region
    _
  $region77: #{attention_dti_forward.2} parent=0 // pred_fallthru
    _
  // Predicated region
  $region78: #{attention_dti_forward.2} parent=0 // pred_check
    _
  $region79: #{attention_dti_forward.2} parent=0 // pred_check_branch
    %64 = sbr.rel (0) target = $region81
  $region80: #{attention_dti_forward.2} parent=0 // pred_region
    _
  $region81: #{attention_dti_forward.2} parent=0 // pred_fallthru
    _
  %v66 = vld [vmem:[%s0] sm:$0xff]
  %v67 = vld [vmem:[%s0 + $0x8] sm:$0xff]
  %v68 = vld [vmem:[%s0 + $0x10] sm:$0xff]
  %v69 = vld [vmem:[%s0 + $0x18] sm:$0xff]
  %v70 = vld [vmem:[%s0 + $0x20] sm:$0xff]
  %v71 = vld [vmem:[%s0 + $0x28] sm:$0xff]
  %v72 = vld [vmem:[%s0 + $0x30] sm:$0xff]
  %v73 = vld [vmem:[%s0 + $0x38] sm:$0xff]
  %v74 = vld [vmem:[%s1] sm:$0xff]
  %v75 = vld [vmem:[%s1 + $0x8] sm:$0xff]
  %v76 = vld [vmem:[%s1 + $0x10] sm:$0xff]
  %v77 = vld [vmem:[%s1 + $0x18] sm:$0xff]
  %v78 = vld [vmem:[%s1 + $0x20] sm:$0xff]
  %v79 = vld [vmem:[%s1 + $0x28] sm:$0xff]
  %v80 = vld [vmem:[%s1 + $0x30] sm:$0xff]
  %v81 = vld [vmem:[%s1 + $0x38] sm:$0xff]
  %v82 = vld [vmem:[%s1 + $0x40] sm:$0xff]
  %v83 = vld [vmem:[%s1 + $0x48] sm:$0xff]
  %v84 = vld [vmem:[%s1 + $0x50] sm:$0xff]
  %v85 = vld [vmem:[%s1 + $0x58] sm:$0xff]
  %v86 = vld [vmem:[%s1 + $0x60] sm:$0xff]
  %v87 = vld [vmem:[%s1 + $0x68] sm:$0xff]
  %v88 = vld [vmem:[%s1 + $0x70] sm:$0xff]
  %v89 = vld [vmem:[%s1 + $0x78] sm:$0xff]
  %vm94 = vcmask 1046528
  %v95 = vrot.slane %v66, 1
  %v96 = vrot.slane %v67, 1
  %v97 = vsel %vm94, %v95, %v96
  %v98 = vrot.slane %v68, 1
  %v99 = vsel %vm94, %v96, %v98
  %v100 = vrot.slane %v69, 1
  %v101 = vsel %vm94, %v98, %v100
  %102 = vrot.lane.b32.xlu0 %v97, 32
  %v103 = vpop.permute.xlu0 %102
  %104 = vrot.lane.b32.xlu0 %v99, 32
  %v105 = vpop.permute.xlu0 %104
  %106 = vrot.lane.b32.xlu0 %v101, 32
  %v107 = vpop.permute.xlu0 %106
  %108 = vrot.lane.b32.xlu0 %v100, 32
  %v109 = vpop.permute.xlu0 %108
  %vm114 = vcmask 1045504
  %v115 = vrot.slane %v66, 2
  %v116 = vrot.slane %v67, 2
  %v117 = vsel %vm114, %v115, %v116
  %v118 = vrot.slane %v68, 2
  %v119 = vsel %vm114, %v116, %v118
  %v120 = vrot.slane %v69, 2
  %v121 = vsel %vm114, %v118, %v120
  %122 = vrot.lane.b32.xlu0 %v117, 64
  %v123 = vpop.permute.xlu0 %122
  %124 = vrot.lane.b32.xlu0 %v119, 64
  %v125 = vpop.permute.xlu0 %124
  %126 = vrot.lane.b32.xlu0 %v121, 64
  %v127 = vpop.permute.xlu0 %126
  %128 = vrot.lane.b32.xlu0 %v120, 64
  %v129 = vpop.permute.xlu0 %128
  %vm134 = vcmask 1044480
  %v135 = vrot.slane %v66, 3
  %v136 = vrot.slane %v67, 3
  %v137 = vsel %vm134, %v135, %v136
  %v138 = vrot.slane %v68, 3
  %v139 = vsel %vm134, %v136, %v138
  %v140 = vrot.slane %v69, 3
  %v141 = vsel %vm134, %v138, %v140
  %142 = vrot.lane.b32.xlu0 %v137, 96
  %v143 = vpop.permute.xlu0 %142
  %144 = vrot.lane.b32.xlu0 %v139, 96
  %v145 = vpop.permute.xlu0 %144
  %146 = vrot.lane.b32.xlu0 %v141, 96
  %v147 = vpop.permute.xlu0 %146
  %148 = vrot.lane.b32.xlu0 %v140, 96
  %v149 = vpop.permute.xlu0 %148
  %vm154 = vcmask 261120
  %v155 = vsel %vm154, %v66, %v103
  %v156 = vsel %vm154, %v67, %v105
  %v157 = vsel %vm154, %v68, %v107
  %v158 = vsel %vm154, %v69, %v109
  %vm159 = vcmask 523264
  %v160 = vsel %vm159, %v155, %v123
  %v161 = vsel %vm159, %v156, %v125
  %v162 = vsel %vm159, %v157, %v127
  %v163 = vsel %vm159, %v158, %v129
  %vm164 = vcmask 785408
  %v165 = vsel %vm164, %v160, %v143
  %v166 = vsel %vm164, %v161, %v145
  %v167 = vsel %vm164, %v162, %v147
  %v168 = vsel %vm164, %v163, %v149
  %v173 = vrot.slane %v70, 1
  %v174 = vrot.slane %v71, 1
  %v175 = vsel %vm94, %v173, %v174
  %v176 = vrot.slane %v72, 1
  %v177 = vsel %vm94, %v174, %v176
  %v178 = vrot.slane %v73, 1
  %v179 = vsel %vm94, %v176, %v178
  %180 = vrot.lane.b32.xlu0 %v175, 32
  %v181 = vpop.permute.xlu0 %180
  %182 = vrot.lane.b32.xlu0 %v177, 32
  %v183 = vpop.permute.xlu0 %182
  %184 = vrot.lane.b32.xlu0 %v179, 32
  %v185 = vpop.permute.xlu0 %184
  %186 = vrot.lane.b32.xlu0 %v178, 32
  %v187 = vpop.permute.xlu0 %186
  %v192 = vrot.slane %v70, 2
  %v193 = vrot.slane %v71, 2
  %v194 = vsel %vm114, %v192, %v193
  %v195 = vrot.slane %v72, 2
  %v196 = vsel %vm114, %v193, %v195
  %v197 = vrot.slane %v73, 2
  %v198 = vsel %vm114, %v195, %v197
  %199 = vrot.lane.b32.xlu0 %v194, 64
  %v200 = vpop.permute.xlu0 %199
  %201 = vrot.lane.b32.xlu0 %v196, 64
  %v202 = vpop.permute.xlu0 %201
  %203 = vrot.lane.b32.xlu0 %v198, 64
  %v204 = vpop.permute.xlu0 %203
  %205 = vrot.lane.b32.xlu0 %v197, 64
  %v206 = vpop.permute.xlu0 %205
  %v211 = vrot.slane %v70, 3
  %v212 = vrot.slane %v71, 3
  %v213 = vsel %vm134, %v211, %v212
  %v214 = vrot.slane %v72, 3
  %v215 = vsel %vm134, %v212, %v214
  %v216 = vrot.slane %v73, 3
  %v217 = vsel %vm134, %v214, %v216
  %218 = vrot.lane.b32.xlu0 %v213, 96
  %v219 = vpop.permute.xlu0 %218
  %220 = vrot.lane.b32.xlu0 %v215, 96
  %v221 = vpop.permute.xlu0 %220
  %222 = vrot.lane.b32.xlu0 %v217, 96
  %v223 = vpop.permute.xlu0 %222
  %224 = vrot.lane.b32.xlu0 %v216, 96
  %v225 = vpop.permute.xlu0 %224
  %v230 = vsel %vm154, %v70, %v181
  %v231 = vsel %vm154, %v71, %v183
  %v232 = vsel %vm154, %v72, %v185
  %v233 = vsel %vm154, %v73, %v187
  %v234 = vsel %vm159, %v230, %v200
  %v235 = vsel %vm159, %v231, %v202
  %v236 = vsel %vm159, %v232, %v204
  %v237 = vsel %vm159, %v233, %v206
  %v238 = vsel %vm164, %v234, %v219
  %v239 = vsel %vm164, %v235, %v221
  %v240 = vsel %vm164, %v236, %v223
  %v241 = vsel %vm164, %v237, %v225
  %v246 = vrot.slane %v238, 3
  %v247 = vrot.slane %v239, 3
  %v248 = vsel %vm134, %v246, %v247
  %v249 = vrot.slane %v240, 3
  %v250 = vsel %vm134, %v247, %v249
  %v251 = vrot.slane %v241, 3
  %v252 = vsel %vm134, %v249, %v251
  %v258 = vsel %vm134, %v168, %v246
  %v259 = vpack.c.bf16 %v166, %v165
  %v260 = vpack.c.bf16 %v258, %v167
  %v261 = vpack.c.bf16 %v250, %v248
  %v262 = vpack.c.bf16 %v251, %v252
  %v263 = vld [vmem:[%s2] sm:$0xf]
  %v264 = vld [vmem:[%s2 + $0x4] sm:$0xf]
  %v265 = vld [vmem:[%s2 + $0x8] sm:$0xf]
  %v266 = vld [vmem:[%s2 + $0xc] sm:$0xf]
  %v267 = vld [vmem:[%s2 + $0x10] sm:$0xf]
  %v268 = vld [vmem:[%s2 + $0x14] sm:$0xf]
  %v269 = vld [vmem:[%s2 + $0x18] sm:$0xf]
  %v270 = vld [vmem:[%s2 + $0x1c] sm:$0xf]
  %v271 = vld [vmem:[%s2 + $0x20] sm:$0xf]
  %v272 = vld [vmem:[%s2 + $0x24] sm:$0xf]
  %v273 = vld [vmem:[%s2 + $0x28] sm:$0xf]
  %v274 = vld [vmem:[%s2 + $0x2c] sm:$0xf]
  %v275 = vld [vmem:[%s2 + $0x30] sm:$0xf]
  %v276 = vld [vmem:[%s2 + $0x34] sm:$0xf]
  %v277 = vld [vmem:[%s2 + $0x38] sm:$0xf]
  %v278 = vld [vmem:[%s2 + $0x3c] sm:$0xf]
  %v279 = vld [vmem:[%s3] sm:$0x1]
  %v281 = vperm.slane %v279, 0
  %v299 = vunpack.c.l.b16 %v263
  %v300 = vunpack.c.l.b16 %v264
  %v301 = vunpack.c.l.b16 %v265
  %v302 = vunpack.c.l.b16 %v266
  %v303 = vunpack.c.l.b16 %v267
  %v304 = vunpack.c.l.b16 %v268
  %v305 = vunpack.c.l.b16 %v269
  %v306 = vunpack.c.l.b16 %v270
  %v307 = vunpack.c.l.b16 %v271
  %v308 = vunpack.c.l.b16 %v272
  %v309 = vunpack.c.l.b16 %v273
  %v310 = vunpack.c.l.b16 %v274
  %v311 = vunpack.c.l.b16 %v275
  %v312 = vunpack.c.l.b16 %v276
  %v313 = vunpack.c.l.b16 %v277
  %v314 = vunpack.c.l.b16 %v278
  %v315 = vpack.c.b16 %v300, %v299
  %v316 = vpack.c.b16 %v302, %v301
  %v317 = vpack.c.b16 %v304, %v303
  %v318 = vpack.c.b16 %v306, %v305
  %v319 = vpack.c.b16 %v308, %v307
  %v320 = vpack.c.b16 %v310, %v309
  %v321 = vpack.c.b16 %v312, %v311
  %v322 = vpack.c.b16 %v314, %v313
  %331 = vmatpush.bf16.msra.mxu0 %v322
  %332 = vmatpush.bf16.msra.mxu0 %v321
  %333 = vmatpush.bf16.msra.mxu0 %v320
  %334 = vmatpush.bf16.msra.mxu0 %v319
  %335 = vmatpush.bf16.msra.mxu0 %v318
  %336 = vmatpush.bf16.msra.mxu0 %v317
  %337 = vmatpush.bf16.msra.mxu0 %v316
  %338 = vmatpush.bf16.msra.mxu0 %v315
  %339 = vmatmul.bf16.gmra.mxu0 %v259
  %v340 = vpop.f32.mrf.mxu0
  %v341 = vadd.f32 %v281, %v340
  %v342 = vpop.f32.mrf.mxu0
  %v343 = vadd.f32 %v281, %v342
  %344 = vmatmul.bf16.gmra.mxu0 %v260
  %v345 = vpop.f32.mrf.mxu0
  %v346 = vadd.f32 %v281, %v345
  %v347 = vpop.f32.mrf.mxu0
  %v348 = vadd.f32 %v281, %v347
  %349 = vmatmul.bf16.gmra.mxu0 %v261
  %v350 = vpop.f32.mrf.mxu0
  %v351 = vadd.f32 %v281, %v350
  %v352 = vpop.f32.mrf.mxu0
  %v353 = vadd.f32 %v281, %v352
  %354 = vmatmul.bf16.gmra.mxu0 %v262
  %v355 = vpop.f32.mrf.mxu0
  %v356 = vadd.f32 %v281, %v355
  %v357 = vpop.f32.mrf.mxu0
  %v358 = vadd.f32 %v281, %v357
  %359 = vdwg.mxu0
  %v360 = vmax.f32 %v341, 0.0
  %v361 = vmax.f32 %v343, 0.0
  %v362 = vmax.f32 %v346, 0.0
  %v363 = vmax.f32 %v348, 0.0
  %v364 = vmax.f32 %v351, 0.0
  %v365 = vmax.f32 %v353, 0.0
  %v366 = vmax.f32 %v356, 0.0
  %v367 = vmax.f32 %v358, 0.0
  %v372 = vrot.slane %v360, 1
  %v373 = vrot.slane %v361, 1
  %v374 = vsel %vm94, %v372, %v373
  %v375 = vrot.slane %v362, 1
  %v376 = vsel %vm94, %v373, %v375
  %v377 = vrot.slane %v363, 1
  %v378 = vsel %vm94, %v375, %v377
  %379 = vrot.lane.b32.xlu0 %v374, 32
  %v380 = vpop.permute.xlu0 %379
  %381 = vrot.lane.b32.xlu0 %v376, 32
  %v382 = vpop.permute.xlu0 %381
  %383 = vrot.lane.b32.xlu0 %v378, 32
  %v384 = vpop.permute.xlu0 %383
  %v388 = vrot.slane %v360, 2
  %v389 = vrot.slane %v361, 2
  %v390 = vsel %vm114, %v388, %v389
  %v391 = vrot.slane %v362, 2
  %v392 = vsel %vm114, %v389, %v391
  %v393 = vrot.slane %v363, 2
  %v394 = vsel %vm114, %v391, %v393
  %395 = vrot.lane.b32.xlu0 %v390, 64
  %v396 = vpop.permute.xlu0 %395
  %397 = vrot.lane.b32.xlu0 %v392, 64
  %v398 = vpop.permute.xlu0 %397
  %399 = vrot.lane.b32.xlu0 %v394, 64
  %v400 = vpop.permute.xlu0 %399
  %v404 = vrot.slane %v360, 3
  %v405 = vrot.slane %v361, 3
  %v406 = vsel %vm134, %v404, %v405
  %v407 = vrot.slane %v362, 3
  %v408 = vsel %vm134, %v405, %v407
  %v409 = vrot.slane %v363, 3
  %v410 = vsel %vm134, %v407, %v409
  %411 = vrot.lane.b32.xlu0 %v406, 96
  %v412 = vpop.permute.xlu0 %411
  %413 = vrot.lane.b32.xlu0 %v408, 96
  %v414 = vpop.permute.xlu0 %413
  %415 = vrot.lane.b32.xlu0 %v410, 96
  %v416 = vpop.permute.xlu0 %415
  %vm420 = vcmask 1043456
  %v421 = vrot.slane %v360, 4
  %v422 = vrot.slane %v361, 4
  %v423 = vsel %vm420, %v421, %v422
  %v424 = vrot.slane %v362, 4
  %v425 = vsel %vm420, %v422, %v424
  %v426 = vrot.slane %v363, 4
  %v427 = vsel %vm420, %v424, %v426
  %vm431 = vcmask 1042432
  %v432 = vrot.slane %v360, 5
  %v433 = vrot.slane %v361, 5
  %v434 = vsel %vm431, %v432, %v433
  %v435 = vrot.slane %v362, 5
  %v436 = vsel %vm431, %v433, %v435
  %v437 = vrot.slane %v363, 5
  %v438 = vsel %vm431, %v435, %v437
  %439 = vrot.lane.b32.xlu0 %v434, 32
  %v440 = vpop.permute.xlu0 %439
  %441 = vrot.lane.b32.xlu0 %v436, 32
  %v442 = vpop.permute.xlu0 %441
  %443 = vrot.lane.b32.xlu0 %v438, 32
  %v444 = vpop.permute.xlu0 %443
  %v448 = vsel %vm154, %v360, %v380
  %v449 = vsel %vm154, %v361, %v382
  %v450 = vsel %vm154, %v362, %v384
  %v451 = vsel %vm159, %v448, %v396
  %v452 = vsel %vm159, %v449, %v398
  %v453 = vsel %vm159, %v450, %v400
  %v454 = vsel %vm164, %v451, %v412
  %v455 = vsel %vm164, %v452, %v414
  %v456 = vsel %vm164, %v453, %v416
  %v457 = vsel %vm154, %v423, %v440
  %v458 = vsel %vm154, %v425, %v442
  %v459 = vsel %vm154, %v427, %v444
  %v463 = vrot.slane %v364, 1
  %v464 = vsel %vm94, %v377, %v463
  %v465 = vrot.slane %v365, 1
  %v466 = vsel %vm94, %v463, %v465
  %v467 = vrot.slane %v366, 1
  %v468 = vsel %vm94, %v465, %v467
  %469 = vrot.lane.b32.xlu0 %v464, 32
  %v470 = vpop.permute.xlu0 %469
  %471 = vrot.lane.b32.xlu0 %v466, 32
  %v472 = vpop.permute.xlu0 %471
  %473 = vrot.lane.b32.xlu0 %v468, 32
  %v474 = vpop.permute.xlu0 %473
  %475 = vrot.lane.b32.xlu0 %v467, 32
  %v476 = vpop.permute.xlu0 %475
  %v481 = vrot.slane %v364, 2
  %v482 = vsel %vm114, %v393, %v481
  %v483 = vrot.slane %v365, 2
  %v484 = vsel %vm114, %v481, %v483
  %v485 = vrot.slane %v366, 2
  %v486 = vsel %vm114, %v483, %v485
  %487 = vrot.lane.b32.xlu0 %v482, 64
  %v488 = vpop.permute.xlu0 %487
  %489 = vrot.lane.b32.xlu0 %v484, 64
  %v490 = vpop.permute.xlu0 %489
  %491 = vrot.lane.b32.xlu0 %v486, 64
  %v492 = vpop.permute.xlu0 %491
  %493 = vrot.lane.b32.xlu0 %v485, 64
  %v494 = vpop.permute.xlu0 %493
  %v499 = vrot.slane %v364, 3
  %v500 = vrot.slane %v365, 3
  %v501 = vsel %vm134, %v499, %v500
  %v502 = vrot.slane %v366, 3
  %v503 = vsel %vm134, %v500, %v502
  %504 = vrot.lane.b32.xlu0 %v499, 96
  %v505 = vpop.permute.xlu0 %504
  %506 = vrot.lane.b32.xlu0 %v501, 96
  %v507 = vpop.permute.xlu0 %506
  %508 = vrot.lane.b32.xlu0 %v503, 96
  %v509 = vpop.permute.xlu0 %508
  %510 = vrot.lane.b32.xlu0 %v502, 96
  %v511 = vpop.permute.xlu0 %510
  %v517 = vrot.slane %v364, 4
  %v518 = vrot.slane %v365, 4
  %v519 = vsel %vm420, %v517, %v518
  %v520 = vrot.slane %v366, 4
  %v521 = vsel %vm420, %v518, %v520
  %v522 = vrot.slane %v367, 4
  %v523 = vsel %vm420, %v520, %v522
  %v528 = vrot.slane %v364, 5
  %v529 = vrot.slane %v365, 5
  %v530 = vsel %vm431, %v528, %v529
  %v531 = vrot.slane %v366, 5
  %v532 = vsel %vm431, %v529, %v531
  %v533 = vrot.slane %v367, 5
  %v534 = vsel %vm431, %v531, %v533
  %535 = vrot.lane.b32.xlu0 %v528, 32
  %v536 = vpop.permute.xlu0 %535
  %537 = vrot.lane.b32.xlu0 %v530, 32
  %v538 = vpop.permute.xlu0 %537
  %539 = vrot.lane.b32.xlu0 %v532, 32
  %v540 = vpop.permute.xlu0 %539
  %541 = vrot.lane.b32.xlu0 %v534, 32
  %v542 = vpop.permute.xlu0 %541
  %v547 = vsel %vm154, %v363, %v470
  %v548 = vsel %vm154, %v364, %v472
  %v549 = vsel %vm154, %v365, %v474
  %v550 = vsel %vm154, %v366, %v476
  %v551 = vsel %vm159, %v547, %v488
  %v552 = vsel %vm159, %v548, %v490
  %v553 = vsel %vm159, %v549, %v492
  %v554 = vsel %vm159, %v550, %v494
  %v555 = vsel %vm164, %v551, %v505
  %v556 = vsel %vm164, %v552, %v507
  %v557 = vsel %vm164, %v553, %v509
  %v558 = vsel %vm164, %v554, %v511
  %v559 = vsel %vm154, %v517, %v536
  %v560 = vsel %vm154, %v519, %v538
  %v561 = vsel %vm154, %v521, %v540
  %v562 = vsel %vm154, %v523, %v542
  %v571 = vrot.slane %v555, 5
  %v572 = vrot.slane %v556, 5
  %v573 = vsel %vm431, %v571, %v572
  %v574 = vrot.slane %v559, 5
  %v575 = vrot.slane %v560, 5
  %v576 = vsel %vm431, %v574, %v575
  %v577 = vrot.slane %v557, 5
  %v578 = vsel %vm431, %v572, %v577
  %v579 = vrot.slane %v561, 5
  %v580 = vsel %vm431, %v575, %v579
  %v581 = vrot.slane %v558, 5
  %v582 = vsel %vm431, %v577, %v581
  %v583 = vrot.slane %v562, 5
  %v584 = vsel %vm431, %v579, %v583
  %v591 = vpack.c.bf16 %v455, %v454
  %v592 = vpack.c.bf16 %v458, %v457
  %v593 = vpack.c.bf16 %v573, %v456
  %v594 = vpack.c.bf16 %v576, %v459
  %v595 = vpack.c.bf16 %v582, %v578
  %v596 = vpack.c.bf16 %v584, %v580
  %v597 = vld [vmem:[%s4] sm:$0xf]
  %v598 = vld [vmem:[%s4 + $0x4] sm:$0xf]
  %v599 = vld [vmem:[%s4 + $0x8] sm:$0xf]
  %v600 = vld [vmem:[%s4 + $0xc] sm:$0xf]
  %v601 = vld [vmem:[%s4 + $0x10] sm:$0xf]
  %v602 = vld [vmem:[%s4 + $0x14] sm:$0xf]
  %v603 = vld [vmem:[%s4 + $0x18] sm:$0xf]
  %v604 = vld [vmem:[%s4 + $0x1c] sm:$0xf]
  %v605 = vld [vmem:[%s4 + $0x20] sm:$0xf]
  %v606 = vld [vmem:[%s4 + $0x24] sm:$0xf]
  %v607 = vld [vmem:[%s4 + $0x28] sm:$0xf]
  %v608 = vld [vmem:[%s4 + $0x2c] sm:$0xf]
  %v609 = vld [vmem:[%s4 + $0x30] sm:$0xf]
  %v610 = vld [vmem:[%s4 + $0x34] sm:$0xf]
  %v611 = vld [vmem:[%s4 + $0x38] sm:$0xf]
  %v612 = vld [vmem:[%s4 + $0x3c] sm:$0xf]
  %v613 = vld [vmem:[%s4 + $0x40] sm:$0xf]
  %v614 = vld [vmem:[%s4 + $0x44] sm:$0xf]
  %v615 = vld [vmem:[%s4 + $0x48] sm:$0xf]
  %v616 = vld [vmem:[%s4 + $0x4c] sm:$0xf]
  %v617 = vld [vmem:[%s4 + $0x50] sm:$0xf]
  %v618 = vld [vmem:[%s4 + $0x54] sm:$0xf]
  %v619 = vld [vmem:[%s4 + $0x58] sm:$0xf]
  %v620 = vld [vmem:[%s4 + $0x5c] sm:$0xf]
  %v621 = vld [vmem:[%s5] sm:$0x1]
  %v623 = vperm.slane %v621, 0
  %v649 = vunpack.c.l.b16 %v597
  %v650 = vunpack.c.l.b16 %v598
  %v651 = vunpack.c.l.b16 %v599
  %v652 = vunpack.c.l.b16 %v600
  %v653 = vunpack.c.l.b16 %v601
  %v654 = vunpack.c.l.b16 %v602
  %v655 = vunpack.c.l.b16 %v603
  %v656 = vunpack.c.l.b16 %v604
  %v657 = vunpack.c.l.b16 %v605
  %v658 = vunpack.c.l.b16 %v606
  %v659 = vunpack.c.l.b16 %v607
  %v660 = vunpack.c.l.b16 %v608
  %v661 = vunpack.c.l.b16 %v609
  %v662 = vunpack.c.l.b16 %v610
  %v663 = vunpack.c.l.b16 %v611
  %v664 = vunpack.c.l.b16 %v612
  %v665 = vunpack.c.l.b16 %v613
  %v666 = vunpack.c.l.b16 %v614
  %v667 = vunpack.c.l.b16 %v615
  %v668 = vunpack.c.l.b16 %v616
  %v669 = vunpack.c.l.b16 %v617
  %v670 = vunpack.c.l.b16 %v618
  %v671 = vunpack.c.l.b16 %v619
  %v672 = vunpack.c.l.b16 %v620
  %v673 = vpack.c.b16 %v650, %v649
  %v674 = vpack.c.b16 %v652, %v651
  %v675 = vpack.c.b16 %v654, %v653
  %v676 = vpack.c.b16 %v656, %v655
  %v677 = vpack.c.b16 %v658, %v657
  %v678 = vpack.c.b16 %v660, %v659
  %v679 = vpack.c.b16 %v662, %v661
  %v680 = vpack.c.b16 %v664, %v663
  %v681 = vpack.c.b16 %v666, %v665
  %v682 = vpack.c.b16 %v668, %v667
  %v683 = vpack.c.b16 %v670, %v669
  %v684 = vpack.c.b16 %v672, %v671
  %v698 = vsel %vm159, %v592, 0
  %v701 = vsel %vm159, %v594, 0
  %v704 = vsel %vm159, %v596, 0
  %706 = vmatpush.bf16.msra.mxu0 %v680
  %707 = vmatpush.bf16.msra.mxu0 %v679
  %708 = vmatpush.bf16.msra.mxu0 %v678
  %709 = vmatpush.bf16.msra.mxu0 %v677
  %710 = vmatpush.bf16.msra.mxu0 %v676
  %711 = vmatpush.bf16.msra.mxu0 %v675
  %712 = vmatpush.bf16.msra.mxu0 %v674
  %713 = vmatpush.bf16.msra.mxu0 %v673
  %714 = vmatmul.bf16.gmra.mxu0 %v591
  %v715 = vpop.f32.mrf.mxu0
  %v716 = vadd.f32 %v623, %v715
  %v717 = vpop.f32.mrf.mxu0
  %v718 = vadd.f32 %v623, %v717
  %719 = vmatmul.bf16.gmra.mxu0 %v593
  %v720 = vpop.f32.mrf.mxu0
  %v721 = vadd.f32 %v623, %v720
  %v722 = vpop.f32.mrf.mxu0
  %v723 = vadd.f32 %v623, %v722
  %724 = vmatmul.bf16.gmra.mxu0 %v595
  %v725 = vpop.f32.mrf.mxu0
  %v726 = vadd.f32 %v623, %v725
  %v727 = vpop.f32.mrf.mxu0
  %v728 = vadd.f32 %v623, %v727
  %729 = vdwg.mxu0
  %730 = vmatpush.bf16.msra.mxu0 0
  %731 = vmatpush.bf16.msra.mxu0 0
  %732 = vmatpush.bf16.msra.mxu0 0
  %733 = vmatpush.bf16.msra.mxu0 0
  %734 = vmatpush.bf16.msra.mxu0 %v684
  %735 = vmatpush.bf16.msra.mxu0 %v683
  %736 = vmatpush.bf16.msra.mxu0 %v682
  %737 = vmatpush.bf16.msra.mxu0 %v681
  %738 = vmatmul.bf16.gmra.mxu0 %v698
  %v739 = vpop.f32.mrf.mxu0
  %v740 = vadd.f32 %v716, %v739
  %v741 = vpop.f32.mrf.mxu0
  %v742 = vadd.f32 %v718, %v741
  %743 = vmatmul.bf16.gmra.mxu0 %v701
  %v744 = vpop.f32.mrf.mxu0
  %v745 = vadd.f32 %v721, %v744
  %v746 = vpop.f32.mrf.mxu0
  %v747 = vadd.f32 %v723, %v746
  %748 = vmatmul.bf16.gmra.mxu0 %v704
  %v749 = vpop.f32.mrf.mxu0
  %v750 = vadd.f32 %v726, %v749
  %v751 = vpop.f32.mrf.mxu0
  %v752 = vadd.f32 %v728, %v751
  %753 = vdwg.mxu0
  %v754 = vmax.f32 %v740, 0.0
  %v755 = vmax.f32 %v742, 0.0
  %v756 = vmax.f32 %v745, 0.0
  %v757 = vmax.f32 %v747, 0.0
  %v758 = vmax.f32 %v750, 0.0
  %v759 = vmax.f32 %v752, 0.0
  %v763 = vrot.slane %v754, 1
  %v764 = vrot.slane %v755, 1
  %v765 = vsel %vm94, %v763, %v764
  %v766 = vrot.slane %v756, 1
  %v767 = vsel %vm94, %v764, %v766
  %768 = vrot.lane.b32.xlu0 %v765, 64
  %v769 = vpop.permute.xlu0 %768
  %770 = vrot.lane.b32.xlu0 %v767, 64
  %v771 = vpop.permute.xlu0 %770
  %772 = vrot.lane.b32.xlu0 %v766, 64
  %v773 = vpop.permute.xlu0 %772
  %v777 = vrot.slane %v754, 2
  %v778 = vrot.slane %v755, 2
  %v779 = vsel %vm114, %v777, %v778
  %v780 = vrot.slane %v756, 2
  %v781 = vsel %vm114, %v778, %v780
  %v785 = vrot.slane %v754, 3
  %v786 = vrot.slane %v755, 3
  %v787 = vsel %vm134, %v785, %v786
  %v788 = vrot.slane %v756, 3
  %v789 = vsel %vm134, %v786, %v788
  %790 = vrot.lane.b32.xlu0 %v787, 64
  %v791 = vpop.permute.xlu0 %790
  %792 = vrot.lane.b32.xlu0 %v789, 64
  %v793 = vpop.permute.xlu0 %792
  %794 = vrot.lane.b32.xlu0 %v788, 64
  %v795 = vpop.permute.xlu0 %794
  %v799 = vrot.slane %v754, 4
  %v800 = vrot.slane %v755, 4
  %v801 = vsel %vm420, %v799, %v800
  %v802 = vrot.slane %v756, 4
  %v803 = vsel %vm420, %v800, %v802
  %v807 = vrot.slane %v754, 5
  %v808 = vrot.slane %v755, 5
  %v809 = vsel %vm431, %v807, %v808
  %v810 = vrot.slane %v756, 5
  %v811 = vsel %vm431, %v808, %v810
  %812 = vrot.lane.b32.xlu0 %v809, 64
  %v813 = vpop.permute.xlu0 %812
  %814 = vrot.lane.b32.xlu0 %v811, 64
  %v815 = vpop.permute.xlu0 %814
  %816 = vrot.lane.b32.xlu0 %v810, 64
  %v817 = vpop.permute.xlu0 %816
  %vm821 = vcmask 1041408
  %v822 = vrot.slane %v754, 6
  %v823 = vrot.slane %v755, 6
  %v824 = vsel %vm821, %v822, %v823
  %v825 = vrot.slane %v756, 6
  %v826 = vsel %vm821, %v823, %v825
  %vm830 = vcmask 1040384
  %v831 = vrot.slane %v754, 7
  %v832 = vrot.slane %v755, 7
  %v833 = vsel %vm830, %v831, %v832
  %v834 = vrot.slane %v756, 7
  %v835 = vsel %vm830, %v832, %v834
  %836 = vrot.lane.b32.xlu0 %v833, 64
  %v837 = vpop.permute.xlu0 %836
  %838 = vrot.lane.b32.xlu0 %v835, 64
  %v839 = vpop.permute.xlu0 %838
  %840 = vrot.lane.b32.xlu0 %v834, 64
  %v841 = vpop.permute.xlu0 %840
  %v845 = vsel %vm159, %v754, %v769
  %v846 = vsel %vm159, %v755, %v771
  %v847 = vsel %vm159, %v756, %v773
  %v848 = vsel %vm159, %v779, %v791
  %v849 = vsel %vm159, %v781, %v793
  %v850 = vsel %vm159, %v780, %v795
  %v851 = vsel %vm159, %v801, %v813
  %v852 = vsel %vm159, %v803, %v815
  %v853 = vsel %vm159, %v802, %v817
  %v854 = vsel %vm159, %v824, %v837
  %v855 = vsel %vm159, %v826, %v839
  %v856 = vsel %vm159, %v825, %v841
  %v860 = vrot.slane %v757, 1
  %v861 = vrot.slane %v758, 1
  %v862 = vsel %vm94, %v860, %v861
  %v863 = vrot.slane %v759, 1
  %v864 = vsel %vm94, %v861, %v863
  %865 = vrot.lane.b32.xlu0 %v862, 64
  %v866 = vpop.permute.xlu0 %865
  %867 = vrot.lane.b32.xlu0 %v864, 64
  %v868 = vpop.permute.xlu0 %867
  %869 = vrot.lane.b32.xlu0 %v863, 64
  %v870 = vpop.permute.xlu0 %869
  %v874 = vrot.slane %v757, 2
  %v875 = vrot.slane %v758, 2
  %v876 = vsel %vm114, %v874, %v875
  %v877 = vrot.slane %v759, 2
  %v878 = vsel %vm114, %v875, %v877
  %v882 = vrot.slane %v757, 3
  %v883 = vrot.slane %v758, 3
  %v884 = vsel %vm134, %v882, %v883
  %v885 = vrot.slane %v759, 3
  %v886 = vsel %vm134, %v883, %v885
  %887 = vrot.lane.b32.xlu0 %v884, 64
  %v888 = vpop.permute.xlu0 %887
  %889 = vrot.lane.b32.xlu0 %v886, 64
  %v890 = vpop.permute.xlu0 %889
  %891 = vrot.lane.b32.xlu0 %v885, 64
  %v892 = vpop.permute.xlu0 %891
  %v896 = vrot.slane %v757, 4
  %v897 = vrot.slane %v758, 4
  %v898 = vsel %vm420, %v896, %v897
  %v899 = vrot.slane %v759, 4
  %v900 = vsel %vm420, %v897, %v899
  %v904 = vrot.slane %v757, 5
  %v905 = vrot.slane %v758, 5
  %v906 = vsel %vm431, %v904, %v905
  %v907 = vrot.slane %v759, 5
  %v908 = vsel %vm431, %v905, %v907
  %909 = vrot.lane.b32.xlu0 %v906, 64
  %v910 = vpop.permute.xlu0 %909
  %911 = vrot.lane.b32.xlu0 %v908, 64
  %v912 = vpop.permute.xlu0 %911
  %913 = vrot.lane.b32.xlu0 %v907, 64
  %v914 = vpop.permute.xlu0 %913
  %v918 = vrot.slane %v757, 6
  %v919 = vrot.slane %v758, 6
  %v920 = vsel %vm821, %v918, %v919
  %v921 = vrot.slane %v759, 6
  %v922 = vsel %vm821, %v919, %v921
  %v926 = vrot.slane %v757, 7
  %v927 = vrot.slane %v758, 7
  %v928 = vsel %vm830, %v926, %v927
  %v929 = vrot.slane %v759, 7
  %v930 = vsel %vm830, %v927, %v929
  %931 = vrot.lane.b32.xlu0 %v928, 64
  %v932 = vpop.permute.xlu0 %931
  %933 = vrot.lane.b32.xlu0 %v930, 64
  %v934 = vpop.permute.xlu0 %933
  %935 = vrot.lane.b32.xlu0 %v929, 64
  %v936 = vpop.permute.xlu0 %935
  %v940 = vsel %vm159, %v757, %v866
  %v941 = vsel %vm159, %v758, %v868
  %v942 = vsel %vm159, %v759, %v870
  %v943 = vsel %vm159, %v876, %v888
  %v944 = vsel %vm159, %v878, %v890
  %v945 = vsel %vm159, %v877, %v892
  %v946 = vsel %vm159, %v898, %v910
  %v947 = vsel %vm159, %v900, %v912
  %v948 = vsel %vm159, %v899, %v914
  %v949 = vsel %vm159, %v920, %v932
  %v950 = vsel %vm159, %v922, %v934
  %v951 = vsel %vm159, %v921, %v936
  %v964 = vrot.slane %v940, 7
  %v965 = vrot.slane %v943, 7
  %v966 = vrot.slane %v946, 7
  %v967 = vrot.slane %v949, 7
  %v968 = vrot.slane %v941, 7
  %v969 = vsel %vm830, %v964, %v968
  %v970 = vrot.slane %v944, 7
  %v971 = vsel %vm830, %v965, %v970
  %v972 = vrot.slane %v947, 7
  %v973 = vsel %vm830, %v966, %v972
  %v974 = vrot.slane %v950, 7
  %v975 = vsel %vm830, %v967, %v974
  %v976 = vrot.slane %v942, 7
  %v977 = vsel %vm830, %v968, %v976
  %v978 = vrot.slane %v945, 7
  %v979 = vsel %vm830, %v970, %v978
  %v980 = vrot.slane %v948, 7
  %v981 = vsel %vm830, %v972, %v980
  %v982 = vrot.slane %v951, 7
  %v983 = vsel %vm830, %v974, %v982
  %v996 = vsel %vm830, %v847, %v964
  %v997 = vsel %vm830, %v850, %v965
  %v998 = vsel %vm830, %v853, %v966
  %v999 = vsel %vm830, %v856, %v967
  %v1000 = vpack.c.bf16 %v846, %v845
  %v1001 = vpack.c.bf16 %v849, %v848
  %v1002 = vpack.c.bf16 %v852, %v851
  %v1003 = vpack.c.bf16 %v855, %v854
  %v1004 = vpack.c.bf16 %v969, %v996
  %v1005 = vpack.c.bf16 %v971, %v997
  %v1006 = vpack.c.bf16 %v973, %v998
  %v1007 = vpack.c.bf16 %v975, %v999
  %v1008 = vpack.c.bf16 %v977, %v977
  %v1009 = vpack.c.bf16 %v979, %v979
  %v1010 = vpack.c.bf16 %v981, %v981
  %v1011 = vpack.c.bf16 %v983, %v983
  %v1012 = vld [vmem:[%s6] sm:$0xf]
  %v1013 = vld [vmem:[%s6 + $0x4] sm:$0xf]
  %v1014 = vld [vmem:[%s6 + $0x8] sm:$0xf]
  %v1015 = vld [vmem:[%s6 + $0xc] sm:$0xf]
  %v1016 = vld [vmem:[%s6 + $0x10] sm:$0xf]
  %v1017 = vld [vmem:[%s6 + $0x14] sm:$0xf]
  %v1018 = vld [vmem:[%s6 + $0x18] sm:$0xf]
  %v1019 = vld [vmem:[%s6 + $0x1c] sm:$0xf]
  %v1020 = vld [vmem:[%s6 + $0x20] sm:$0xf]
  %v1021 = vld [vmem:[%s6 + $0x24] sm:$0xf]
  %v1022 = vld [vmem:[%s6 + $0x28] sm:$0xf]
  %v1023 = vld [vmem:[%s6 + $0x2c] sm:$0xf]
  %v1024 = vld [vmem:[%s6 + $0x30] sm:$0xf]
  %v1025 = vld [vmem:[%s6 + $0x34] sm:$0xf]
  %v1026 = vld [vmem:[%s6 + $0x38] sm:$0xf]
  %v1027 = vld [vmem:[%s6 + $0x3c] sm:$0xf]
  %v1028 = vld [vmem:[%s6 + $0x40] sm:$0xf]
  %v1029 = vld [vmem:[%s6 + $0x44] sm:$0xf]
  %v1030 = vld [vmem:[%s6 + $0x48] sm:$0xf]
  %v1031 = vld [vmem:[%s6 + $0x4c] sm:$0xf]
  %v1032 = vld [vmem:[%s6 + $0x50] sm:$0xf]
  %v1033 = vld [vmem:[%s6 + $0x54] sm:$0xf]
  %v1034 = vld [vmem:[%s6 + $0x58] sm:$0xf]
  %v1035 = vld [vmem:[%s6 + $0x5c] sm:$0xf]
  %v1036 = vld [vmem:[%s6 + $0x60] sm:$0xf]
  %v1037 = vld [vmem:[%s6 + $0x64] sm:$0xf]
  %v1038 = vld [vmem:[%s6 + $0x68] sm:$0xf]
  %v1039 = vld [vmem:[%s6 + $0x6c] sm:$0xf]
  %v1040 = vld [vmem:[%s6 + $0x70] sm:$0xf]
  %v1041 = vld [vmem:[%s6 + $0x74] sm:$0xf]
  %v1042 = vld [vmem:[%s6 + $0x78] sm:$0xf]
  %v1043 = vld [vmem:[%s6 + $0x7c] sm:$0xf]
  %v1044 = vld [vmem:[%s6 + $0x80] sm:$0xf]
  %v1045 = vld [vmem:[%s6 + $0x84] sm:$0xf]
  %v1046 = vld [vmem:[%s6 + $0x88] sm:$0xf]
  %v1047 = vld [vmem:[%s6 + $0x8c] sm:$0xf]
  %v1048 = vld [vmem:[%s6 + $0x90] sm:$0xf]
  %v1049 = vld [vmem:[%s6 + $0x94] sm:$0xf]
  %v1050 = vld [vmem:[%s6 + $0x98] sm:$0xf]
  %v1051 = vld [vmem:[%s6 + $0x9c] sm:$0xf]
  %v1052 = vld [vmem:[%s6 + $0xa0] sm:$0xf]
  %v1053 = vld [vmem:[%s6 + $0xa4] sm:$0xf]
  %v1054 = vld [vmem:[%s6 + $0xa8] sm:$0xf]
  %v1055 = vld [vmem:[%s6 + $0xac] sm:$0xf]
  %v1056 = vld [vmem:[%s6 + $0xb0] sm:$0xf]
  %v1057 = vld [vmem:[%s6 + $0xb4] sm:$0xf]
  %v1058 = vld [vmem:[%s6 + $0xb8] sm:$0xf]
  %v1059 = vld [vmem:[%s6 + $0xbc] sm:$0xf]
  %v1060 = vld [vmem:[%s6 + $0xc0] sm:$0xf]
  %v1061 = vld [vmem:[%s6 + $0xc4] sm:$0xf]
  %v1062 = vld [vmem:[%s6 + $0xc8] sm:$0xf]
  %v1063 = vld [vmem:[%s6 + $0xcc] sm:$0xf]
  %v1064 = vld [vmem:[%s6 + $0xd0] sm:$0xf]
  %v1065 = vld [vmem:[%s6 + $0xd4] sm:$0xf]
  %v1066 = vld [vmem:[%s6 + $0xd8] sm:$0xf]
  %v1067 = vld [vmem:[%s6 + $0xdc] sm:$0xf]
  %v1068 = vld [vmem:[%s6 + $0xe0] sm:$0xf]
  %v1069 = vld [vmem:[%s6 + $0xe4] sm:$0xf]
  %v1070 = vld [vmem:[%s6 + $0xe8] sm:$0xf]
  %v1071 = vld [vmem:[%s6 + $0xec] sm:$0xf]
  %v1072 = vld [vmem:[%s6 + $0xf0] sm:$0xf]
  %v1073 = vld [vmem:[%s6 + $0xf4] sm:$0xf]
  %v1074 = vld [vmem:[%s6 + $0xf8] sm:$0xf]
  %v1075 = vld [vmem:[%s6 + $0xfc] sm:$0xf]
  %v1076 = vld [vmem:[%s7] sm:$0x1]
  %v1078 = vperm.slane %v1076, 0
  %v1144 = vunpack.c.l.b16 %v1012
  %v1145 = vunpack.c.l.b16 %v1013
  %v1146 = vunpack.c.l.b16 %v1014
  %v1147 = vunpack.c.l.b16 %v1015
  %v1148 = vunpack.c.l.b16 %v1016
  %v1149 = vunpack.c.l.b16 %v1017
  %v1150 = vunpack.c.l.b16 %v1018
  %v1151 = vunpack.c.l.b16 %v1019
  %v1152 = vunpack.c.l.b16 %v1020
  %v1153 = vunpack.c.l.b16 %v1021
  %v1154 = vunpack.c.l.b16 %v1022
  %v1155 = vunpack.c.l.b16 %v1023
  %v1156 = vunpack.c.l.b16 %v1024
  %v1157 = vunpack.c.l.b16 %v1025
  %v1158 = vunpack.c.l.b16 %v1026
  %v1159 = vunpack.c.l.b16 %v1027
  %v1160 = vunpack.c.l.b16 %v1028
  %v1161 = vunpack.c.l.b16 %v1029
  %v1162 = vunpack.c.l.b16 %v1030
  %v1163 = vunpack.c.l.b16 %v1031
  %v1164 = vunpack.c.l.b16 %v1032
  %v1165 = vunpack.c.l.b16 %v1033
  %v1166 = vunpack.c.l.b16 %v1034
  %v1167 = vunpack.c.l.b16 %v1035
  %v1168 = vunpack.c.l.b16 %v1036
  %v1169 = vunpack.c.l.b16 %v1037
  %v1170 = vunpack.c.l.b16 %v1038
  %v1171 = vunpack.c.l.b16 %v1039
  %v1172 = vunpack.c.l.b16 %v1040
  %v1173 = vunpack.c.l.b16 %v1041
  %v1174 = vunpack.c.l.b16 %v1042
  %v1175 = vunpack.c.l.b16 %v1043
  %v1176 = vunpack.c.l.b16 %v1044
  %v1177 = vunpack.c.l.b16 %v1045
  %v1178 = vunpack.c.l.b16 %v1046
  %v1179 = vunpack.c.l.b16 %v1047
  %v1180 = vunpack.c.l.b16 %v1048
  %v1181 = vunpack.c.l.b16 %v1049
  %v1182 = vunpack.c.l.b16 %v1050
  %v1183 = vunpack.c.l.b16 %v1051
  %v1184 = vunpack.c.l.b16 %v1052
  %v1185 = vunpack.c.l.b16 %v1053
  %v1186 = vunpack.c.l.b16 %v1054
  %v1187 = vunpack.c.l.b16 %v1055
  %v1188 = vunpack.c.l.b16 %v1056
  %v1189 = vunpack.c.l.b16 %v1057
  %v1190 = vunpack.c.l.b16 %v1058
  %v1191 = vunpack.c.l.b16 %v1059
  %v1192 = vunpack.c.l.b16 %v1060
  %v1193 = vunpack.c.l.b16 %v1061
  %v1194 = vunpack.c.l.b16 %v1062
  %v1195 = vunpack.c.l.b16 %v1063
  %v1196 = vunpack.c.l.b16 %v1064
  %v1197 = vunpack.c.l.b16 %v1065
  %v1198 = vunpack.c.l.b16 %v1066
  %v1199 = vunpack.c.l.b16 %v1067
  %v1200 = vunpack.c.l.b16 %v1068
  %v1201 = vunpack.c.l.b16 %v1069
  %v1202 = vunpack.c.l.b16 %v1070
  %v1203 = vunpack.c.l.b16 %v1071
  %v1204 = vunpack.c.l.b16 %v1072
  %v1205 = vunpack.c.l.b16 %v1073
  %v1206 = vunpack.c.l.b16 %v1074
  %v1207 = vunpack.c.l.b16 %v1075
  %v1208 = vpack.c.b16 %v1145, %v1144
  %v1209 = vpack.c.b16 %v1147, %v1146
  %v1210 = vpack.c.b16 %v1149, %v1148
  %v1211 = vpack.c.b16 %v1151, %v1150
  %v1212 = vpack.c.b16 %v1153, %v1152
  %v1213 = vpack.c.b16 %v1155, %v1154
  %v1214 = vpack.c.b16 %v1157, %v1156
  %v1215 = vpack.c.b16 %v1159, %v1158
  %v1216 = vpack.c.b16 %v1161, %v1160
  %v1217 = vpack.c.b16 %v1163, %v1162
  %v1218 = vpack.c.b16 %v1165, %v1164
  %v1219 = vpack.c.b16 %v1167, %v1166
  %v1220 = vpack.c.b16 %v1169, %v1168
  %v1221 = vpack.c.b16 %v1171, %v1170
  %v1222 = vpack.c.b16 %v1173, %v1172
  %v1223 = vpack.c.b16 %v1175, %v1174
  %v1224 = vpack.c.b16 %v1177, %v1176
  %v1225 = vpack.c.b16 %v1179, %v1178
  %v1226 = vpack.c.b16 %v1181, %v1180
  %v1227 = vpack.c.b16 %v1183, %v1182
  %v1228 = vpack.c.b16 %v1185, %v1184
  %v1229 = vpack.c.b16 %v1187, %v1186
  %v1230 = vpack.c.b16 %v1189, %v1188
  %v1231 = vpack.c.b16 %v1191, %v1190
  %v1232 = vpack.c.b16 %v1193, %v1192
  %v1233 = vpack.c.b16 %v1195, %v1194
  %v1234 = vpack.c.b16 %v1197, %v1196
  %v1235 = vpack.c.b16 %v1199, %v1198
  %v1236 = vpack.c.b16 %v1201, %v1200
  %v1237 = vpack.c.b16 %v1203, %v1202
  %v1238 = vpack.c.b16 %v1205, %v1204
  %v1239 = vpack.c.b16 %v1207, %v1206
  %1272 = vmatpush.bf16.msra.mxu0 %v1215
  %1273 = vmatpush.bf16.msra.mxu0 %v1214
  %1274 = vmatpush.bf16.msra.mxu0 %v1213
  %1275 = vmatpush.bf16.msra.mxu0 %v1212
  %1276 = vmatpush.bf16.msra.mxu0 %v1211
  %1277 = vmatpush.bf16.msra.mxu0 %v1210
  %1278 = vmatpush.bf16.msra.mxu0 %v1209
  %1279 = vmatpush.bf16.msra.mxu0 %v1208
  %1280 = vmatmul.bf16.gmra.mxu0 %v1000
  %v1281 = vpop.f32.mrf.mxu0
  %v1282 = vadd.f32 %v1078, %v1281
  %v1283 = vpop.f32.mrf.mxu0
  %v1284 = vadd.f32 %v1078, %v1283
  %1285 = vmatmul.bf16.gmra.mxu0 %v1004
  %v1286 = vpop.f32.mrf.mxu0
  %v1287 = vadd.f32 %v1078, %v1286
  %v1288 = vpop.f32.mrf.mxu0
  %v1289 = vadd.f32 %v1078, %v1288
  %1290 = vmatmul.bf16.gmra.mxu0 %v1008
  %v1291 = vpop.f32.mrf.mxu0
  %v1292 = vadd.f32 %v1078, %v1291
  %v1293 = vpop.f32.mrf.mxu0
  %1294 = vdwg.mxu0
  %1295 = vmatpush.bf16.msra.mxu0 %v1223
  %1296 = vmatpush.bf16.msra.mxu0 %v1222
  %1297 = vmatpush.bf16.msra.mxu0 %v1221
  %1298 = vmatpush.bf16.msra.mxu0 %v1220
  %1299 = vmatpush.bf16.msra.mxu0 %v1219
  %1300 = vmatpush.bf16.msra.mxu0 %v1218
  %1301 = vmatpush.bf16.msra.mxu0 %v1217
  %1302 = vmatpush.bf16.msra.mxu0 %v1216
  %1303 = vmatmul.bf16.gmra.mxu0 %v1001
  %v1304 = vpop.f32.mrf.mxu0
  %v1305 = vadd.f32 %v1282, %v1304
  %v1306 = vpop.f32.mrf.mxu0
  %v1307 = vadd.f32 %v1284, %v1306
  %1308 = vmatmul.bf16.gmra.mxu0 %v1005
  %v1309 = vpop.f32.mrf.mxu0
  %v1310 = vadd.f32 %v1287, %v1309
  %v1311 = vpop.f32.mrf.mxu0
  %v1312 = vadd.f32 %v1289, %v1311
  %1313 = vmatmul.bf16.gmra.mxu0 %v1009
  %v1314 = vpop.f32.mrf.mxu0
  %v1315 = vadd.f32 %v1292, %v1314
  %v1316 = vpop.f32.mrf.mxu0
  %1317 = vdwg.mxu0
  %1318 = vmatpush.bf16.msra.mxu0 %v1231
  %1319 = vmatpush.bf16.msra.mxu0 %v1230
  %1320 = vmatpush.bf16.msra.mxu0 %v1229
  %1321 = vmatpush.bf16.msra.mxu0 %v1228
  %1322 = vmatpush.bf16.msra.mxu0 %v1227
  %1323 = vmatpush.bf16.msra.mxu0 %v1226
  %1324 = vmatpush.bf16.msra.mxu0 %v1225
  %1325 = vmatpush.bf16.msra.mxu0 %v1224
  %1326 = vmatmul.bf16.gmra.mxu0 %v1002
  %v1327 = vpop.f32.mrf.mxu0
  %v1328 = vadd.f32 %v1305, %v1327
  %v1329 = vpop.f32.mrf.mxu0
  %v1330 = vadd.f32 %v1307, %v1329
  %1331 = vmatmul.bf16.gmra.mxu0 %v1006
  %v1332 = vpop.f32.mrf.mxu0
  %v1333 = vadd.f32 %v1310, %v1332
  %v1334 = vpop.f32.mrf.mxu0
  %v1335 = vadd.f32 %v1312, %v1334
  %1336 = vmatmul.bf16.gmra.mxu0 %v1010
  %v1337 = vpop.f32.mrf.mxu0
  %v1338 = vadd.f32 %v1315, %v1337
  %v1339 = vpop.f32.mrf.mxu0
  %1340 = vdwg.mxu0
  %1341 = vmatpush.bf16.msra.mxu0 %v1239
  %1342 = vmatpush.bf16.msra.mxu0 %v1238
  %1343 = vmatpush.bf16.msra.mxu0 %v1237
  %1344 = vmatpush.bf16.msra.mxu0 %v1236
  %1345 = vmatpush.bf16.msra.mxu0 %v1235
  %1346 = vmatpush.bf16.msra.mxu0 %v1234
  %1347 = vmatpush.bf16.msra.mxu0 %v1233
  %1348 = vmatpush.bf16.msra.mxu0 %v1232
  %1349 = vmatmul.bf16.gmra.mxu0 %v1003
  %v1350 = vpop.f32.mrf.mxu0
  %v1351 = vadd.f32 %v1328, %v1350
  %v1352 = vpop.f32.mrf.mxu0
  %v1353 = vadd.f32 %v1330, %v1352
  %1354 = vmatmul.bf16.gmra.mxu0 %v1007
  %v1355 = vpop.f32.mrf.mxu0
  %v1356 = vadd.f32 %v1333, %v1355
  %v1357 = vpop.f32.mrf.mxu0
  %v1358 = vadd.f32 %v1335, %v1357
  %1359 = vmatmul.bf16.gmra.mxu0 %v1011
  %v1360 = vpop.f32.mrf.mxu0
  %v1361 = vadd.f32 %v1338, %v1360
  %v1362 = vpop.f32.mrf.mxu0
  %1363 = vdwg.mxu0
  %v1364 = vmax.f32 %v1351, 0.0
  %v1365 = vmax.f32 %v1353, 0.0
  %v1366 = vmax.f32 %v1356, 0.0
  %v1367 = vmax.f32 %v1358, 0.0
  %v1368 = vmax.f32 %v1361, 0.0
  %v1377 = vrot.slane %v74, 1
  %v1378 = vrot.slane %v75, 1
  %v1379 = vsel %vm94, %v1377, %v1378
  %v1380 = vrot.slane %v76, 1
  %v1381 = vsel %vm94, %v1378, %v1380
  %v1382 = vrot.slane %v77, 1
  %v1383 = vsel %vm94, %v1380, %v1382
  %v1384 = vrot.slane %v78, 1
  %v1385 = vsel %vm94, %v1382, %v1384
  %v1386 = vrot.slane %v79, 1
  %v1387 = vsel %vm94, %v1384, %v1386
  %v1388 = vrot.slane %v80, 1
  %v1389 = vsel %vm94, %v1386, %v1388
  %v1390 = vrot.slane %v81, 1
  %v1391 = vsel %vm94, %v1388, %v1390
  %1392 = vrot.lane.b32.xlu0 %v1379, 32
  %v1393 = vpop.permute.xlu0 %1392
  %1394 = vrot.lane.b32.xlu0 %v1381, 32
  %v1395 = vpop.permute.xlu0 %1394
  %1396 = vrot.lane.b32.xlu0 %v1383, 32
  %v1397 = vpop.permute.xlu0 %1396
  %1398 = vrot.lane.b32.xlu0 %v1385, 32
  %v1399 = vpop.permute.xlu0 %1398
  %1400 = vrot.lane.b32.xlu0 %v1387, 32
  %v1401 = vpop.permute.xlu0 %1400
  %1402 = vrot.lane.b32.xlu0 %v1389, 32
  %v1403 = vpop.permute.xlu0 %1402
  %1404 = vrot.lane.b32.xlu0 %v1391, 32
  %v1405 = vpop.permute.xlu0 %1404
  %1406 = vrot.lane.b32.xlu0 %v1390, 32
  %v1407 = vpop.permute.xlu0 %1406
  %v1416 = vrot.slane %v74, 2
  %v1417 = vrot.slane %v75, 2
  %v1418 = vsel %vm114, %v1416, %v1417
  %v1419 = vrot.slane %v76, 2
  %v1420 = vsel %vm114, %v1417, %v1419
  %v1421 = vrot.slane %v77, 2
  %v1422 = vsel %vm114, %v1419, %v1421
  %v1423 = vrot.slane %v78, 2
  %v1424 = vsel %vm114, %v1421, %v1423
  %v1425 = vrot.slane %v79, 2
  %v1426 = vsel %vm114, %v1423, %v1425
  %v1427 = vrot.slane %v80, 2
  %v1428 = vsel %vm114, %v1425, %v1427
  %v1429 = vrot.slane %v81, 2
  %v1430 = vsel %vm114, %v1427, %v1429
  %1431 = vrot.lane.b32.xlu0 %v1418, 64
  %v1432 = vpop.permute.xlu0 %1431
  %1433 = vrot.lane.b32.xlu0 %v1420, 64
  %v1434 = vpop.permute.xlu0 %1433
  %1435 = vrot.lane.b32.xlu0 %v1422, 64
  %v1436 = vpop.permute.xlu0 %1435
  %1437 = vrot.lane.b32.xlu0 %v1424, 64
  %v1438 = vpop.permute.xlu0 %1437
  %1439 = vrot.lane.b32.xlu0 %v1426, 64
  %v1440 = vpop.permute.xlu0 %1439
  %1441 = vrot.lane.b32.xlu0 %v1428, 64
  %v1442 = vpop.permute.xlu0 %1441
  %1443 = vrot.lane.b32.xlu0 %v1430, 64
  %v1444 = vpop.permute.xlu0 %1443
  %1445 = vrot.lane.b32.xlu0 %v1429, 64
  %v1446 = vpop.permute.xlu0 %1445
  %v1455 = vrot.slane %v74, 3
  %v1456 = vrot.slane %v75, 3
  %v1457 = vsel %vm134, %v1455, %v1456
  %v1458 = vrot.slane %v76, 3
  %v1459 = vsel %vm134, %v1456, %v1458
  %v1460 = vrot.slane %v77, 3
  %v1461 = vsel %vm134, %v1458, %v1460
  %v1462 = vrot.slane %v78, 3
  %v1463 = vsel %vm134, %v1460, %v1462
  %v1464 = vrot.slane %v79, 3
  %v1465 = vsel %vm134, %v1462, %v1464
  %v1466 = vrot.slane %v80, 3
  %v1467 = vsel %vm134, %v1464, %v1466
  %v1468 = vrot.slane %v81, 3
  %v1469 = vsel %vm134, %v1466, %v1468
  %1470 = vrot.lane.b32.xlu0 %v1457, 96
  %v1471 = vpop.permute.xlu0 %1470
  %1472 = vrot.lane.b32.xlu0 %v1459, 96
  %v1473 = vpop.permute.xlu0 %1472
  %1474 = vrot.lane.b32.xlu0 %v1461, 96
  %v1475 = vpop.permute.xlu0 %1474
  %1476 = vrot.lane.b32.xlu0 %v1463, 96
  %v1477 = vpop.permute.xlu0 %1476
  %1478 = vrot.lane.b32.xlu0 %v1465, 96
  %v1479 = vpop.permute.xlu0 %1478
  %1480 = vrot.lane.b32.xlu0 %v1467, 96
  %v1481 = vpop.permute.xlu0 %1480
  %1482 = vrot.lane.b32.xlu0 %v1469, 96
  %v1483 = vpop.permute.xlu0 %1482
  %1484 = vrot.lane.b32.xlu0 %v1468, 96
  %v1485 = vpop.permute.xlu0 %1484
  %v1494 = vsel %vm154, %v74, %v1393
  %v1495 = vsel %vm154, %v75, %v1395
  %v1496 = vsel %vm154, %v76, %v1397
  %v1497 = vsel %vm154, %v77, %v1399
  %v1498 = vsel %vm154, %v78, %v1401
  %v1499 = vsel %vm154, %v79, %v1403
  %v1500 = vsel %vm154, %v80, %v1405
  %v1501 = vsel %vm154, %v81, %v1407
  %v1502 = vsel %vm159, %v1494, %v1432
  %v1503 = vsel %vm159, %v1495, %v1434
  %v1504 = vsel %vm159, %v1496, %v1436
  %v1505 = vsel %vm159, %v1497, %v1438
  %v1506 = vsel %vm159, %v1498, %v1440
  %v1507 = vsel %vm159, %v1499, %v1442
  %v1508 = vsel %vm159, %v1500, %v1444
  %v1509 = vsel %vm159, %v1501, %v1446
  %v1510 = vsel %vm164, %v1502, %v1471
  %v1511 = vsel %vm164, %v1503, %v1473
  %v1512 = vsel %vm164, %v1504, %v1475
  %v1513 = vsel %vm164, %v1505, %v1477
  %v1514 = vsel %vm164, %v1506, %v1479
  %v1515 = vsel %vm164, %v1507, %v1481
  %v1516 = vsel %vm164, %v1508, %v1483
  %v1517 = vsel %vm164, %v1509, %v1485
  %v1526 = vrot.slane %v82, 1
  %v1527 = vrot.slane %v83, 1
  %v1528 = vsel %vm94, %v1526, %v1527
  %v1529 = vrot.slane %v84, 1
  %v1530 = vsel %vm94, %v1527, %v1529
  %v1531 = vrot.slane %v85, 1
  %v1532 = vsel %vm94, %v1529, %v1531
  %v1533 = vrot.slane %v86, 1
  %v1534 = vsel %vm94, %v1531, %v1533
  %v1535 = vrot.slane %v87, 1
  %v1536 = vsel %vm94, %v1533, %v1535
  %v1537 = vrot.slane %v88, 1
  %v1538 = vsel %vm94, %v1535, %v1537
  %v1539 = vrot.slane %v89, 1
  %v1540 = vsel %vm94, %v1537, %v1539
  %1541 = vrot.lane.b32.xlu0 %v1528, 32
  %v1542 = vpop.permute.xlu0 %1541
  %1543 = vrot.lane.b32.xlu0 %v1530, 32
  %v1544 = vpop.permute.xlu0 %1543
  %1545 = vrot.lane.b32.xlu0 %v1532, 32
  %v1546 = vpop.permute.xlu0 %1545
  %1547 = vrot.lane.b32.xlu0 %v1534, 32
  %v1548 = vpop.permute.xlu0 %1547
  %1549 = vrot.lane.b32.xlu0 %v1536, 32
  %v1550 = vpop.permute.xlu0 %1549
  %1551 = vrot.lane.b32.xlu0 %v1538, 32
  %v1552 = vpop.permute.xlu0 %1551
  %1553 = vrot.lane.b32.xlu0 %v1540, 32
  %v1554 = vpop.permute.xlu0 %1553
  %1555 = vrot.lane.b32.xlu0 %v1539, 32
  %v1556 = vpop.permute.xlu0 %1555
  %v1565 = vrot.slane %v82, 2
  %v1566 = vrot.slane %v83, 2
  %v1567 = vsel %vm114, %v1565, %v1566
  %v1568 = vrot.slane %v84, 2
  %v1569 = vsel %vm114, %v1566, %v1568
  %v1570 = vrot.slane %v85, 2
  %v1571 = vsel %vm114, %v1568, %v1570
  %v1572 = vrot.slane %v86, 2
  %v1573 = vsel %vm114, %v1570, %v1572
  %v1574 = vrot.slane %v87, 2
  %v1575 = vsel %vm114, %v1572, %v1574
  %v1576 = vrot.slane %v88, 2
  %v1577 = vsel %vm114, %v1574, %v1576
  %v1578 = vrot.slane %v89, 2
  %v1579 = vsel %vm114, %v1576, %v1578
  %1580 = vrot.lane.b32.xlu0 %v1567, 64
  %v1581 = vpop.permute.xlu0 %1580
  %1582 = vrot.lane.b32.xlu0 %v1569, 64
  %v1583 = vpop.permute.xlu0 %1582
  %1584 = vrot.lane.b32.xlu0 %v1571, 64
  %v1585 = vpop.permute.xlu0 %1584
  %1586 = vrot.lane.b32.xlu0 %v1573, 64
  %v1587 = vpop.permute.xlu0 %1586
  %1588 = vrot.lane.b32.xlu0 %v1575, 64
  %v1589 = vpop.permute.xlu0 %1588
  %1590 = vrot.lane.b32.xlu0 %v1577, 64
  %v1591 = vpop.permute.xlu0 %1590
  %1592 = vrot.lane.b32.xlu0 %v1579, 64
  %v1593 = vpop.permute.xlu0 %1592
  %1594 = vrot.lane.b32.xlu0 %v1578, 64
  %v1595 = vpop.permute.xlu0 %1594
  %v1604 = vrot.slane %v82, 3
  %v1605 = vrot.slane %v83, 3
  %v1606 = vsel %vm134, %v1604, %v1605
  %v1607 = vrot.slane %v84, 3
  %v1608 = vsel %vm134, %v1605, %v1607
  %v1609 = vrot.slane %v85, 3
  %v1610 = vsel %vm134, %v1607, %v1609
  %v1611 = vrot.slane %v86, 3
  %v1612 = vsel %vm134, %v1609, %v1611
  %v1613 = vrot.slane %v87, 3
  %v1614 = vsel %vm134, %v1611, %v1613
  %v1615 = vrot.slane %v88, 3
  %v1616 = vsel %vm134, %v1613, %v1615
  %v1617 = vrot.slane %v89, 3
  %v1618 = vsel %vm134, %v1615, %v1617
  %1619 = vrot.lane.b32.xlu0 %v1606, 96
  %v1620 = vpop.permute.xlu0 %1619
  %1621 = vrot.lane.b32.xlu0 %v1608, 96
  %v1622 = vpop.permute.xlu0 %1621
  %1623 = vrot.lane.b32.xlu0 %v1610, 96
  %v1624 = vpop.permute.xlu0 %1623
  %1625 = vrot.lane.b32.xlu0 %v1612, 96
  %v1626 = vpop.permute.xlu0 %1625
  %1627 = vrot.lane.b32.xlu0 %v1614, 96
  %v1628 = vpop.permute.xlu0 %1627
  %1629 = vrot.lane.b32.xlu0 %v1616, 96
  %v1630 = vpop.permute.xlu0 %1629
  %1631 = vrot.lane.b32.xlu0 %v1618, 96
  %v1632 = vpop.permute.xlu0 %1631
  %1633 = vrot.lane.b32.xlu0 %v1617, 96
  %v1634 = vpop.permute.xlu0 %1633
  %v1643 = vsel %vm154, %v82, %v1542
  %v1644 = vsel %vm154, %v83, %v1544
  %v1645 = vsel %vm154, %v84, %v1546
  %v1646 = vsel %vm154, %v85, %v1548
  %v1647 = vsel %vm154, %v86, %v1550
  %v1648 = vsel %vm154, %v87, %v1552
  %v1649 = vsel %vm154, %v88, %v1554
  %v1650 = vsel %vm154, %v89, %v1556
  %v1651 = vsel %vm159, %v1643, %v1581
  %v1652 = vsel %vm159, %v1644, %v1583
  %v1653 = vsel %vm159, %v1645, %v1585
  %v1654 = vsel %vm159, %v1646, %v1587
  %v1655 = vsel %vm159, %v1647, %v1589
  %v1656 = vsel %vm159, %v1648, %v1591
  %v1657 = vsel %vm159, %v1649, %v1593
  %v1658 = vsel %vm159, %v1650, %v1595
  %v1659 = vsel %vm164, %v1651, %v1620
  %v1660 = vsel %vm164, %v1652, %v1622
  %v1661 = vsel %vm164, %v1653, %v1624
  %v1662 = vsel %vm164, %v1654, %v1626
  %v1663 = vsel %vm164, %v1655, %v1628
  %v1664 = vsel %vm164, %v1656, %v1630
  %v1665 = vsel %vm164, %v1657, %v1632
  %v1666 = vsel %vm164, %v1658, %v1634
  %v1675 = vrot.slane %v1659, 3
  %v1676 = vrot.slane %v1660, 3
  %v1677 = vsel %vm134, %v1675, %v1676
  %v1678 = vrot.slane %v1661, 3
  %v1679 = vsel %vm134, %v1676, %v1678
  %v1680 = vrot.slane %v1662, 3
  %v1681 = vsel %vm134, %v1678, %v1680
  %v1682 = vrot.slane %v1663, 3
  %v1683 = vsel %vm134, %v1680, %v1682
  %v1684 = vrot.slane %v1664, 3
  %v1685 = vsel %vm134, %v1682, %v1684
  %v1686 = vrot.slane %v1665, 3
  %v1687 = vsel %vm134, %v1684, %v1686
  %v1688 = vrot.slane %v1666, 3
  %v1689 = vsel %vm134, %v1686, %v1688
  %v1699 = vsel %vm134, %v1517, %v1675
  %v1700 = vpack.c.bf16 %v1511, %v1510
  %v1701 = vpack.c.bf16 %v1513, %v1512
  %v1702 = vpack.c.bf16 %v1515, %v1514
  %v1703 = vpack.c.bf16 %v1699, %v1516
  %v1704 = vpack.c.bf16 %v1679, %v1677
  %v1705 = vpack.c.bf16 %v1683, %v1681
  %v1706 = vpack.c.bf16 %v1687, %v1685
  %v1707 = vpack.c.bf16 %v1688, %v1689
  %v1708 = vld [vmem:[%s8] sm:$0xf]
  %v1709 = vld [vmem:[%s8 + $0x4] sm:$0xf]
  %v1710 = vld [vmem:[%s8 + $0x8] sm:$0xf]
  %v1711 = vld [vmem:[%s8 + $0xc] sm:$0xf]
  %v1712 = vld [vmem:[%s8 + $0x10] sm:$0xf]
  %v1713 = vld [vmem:[%s8 + $0x14] sm:$0xf]
  %v1714 = vld [vmem:[%s8 + $0x18] sm:$0xf]
  %v1715 = vld [vmem:[%s8 + $0x1c] sm:$0xf]
  %v1716 = vld [vmem:[%s8 + $0x20] sm:$0xf]
  %v1717 = vld [vmem:[%s8 + $0x24] sm:$0xf]
  %v1718 = vld [vmem:[%s8 + $0x28] sm:$0xf]
  %v1719 = vld [vmem:[%s8 + $0x2c] sm:$0xf]
  %v1720 = vld [vmem:[%s8 + $0x30] sm:$0xf]
  %v1721 = vld [vmem:[%s8 + $0x34] sm:$0xf]
  %v1722 = vld [vmem:[%s8 + $0x38] sm:$0xf]
  %v1723 = vld [vmem:[%s8 + $0x3c] sm:$0xf]
  %v1724 = vld [vmem:[%s9] sm:$0x1]
  %v1726 = vperm.slane %v1724, 0
  %v1744 = vunpack.c.l.b16 %v1708
  %v1745 = vunpack.c.l.b16 %v1709
  %v1746 = vunpack.c.l.b16 %v1710
  %v1747 = vunpack.c.l.b16 %v1711
  %v1748 = vunpack.c.l.b16 %v1712
  %v1749 = vunpack.c.l.b16 %v1713
  %v1750 = vunpack.c.l.b16 %v1714
  %v1751 = vunpack.c.l.b16 %v1715
  %v1752 = vunpack.c.l.b16 %v1716
  %v1753 = vunpack.c.l.b16 %v1717
  %v1754 = vunpack.c.l.b16 %v1718
  %v1755 = vunpack.c.l.b16 %v1719
  %v1756 = vunpack.c.l.b16 %v1720
  %v1757 = vunpack.c.l.b16 %v1721
  %v1758 = vunpack.c.l.b16 %v1722
  %v1759 = vunpack.c.l.b16 %v1723
  %v1760 = vpack.c.b16 %v1745, %v1744
  %v1761 = vpack.c.b16 %v1747, %v1746
  %v1762 = vpack.c.b16 %v1749, %v1748
  %v1763 = vpack.c.b16 %v1751, %v1750
  %v1764 = vpack.c.b16 %v1753, %v1752
  %v1765 = vpack.c.b16 %v1755, %v1754
  %v1766 = vpack.c.b16 %v1757, %v1756
  %v1767 = vpack.c.b16 %v1759, %v1758
  %1776 = vmatpush.bf16.msra.mxu0 %v1767
  %1777 = vmatpush.bf16.msra.mxu0 %v1766
  %1778 = vmatpush.bf16.msra.mxu0 %v1765
  %1779 = vmatpush.bf16.msra.mxu0 %v1764
  %1780 = vmatpush.bf16.msra.mxu0 %v1763
  %1781 = vmatpush.bf16.msra.mxu0 %v1762
  %1782 = vmatpush.bf16.msra.mxu0 %v1761
  %1783 = vmatpush.bf16.msra.mxu0 %v1760
  %1784 = vmatmul.bf16.gmra.mxu0 %v1700
  %v1785 = vpop.f32.mrf.mxu0
  %v1786 = vadd.f32 %v1726, %v1785
  %v1787 = vpop.f32.mrf.mxu0
  %v1788 = vadd.f32 %v1726, %v1787
  %1789 = vmatmul.bf16.gmra.mxu0 %v1701
  %v1790 = vpop.f32.mrf.mxu0
  %v1791 = vadd.f32 %v1726, %v1790
  %v1792 = vpop.f32.mrf.mxu0
  %v1793 = vadd.f32 %v1726, %v1792
  %1794 = vmatmul.bf16.gmra.mxu0 %v1702
  %v1795 = vpop.f32.mrf.mxu0
  %v1796 = vadd.f32 %v1726, %v1795
  %v1797 = vpop.f32.mrf.mxu0
  %v1798 = vadd.f32 %v1726, %v1797
  %1799 = vmatmul.bf16.gmra.mxu0 %v1703
  %v1800 = vpop.f32.mrf.mxu0
  %v1801 = vadd.f32 %v1726, %v1800
  %v1802 = vpop.f32.mrf.mxu0
  %v1803 = vadd.f32 %v1726, %v1802
  %1804 = vmatmul.bf16.gmra.mxu0 %v1704
  %v1805 = vpop.f32.mrf.mxu0
  %v1806 = vadd.f32 %v1726, %v1805
  %v1807 = vpop.f32.mrf.mxu0
  %v1808 = vadd.f32 %v1726, %v1807
  %1809 = vmatmul.bf16.gmra.mxu0 %v1705
  %v1810 = vpop.f32.mrf.mxu0
  %v1811 = vadd.f32 %v1726, %v1810
  %v1812 = vpop.f32.mrf.mxu0
  %v1813 = vadd.f32 %v1726, %v1812
  %1814 = vmatmul.bf16.gmra.mxu0 %v1706
  %v1815 = vpop.f32.mrf.mxu0
  %v1816 = vadd.f32 %v1726, %v1815
  %v1817 = vpop.f32.mrf.mxu0
  %v1818 = vadd.f32 %v1726, %v1817
  %1819 = vmatmul.bf16.gmra.mxu0 %v1707
  %v1820 = vpop.f32.mrf.mxu0
  %v1821 = vadd.f32 %v1726, %v1820
  %v1822 = vpop.f32.mrf.mxu0
  %v1823 = vadd.f32 %v1726, %v1822
  %1824 = vdwg.mxu0
  %v1825 = vmax.f32 %v1786, 0.0
  %v1826 = vmax.f32 %v1788, 0.0
  %v1827 = vmax.f32 %v1791, 0.0
  %v1828 = vmax.f32 %v1793, 0.0
  %v1829 = vmax.f32 %v1796, 0.0
  %v1830 = vmax.f32 %v1798, 0.0
  %v1831 = vmax.f32 %v1801, 0.0
  %v1832 = vmax.f32 %v1803, 0.0
  %v1833 = vmax.f32 %v1806, 0.0
  %v1834 = vmax.f32 %v1808, 0.0
  %v1835 = vmax.f32 %v1811, 0.0
  %v1836 = vmax.f32 %v1813, 0.0
  %v1837 = vmax.f32 %v1816, 0.0
  %v1838 = vmax.f32 %v1818, 0.0
  %v1839 = vmax.f32 %v1821, 0.0
  %v1840 = vmax.f32 %v1823, 0.0
  %v1848 = vrot.slane %v1825, 1
  %v1849 = vrot.slane %v1826, 1
  %v1850 = vsel %vm94, %v1848, %v1849
  %v1851 = vrot.slane %v1827, 1
  %v1852 = vsel %vm94, %v1849, %v1851
  %v1853 = vrot.slane %v1828, 1
  %v1854 = vsel %vm94, %v1851, %v1853
  %v1855 = vrot.slane %v1829, 1
  %v1856 = vsel %vm94, %v1853, %v1855
  %v1857 = vrot.slane %v1830, 1
  %v1858 = vsel %vm94, %v1855, %v1857
  %v1859 = vrot.slane %v1831, 1
  %v1860 = vsel %vm94, %v1857, %v1859
  %1861 = vrot.lane.b32.xlu0 %v1850, 32
  %v1862 = vpop.permute.xlu0 %1861
  %1863 = vrot.lane.b32.xlu0 %v1852, 32
  %v1864 = vpop.permute.xlu0 %1863
  %1865 = vrot.lane.b32.xlu0 %v1854, 32
  %v1866 = vpop.permute.xlu0 %1865
  %1867 = vrot.lane.b32.xlu0 %v1856, 32
  %v1868 = vpop.permute.xlu0 %1867
  %1869 = vrot.lane.b32.xlu0 %v1858, 32
  %v1870 = vpop.permute.xlu0 %1869
  %1871 = vrot.lane.b32.xlu0 %v1860, 32
  %v1872 = vpop.permute.xlu0 %1871
  %1873 = vrot.lane.b32.xlu0 %v1859, 32
  %v1874 = vpop.permute.xlu0 %1873
  %v1882 = vrot.slane %v1825, 2
  %v1883 = vrot.slane %v1826, 2
  %v1884 = vsel %vm114, %v1882, %v1883
  %v1885 = vrot.slane %v1827, 2
  %v1886 = vsel %vm114, %v1883, %v1885
  %v1887 = vrot.slane %v1828, 2
  %v1888 = vsel %vm114, %v1885, %v1887
  %v1889 = vrot.slane %v1829, 2
  %v1890 = vsel %vm114, %v1887, %v1889
  %v1891 = vrot.slane %v1830, 2
  %v1892 = vsel %vm114, %v1889, %v1891
  %v1893 = vrot.slane %v1831, 2
  %v1894 = vsel %vm114, %v1891, %v1893
  %1895 = vrot.lane.b32.xlu0 %v1884, 64
  %v1896 = vpop.permute.xlu0 %1895
  %1897 = vrot.lane.b32.xlu0 %v1886, 64
  %v1898 = vpop.permute.xlu0 %1897
  %1899 = vrot.lane.b32.xlu0 %v1888, 64
  %v1900 = vpop.permute.xlu0 %1899
  %1901 = vrot.lane.b32.xlu0 %v1890, 64
  %v1902 = vpop.permute.xlu0 %1901
  %1903 = vrot.lane.b32.xlu0 %v1892, 64
  %v1904 = vpop.permute.xlu0 %1903
  %1905 = vrot.lane.b32.xlu0 %v1894, 64
  %v1906 = vpop.permute.xlu0 %1905
  %1907 = vrot.lane.b32.xlu0 %v1893, 64
  %v1908 = vpop.permute.xlu0 %1907
  %v1917 = vrot.slane %v1825, 3
  %v1918 = vrot.slane %v1826, 3
  %v1919 = vsel %vm134, %v1917, %v1918
  %v1920 = vrot.slane %v1827, 3
  %v1921 = vsel %vm134, %v1918, %v1920
  %v1922 = vrot.slane %v1828, 3
  %v1923 = vsel %vm134, %v1920, %v1922
  %v1924 = vrot.slane %v1829, 3
  %v1925 = vsel %vm134, %v1922, %v1924
  %v1926 = vrot.slane %v1830, 3
  %v1927 = vsel %vm134, %v1924, %v1926
  %v1928 = vrot.slane %v1831, 3
  %v1929 = vsel %vm134, %v1926, %v1928
  %v1930 = vrot.slane %v1832, 3
  %v1931 = vsel %vm134, %v1928, %v1930
  %1932 = vrot.lane.b32.xlu0 %v1919, 96
  %v1933 = vpop.permute.xlu0 %1932
  %1934 = vrot.lane.b32.xlu0 %v1921, 96
  %v1935 = vpop.permute.xlu0 %1934
  %1936 = vrot.lane.b32.xlu0 %v1923, 96
  %v1937 = vpop.permute.xlu0 %1936
  %1938 = vrot.lane.b32.xlu0 %v1925, 96
  %v1939 = vpop.permute.xlu0 %1938
  %1940 = vrot.lane.b32.xlu0 %v1927, 96
  %v1941 = vpop.permute.xlu0 %1940
  %1942 = vrot.lane.b32.xlu0 %v1929, 96
  %v1943 = vpop.permute.xlu0 %1942
  %1944 = vrot.lane.b32.xlu0 %v1931, 96
  %v1945 = vpop.permute.xlu0 %1944
  %v1953 = vrot.slane %v1825, 4
  %v1954 = vrot.slane %v1826, 4
  %v1955 = vsel %vm420, %v1953, %v1954
  %v1956 = vrot.slane %v1827, 4
  %v1957 = vsel %vm420, %v1954, %v1956
  %v1958 = vrot.slane %v1828, 4
  %v1959 = vsel %vm420, %v1956, %v1958
  %v1960 = vrot.slane %v1829, 4
  %v1961 = vsel %vm420, %v1958, %v1960
  %v1962 = vrot.slane %v1830, 4
  %v1963 = vsel %vm420, %v1960, %v1962
  %v1964 = vrot.slane %v1831, 4
  %v1965 = vsel %vm420, %v1962, %v1964
  %v1966 = vrot.slane %v1832, 4
  %v1967 = vsel %vm420, %v1964, %v1966
  %v1975 = vrot.slane %v1825, 5
  %v1976 = vrot.slane %v1826, 5
  %v1977 = vsel %vm431, %v1975, %v1976
  %v1978 = vrot.slane %v1827, 5
  %v1979 = vsel %vm431, %v1976, %v1978
  %v1980 = vrot.slane %v1828, 5
  %v1981 = vsel %vm431, %v1978, %v1980
  %v1982 = vrot.slane %v1829, 5
  %v1983 = vsel %vm431, %v1980, %v1982
  %v1984 = vrot.slane %v1830, 5
  %v1985 = vsel %vm431, %v1982, %v1984
  %v1986 = vrot.slane %v1831, 5
  %v1987 = vsel %vm431, %v1984, %v1986
  %v1988 = vrot.slane %v1832, 5
  %v1989 = vsel %vm431, %v1986, %v1988
  %1990 = vrot.lane.b32.xlu0 %v1977, 32
  %v1991 = vpop.permute.xlu0 %1990
  %1992 = vrot.lane.b32.xlu0 %v1979, 32
  %v1993 = vpop.permute.xlu0 %1992
  %1994 = vrot.lane.b32.xlu0 %v1981, 32
  %v1995 = vpop.permute.xlu0 %1994
  %1996 = vrot.lane.b32.xlu0 %v1983, 32
  %v1997 = vpop.permute.xlu0 %1996
  %1998 = vrot.lane.b32.xlu0 %v1985, 32
  %v1999 = vpop.permute.xlu0 %1998
  %2000 = vrot.lane.b32.xlu0 %v1987, 32
  %v2001 = vpop.permute.xlu0 %2000
  %2002 = vrot.lane.b32.xlu0 %v1989, 32
  %v2003 = vpop.permute.xlu0 %2002
  %v2011 = vrot.slane %v1825, 6
  %v2012 = vrot.slane %v1826, 6
  %v2013 = vsel %vm821, %v2011, %v2012
  %v2014 = vrot.slane %v1827, 6
  %v2015 = vsel %vm821, %v2012, %v2014
  %v2016 = vrot.slane %v1828, 6
  %v2017 = vsel %vm821, %v2014, %v2016
  %v2018 = vrot.slane %v1829, 6
  %v2019 = vsel %vm821, %v2016, %v2018
  %v2020 = vrot.slane %v1830, 6
  %v2021 = vsel %vm821, %v2018, %v2020
  %v2022 = vrot.slane %v1831, 6
  %v2023 = vsel %vm821, %v2020, %v2022
  %v2024 = vrot.slane %v1832, 6
  %v2025 = vsel %vm821, %v2022, %v2024
  %2026 = vrot.lane.b32.xlu0 %v2013, 64
  %v2027 = vpop.permute.xlu0 %2026
  %2028 = vrot.lane.b32.xlu0 %v2015, 64
  %v2029 = vpop.permute.xlu0 %2028
  %2030 = vrot.lane.b32.xlu0 %v2017, 64
  %v2031 = vpop.permute.xlu0 %2030
  %2032 = vrot.lane.b32.xlu0 %v2019, 64
  %v2033 = vpop.permute.xlu0 %2032
  %2034 = vrot.lane.b32.xlu0 %v2021, 64
  %v2035 = vpop.permute.xlu0 %2034
  %2036 = vrot.lane.b32.xlu0 %v2023, 64
  %v2037 = vpop.permute.xlu0 %2036
  %2038 = vrot.lane.b32.xlu0 %v2025, 64
  %v2039 = vpop.permute.xlu0 %2038
  %v2047 = vrot.slane %v1825, 7
  %v2048 = vrot.slane %v1826, 7
  %v2049 = vsel %vm830, %v2047, %v2048
  %v2050 = vrot.slane %v1827, 7
  %v2051 = vsel %vm830, %v2048, %v2050
  %v2052 = vrot.slane %v1828, 7
  %v2053 = vsel %vm830, %v2050, %v2052
  %v2054 = vrot.slane %v1829, 7
  %v2055 = vsel %vm830, %v2052, %v2054
  %v2056 = vrot.slane %v1830, 7
  %v2057 = vsel %vm830, %v2054, %v2056
  %v2058 = vrot.slane %v1831, 7
  %v2059 = vsel %vm830, %v2056, %v2058
  %v2060 = vrot.slane %v1832, 7
  %v2061 = vsel %vm830, %v2058, %v2060
  %2062 = vrot.lane.b32.xlu0 %v2049, 96
  %v2063 = vpop.permute.xlu0 %2062
  %2064 = vrot.lane.b32.xlu0 %v2051, 96
  %v2065 = vpop.permute.xlu0 %2064
  %2066 = vrot.lane.b32.xlu0 %v2053, 96
  %v2067 = vpop.permute.xlu0 %2066
  %2068 = vrot.lane.b32.xlu0 %v2055, 96
  %v2069 = vpop.permute.xlu0 %2068
  %2070 = vrot.lane.b32.xlu0 %v2057, 96
  %v2071 = vpop.permute.xlu0 %2070
  %2072 = vrot.lane.b32.xlu0 %v2059, 96
  %v2073 = vpop.permute.xlu0 %2072
  %2074 = vrot.lane.b32.xlu0 %v2061, 96
  %v2075 = vpop.permute.xlu0 %2074
  %v2083 = vsel %vm154, %v1825, %v1862
  %v2084 = vsel %vm154, %v1826, %v1864
  %v2085 = vsel %vm154, %v1827, %v1866
  %v2086 = vsel %vm154, %v1828, %v1868
  %v2087 = vsel %vm154, %v1829, %v1870
  %v2088 = vsel %vm154, %v1830, %v1872
  %v2089 = vsel %vm154, %v1831, %v1874
  %v2090 = vsel %vm159, %v2083, %v1896
  %v2091 = vsel %vm159, %v2084, %v1898
  %v2092 = vsel %vm159, %v2085, %v1900
  %v2093 = vsel %vm159, %v2086, %v1902
  %v2094 = vsel %vm159, %v2087, %v1904
  %v2095 = vsel %vm159, %v2088, %v1906
  %v2096 = vsel %vm159, %v2089, %v1908
  %v2097 = vsel %vm164, %v2090, %v1933
  %v2098 = vsel %vm164, %v2091, %v1935
  %v2099 = vsel %vm164, %v2092, %v1937
  %v2100 = vsel %vm164, %v2093, %v1939
  %v2101 = vsel %vm164, %v2094, %v1941
  %v2102 = vsel %vm164, %v2095, %v1943
  %v2103 = vsel %vm164, %v2096, %v1945
  %v2104 = vsel %vm154, %v1955, %v1991
  %v2105 = vsel %vm154, %v1957, %v1993
  %v2106 = vsel %vm154, %v1959, %v1995
  %v2107 = vsel %vm154, %v1961, %v1997
  %v2108 = vsel %vm154, %v1963, %v1999
  %v2109 = vsel %vm154, %v1965, %v2001
  %v2110 = vsel %vm154, %v1967, %v2003
  %v2111 = vsel %vm159, %v2104, %v2027
  %v2112 = vsel %vm159, %v2105, %v2029
  %v2113 = vsel %vm159, %v2106, %v2031
  %v2114 = vsel %vm159, %v2107, %v2033
  %v2115 = vsel %vm159, %v2108, %v2035
  %v2116 = vsel %vm159, %v2109, %v2037
  %v2117 = vsel %vm159, %v2110, %v2039
  %v2118 = vsel %vm164, %v2111, %v2063
  %v2119 = vsel %vm164, %v2112, %v2065
  %v2120 = vsel %vm164, %v2113, %v2067
  %v2121 = vsel %vm164, %v2114, %v2069
  %v2122 = vsel %vm164, %v2115, %v2071
  %v2123 = vsel %vm164, %v2116, %v2073
  %v2124 = vsel %vm164, %v2117, %v2075
  %v2132 = vrot.slane %v1832, 1
  %v2133 = vrot.slane %v1833, 1
  %v2134 = vsel %vm94, %v2132, %v2133
  %v2135 = vrot.slane %v1834, 1
  %v2136 = vsel %vm94, %v2133, %v2135
  %v2137 = vrot.slane %v1835, 1
  %v2138 = vsel %vm94, %v2135, %v2137
  %v2139 = vrot.slane %v1836, 1
  %v2140 = vsel %vm94, %v2137, %v2139
  %v2141 = vrot.slane %v1837, 1
  %v2142 = vsel %vm94, %v2139, %v2141
  %v2143 = vrot.slane %v1838, 1
  %v2144 = vsel %vm94, %v2141, %v2143
  %v2145 = vrot.slane %v1839, 1
  %v2146 = vsel %vm94, %v2143, %v2145
  %2147 = vrot.lane.b32.xlu0 %v2134, 32
  %v2148 = vpop.permute.xlu0 %2147
  %2149 = vrot.lane.b32.xlu0 %v2136, 32
  %v2150 = vpop.permute.xlu0 %2149
  %2151 = vrot.lane.b32.xlu0 %v2138, 32
  %v2152 = vpop.permute.xlu0 %2151
  %2153 = vrot.lane.b32.xlu0 %v2140, 32
  %v2154 = vpop.permute.xlu0 %2153
  %2155 = vrot.lane.b32.xlu0 %v2142, 32
  %v2156 = vpop.permute.xlu0 %2155
  %2157 = vrot.lane.b32.xlu0 %v2144, 32
  %v2158 = vpop.permute.xlu0 %2157
  %2159 = vrot.lane.b32.xlu0 %v2146, 32
  %v2160 = vpop.permute.xlu0 %2159
  %2161 = vrot.lane.b32.xlu0 %v2145, 32
  %v2162 = vpop.permute.xlu0 %2161
  %v2171 = vrot.slane %v1832, 2
  %v2172 = vrot.slane %v1833, 2
  %v2173 = vsel %vm114, %v2171, %v2172
  %v2174 = vrot.slane %v1834, 2
  %v2175 = vsel %vm114, %v2172, %v2174
  %v2176 = vrot.slane %v1835, 2
  %v2177 = vsel %vm114, %v2174, %v2176
  %v2178 = vrot.slane %v1836, 2
  %v2179 = vsel %vm114, %v2176, %v2178
  %v2180 = vrot.slane %v1837, 2
  %v2181 = vsel %vm114, %v2178, %v2180
  %v2182 = vrot.slane %v1838, 2
  %v2183 = vsel %vm114, %v2180, %v2182
  %v2184 = vrot.slane %v1839, 2
  %v2185 = vsel %vm114, %v2182, %v2184
  %2186 = vrot.lane.b32.xlu0 %v2173, 64
  %v2187 = vpop.permute.xlu0 %2186
  %2188 = vrot.lane.b32.xlu0 %v2175, 64
  %v2189 = vpop.permute.xlu0 %2188
  %2190 = vrot.lane.b32.xlu0 %v2177, 64
  %v2191 = vpop.permute.xlu0 %2190
  %2192 = vrot.lane.b32.xlu0 %v2179, 64
  %v2193 = vpop.permute.xlu0 %2192
  %2194 = vrot.lane.b32.xlu0 %v2181, 64
  %v2195 = vpop.permute.xlu0 %2194
  %2196 = vrot.lane.b32.xlu0 %v2183, 64
  %v2197 = vpop.permute.xlu0 %2196
  %2198 = vrot.lane.b32.xlu0 %v2185, 64
  %v2199 = vpop.permute.xlu0 %2198
  %2200 = vrot.lane.b32.xlu0 %v2184, 64
  %v2201 = vpop.permute.xlu0 %2200
  %v2210 = vrot.slane %v1833, 3
  %v2211 = vrot.slane %v1834, 3
  %v2212 = vsel %vm134, %v2210, %v2211
  %v2213 = vrot.slane %v1835, 3
  %v2214 = vsel %vm134, %v2211, %v2213
  %v2215 = vrot.slane %v1836, 3
  %v2216 = vsel %vm134, %v2213, %v2215
  %v2217 = vrot.slane %v1837, 3
  %v2218 = vsel %vm134, %v2215, %v2217
  %v2219 = vrot.slane %v1838, 3
  %v2220 = vsel %vm134, %v2217, %v2219
  %v2221 = vrot.slane %v1839, 3
  %v2222 = vsel %vm134, %v2219, %v2221
  %2223 = vrot.lane.b32.xlu0 %v2210, 96
  %v2224 = vpop.permute.xlu0 %2223
  %2225 = vrot.lane.b32.xlu0 %v2212, 96
  %v2226 = vpop.permute.xlu0 %2225
  %2227 = vrot.lane.b32.xlu0 %v2214, 96
  %v2228 = vpop.permute.xlu0 %2227
  %2229 = vrot.lane.b32.xlu0 %v2216, 96
  %v2230 = vpop.permute.xlu0 %2229
  %2231 = vrot.lane.b32.xlu0 %v2218, 96
  %v2232 = vpop.permute.xlu0 %2231
  %2233 = vrot.lane.b32.xlu0 %v2220, 96
  %v2234 = vpop.permute.xlu0 %2233
  %2235 = vrot.lane.b32.xlu0 %v2222, 96
  %v2236 = vpop.permute.xlu0 %2235
  %2237 = vrot.lane.b32.xlu0 %v2221, 96
  %v2238 = vpop.permute.xlu0 %2237
  %v2247 = vrot.slane %v1833, 4
  %v2248 = vrot.slane %v1834, 4
  %v2249 = vsel %vm420, %v2247, %v2248
  %v2250 = vrot.slane %v1835, 4
  %v2251 = vsel %vm420, %v2248, %v2250
  %v2252 = vrot.slane %v1836, 4
  %v2253 = vsel %vm420, %v2250, %v2252
  %v2254 = vrot.slane %v1837, 4
  %v2255 = vsel %vm420, %v2252, %v2254
  %v2256 = vrot.slane %v1838, 4
  %v2257 = vsel %vm420, %v2254, %v2256
  %v2258 = vrot.slane %v1839, 4
  %v2259 = vsel %vm420, %v2256, %v2258
  %v2268 = vrot.slane %v1833, 5
  %v2269 = vrot.slane %v1834, 5
  %v2270 = vsel %vm431, %v2268, %v2269
  %v2271 = vrot.slane %v1835, 5
  %v2272 = vsel %vm431, %v2269, %v2271
  %v2273 = vrot.slane %v1836, 5
  %v2274 = vsel %vm431, %v2271, %v2273
  %v2275 = vrot.slane %v1837, 5
  %v2276 = vsel %vm431, %v2273, %v2275
  %v2277 = vrot.slane %v1838, 5
  %v2278 = vsel %vm431, %v2275, %v2277
  %v2279 = vrot.slane %v1839, 5
  %v2280 = vsel %vm431, %v2277, %v2279
  %2281 = vrot.lane.b32.xlu0 %v2268, 32
  %v2282 = vpop.permute.xlu0 %2281
  %2283 = vrot.lane.b32.xlu0 %v2270, 32
  %v2284 = vpop.permute.xlu0 %2283
  %2285 = vrot.lane.b32.xlu0 %v2272, 32
  %v2286 = vpop.permute.xlu0 %2285
  %2287 = vrot.lane.b32.xlu0 %v2274, 32
  %v2288 = vpop.permute.xlu0 %2287
  %2289 = vrot.lane.b32.xlu0 %v2276, 32
  %v2290 = vpop.permute.xlu0 %2289
  %2291 = vrot.lane.b32.xlu0 %v2278, 32
  %v2292 = vpop.permute.xlu0 %2291
  %2293 = vrot.lane.b32.xlu0 %v2280, 32
  %v2294 = vpop.permute.xlu0 %2293
  %2295 = vrot.lane.b32.xlu0 %v2279, 32
  %v2296 = vpop.permute.xlu0 %2295
  %v2306 = vrot.slane %v1833, 6
  %v2307 = vrot.slane %v1834, 6
  %v2308 = vsel %vm821, %v2306, %v2307
  %v2309 = vrot.slane %v1835, 6
  %v2310 = vsel %vm821, %v2307, %v2309
  %v2311 = vrot.slane %v1836, 6
  %v2312 = vsel %vm821, %v2309, %v2311
  %v2313 = vrot.slane %v1837, 6
  %v2314 = vsel %vm821, %v2311, %v2313
  %v2315 = vrot.slane %v1838, 6
  %v2316 = vsel %vm821, %v2313, %v2315
  %v2317 = vrot.slane %v1839, 6
  %v2318 = vsel %vm821, %v2315, %v2317
  %v2319 = vrot.slane %v1840, 6
  %v2320 = vsel %vm821, %v2317, %v2319
  %2321 = vrot.lane.b32.xlu0 %v2306, 64
  %v2322 = vpop.permute.xlu0 %2321
  %2323 = vrot.lane.b32.xlu0 %v2308, 64
  %v2324 = vpop.permute.xlu0 %2323
  %2325 = vrot.lane.b32.xlu0 %v2310, 64
  %v2326 = vpop.permute.xlu0 %2325
  %2327 = vrot.lane.b32.xlu0 %v2312, 64
  %v2328 = vpop.permute.xlu0 %2327
  %2329 = vrot.lane.b32.xlu0 %v2314, 64
  %v2330 = vpop.permute.xlu0 %2329
  %2331 = vrot.lane.b32.xlu0 %v2316, 64
  %v2332 = vpop.permute.xlu0 %2331
  %2333 = vrot.lane.b32.xlu0 %v2318, 64
  %v2334 = vpop.permute.xlu0 %2333
  %2335 = vrot.lane.b32.xlu0 %v2320, 64
  %v2336 = vpop.permute.xlu0 %2335
  %v2345 = vrot.slane %v1833, 7
  %v2346 = vrot.slane %v1834, 7
  %v2347 = vsel %vm830, %v2345, %v2346
  %v2348 = vrot.slane %v1835, 7
  %v2349 = vsel %vm830, %v2346, %v2348
  %v2350 = vrot.slane %v1836, 7
  %v2351 = vsel %vm830, %v2348, %v2350
  %v2352 = vrot.slane %v1837, 7
  %v2353 = vsel %vm830, %v2350, %v2352
  %v2354 = vrot.slane %v1838, 7
  %v2355 = vsel %vm830, %v2352, %v2354
  %v2356 = vrot.slane %v1839, 7
  %v2357 = vsel %vm830, %v2354, %v2356
  %v2358 = vrot.slane %v1840, 7
  %v2359 = vsel %vm830, %v2356, %v2358
  %2360 = vrot.lane.b32.xlu0 %v2345, 96
  %v2361 = vpop.permute.xlu0 %2360
  %2362 = vrot.lane.b32.xlu0 %v2347, 96
  %v2363 = vpop.permute.xlu0 %2362
  %2364 = vrot.lane.b32.xlu0 %v2349, 96
  %v2365 = vpop.permute.xlu0 %2364
  %2366 = vrot.lane.b32.xlu0 %v2351, 96
  %v2367 = vpop.permute.xlu0 %2366
  %2368 = vrot.lane.b32.xlu0 %v2353, 96
  %v2369 = vpop.permute.xlu0 %2368
  %2370 = vrot.lane.b32.xlu0 %v2355, 96
  %v2371 = vpop.permute.xlu0 %2370
  %2372 = vrot.lane.b32.xlu0 %v2357, 96
  %v2373 = vpop.permute.xlu0 %2372
  %2374 = vrot.lane.b32.xlu0 %v2359, 96
  %v2375 = vpop.permute.xlu0 %2374
  %v2384 = vsel %vm154, %v1832, %v2148
  %v2385 = vsel %vm154, %v1833, %v2150
  %v2386 = vsel %vm154, %v1834, %v2152
  %v2387 = vsel %vm154, %v1835, %v2154
  %v2388 = vsel %vm154, %v1836, %v2156
  %v2389 = vsel %vm154, %v1837, %v2158
  %v2390 = vsel %vm154, %v1838, %v2160
  %v2391 = vsel %vm154, %v1839, %v2162
  %v2392 = vsel %vm159, %v2384, %v2187
  %v2393 = vsel %vm159, %v2385, %v2189
  %v2394 = vsel %vm159, %v2386, %v2191
  %v2395 = vsel %vm159, %v2387, %v2193
  %v2396 = vsel %vm159, %v2388, %v2195
  %v2397 = vsel %vm159, %v2389, %v2197
  %v2398 = vsel %vm159, %v2390, %v2199
  %v2399 = vsel %vm159, %v2391, %v2201
  %v2400 = vsel %vm164, %v2392, %v2224
  %v2401 = vsel %vm164, %v2393, %v2226
  %v2402 = vsel %vm164, %v2394, %v2228
  %v2403 = vsel %vm164, %v2395, %v2230
  %v2404 = vsel %vm164, %v2396, %v2232
  %v2405 = vsel %vm164, %v2397, %v2234
  %v2406 = vsel %vm164, %v2398, %v2236
  %v2407 = vsel %vm164, %v2399, %v2238
  %v2408 = vsel %vm154, %v2247, %v2282
  %v2409 = vsel %vm154, %v2249, %v2284
  %v2410 = vsel %vm154, %v2251, %v2286
  %v2411 = vsel %vm154, %v2253, %v2288
  %v2412 = vsel %vm154, %v2255, %v2290
  %v2413 = vsel %vm154, %v2257, %v2292
  %v2414 = vsel %vm154, %v2259, %v2294
  %v2415 = vsel %vm154, %v2258, %v2296
  %v2416 = vsel %vm159, %v2408, %v2322
  %v2417 = vsel %vm159, %v2409, %v2324
  %v2418 = vsel %vm159, %v2410, %v2326
  %v2419 = vsel %vm159, %v2411, %v2328
  %v2420 = vsel %vm159, %v2412, %v2330
  %v2421 = vsel %vm159, %v2413, %v2332
  %v2422 = vsel %vm159, %v2414, %v2334
  %v2423 = vsel %vm159, %v2415, %v2336
  %v2424 = vsel %vm164, %v2416, %v2361
  %v2425 = vsel %vm164, %v2417, %v2363
  %v2426 = vsel %vm164, %v2418, %v2365
  %v2427 = vsel %vm164, %v2419, %v2367
  %v2428 = vsel %vm164, %v2420, %v2369
  %v2429 = vsel %vm164, %v2421, %v2371
  %v2430 = vsel %vm164, %v2422, %v2373
  %v2431 = vsel %vm164, %v2423, %v2375
  %v2448 = vrot.slane %v2400, 7
  %v2449 = vrot.slane %v2424, 7
  %v2450 = vrot.slane %v2401, 7
  %v2451 = vsel %vm830, %v2448, %v2450
  %v2452 = vrot.slane %v2425, 7
  %v2453 = vsel %vm830, %v2449, %v2452
  %v2454 = vrot.slane %v2402, 7
  %v2455 = vsel %vm830, %v2450, %v2454
  %v2456 = vrot.slane %v2426, 7
  %v2457 = vsel %vm830, %v2452, %v2456
  %v2458 = vrot.slane %v2403, 7
  %v2459 = vsel %vm830, %v2454, %v2458
  %v2460 = vrot.slane %v2427, 7
  %v2461 = vsel %vm830, %v2456, %v2460
  %v2462 = vrot.slane %v2404, 7
  %v2463 = vsel %vm830, %v2458, %v2462
  %v2464 = vrot.slane %v2428, 7
  %v2465 = vsel %vm830, %v2460, %v2464
  %v2466 = vrot.slane %v2405, 7
  %v2467 = vsel %vm830, %v2462, %v2466
  %v2468 = vrot.slane %v2429, 7
  %v2469 = vsel %vm830, %v2464, %v2468
  %v2470 = vrot.slane %v2406, 7
  %v2471 = vsel %vm830, %v2466, %v2470
  %v2472 = vrot.slane %v2430, 7
  %v2473 = vsel %vm830, %v2468, %v2472
  %v2474 = vrot.slane %v2407, 7
  %v2475 = vsel %vm830, %v2470, %v2474
  %v2476 = vrot.slane %v2431, 7
  %v2477 = vsel %vm830, %v2472, %v2476
  %v2494 = vsel %vm114, %v2103, %v2448
  %v2495 = vsel %vm114, %v2124, %v2449
  %v2496 = vpack.c.bf16 %v2098, %v2097
  %v2497 = vpack.c.bf16 %v2119, %v2118
  %v2498 = vpack.c.bf16 %v2100, %v2099
  %v2499 = vpack.c.bf16 %v2121, %v2120
  %v2500 = vpack.c.bf16 %v2102, %v2101
  %v2501 = vpack.c.bf16 %v2123, %v2122
  %v2502 = vpack.c.bf16 %v2451, %v2494
  %v2503 = vpack.c.bf16 %v2453, %v2495
  %v2504 = vpack.c.bf16 %v2459, %v2455
  %v2505 = vpack.c.bf16 %v2461, %v2457
  %v2506 = vpack.c.bf16 %v2467, %v2463
  %v2507 = vpack.c.bf16 %v2469, %v2465
  %v2508 = vpack.c.bf16 %v2475, %v2471
  %v2509 = vpack.c.bf16 %v2477, %v2473
  %v2510 = vld [vmem:[%s10] sm:$0xf]
  %v2511 = vld [vmem:[%s10 + $0x4] sm:$0xf]
  %v2512 = vld [vmem:[%s10 + $0x8] sm:$0xf]
  %v2513 = vld [vmem:[%s10 + $0xc] sm:$0xf]
  %v2514 = vld [vmem:[%s10 + $0x10] sm:$0xf]
  %v2515 = vld [vmem:[%s10 + $0x14] sm:$0xf]
  %v2516 = vld [vmem:[%s10 + $0x18] sm:$0xf]
  %v2517 = vld [vmem:[%s10 + $0x1c] sm:$0xf]
  %v2518 = vld [vmem:[%s10 + $0x20] sm:$0xf]
  %v2519 = vld [vmem:[%s10 + $0x24] sm:$0xf]
  %v2520 = vld [vmem:[%s10 + $0x28] sm:$0xf]
  %v2521 = vld [vmem:[%s10 + $0x2c] sm:$0xf]
  %v2522 = vld [vmem:[%s10 + $0x30] sm:$0xf]
  %v2523 = vld [vmem:[%s10 + $0x34] sm:$0xf]
  %v2524 = vld [vmem:[%s10 + $0x38] sm:$0xf]
  %v2525 = vld [vmem:[%s10 + $0x3c] sm:$0xf]
  %v2526 = vld [vmem:[%s10 + $0x40] sm:$0xf]
  %v2527 = vld [vmem:[%s10 + $0x44] sm:$0xf]
  %v2528 = vld [vmem:[%s10 + $0x48] sm:$0xf]
  %v2529 = vld [vmem:[%s10 + $0x4c] sm:$0xf]
  %v2530 = vld [vmem:[%s10 + $0x50] sm:$0xf]
  %v2531 = vld [vmem:[%s10 + $0x54] sm:$0xf]
  %v2532 = vld [vmem:[%s10 + $0x58] sm:$0xf]
  %v2533 = vld [vmem:[%s10 + $0x5c] sm:$0xf]
  %v2534 = vld [vmem:[%s10 + $0x60] sm:$0xf]
  %v2535 = vld [vmem:[%s10 + $0x64] sm:$0xf]
  %v2536 = vld [vmem:[%s10 + $0x68] sm:$0xf]
  %v2537 = vld [vmem:[%s10 + $0x6c] sm:$0xf]
  %v2538 = vld [vmem:[%s10 + $0x70] sm:$0xf]
  %v2539 = vld [vmem:[%s10 + $0x74] sm:$0xf]
  %v2540 = vld [vmem:[%s10 + $0x78] sm:$0xf]
  %v2541 = vld [vmem:[%s10 + $0x7c] sm:$0xf]
  %v2542 = vld [vmem:[%s11] sm:$0x1]
  %v2544 = vperm.slane %v2542, 0
  %v2578 = vunpack.c.l.b16 %v2510
  %v2579 = vunpack.c.l.b16 %v2511
  %v2580 = vunpack.c.l.b16 %v2512
  %v2581 = vunpack.c.l.b16 %v2513
  %v2582 = vunpack.c.l.b16 %v2514
  %v2583 = vunpack.c.l.b16 %v2515
  %v2584 = vunpack.c.l.b16 %v2516
  %v2585 = vunpack.c.l.b16 %v2517
  %v2586 = vunpack.c.l.b16 %v2518
  %v2587 = vunpack.c.l.b16 %v2519
  %v2588 = vunpack.c.l.b16 %v2520
  %v2589 = vunpack.c.l.b16 %v2521
  %v2590 = vunpack.c.l.b16 %v2522
  %v2591 = vunpack.c.l.b16 %v2523
  %v2592 = vunpack.c.l.b16 %v2524
  %v2593 = vunpack.c.l.b16 %v2525
  %v2594 = vunpack.c.l.b16 %v2526
  %v2595 = vunpack.c.l.b16 %v2527
  %v2596 = vunpack.c.l.b16 %v2528
  %v2597 = vunpack.c.l.b16 %v2529
  %v2598 = vunpack.c.l.b16 %v2530
  %v2599 = vunpack.c.l.b16 %v2531
  %v2600 = vunpack.c.l.b16 %v2532
  %v2601 = vunpack.c.l.b16 %v2533
  %v2602 = vunpack.c.l.b16 %v2534
  %v2603 = vunpack.c.l.b16 %v2535
  %v2604 = vunpack.c.l.b16 %v2536
  %v2605 = vunpack.c.l.b16 %v2537
  %v2606 = vunpack.c.l.b16 %v2538
  %v2607 = vunpack.c.l.b16 %v2539
  %v2608 = vunpack.c.l.b16 %v2540
  %v2609 = vunpack.c.l.b16 %v2541
  %v2610 = vpack.c.b16 %v2579, %v2578
  %v2611 = vpack.c.b16 %v2581, %v2580
  %v2612 = vpack.c.b16 %v2583, %v2582
  %v2613 = vpack.c.b16 %v2585, %v2584
  %v2614 = vpack.c.b16 %v2587, %v2586
  %v2615 = vpack.c.b16 %v2589, %v2588
  %v2616 = vpack.c.b16 %v2591, %v2590
  %v2617 = vpack.c.b16 %v2593, %v2592
  %v2618 = vpack.c.b16 %v2595, %v2594
  %v2619 = vpack.c.b16 %v2597, %v2596
  %v2620 = vpack.c.b16 %v2599, %v2598
  %v2621 = vpack.c.b16 %v2601, %v2600
  %v2622 = vpack.c.b16 %v2603, %v2602
  %v2623 = vpack.c.b16 %v2605, %v2604
  %v2624 = vpack.c.b16 %v2607, %v2606
  %v2625 = vpack.c.b16 %v2609, %v2608
  %2642 = vmatpush.bf16.msra.mxu0 %v2617
  %2643 = vmatpush.bf16.msra.mxu0 %v2616
  %2644 = vmatpush.bf16.msra.mxu0 %v2615
  %2645 = vmatpush.bf16.msra.mxu0 %v2614
  %2646 = vmatpush.bf16.msra.mxu0 %v2613
  %2647 = vmatpush.bf16.msra.mxu0 %v2612
  %2648 = vmatpush.bf16.msra.mxu0 %v2611
  %2649 = vmatpush.bf16.msra.mxu0 %v2610
  %2650 = vmatmul.bf16.gmra.mxu0 %v2496
  %v2651 = vpop.f32.mrf.mxu0
  %v2652 = vadd.f32 %v2544, %v2651
  %v2653 = vpop.f32.mrf.mxu0
  %v2654 = vadd.f32 %v2544, %v2653
  %2655 = vmatmul.bf16.gmra.mxu0 %v2498
  %v2656 = vpop.f32.mrf.mxu0
  %v2657 = vadd.f32 %v2544, %v2656
  %v2658 = vpop.f32.mrf.mxu0
  %v2659 = vadd.f32 %v2544, %v2658
  %2660 = vmatmul.bf16.gmra.mxu0 %v2500
  %v2661 = vpop.f32.mrf.mxu0
  %v2662 = vadd.f32 %v2544, %v2661
  %v2663 = vpop.f32.mrf.mxu0
  %v2664 = vadd.f32 %v2544, %v2663
  %2665 = vmatmul.bf16.gmra.mxu0 %v2502
  %v2666 = vpop.f32.mrf.mxu0
  %v2667 = vadd.f32 %v2544, %v2666
  %v2668 = vpop.f32.mrf.mxu0
  %v2669 = vadd.f32 %v2544, %v2668
  %2670 = vmatmul.bf16.gmra.mxu0 %v2504
  %v2671 = vpop.f32.mrf.mxu0
  %v2672 = vadd.f32 %v2544, %v2671
  %v2673 = vpop.f32.mrf.mxu0
  %v2674 = vadd.f32 %v2544, %v2673
  %2675 = vmatmul.bf16.gmra.mxu0 %v2506
  %v2676 = vpop.f32.mrf.mxu0
  %v2677 = vadd.f32 %v2544, %v2676
  %v2678 = vpop.f32.mrf.mxu0
  %v2679 = vadd.f32 %v2544, %v2678
  %2680 = vmatmul.bf16.gmra.mxu0 %v2508
  %v2681 = vpop.f32.mrf.mxu0
  %v2682 = vadd.f32 %v2544, %v2681
  %v2683 = vpop.f32.mrf.mxu0
  %v2684 = vadd.f32 %v2544, %v2683
  %2685 = vdwg.mxu0
  %2686 = vmatpush.bf16.msra.mxu0 %v2625
  %2687 = vmatpush.bf16.msra.mxu0 %v2624
  %2688 = vmatpush.bf16.msra.mxu0 %v2623
  %2689 = vmatpush.bf16.msra.mxu0 %v2622
  %2690 = vmatpush.bf16.msra.mxu0 %v2621
  %2691 = vmatpush.bf16.msra.mxu0 %v2620
  %2692 = vmatpush.bf16.msra.mxu0 %v2619
  %2693 = vmatpush.bf16.msra.mxu0 %v2618
  %2694 = vmatmul.bf16.gmra.mxu0 %v2497
  %v2695 = vpop.f32.mrf.mxu0
  %v2696 = vadd.f32 %v2652, %v2695
  %v2697 = vpop.f32.mrf.mxu0
  %v2698 = vadd.f32 %v2654, %v2697
  %2699 = vmatmul.bf16.gmra.mxu0 %v2499
  %v2700 = vpop.f32.mrf.mxu0
  %v2701 = vadd.f32 %v2657, %v2700
  %v2702 = vpop.f32.mrf.mxu0
  %v2703 = vadd.f32 %v2659, %v2702
  %2704 = vmatmul.bf16.gmra.mxu0 %v2501
  %v2705 = vpop.f32.mrf.mxu0
  %v2706 = vadd.f32 %v2662, %v2705
  %v2707 = vpop.f32.mrf.mxu0
  %v2708 = vadd.f32 %v2664, %v2707
  %2709 = vmatmul.bf16.gmra.mxu0 %v2503
  %v2710 = vpop.f32.mrf.mxu0
  %v2711 = vadd.f32 %v2667, %v2710
  %v2712 = vpop.f32.mrf.mxu0
  %v2713 = vadd.f32 %v2669, %v2712
  %2714 = vmatmul.bf16.gmra.mxu0 %v2505
  %v2715 = vpop.f32.mrf.mxu0
  %v2716 = vadd.f32 %v2672, %v2715
  %v2717 = vpop.f32.mrf.mxu0
  %v2718 = vadd.f32 %v2674, %v2717
  %2719 = vmatmul.bf16.gmra.mxu0 %v2507
  %v2720 = vpop.f32.mrf.mxu0
  %v2721 = vadd.f32 %v2677, %v2720
  %v2722 = vpop.f32.mrf.mxu0
  %v2723 = vadd.f32 %v2679, %v2722
  %2724 = vmatmul.bf16.gmra.mxu0 %v2509
  %v2725 = vpop.f32.mrf.mxu0
  %v2726 = vadd.f32 %v2682, %v2725
  %v2727 = vpop.f32.mrf.mxu0
  %v2728 = vadd.f32 %v2684, %v2727
  %2729 = vdwg.mxu0
  %v2730 = vmax.f32 %v2696, 0.0
  %v2731 = vmax.f32 %v2698, 0.0
  %v2732 = vmax.f32 %v2701, 0.0
  %v2733 = vmax.f32 %v2703, 0.0
  %v2734 = vmax.f32 %v2706, 0.0
  %v2735 = vmax.f32 %v2708, 0.0
  %v2736 = vmax.f32 %v2711, 0.0
  %v2737 = vmax.f32 %v2713, 0.0
  %v2738 = vmax.f32 %v2716, 0.0
  %v2739 = vmax.f32 %v2718, 0.0
  %v2740 = vmax.f32 %v2721, 0.0
  %v2741 = vmax.f32 %v2723, 0.0
  %v2742 = vmax.f32 %v2726, 0.0
  %v2743 = vmax.f32 %v2728, 0.0
  %v2750 = vrot.slane %v2730, 1
  %v2751 = vrot.slane %v2731, 1
  %v2752 = vsel %vm94, %v2750, %v2751
  %v2753 = vrot.slane %v2732, 1
  %v2754 = vsel %vm94, %v2751, %v2753
  %v2755 = vrot.slane %v2733, 1
  %v2756 = vsel %vm94, %v2753, %v2755
  %v2757 = vrot.slane %v2734, 1
  %v2758 = vsel %vm94, %v2755, %v2757
  %v2759 = vrot.slane %v2735, 1
  %v2760 = vsel %vm94, %v2757, %v2759
  %2761 = vrot.lane.b32.xlu0 %v2752, 64
  %v2762 = vpop.permute.xlu0 %2761
  %2763 = vrot.lane.b32.xlu0 %v2754, 64
  %v2764 = vpop.permute.xlu0 %2763
  %2765 = vrot.lane.b32.xlu0 %v2756, 64
  %v2766 = vpop.permute.xlu0 %2765
  %2767 = vrot.lane.b32.xlu0 %v2758, 64
  %v2768 = vpop.permute.xlu0 %2767
  %2769 = vrot.lane.b32.xlu0 %v2760, 64
  %v2770 = vpop.permute.xlu0 %2769
  %2771 = vrot.lane.b32.xlu0 %v2759, 64
  %v2772 = vpop.permute.xlu0 %2771
  %v2779 = vrot.slane %v2730, 2
  %v2780 = vrot.slane %v2731, 2
  %v2781 = vsel %vm114, %v2779, %v2780
  %v2782 = vrot.slane %v2732, 2
  %v2783 = vsel %vm114, %v2780, %v2782
  %v2784 = vrot.slane %v2733, 2
  %v2785 = vsel %vm114, %v2782, %v2784
  %v2786 = vrot.slane %v2734, 2
  %v2787 = vsel %vm114, %v2784, %v2786
  %v2788 = vrot.slane %v2735, 2
  %v2789 = vsel %vm114, %v2786, %v2788
  %v2796 = vrot.slane %v2730, 3
  %v2797 = vrot.slane %v2731, 3
  %v2798 = vsel %vm134, %v2796, %v2797
  %v2799 = vrot.slane %v2732, 3
  %v2800 = vsel %vm134, %v2797, %v2799
  %v2801 = vrot.slane %v2733, 3
  %v2802 = vsel %vm134, %v2799, %v2801
  %v2803 = vrot.slane %v2734, 3
  %v2804 = vsel %vm134, %v2801, %v2803
  %v2805 = vrot.slane %v2735, 3
  %v2806 = vsel %vm134, %v2803, %v2805
  %2807 = vrot.lane.b32.xlu0 %v2798, 64
  %v2808 = vpop.permute.xlu0 %2807
  %2809 = vrot.lane.b32.xlu0 %v2800, 64
  %v2810 = vpop.permute.xlu0 %2809
  %2811 = vrot.lane.b32.xlu0 %v2802, 64
  %v2812 = vpop.permute.xlu0 %2811
  %2813 = vrot.lane.b32.xlu0 %v2804, 64
  %v2814 = vpop.permute.xlu0 %2813
  %2815 = vrot.lane.b32.xlu0 %v2806, 64
  %v2816 = vpop.permute.xlu0 %2815
  %2817 = vrot.lane.b32.xlu0 %v2805, 64
  %v2818 = vpop.permute.xlu0 %2817
  %v2825 = vrot.slane %v2730, 4
  %v2826 = vrot.slane %v2731, 4
  %v2827 = vsel %vm420, %v2825, %v2826
  %v2828 = vrot.slane %v2732, 4
  %v2829 = vsel %vm420, %v2826, %v2828
  %v2830 = vrot.slane %v2733, 4
  %v2831 = vsel %vm420, %v2828, %v2830
  %v2832 = vrot.slane %v2734, 4
  %v2833 = vsel %vm420, %v2830, %v2832
  %v2834 = vrot.slane %v2735, 4
  %v2835 = vsel %vm420, %v2832, %v2834
  %v2842 = vrot.slane %v2730, 5
  %v2843 = vrot.slane %v2731, 5
  %v2844 = vsel %vm431, %v2842, %v2843
  %v2845 = vrot.slane %v2732, 5
  %v2846 = vsel %vm431, %v2843, %v2845
  %v2847 = vrot.slane %v2733, 5
  %v2848 = vsel %vm431, %v2845, %v2847
  %v2849 = vrot.slane %v2734, 5
  %v2850 = vsel %vm431, %v2847, %v2849
  %v2851 = vrot.slane %v2735, 5
  %v2852 = vsel %vm431, %v2849, %v2851
  %2853 = vrot.lane.b32.xlu0 %v2844, 64
  %v2854 = vpop.permute.xlu0 %2853
  %2855 = vrot.lane.b32.xlu0 %v2846, 64
  %v2856 = vpop.permute.xlu0 %2855
  %2857 = vrot.lane.b32.xlu0 %v2848, 64
  %v2858 = vpop.permute.xlu0 %2857
  %2859 = vrot.lane.b32.xlu0 %v2850, 64
  %v2860 = vpop.permute.xlu0 %2859
  %2861 = vrot.lane.b32.xlu0 %v2852, 64
  %v2862 = vpop.permute.xlu0 %2861
  %2863 = vrot.lane.b32.xlu0 %v2851, 64
  %v2864 = vpop.permute.xlu0 %2863
  %v2872 = vrot.slane %v2730, 6
  %v2873 = vrot.slane %v2731, 6
  %v2874 = vsel %vm821, %v2872, %v2873
  %v2875 = vrot.slane %v2732, 6
  %v2876 = vsel %vm821, %v2873, %v2875
  %v2877 = vrot.slane %v2733, 6
  %v2878 = vsel %vm821, %v2875, %v2877
  %v2879 = vrot.slane %v2734, 6
  %v2880 = vsel %vm821, %v2877, %v2879
  %v2881 = vrot.slane %v2735, 6
  %v2882 = vsel %vm821, %v2879, %v2881
  %v2883 = vrot.slane %v2736, 6
  %v2884 = vsel %vm821, %v2881, %v2883
  %v2891 = vrot.slane %v2730, 7
  %v2892 = vrot.slane %v2731, 7
  %v2893 = vsel %vm830, %v2891, %v2892
  %v2894 = vrot.slane %v2732, 7
  %v2895 = vsel %vm830, %v2892, %v2894
  %v2896 = vrot.slane %v2733, 7
  %v2897 = vsel %vm830, %v2894, %v2896
  %v2898 = vrot.slane %v2734, 7
  %v2899 = vsel %vm830, %v2896, %v2898
  %v2900 = vrot.slane %v2735, 7
  %v2901 = vsel %vm830, %v2898, %v2900
  %v2902 = vrot.slane %v2736, 7
  %v2903 = vsel %vm830, %v2900, %v2902
  %2904 = vrot.lane.b32.xlu0 %v2893, 64
  %v2905 = vpop.permute.xlu0 %2904
  %2906 = vrot.lane.b32.xlu0 %v2895, 64
  %v2907 = vpop.permute.xlu0 %2906
  %2908 = vrot.lane.b32.xlu0 %v2897, 64
  %v2909 = vpop.permute.xlu0 %2908
  %2910 = vrot.lane.b32.xlu0 %v2899, 64
  %v2911 = vpop.permute.xlu0 %2910
  %2912 = vrot.lane.b32.xlu0 %v2901, 64
  %v2913 = vpop.permute.xlu0 %2912
  %2914 = vrot.lane.b32.xlu0 %v2903, 64
  %v2915 = vpop.permute.xlu0 %2914
  %v2922 = vrot.slane %v2736, 1
  %v2923 = vsel %vm94, %v2759, %v2922
  %2924 = vrot.lane.b32.xlu0 %v2923, 64
  %v2925 = vpop.permute.xlu0 %2924
  %2926 = vrot.lane.b32.xlu0 %v2922, 64
  %v2927 = vpop.permute.xlu0 %2926
  %v2930 = vrot.slane %v2736, 2
  %v2931 = vsel %vm114, %v2788, %v2930
  %v2934 = vrot.slane %v2736, 3
  %v2935 = vsel %vm134, %v2805, %v2934
  %2936 = vrot.lane.b32.xlu0 %v2935, 64
  %v2937 = vpop.permute.xlu0 %2936
  %2938 = vrot.lane.b32.xlu0 %v2934, 64
  %v2939 = vpop.permute.xlu0 %2938
  %v2942 = vsel %vm159, %v2730, %v2762
  %v2943 = vsel %vm159, %v2731, %v2764
  %v2944 = vsel %vm159, %v2732, %v2766
  %v2945 = vsel %vm159, %v2733, %v2768
  %v2946 = vsel %vm159, %v2734, %v2770
  %v2947 = vsel %vm159, %v2735, %v2772
  %v2948 = vsel %vm159, %v2781, %v2808
  %v2949 = vsel %vm159, %v2783, %v2810
  %v2950 = vsel %vm159, %v2785, %v2812
  %v2951 = vsel %vm159, %v2787, %v2814
  %v2952 = vsel %vm159, %v2789, %v2816
  %v2953 = vsel %vm159, %v2788, %v2818
  %v2954 = vsel %vm159, %v2827, %v2854
  %v2955 = vsel %vm159, %v2829, %v2856
  %v2956 = vsel %vm159, %v2831, %v2858
  %v2957 = vsel %vm159, %v2833, %v2860
  %v2958 = vsel %vm159, %v2835, %v2862
  %v2959 = vsel %vm159, %v2834, %v2864
  %v2960 = vsel %vm159, %v2874, %v2905
  %v2961 = vsel %vm159, %v2876, %v2907
  %v2962 = vsel %vm159, %v2878, %v2909
  %v2963 = vsel %vm159, %v2880, %v2911
  %v2964 = vsel %vm159, %v2882, %v2913
  %v2965 = vsel %vm159, %v2884, %v2915
  %v2966 = vsel %vm159, %v2735, %v2925
  %v2967 = vsel %vm159, %v2736, %v2927
  %v2968 = vsel %vm159, %v2931, %v2937
  %v2969 = vsel %vm159, %v2930, %v2939
  %v2976 = vrot.slane %v2737, 1
  %v2977 = vsel %vm94, %v2922, %v2976
  %v2978 = vrot.slane %v2738, 1
  %v2979 = vsel %vm94, %v2976, %v2978
  %v2980 = vrot.slane %v2739, 1
  %v2981 = vsel %vm94, %v2978, %v2980
  %v2982 = vrot.slane %v2740, 1
  %v2983 = vsel %vm94, %v2980, %v2982
  %v2984 = vrot.slane %v2741, 1
  %v2985 = vsel %vm94, %v2982, %v2984
  %v2986 = vrot.slane %v2742, 1
  %v2987 = vsel %vm94, %v2984, %v2986
  %2988 = vrot.lane.b32.xlu0 %v2977, 64
  %v2989 = vpop.permute.xlu0 %2988
  %2990 = vrot.lane.b32.xlu0 %v2979, 64
  %v2991 = vpop.permute.xlu0 %2990
  %2992 = vrot.lane.b32.xlu0 %v2981, 64
  %v2993 = vpop.permute.xlu0 %2992
  %2994 = vrot.lane.b32.xlu0 %v2983, 64
  %v2995 = vpop.permute.xlu0 %2994
  %2996 = vrot.lane.b32.xlu0 %v2985, 64
  %v2997 = vpop.permute.xlu0 %2996
  %2998 = vrot.lane.b32.xlu0 %v2987, 64
  %v2999 = vpop.permute.xlu0 %2998
  %3000 = vrot.lane.b32.xlu0 %v2986, 64
  %v3001 = vpop.permute.xlu0 %3000
  %v3009 = vrot.slane %v2737, 2
  %v3010 = vrot.slane %v2738, 2
  %v3011 = vsel %vm114, %v3009, %v3010
  %v3012 = vrot.slane %v2739, 2
  %v3013 = vsel %vm114, %v3010, %v3012
  %v3014 = vrot.slane %v2740, 2
  %v3015 = vsel %vm114, %v3012, %v3014
  %v3016 = vrot.slane %v2741, 2
  %v3017 = vsel %vm114, %v3014, %v3016
  %v3018 = vrot.slane %v2742, 2
  %v3019 = vsel %vm114, %v3016, %v3018
  %v3027 = vrot.slane %v2737, 3
  %v3028 = vrot.slane %v2738, 3
  %v3029 = vsel %vm134, %v3027, %v3028
  %v3030 = vrot.slane %v2739, 3
  %v3031 = vsel %vm134, %v3028, %v3030
  %v3032 = vrot.slane %v2740, 3
  %v3033 = vsel %vm134, %v3030, %v3032
  %v3034 = vrot.slane %v2741, 3
  %v3035 = vsel %vm134, %v3032, %v3034
  %v3036 = vrot.slane %v2742, 3
  %v3037 = vsel %vm134, %v3034, %v3036
  %3038 = vrot.lane.b32.xlu0 %v3027, 64
  %v3039 = vpop.permute.xlu0 %3038
  %3040 = vrot.lane.b32.xlu0 %v3029, 64
  %v3041 = vpop.permute.xlu0 %3040
  %3042 = vrot.lane.b32.xlu0 %v3031, 64
  %v3043 = vpop.permute.xlu0 %3042
  %3044 = vrot.lane.b32.xlu0 %v3033, 64
  %v3045 = vpop.permute.xlu0 %3044
  %3046 = vrot.lane.b32.xlu0 %v3035, 64
  %v3047 = vpop.permute.xlu0 %3046
  %3048 = vrot.lane.b32.xlu0 %v3037, 64
  %v3049 = vpop.permute.xlu0 %3048
  %3050 = vrot.lane.b32.xlu0 %v3036, 64
  %v3051 = vpop.permute.xlu0 %3050
  %v3059 = vrot.slane %v2737, 4
  %v3060 = vrot.slane %v2738, 4
  %v3061 = vsel %vm420, %v3059, %v3060
  %v3062 = vrot.slane %v2739, 4
  %v3063 = vsel %vm420, %v3060, %v3062
  %v3064 = vrot.slane %v2740, 4
  %v3065 = vsel %vm420, %v3062, %v3064
  %v3066 = vrot.slane %v2741, 4
  %v3067 = vsel %vm420, %v3064, %v3066
  %v3068 = vrot.slane %v2742, 4
  %v3069 = vsel %vm420, %v3066, %v3068
  %v3077 = vrot.slane %v2737, 5
  %v3078 = vrot.slane %v2738, 5
  %v3079 = vsel %vm431, %v3077, %v3078
  %v3080 = vrot.slane %v2739, 5
  %v3081 = vsel %vm431, %v3078, %v3080
  %v3082 = vrot.slane %v2740, 5
  %v3083 = vsel %vm431, %v3080, %v3082
  %v3084 = vrot.slane %v2741, 5
  %v3085 = vsel %vm431, %v3082, %v3084
  %v3086 = vrot.slane %v2742, 5
  %v3087 = vsel %vm431, %v3084, %v3086
  %3088 = vrot.lane.b32.xlu0 %v3077, 64
  %v3089 = vpop.permute.xlu0 %3088
  %3090 = vrot.lane.b32.xlu0 %v3079, 64
  %v3091 = vpop.permute.xlu0 %3090
  %3092 = vrot.lane.b32.xlu0 %v3081, 64
  %v3093 = vpop.permute.xlu0 %3092
  %3094 = vrot.lane.b32.xlu0 %v3083, 64
  %v3095 = vpop.permute.xlu0 %3094
  %3096 = vrot.lane.b32.xlu0 %v3085, 64
  %v3097 = vpop.permute.xlu0 %3096
  %3098 = vrot.lane.b32.xlu0 %v3087, 64
  %v3099 = vpop.permute.xlu0 %3098
  %3100 = vrot.lane.b32.xlu0 %v3086, 64
  %v3101 = vpop.permute.xlu0 %3100
  %v3109 = vrot.slane %v2737, 6
  %v3110 = vrot.slane %v2738, 6
  %v3111 = vsel %vm821, %v3109, %v3110
  %v3112 = vrot.slane %v2739, 6
  %v3113 = vsel %vm821, %v3110, %v3112
  %v3114 = vrot.slane %v2740, 6
  %v3115 = vsel %vm821, %v3112, %v3114
  %v3116 = vrot.slane %v2741, 6
  %v3117 = vsel %vm821, %v3114, %v3116
  %v3118 = vrot.slane %v2742, 6
  %v3119 = vsel %vm821, %v3116, %v3118
  %v3127 = vrot.slane %v2737, 7
  %v3128 = vrot.slane %v2738, 7
  %v3129 = vsel %vm830, %v3127, %v3128
  %v3130 = vrot.slane %v2739, 7
  %v3131 = vsel %vm830, %v3128, %v3130
  %v3132 = vrot.slane %v2740, 7
  %v3133 = vsel %vm830, %v3130, %v3132
  %v3134 = vrot.slane %v2741, 7
  %v3135 = vsel %vm830, %v3132, %v3134
  %v3136 = vrot.slane %v2742, 7
  %v3137 = vsel %vm830, %v3134, %v3136
  %3138 = vrot.lane.b32.xlu0 %v3127, 64
  %v3139 = vpop.permute.xlu0 %3138
  %3140 = vrot.lane.b32.xlu0 %v3129, 64
  %v3141 = vpop.permute.xlu0 %3140
  %3142 = vrot.lane.b32.xlu0 %v3131, 64
  %v3143 = vpop.permute.xlu0 %3142
  %3144 = vrot.lane.b32.xlu0 %v3133, 64
  %v3145 = vpop.permute.xlu0 %3144
  %3146 = vrot.lane.b32.xlu0 %v3135, 64
  %v3147 = vpop.permute.xlu0 %3146
  %3148 = vrot.lane.b32.xlu0 %v3137, 64
  %v3149 = vpop.permute.xlu0 %3148
  %3150 = vrot.lane.b32.xlu0 %v3136, 64
  %v3151 = vpop.permute.xlu0 %3150
  %v3160 = vrot.slane %v2743, 1
  %v3161 = vsel %vm94, %v2986, %v3160
  %3162 = vrot.lane.b32.xlu0 %v3161, 64
  %v3163 = vpop.permute.xlu0 %3162
  %3164 = vrot.lane.b32.xlu0 %v3160, 64
  %v3165 = vpop.permute.xlu0 %3164
  %v3168 = vrot.slane %v2743, 2
  %v3169 = vsel %vm114, %v3018, %v3168
  %v3173 = vrot.slane %v2743, 3
  %v3174 = vsel %vm134, %v3036, %v3173
  %3175 = vrot.lane.b32.xlu0 %v3028, 64
  %v3176 = vpop.permute.xlu0 %3175
  %3177 = vrot.lane.b32.xlu0 %v3174, 64
  %v3178 = vpop.permute.xlu0 %3177
  %3179 = vrot.lane.b32.xlu0 %v3173, 64
  %v3180 = vpop.permute.xlu0 %3179
  %v3184 = vsel %vm159, %v2736, %v2989
  %v3185 = vsel %vm159, %v2737, %v2991
  %v3186 = vsel %vm159, %v2738, %v2993
  %v3187 = vsel %vm159, %v2739, %v2995
  %v3188 = vsel %vm159, %v2740, %v2997
  %v3189 = vsel %vm159, %v2741, %v2999
  %v3190 = vsel %vm159, %v2742, %v3001
  %v3191 = vsel %vm159, %v3009, %v3039
  %v3192 = vsel %vm159, %v3011, %v3041
  %v3193 = vsel %vm159, %v3013, %v3043
  %v3194 = vsel %vm159, %v3015, %v3045
  %v3195 = vsel %vm159, %v3017, %v3047
  %v3196 = vsel %vm159, %v3019, %v3049
  %v3197 = vsel %vm159, %v3018, %v3051
  %v3198 = vsel %vm159, %v3059, %v3089
  %v3199 = vsel %vm159, %v3061, %v3091
  %v3200 = vsel %vm159, %v3063, %v3093
  %v3201 = vsel %vm159, %v3065, %v3095
  %v3202 = vsel %vm159, %v3067, %v3097
  %v3203 = vsel %vm159, %v3069, %v3099
  %v3204 = vsel %vm159, %v3068, %v3101
  %v3205 = vsel %vm159, %v3109, %v3139
  %v3206 = vsel %vm159, %v3111, %v3141
  %v3207 = vsel %vm159, %v3113, %v3143
  %v3208 = vsel %vm159, %v3115, %v3145
  %v3209 = vsel %vm159, %v3117, %v3147
  %v3210 = vsel %vm159, %v3119, %v3149
  %v3211 = vsel %vm159, %v3118, %v3151
  %v3212 = vsel %vm159, %v2742, %v3163
  %v3213 = vsel %vm159, %v2743, %v3165
  %v3214 = vsel %vm159, %v3010, %v3176
  %v3215 = vsel %vm159, %v3169, %v3178
  %v3216 = vsel %vm159, %v3168, %v3180
  %v3250 = vrot.slane %v3184, 3
  %v3251 = vrot.slane %v3185, 3
  %v3252 = vsel %vm134, %v3250, %v3251
  %v3253 = vrot.slane %v3191, 3
  %v3254 = vrot.slane %v3192, 3
  %v3255 = vsel %vm134, %v3253, %v3254
  %v3256 = vrot.slane %v3198, 3
  %v3257 = vrot.slane %v3199, 3
  %v3258 = vsel %vm134, %v3256, %v3257
  %v3259 = vrot.slane %v3205, 3
  %v3260 = vrot.slane %v3206, 3
  %v3261 = vsel %vm134, %v3259, %v3260
  %v3262 = vrot.slane %v3186, 3
  %v3263 = vsel %vm134, %v3251, %v3262
  %v3264 = vrot.slane %v3214, 3
  %v3265 = vrot.slane %v3193, 3
  %v3266 = vsel %vm134, %v3264, %v3265
  %v3267 = vsel %vm134, %v3254, %v3265
  %v3268 = vrot.slane %v3200, 3
  %v3269 = vsel %vm134, %v3257, %v3268
  %v3270 = vrot.slane %v3207, 3
  %v3271 = vsel %vm134, %v3260, %v3270
  %v3272 = vrot.slane %v3187, 3
  %v3273 = vsel %vm134, %v3262, %v3272
  %v3274 = vrot.slane %v3194, 3
  %v3275 = vsel %vm134, %v3265, %v3274
  %v3276 = vrot.slane %v3201, 3
  %v3277 = vsel %vm134, %v3268, %v3276
  %v3278 = vrot.slane %v3208, 3
  %v3279 = vsel %vm134, %v3270, %v3278
  %v3280 = vrot.slane %v3188, 3
  %v3281 = vsel %vm134, %v3272, %v3280
  %v3282 = vrot.slane %v3195, 3
  %v3283 = vsel %vm134, %v3274, %v3282
  %v3284 = vrot.slane %v3202, 3
  %v3285 = vsel %vm134, %v3276, %v3284
  %v3286 = vrot.slane %v3209, 3
  %v3287 = vsel %vm134, %v3278, %v3286
  %v3288 = vrot.slane %v3189, 3
  %v3289 = vsel %vm134, %v3280, %v3288
  %v3290 = vrot.slane %v3196, 3
  %v3291 = vsel %vm134, %v3282, %v3290
  %v3292 = vrot.slane %v3203, 3
  %v3293 = vsel %vm134, %v3284, %v3292
  %v3294 = vrot.slane %v3210, 3
  %v3295 = vsel %vm134, %v3286, %v3294
  %v3296 = vrot.slane %v3212, 3
  %v3297 = vsel %vm134, %v3288, %v3296
  %v3298 = vrot.slane %v3215, 3
  %v3299 = vsel %vm134, %v3290, %v3298
  %v3300 = vrot.slane %v3190, 3
  %v3301 = vsel %vm134, %v3288, %v3300
  %v3302 = vrot.slane %v3197, 3
  %v3303 = vsel %vm134, %v3290, %v3302
  %v3304 = vrot.slane %v3204, 3
  %v3305 = vsel %vm134, %v3292, %v3304
  %v3306 = vrot.slane %v3211, 3
  %v3307 = vsel %vm134, %v3294, %v3306
  %v3308 = vrot.slane %v3213, 3
  %v3309 = vsel %vm134, %v3296, %v3308
  %v3310 = vrot.slane %v3216, 3
  %v3311 = vsel %vm134, %v3298, %v3310
  %v3341 = vsel %vm431, %v2947, %v3252
  %v3342 = vsel %vm431, %v2953, %v3255
  %v3343 = vsel %vm431, %v2959, %v3258
  %v3344 = vsel %vm431, %v2965, %v3261
  %v3345 = vsel %vm431, %v2967, %v3263
  %v3346 = vsel %vm431, %v2969, %v3266
  %v3347 = vpack.c.bf16 %v2943, %v2942
  %v3348 = vpack.c.bf16 %v2949, %v2948
  %v3349 = vpack.c.bf16 %v2955, %v2954
  %v3350 = vpack.c.bf16 %v2961, %v2960
  %v3351 = vpack.c.bf16 %v2944, %v2943
  %v3352 = vpack.c.bf16 %v2950, %v2949
  %v3353 = vpack.c.bf16 %v2945, %v2944
  %v3354 = vpack.c.bf16 %v2951, %v2950
  %v3355 = vpack.c.bf16 %v2957, %v2956
  %v3356 = vpack.c.bf16 %v2963, %v2962
  %v3357 = vpack.c.bf16 %v2946, %v2945
  %v3358 = vpack.c.bf16 %v2952, %v2951
  %v3359 = vpack.c.bf16 %v3341, %v2946
  %v3360 = vpack.c.bf16 %v3342, %v2952
  %v3361 = vpack.c.bf16 %v3343, %v2958
  %v3362 = vpack.c.bf16 %v3344, %v2964
  %v3363 = vpack.c.bf16 %v3345, %v2966
  %v3364 = vpack.c.bf16 %v3346, %v2968
  %v3365 = vpack.c.bf16 %v3273, %v3263
  %v3366 = vpack.c.bf16 %v3275, %v3267
  %v3367 = vpack.c.bf16 %v3277, %v3269
  %v3368 = vpack.c.bf16 %v3279, %v3271
  %v3369 = vpack.c.bf16 %v3281, %v3273
  %v3370 = vpack.c.bf16 %v3283, %v3275
  %v3371 = vpack.c.bf16 %v3289, %v3281
  %v3372 = vpack.c.bf16 %v3291, %v3283
  %v3373 = vpack.c.bf16 %v3293, %v3285
  %v3374 = vpack.c.bf16 %v3295, %v3287
  %v3375 = vpack.c.bf16 %v3297, %v3289
  %v3376 = vpack.c.bf16 %v3299, %v3291
  %v3377 = vpack.c.bf16 %v3301, %v3301
  %v3378 = vpack.c.bf16 %v3303, %v3303
  %v3379 = vpack.c.bf16 %v3305, %v3305
  %v3380 = vpack.c.bf16 %v3307, %v3307
  %v3381 = vpack.c.bf16 %v3309, %v3309
  %v3382 = vpack.c.bf16 %v3311, %v3311
  %v3383 = vld [vmem:[%s12] sm:$0xf]
  %v3384 = vld [vmem:[%s12 + $0x4] sm:$0xf]
  %v3385 = vld [vmem:[%s12 + $0x8] sm:$0xf]
  %v3386 = vld [vmem:[%s12 + $0xc] sm:$0xf]
  %v3387 = vld [vmem:[%s12 + $0x10] sm:$0xf]
  %v3388 = vld [vmem:[%s12 + $0x14] sm:$0xf]
  %v3389 = vld [vmem:[%s12 + $0x18] sm:$0xf]
  %v3390 = vld [vmem:[%s12 + $0x1c] sm:$0xf]
  %v3391 = vld [vmem:[%s12 + $0x20] sm:$0xf]
  %v3392 = vld [vmem:[%s12 + $0x24] sm:$0xf]
  %v3393 = vld [vmem:[%s12 + $0x28] sm:$0xf]
  %v3394 = vld [vmem:[%s12 + $0x2c] sm:$0xf]
  %v3395 = vld [vmem:[%s12 + $0x30] sm:$0xf]
  %v3396 = vld [vmem:[%s12 + $0x34] sm:$0xf]
  %v3397 = vld [vmem:[%s12 + $0x38] sm:$0xf]
  %v3398 = vld [vmem:[%s12 + $0x3c] sm:$0xf]
  %v3399 = vld [vmem:[%s12 + $0x40] sm:$0xf]
  %v3400 = vld [vmem:[%s12 + $0x44] sm:$0xf]
  %v3401 = vld [vmem:[%s12 + $0x48] sm:$0xf]
  %v3402 = vld [vmem:[%s12 + $0x4c] sm:$0xf]
  %v3403 = vld [vmem:[%s12 + $0x50] sm:$0xf]
  %v3404 = vld [vmem:[%s12 + $0x54] sm:$0xf]
  %v3405 = vld [vmem:[%s12 + $0x58] sm:$0xf]
  %v3406 = vld [vmem:[%s12 + $0x5c] sm:$0xf]
  %v3407 = vld [vmem:[%s12 + $0x60] sm:$0xf]
  %v3408 = vld [vmem:[%s12 + $0x64] sm:$0xf]
  %v3409 = vld [vmem:[%s12 + $0x68] sm:$0xf]
  %v3410 = vld [vmem:[%s12 + $0x6c] sm:$0xf]
  %v3411 = vld [vmem:[%s12 + $0x70] sm:$0xf]
  %v3412 = vld [vmem:[%s12 + $0x74] sm:$0xf]
  %v3413 = vld [vmem:[%s12 + $0x78] sm:$0xf]
  %v3414 = vld [vmem:[%s12 + $0x7c] sm:$0xf]
  %v3415 = vld [vmem:[%s12 + $0x80] sm:$0xf]
  %v3416 = vld [vmem:[%s12 + $0x84] sm:$0xf]
  %v3417 = vld [vmem:[%s12 + $0x88] sm:$0xf]
  %v3418 = vld [vmem:[%s12 + $0x8c] sm:$0xf]
  %v3419 = vld [vmem:[%s12 + $0x90] sm:$0xf]
  %v3420 = vld [vmem:[%s12 + $0x94] sm:$0xf]
  %v3421 = vld [vmem:[%s12 + $0x98] sm:$0xf]
  %v3422 = vld [vmem:[%s12 + $0x9c] sm:$0xf]
  %v3423 = vld [vmem:[%s12 + $0xa0] sm:$0xf]
  %v3424 = vld [vmem:[%s12 + $0xa4] sm:$0xf]
  %v3425 = vld [vmem:[%s12 + $0xa8] sm:$0xf]
  %v3426 = vld [vmem:[%s12 + $0xac] sm:$0xf]
  %v3427 = vld [vmem:[%s12 + $0xb0] sm:$0xf]
  %v3428 = vld [vmem:[%s12 + $0xb4] sm:$0xf]
  %v3429 = vld [vmem:[%s12 + $0xb8] sm:$0xf]
  %v3430 = vld [vmem:[%s12 + $0xbc] sm:$0xf]
  %v3431 = vld [vmem:[%s12 + $0xc0] sm:$0xf]
  %v3432 = vld [vmem:[%s12 + $0xc4] sm:$0xf]
  %v3433 = vld [vmem:[%s12 + $0xc8] sm:$0xf]
  %v3434 = vld [vmem:[%s12 + $0xcc] sm:$0xf]
  %v3435 = vld [vmem:[%s12 + $0xd0] sm:$0xf]
  %v3436 = vld [vmem:[%s12 + $0xd4] sm:$0xf]
  %v3437 = vld [vmem:[%s12 + $0xd8] sm:$0xf]
  %v3438 = vld [vmem:[%s12 + $0xdc] sm:$0xf]
  %v3439 = vld [vmem:[%s12 + $0xe0] sm:$0xf]
  %v3440 = vld [vmem:[%s12 + $0xe4] sm:$0xf]
  %v3441 = vld [vmem:[%s12 + $0xe8] sm:$0xf]
  %v3442 = vld [vmem:[%s12 + $0xec] sm:$0xf]
  %v3443 = vld [vmem:[%s12 + $0xf0] sm:$0xf]
  %v3444 = vld [vmem:[%s12 + $0xf4] sm:$0xf]
  %v3445 = vld [vmem:[%s12 + $0xf8] sm:$0xf]
  %v3446 = vld [vmem:[%s12 + $0xfc] sm:$0xf]
  %v3447 = vld [vmem:[%s12 + $0x100] sm:$0xf]
  %v3448 = vld [vmem:[%s12 + $0x104] sm:$0xf]
  %v3449 = vld [vmem:[%s12 + $0x108] sm:$0xf]
  %v3450 = vld [vmem:[%s12 + $0x10c] sm:$0xf]
  %v3451 = vld [vmem:[%s12 + $0x110] sm:$0xf]
  %v3452 = vld [vmem:[%s12 + $0x114] sm:$0xf]
  %v3453 = vld [vmem:[%s12 + $0x118] sm:$0xf]
  %v3454 = vld [vmem:[%s12 + $0x11c] sm:$0xf]
  %v3455 = vld [vmem:[%s12 + $0x120] sm:$0xf]
  %v3456 = vld [vmem:[%s12 + $0x124] sm:$0xf]
  %v3457 = vld [vmem:[%s12 + $0x128] sm:$0xf]
  %v3458 = vld [vmem:[%s12 + $0x12c] sm:$0xf]
  %v3459 = vld [vmem:[%s12 + $0x130] sm:$0xf]
  %v3460 = vld [vmem:[%s12 + $0x134] sm:$0xf]
  %v3461 = vld [vmem:[%s12 + $0x138] sm:$0xf]
  %v3462 = vld [vmem:[%s12 + $0x13c] sm:$0xf]
  %v3463 = vld [vmem:[%s12 + $0x140] sm:$0xf]
  %v3464 = vld [vmem:[%s12 + $0x144] sm:$0xf]
  %v3465 = vld [vmem:[%s12 + $0x148] sm:$0xf]
  %v3466 = vld [vmem:[%s12 + $0x14c] sm:$0xf]
  %v3467 = vld [vmem:[%s12 + $0x150] sm:$0xf]
  %v3468 = vld [vmem:[%s12 + $0x154] sm:$0xf]
  %v3469 = vld [vmem:[%s12 + $0x158] sm:$0xf]
  %v3470 = vld [vmem:[%s12 + $0x15c] sm:$0xf]
  %v3471 = vld [vmem:[%s12 + $0x160] sm:$0xf]
  %v3472 = vld [vmem:[%s12 + $0x164] sm:$0xf]
  %v3473 = vld [vmem:[%s12 + $0x168] sm:$0xf]
  %v3474 = vld [vmem:[%s12 + $0x16c] sm:$0xf]
  %v3475 = vld [vmem:[%s12 + $0x170] sm:$0xf]
  %v3476 = vld [vmem:[%s12 + $0x174] sm:$0xf]
  %v3477 = vld [vmem:[%s12 + $0x178] sm:$0xf]
  %v3478 = vld [vmem:[%s12 + $0x17c] sm:$0xf]
  %v3479 = vld [vmem:[%s13] sm:$0x1]
  %v3481 = vperm.slane %v3479, 0
  %v3579 = vunpack.c.l.b16 %v3383
  %v3580 = vunpack.c.l.b16 %v3384
  %v3581 = vunpack.c.l.b16 %v3385
  %v3582 = vunpack.c.l.b16 %v3386
  %v3583 = vunpack.c.l.b16 %v3387
  %v3584 = vunpack.c.l.b16 %v3388
  %v3585 = vunpack.c.l.b16 %v3389
  %v3586 = vunpack.c.l.b16 %v3390
  %v3587 = vunpack.c.l.b16 %v3391
  %v3588 = vunpack.c.l.b16 %v3392
  %v3589 = vunpack.c.l.b16 %v3393
  %v3590 = vunpack.c.l.b16 %v3394
  %v3591 = vunpack.c.l.b16 %v3395
  %v3592 = vunpack.c.l.b16 %v3396
  %v3593 = vunpack.c.l.b16 %v3397
  %v3594 = vunpack.c.l.b16 %v3398
  %v3595 = vunpack.c.l.b16 %v3399
  %v3596 = vunpack.c.l.b16 %v3400
  %v3597 = vunpack.c.l.b16 %v3401
  %v3598 = vunpack.c.l.b16 %v3402
  %v3599 = vunpack.c.l.b16 %v3403
  %v3600 = vunpack.c.l.b16 %v3404
  %v3601 = vunpack.c.l.b16 %v3405
  %v3602 = vunpack.c.l.b16 %v3406
  %v3603 = vunpack.c.l.b16 %v3407
  %v3604 = vunpack.c.l.b16 %v3408
  %v3605 = vunpack.c.l.b16 %v3409
  %v3606 = vunpack.c.l.b16 %v3410
  %v3607 = vunpack.c.l.b16 %v3411
  %v3608 = vunpack.c.l.b16 %v3412
  %v3609 = vunpack.c.l.b16 %v3413
  %v3610 = vunpack.c.l.b16 %v3414
  %v3611 = vunpack.c.l.b16 %v3415
  %v3612 = vunpack.c.l.b16 %v3416
  %v3613 = vunpack.c.l.b16 %v3417
  %v3614 = vunpack.c.l.b16 %v3418
  %v3615 = vunpack.c.l.b16 %v3419
  %v3616 = vunpack.c.l.b16 %v3420
  %v3617 = vunpack.c.l.b16 %v3421
  %v3618 = vunpack.c.l.b16 %v3422
  %v3619 = vunpack.c.l.b16 %v3423
  %v3620 = vunpack.c.l.b16 %v3424
  %v3621 = vunpack.c.l.b16 %v3425
  %v3622 = vunpack.c.l.b16 %v3426
  %v3623 = vunpack.c.l.b16 %v3427
  %v3624 = vunpack.c.l.b16 %v3428
  %v3625 = vunpack.c.l.b16 %v3429
  %v3626 = vunpack.c.l.b16 %v3430
  %v3627 = vunpack.c.l.b16 %v3431
  %v3628 = vunpack.c.l.b16 %v3432
  %v3629 = vunpack.c.l.b16 %v3433
  %v3630 = vunpack.c.l.b16 %v3434
  %v3631 = vunpack.c.l.b16 %v3435
  %v3632 = vunpack.c.l.b16 %v3436
  %v3633 = vunpack.c.l.b16 %v3437
  %v3634 = vunpack.c.l.b16 %v3438
  %v3635 = vunpack.c.l.b16 %v3439
  %v3636 = vunpack.c.l.b16 %v3440
  %v3637 = vunpack.c.l.b16 %v3441
  %v3638 = vunpack.c.l.b16 %v3442
  %v3639 = vunpack.c.l.b16 %v3443
  %v3640 = vunpack.c.l.b16 %v3444
  %v3641 = vunpack.c.l.b16 %v3445
  %v3642 = vunpack.c.l.b16 %v3446
  %v3643 = vunpack.c.l.b16 %v3447
  %v3644 = vunpack.c.l.b16 %v3448
  %v3645 = vunpack.c.l.b16 %v3449
  %v3646 = vunpack.c.l.b16 %v3450
  %v3647 = vunpack.c.l.b16 %v3451
  %v3648 = vunpack.c.l.b16 %v3452
  %v3649 = vunpack.c.l.b16 %v3453
  %v3650 = vunpack.c.l.b16 %v3454
  %v3651 = vunpack.c.l.b16 %v3455
  %v3652 = vunpack.c.l.b16 %v3456
  %v3653 = vunpack.c.l.b16 %v3457
  %v3654 = vunpack.c.l.b16 %v3458
  %v3655 = vunpack.c.l.b16 %v3459
  %v3656 = vunpack.c.l.b16 %v3460
  %v3657 = vunpack.c.l.b16 %v3461
  %v3658 = vunpack.c.l.b16 %v3462
  %v3659 = vunpack.c.l.b16 %v3463
  %v3660 = vunpack.c.l.b16 %v3464
  %v3661 = vunpack.c.l.b16 %v3465
  %v3662 = vunpack.c.l.b16 %v3466
  %v3663 = vunpack.c.l.b16 %v3467
  %v3664 = vunpack.c.l.b16 %v3468
  %v3665 = vunpack.c.l.b16 %v3469
  %v3666 = vunpack.c.l.b16 %v3470
  %v3667 = vunpack.c.l.b16 %v3471
  %v3668 = vunpack.c.l.b16 %v3472
  %v3669 = vunpack.c.l.b16 %v3473
  %v3670 = vunpack.c.l.b16 %v3474
  %v3671 = vunpack.c.l.b16 %v3475
  %v3672 = vunpack.c.l.b16 %v3476
  %v3673 = vunpack.c.l.b16 %v3477
  %v3674 = vunpack.c.l.b16 %v3478
  %v3675 = vpack.c.b16 %v3580, %v3579
  %v3676 = vpack.c.b16 %v3582, %v3581
  %v3677 = vpack.c.b16 %v3584, %v3583
  %v3678 = vpack.c.b16 %v3586, %v3585
  %v3679 = vpack.c.b16 %v3588, %v3587
  %v3680 = vpack.c.b16 %v3590, %v3589
  %v3681 = vpack.c.b16 %v3592, %v3591
  %v3682 = vpack.c.b16 %v3594, %v3593
  %v3683 = vpack.c.b16 %v3596, %v3595
  %v3684 = vpack.c.b16 %v3598, %v3597
  %v3685 = vpack.c.b16 %v3600, %v3599
  %v3686 = vpack.c.b16 %v3602, %v3601
  %v3687 = vpack.c.b16 %v3604, %v3603
  %v3688 = vpack.c.b16 %v3606, %v3605
  %v3689 = vpack.c.b16 %v3608, %v3607
  %v3690 = vpack.c.b16 %v3610, %v3609
  %v3691 = vpack.c.b16 %v3612, %v3611
  %v3692 = vpack.c.b16 %v3614, %v3613
  %v3693 = vpack.c.b16 %v3616, %v3615
  %v3694 = vpack.c.b16 %v3618, %v3617
  %v3695 = vpack.c.b16 %v3620, %v3619
  %v3696 = vpack.c.b16 %v3622, %v3621
  %v3697 = vpack.c.b16 %v3624, %v3623
  %v3698 = vpack.c.b16 %v3626, %v3625
  %v3699 = vpack.c.b16 %v3628, %v3627
  %v3700 = vpack.c.b16 %v3630, %v3629
  %v3701 = vpack.c.b16 %v3632, %v3631
  %v3702 = vpack.c.b16 %v3634, %v3633
  %v3703 = vpack.c.b16 %v3636, %v3635
  %v3704 = vpack.c.b16 %v3638, %v3637
  %v3705 = vpack.c.b16 %v3640, %v3639
  %v3706 = vpack.c.b16 %v3642, %v3641
  %v3707 = vpack.c.b16 %v3644, %v3643
  %v3708 = vpack.c.b16 %v3646, %v3645
  %v3709 = vpack.c.b16 %v3648, %v3647
  %v3710 = vpack.c.b16 %v3650, %v3649
  %v3711 = vpack.c.b16 %v3652, %v3651
  %v3712 = vpack.c.b16 %v3654, %v3653
  %v3713 = vpack.c.b16 %v3656, %v3655
  %v3714 = vpack.c.b16 %v3658, %v3657
  %v3715 = vpack.c.b16 %v3660, %v3659
  %v3716 = vpack.c.b16 %v3662, %v3661
  %v3717 = vpack.c.b16 %v3664, %v3663
  %v3718 = vpack.c.b16 %v3666, %v3665
  %v3719 = vpack.c.b16 %v3668, %v3667
  %v3720 = vpack.c.b16 %v3670, %v3669
  %v3721 = vpack.c.b16 %v3672, %v3671
  %v3722 = vpack.c.b16 %v3674, %v3673
  %3771 = vmatpush.bf16.msra.mxu0 %v3682
  %3772 = vmatpush.bf16.msra.mxu0 %v3681
  %3773 = vmatpush.bf16.msra.mxu0 %v3680
  %3774 = vmatpush.bf16.msra.mxu0 %v3679
  %3775 = vmatpush.bf16.msra.mxu0 %v3678
  %3776 = vmatpush.bf16.msra.mxu0 %v3677
  %3777 = vmatpush.bf16.msra.mxu0 %v3676
  %3778 = vmatpush.bf16.msra.mxu0 %v3675
  %3779 = vmatmul.bf16.gmra.mxu0 %v3347
  %v3780 = vpop.f32.mrf.mxu0
  %v3781 = vadd.f32 %v3481, %v3780
  %v3782 = vpop.f32.mrf.mxu0
  %v3783 = vadd.f32 %v3481, %v3782
  %3784 = vmatmul.bf16.gmra.mxu0 %v3353
  %v3785 = vpop.f32.mrf.mxu0
  %v3786 = vadd.f32 %v3481, %v3785
  %v3787 = vpop.f32.mrf.mxu0
  %v3788 = vadd.f32 %v3481, %v3787
  %3789 = vmatmul.bf16.gmra.mxu0 %v3359
  %v3790 = vpop.f32.mrf.mxu0
  %v3791 = vadd.f32 %v3481, %v3790
  %v3792 = vpop.f32.mrf.mxu0
  %v3793 = vadd.f32 %v3481, %v3792
  %3794 = vmatmul.bf16.gmra.mxu0 %v3365
  %v3795 = vpop.f32.mrf.mxu0
  %v3796 = vadd.f32 %v3481, %v3795
  %v3797 = vpop.f32.mrf.mxu0
  %v3798 = vadd.f32 %v3481, %v3797
  %3799 = vmatmul.bf16.gmra.mxu0 %v3371
  %v3800 = vpop.f32.mrf.mxu0
  %v3801 = vadd.f32 %v3481, %v3800
  %v3802 = vpop.f32.mrf.mxu0
  %v3803 = vadd.f32 %v3481, %v3802
  %3804 = vmatmul.bf16.gmra.mxu0 %v3377
  %v3805 = vpop.f32.mrf.mxu0
  %v3806 = vadd.f32 %v3481, %v3805
  %v3807 = vpop.f32.mrf.mxu0
  %3808 = vdwg.mxu0
  %3809 = vmatpush.bf16.msra.mxu0 %v3690
  %3810 = vmatpush.bf16.msra.mxu0 %v3689
  %3811 = vmatpush.bf16.msra.mxu0 %v3688
  %3812 = vmatpush.bf16.msra.mxu0 %v3687
  %3813 = vmatpush.bf16.msra.mxu0 %v3686
  %3814 = vmatpush.bf16.msra.mxu0 %v3685
  %3815 = vmatpush.bf16.msra.mxu0 %v3684
  %3816 = vmatpush.bf16.msra.mxu0 %v3683
  %3817 = vmatmul.bf16.gmra.mxu0 %v3348
  %v3818 = vpop.f32.mrf.mxu0
  %v3819 = vadd.f32 %v3781, %v3818
  %v3820 = vpop.f32.mrf.mxu0
  %v3821 = vadd.f32 %v3783, %v3820
  %3822 = vmatmul.bf16.gmra.mxu0 %v3354
  %v3823 = vpop.f32.mrf.mxu0
  %v3824 = vadd.f32 %v3786, %v3823
  %v3825 = vpop.f32.mrf.mxu0
  %v3826 = vadd.f32 %v3788, %v3825
  %3827 = vmatmul.bf16.gmra.mxu0 %v3360
  %v3828 = vpop.f32.mrf.mxu0
  %v3829 = vadd.f32 %v3791, %v3828
  %v3830 = vpop.f32.mrf.mxu0
  %v3831 = vadd.f32 %v3793, %v3830
  %3832 = vmatmul.bf16.gmra.mxu0 %v3366
  %v3833 = vpop.f32.mrf.mxu0
  %v3834 = vadd.f32 %v3796, %v3833
  %v3835 = vpop.f32.mrf.mxu0
  %v3836 = vadd.f32 %v3798, %v3835
  %3837 = vmatmul.bf16.gmra.mxu0 %v3372
  %v3838 = vpop.f32.mrf.mxu0
  %v3839 = vadd.f32 %v3801, %v3838
  %v3840 = vpop.f32.mrf.mxu0
  %v3841 = vadd.f32 %v3803, %v3840
  %3842 = vmatmul.bf16.gmra.mxu0 %v3378
  %v3843 = vpop.f32.mrf.mxu0
  %v3844 = vadd.f32 %v3806, %v3843
  %v3845 = vpop.f32.mrf.mxu0
  %3846 = vdwg.mxu0
  %3847 = vmatpush.bf16.msra.mxu0 %v3698
  %3848 = vmatpush.bf16.msra.mxu0 %v3697
  %3849 = vmatpush.bf16.msra.mxu0 %v3696
  %3850 = vmatpush.bf16.msra.mxu0 %v3695
  %3851 = vmatpush.bf16.msra.mxu0 %v3694
  %3852 = vmatpush.bf16.msra.mxu0 %v3693
  %3853 = vmatpush.bf16.msra.mxu0 %v3692
  %3854 = vmatpush.bf16.msra.mxu0 %v3691
  %3855 = vmatmul.bf16.gmra.mxu0 %v3349
  %v3856 = vpop.f32.mrf.mxu0
  %v3857 = vadd.f32 %v3819, %v3856
  %v3858 = vpop.f32.mrf.mxu0
  %v3859 = vadd.f32 %v3821, %v3858
  %3860 = vmatmul.bf16.gmra.mxu0 %v3355
  %v3861 = vpop.f32.mrf.mxu0
  %v3862 = vadd.f32 %v3824, %v3861
  %v3863 = vpop.f32.mrf.mxu0
  %v3864 = vadd.f32 %v3826, %v3863
  %3865 = vmatmul.bf16.gmra.mxu0 %v3361
  %v3866 = vpop.f32.mrf.mxu0
  %v3867 = vadd.f32 %v3829, %v3866
  %v3868 = vpop.f32.mrf.mxu0
  %v3869 = vadd.f32 %v3831, %v3868
  %3870 = vmatmul.bf16.gmra.mxu0 %v3367
  %v3871 = vpop.f32.mrf.mxu0
  %v3872 = vadd.f32 %v3834, %v3871
  %v3873 = vpop.f32.mrf.mxu0
  %v3874 = vadd.f32 %v3836, %v3873
  %3875 = vmatmul.bf16.gmra.mxu0 %v3373
  %v3876 = vpop.f32.mrf.mxu0
  %v3877 = vadd.f32 %v3839, %v3876
  %v3878 = vpop.f32.mrf.mxu0
  %v3879 = vadd.f32 %v3841, %v3878
  %3880 = vmatmul.bf16.gmra.mxu0 %v3379
  %v3881 = vpop.f32.mrf.mxu0
  %v3882 = vadd.f32 %v3844, %v3881
  %v3883 = vpop.f32.mrf.mxu0
  %3884 = vdwg.mxu0
  %3885 = vmatpush.bf16.msra.mxu0 %v3706
  %3886 = vmatpush.bf16.msra.mxu0 %v3705
  %3887 = vmatpush.bf16.msra.mxu0 %v3704
  %3888 = vmatpush.bf16.msra.mxu0 %v3703
  %3889 = vmatpush.bf16.msra.mxu0 %v3702
  %3890 = vmatpush.bf16.msra.mxu0 %v3701
  %3891 = vmatpush.bf16.msra.mxu0 %v3700
  %3892 = vmatpush.bf16.msra.mxu0 %v3699
  %3893 = vmatmul.bf16.gmra.mxu0 %v3350
  %v3894 = vpop.f32.mrf.mxu0
  %v3895 = vadd.f32 %v3857, %v3894
  %v3896 = vpop.f32.mrf.mxu0
  %v3897 = vadd.f32 %v3859, %v3896
  %3898 = vmatmul.bf16.gmra.mxu0 %v3356
  %v3899 = vpop.f32.mrf.mxu0
  %v3900 = vadd.f32 %v3862, %v3899
  %v3901 = vpop.f32.mrf.mxu0
  %v3902 = vadd.f32 %v3864, %v3901
  %3903 = vmatmul.bf16.gmra.mxu0 %v3362
  %v3904 = vpop.f32.mrf.mxu0
  %v3905 = vadd.f32 %v3867, %v3904
  %v3906 = vpop.f32.mrf.mxu0
  %v3907 = vadd.f32 %v3869, %v3906
  %3908 = vmatmul.bf16.gmra.mxu0 %v3368
  %v3909 = vpop.f32.mrf.mxu0
  %v3910 = vadd.f32 %v3872, %v3909
  %v3911 = vpop.f32.mrf.mxu0
  %v3912 = vadd.f32 %v3874, %v3911
  %3913 = vmatmul.bf16.gmra.mxu0 %v3374
  %v3914 = vpop.f32.mrf.mxu0
  %v3915 = vadd.f32 %v3877, %v3914
  %v3916 = vpop.f32.mrf.mxu0
  %v3917 = vadd.f32 %v3879, %v3916
  %3918 = vmatmul.bf16.gmra.mxu0 %v3380
  %v3919 = vpop.f32.mrf.mxu0
  %v3920 = vadd.f32 %v3882, %v3919
  %v3921 = vpop.f32.mrf.mxu0
  %3922 = vdwg.mxu0
  %3923 = vmatpush.bf16.msra.mxu0 %v3714
  %3924 = vmatpush.bf16.msra.mxu0 %v3713
  %3925 = vmatpush.bf16.msra.mxu0 %v3712
  %3926 = vmatpush.bf16.msra.mxu0 %v3711
  %3927 = vmatpush.bf16.msra.mxu0 %v3710
  %3928 = vmatpush.bf16.msra.mxu0 %v3709
  %3929 = vmatpush.bf16.msra.mxu0 %v3708
  %3930 = vmatpush.bf16.msra.mxu0 %v3707
  %3931 = vmatmul.bf16.gmra.mxu0 %v3351
  %v3932 = vpop.f32.mrf.mxu0
  %v3933 = vadd.f32 %v3895, %v3932
  %v3934 = vpop.f32.mrf.mxu0
  %v3935 = vadd.f32 %v3897, %v3934
  %3936 = vmatmul.bf16.gmra.mxu0 %v3357
  %v3937 = vpop.f32.mrf.mxu0
  %v3938 = vadd.f32 %v3900, %v3937
  %v3939 = vpop.f32.mrf.mxu0
  %v3940 = vadd.f32 %v3902, %v3939
  %3941 = vmatmul.bf16.gmra.mxu0 %v3363
  %v3942 = vpop.f32.mrf.mxu0
  %v3943 = vadd.f32 %v3905, %v3942
  %v3944 = vpop.f32.mrf.mxu0
  %v3945 = vadd.f32 %v3907, %v3944
  %3946 = vmatmul.bf16.gmra.mxu0 %v3369
  %v3947 = vpop.f32.mrf.mxu0
  %v3948 = vadd.f32 %v3910, %v3947
  %v3949 = vpop.f32.mrf.mxu0
  %v3950 = vadd.f32 %v3912, %v3949
  %3951 = vmatmul.bf16.gmra.mxu0 %v3375
  %v3952 = vpop.f32.mrf.mxu0
  %v3953 = vadd.f32 %v3915, %v3952
  %v3954 = vpop.f32.mrf.mxu0
  %v3955 = vadd.f32 %v3917, %v3954
  %3956 = vmatmul.bf16.gmra.mxu0 %v3381
  %v3957 = vpop.f32.mrf.mxu0
  %v3958 = vadd.f32 %v3920, %v3957
  %v3959 = vpop.f32.mrf.mxu0
  %3960 = vdwg.mxu0
  %3961 = vmatpush.bf16.msra.mxu0 %v3722
  %3962 = vmatpush.bf16.msra.mxu0 %v3721
  %3963 = vmatpush.bf16.msra.mxu0 %v3720
  %3964 = vmatpush.bf16.msra.mxu0 %v3719
  %3965 = vmatpush.bf16.msra.mxu0 %v3718
  %3966 = vmatpush.bf16.msra.mxu0 %v3717
  %3967 = vmatpush.bf16.msra.mxu0 %v3716
  %3968 = vmatpush.bf16.msra.mxu0 %v3715
  %3969 = vmatmul.bf16.gmra.mxu0 %v3352
  %v3970 = vpop.f32.mrf.mxu0
  %v3971 = vadd.f32 %v3933, %v3970
  %v3972 = vpop.f32.mrf.mxu0
  %v3973 = vadd.f32 %v3935, %v3972
  %3974 = vmatmul.bf16.gmra.mxu0 %v3358
  %v3975 = vpop.f32.mrf.mxu0
  %v3976 = vadd.f32 %v3938, %v3975
  %v3977 = vpop.f32.mrf.mxu0
  %v3978 = vadd.f32 %v3940, %v3977
  %3979 = vmatmul.bf16.gmra.mxu0 %v3364
  %v3980 = vpop.f32.mrf.mxu0
  %v3981 = vadd.f32 %v3943, %v3980
  %v3982 = vpop.f32.mrf.mxu0
  %v3983 = vadd.f32 %v3945, %v3982
  %3984 = vmatmul.bf16.gmra.mxu0 %v3370
  %v3985 = vpop.f32.mrf.mxu0
  %v3986 = vadd.f32 %v3948, %v3985
  %v3987 = vpop.f32.mrf.mxu0
  %v3988 = vadd.f32 %v3950, %v3987
  %3989 = vmatmul.bf16.gmra.mxu0 %v3376
  %v3990 = vpop.f32.mrf.mxu0
  %v3991 = vadd.f32 %v3953, %v3990
  %v3992 = vpop.f32.mrf.mxu0
  %v3993 = vadd.f32 %v3955, %v3992
  %3994 = vmatmul.bf16.gmra.mxu0 %v3382
  %v3995 = vpop.f32.mrf.mxu0
  %v3996 = vadd.f32 %v3958, %v3995
  %v3997 = vpop.f32.mrf.mxu0
  %3998 = vdwg.mxu0
  %v3999 = vmax.f32 %v3971, 0.0
  %v4000 = vmax.f32 %v3973, 0.0
  %v4001 = vmax.f32 %v3976, 0.0
  %v4002 = vmax.f32 %v3978, 0.0
  %v4003 = vmax.f32 %v3981, 0.0
  %v4004 = vmax.f32 %v3983, 0.0
  %v4005 = vmax.f32 %v3986, 0.0
  %v4006 = vmax.f32 %v3988, 0.0
  %v4007 = vmax.f32 %v3991, 0.0
  %v4008 = vmax.f32 %v3993, 0.0
  %v4009 = vmax.f32 %v3996, 0.0
  %v4010 = vpack.c.bf16 %v1365, %v1364
  %v4011 = vpack.c.bf16 %v1367, %v1366
  %v4012 = vpack.c.bf16 %v1368, %v1368
  %v4013 = vld [vmem:[%s14] sm:$0xf]
  %v4014 = vld [vmem:[%s14 + $0x4] sm:$0xf]
  %v4015 = vld [vmem:[%s14 + $0x8] sm:$0xf]
  %v4016 = vld [vmem:[%s14 + $0xc] sm:$0xf]
  %v4017 = vld [vmem:[%s14 + $0x10] sm:$0xf]
  %v4018 = vld [vmem:[%s14 + $0x14] sm:$0xf]
  %v4019 = vld [vmem:[%s14 + $0x18] sm:$0xf]
  %v4020 = vld [vmem:[%s14 + $0x1c] sm:$0xf]
  %v4021 = vld [vmem:[%s14 + $0x20] sm:$0xf]
  %v4022 = vld [vmem:[%s14 + $0x24] sm:$0xf]
  %v4023 = vld [vmem:[%s14 + $0x28] sm:$0xf]
  %v4024 = vld [vmem:[%s14 + $0x2c] sm:$0xf]
  %v4025 = vld [vmem:[%s14 + $0x30] sm:$0xf]
  %v4026 = vld [vmem:[%s14 + $0x34] sm:$0xf]
  %v4027 = vld [vmem:[%s14 + $0x38] sm:$0xf]
  %v4028 = vld [vmem:[%s14 + $0x3c] sm:$0xf]
  %v4029 = vld [vmem:[%s15] sm:$0x1]
  %v4031 = vperm.slane %v4029, 0
  %v4049 = vunpack.c.l.b16 %v4013
  %v4050 = vunpack.c.l.b16 %v4014
  %v4051 = vunpack.c.l.b16 %v4015
  %v4052 = vunpack.c.l.b16 %v4016
  %v4053 = vunpack.c.l.b16 %v4017
  %v4054 = vunpack.c.l.b16 %v4018
  %v4055 = vunpack.c.l.b16 %v4019
  %v4056 = vunpack.c.l.b16 %v4020
  %v4057 = vunpack.c.l.b16 %v4021
  %v4058 = vunpack.c.l.b16 %v4022
  %v4059 = vunpack.c.l.b16 %v4023
  %v4060 = vunpack.c.l.b16 %v4024
  %v4061 = vunpack.c.l.b16 %v4025
  %v4062 = vunpack.c.l.b16 %v4026
  %v4063 = vunpack.c.l.b16 %v4027
  %v4064 = vunpack.c.l.b16 %v4028
  %v4065 = vpack.c.b16 %v4050, %v4049
  %v4066 = vpack.c.b16 %v4052, %v4051
  %v4067 = vpack.c.b16 %v4054, %v4053
  %v4068 = vpack.c.b16 %v4056, %v4055
  %v4069 = vpack.c.b16 %v4058, %v4057
  %v4070 = vpack.c.b16 %v4060, %v4059
  %v4071 = vpack.c.b16 %v4062, %v4061
  %v4072 = vpack.c.b16 %v4064, %v4063
  %4081 = vmatpush.bf16.msra.mxu0 %v4072
  %4082 = vmatpush.bf16.msra.mxu0 %v4071
  %4083 = vmatpush.bf16.msra.mxu0 %v4070
  %4084 = vmatpush.bf16.msra.mxu0 %v4069
  %4085 = vmatpush.bf16.msra.mxu0 %v4068
  %4086 = vmatpush.bf16.msra.mxu0 %v4067
  %4087 = vmatpush.bf16.msra.mxu0 %v4066
  %4088 = vmatpush.bf16.msra.mxu0 %v4065
  %4089 = vmatmul.bf16.gmra.mxu0 %v4010
  %v4090 = vpop.f32.mrf.mxu0
  %v4091 = vadd.f32 %v4031, %v4090
  %v4092 = vpop.f32.mrf.mxu0
  %v4093 = vadd.f32 %v4031, %v4092
  %4094 = vmatmul.bf16.gmra.mxu0 %v4011
  %v4095 = vpop.f32.mrf.mxu0
  %v4096 = vadd.f32 %v4031, %v4095
  %v4097 = vpop.f32.mrf.mxu0
  %v4098 = vadd.f32 %v4031, %v4097
  %4099 = vmatmul.bf16.gmra.mxu0 %v4012
  %v4100 = vpop.f32.mrf.mxu0
  %v4101 = vadd.f32 %v4031, %v4100
  %v4102 = vpop.f32.mrf.mxu0
  %4103 = vdwg.mxu0
  %v4104 = vpack.c.bf16 %v4000, %v3999
  %v4105 = vpack.c.bf16 %v4002, %v4001
  %v4106 = vpack.c.bf16 %v4004, %v4003
  %v4107 = vpack.c.bf16 %v4006, %v4005
  %v4108 = vpack.c.bf16 %v4008, %v4007
  %v4109 = vpack.c.bf16 %v4009, %v4009
  %v4110 = vld [vmem:[%s16] sm:$0xf]
  %v4111 = vld [vmem:[%s16 + $0x4] sm:$0xf]
  %v4112 = vld [vmem:[%s16 + $0x8] sm:$0xf]
  %v4113 = vld [vmem:[%s16 + $0xc] sm:$0xf]
  %v4114 = vld [vmem:[%s16 + $0x10] sm:$0xf]
  %v4115 = vld [vmem:[%s16 + $0x14] sm:$0xf]
  %v4116 = vld [vmem:[%s16 + $0x18] sm:$0xf]
  %v4117 = vld [vmem:[%s16 + $0x1c] sm:$0xf]
  %v4118 = vld [vmem:[%s16 + $0x20] sm:$0xf]
  %v4119 = vld [vmem:[%s16 + $0x24] sm:$0xf]
  %v4120 = vld [vmem:[%s16 + $0x28] sm:$0xf]
  %v4121 = vld [vmem:[%s16 + $0x2c] sm:$0xf]
  %v4122 = vld [vmem:[%s16 + $0x30] sm:$0xf]
  %v4123 = vld [vmem:[%s16 + $0x34] sm:$0xf]
  %v4124 = vld [vmem:[%s16 + $0x38] sm:$0xf]
  %v4125 = vld [vmem:[%s16 + $0x3c] sm:$0xf]
  %v4126 = vld [vmem:[%s17] sm:$0x1]
  %v4128 = vperm.slane %v4126, 0
  %v4146 = vunpack.c.l.b16 %v4110
  %v4147 = vunpack.c.l.b16 %v4111
  %v4148 = vunpack.c.l.b16 %v4112
  %v4149 = vunpack.c.l.b16 %v4113
  %v4150 = vunpack.c.l.b16 %v4114
  %v4151 = vunpack.c.l.b16 %v4115
  %v4152 = vunpack.c.l.b16 %v4116
  %v4153 = vunpack.c.l.b16 %v4117
  %v4154 = vunpack.c.l.b16 %v4118
  %v4155 = vunpack.c.l.b16 %v4119
  %v4156 = vunpack.c.l.b16 %v4120
  %v4157 = vunpack.c.l.b16 %v4121
  %v4158 = vunpack.c.l.b16 %v4122
  %v4159 = vunpack.c.l.b16 %v4123
  %v4160 = vunpack.c.l.b16 %v4124
  %v4161 = vunpack.c.l.b16 %v4125
  %v4162 = vpack.c.b16 %v4147, %v4146
  %v4163 = vpack.c.b16 %v4149, %v4148
  %v4164 = vpack.c.b16 %v4151, %v4150
  %v4165 = vpack.c.b16 %v4153, %v4152
  %v4166 = vpack.c.b16 %v4155, %v4154
  %v4167 = vpack.c.b16 %v4157, %v4156
  %v4168 = vpack.c.b16 %v4159, %v4158
  %v4169 = vpack.c.b16 %v4161, %v4160
  %4178 = vmatpush.bf16.msra.mxu0 %v4169
  %4179 = vmatpush.bf16.msra.mxu0 %v4168
  %4180 = vmatpush.bf16.msra.mxu0 %v4167
  %4181 = vmatpush.bf16.msra.mxu0 %v4166
  %4182 = vmatpush.bf16.msra.mxu0 %v4165
  %4183 = vmatpush.bf16.msra.mxu0 %v4164
  %4184 = vmatpush.bf16.msra.mxu0 %v4163
  %4185 = vmatpush.bf16.msra.mxu0 %v4162
  %4186 = vmatmul.bf16.gmra.mxu0 %v4104
  %v4187 = vpop.f32.mrf.mxu0
  %v4188 = vadd.f32 %v4128, %v4187
  %v4189 = vpop.f32.mrf.mxu0
  %v4190 = vadd.f32 %v4128, %v4189
  %4191 = vmatmul.bf16.gmra.mxu0 %v4105
  %v4192 = vpop.f32.mrf.mxu0
  %v4193 = vadd.f32 %v4128, %v4192
  %v4194 = vpop.f32.mrf.mxu0
  %v4195 = vadd.f32 %v4128, %v4194
  %4196 = vmatmul.bf16.gmra.mxu0 %v4106
  %v4197 = vpop.f32.mrf.mxu0
  %v4198 = vadd.f32 %v4128, %v4197
  %v4199 = vpop.f32.mrf.mxu0
  %v4200 = vadd.f32 %v4128, %v4199
  %4201 = vmatmul.bf16.gmra.mxu0 %v4107
  %v4202 = vpop.f32.mrf.mxu0
  %v4203 = vadd.f32 %v4128, %v4202
  %v4204 = vpop.f32.mrf.mxu0
  %v4205 = vadd.f32 %v4128, %v4204
  %4206 = vmatmul.bf16.gmra.mxu0 %v4108
  %v4207 = vpop.f32.mrf.mxu0
  %v4208 = vadd.f32 %v4128, %v4207
  %v4209 = vpop.f32.mrf.mxu0
  %v4210 = vadd.f32 %v4128, %v4209
  %4211 = vmatmul.bf16.gmra.mxu0 %v4109
  %v4212 = vpop.f32.mrf.mxu0
  %v4213 = vadd.f32 %v4128, %v4212
  %v4214 = vpop.f32.mrf.mxu0
  %4215 = vdwg.mxu0
  %v4219 = vrot.slane %v4091, 1
  %v4220 = vrot.slane %v4091, 2
  %v4221 = vrot.slane %v4091, 3
  %v4222 = vrot.slane %v4091, 4
  %v4223 = vrot.slane %v4091, 5
  %v4224 = vrot.slane %v4091, 6
  %v4225 = vrot.slane %v4091, 7
  %v4226 = vrot.slane %v4093, 1
  %v4227 = vrot.slane %v4093, 2
  %v4228 = vrot.slane %v4093, 3
  %v4229 = vrot.slane %v4093, 4
  %v4230 = vrot.slane %v4093, 5
  %v4231 = vrot.slane %v4093, 6
  %v4232 = vrot.slane %v4093, 7
  %v4233 = vperm.slane %v4091, 0
  %v4234 = vperm.slane %v4219, 0
  %v4235 = vperm.slane %v4220, 0
  %v4236 = vperm.slane %v4221, 0
  %v4237 = vperm.slane %v4222, 0
  %v4238 = vperm.slane %v4223, 0
  %v4239 = vperm.slane %v4224, 0
  %v4240 = vperm.slane %v4225, 0
  %v4241 = vperm.slane %v4093, 0
  %v4242 = vperm.slane %v4226, 0
  %v4243 = vperm.slane %v4227, 0
  %v4244 = vperm.slane %v4228, 0
  %v4245 = vperm.slane %v4229, 0
  %v4246 = vperm.slane %v4230, 0
  %v4247 = vperm.slane %v4231, 0
  %v4248 = vperm.slane %v4232, 0
  %v4249 = vperm.slane %v4096, 0
  %v4267 = vadd.f32 %v4233, %v4188
  %v4268 = vadd.f32 %v4233, %v4190
  %v4269 = vadd.f32 %v4233, %v4193
  %v4270 = vadd.f32 %v4233, %v4195
  %v4271 = vadd.f32 %v4233, %v4198
  %v4272 = vadd.f32 %v4233, %v4200
  %v4273 = vadd.f32 %v4234, %v4188
  %v4274 = vadd.f32 %v4234, %v4190
  %v4275 = vadd.f32 %v4234, %v4193
  %v4276 = vadd.f32 %v4234, %v4195
  %v4277 = vadd.f32 %v4234, %v4198
  %v4278 = vadd.f32 %v4234, %v4200
  %v4279 = vadd.f32 %v4235, %v4188
  %v4280 = vadd.f32 %v4235, %v4190
  %v4281 = vadd.f32 %v4235, %v4193
  %v4282 = vadd.f32 %v4235, %v4195
  %v4283 = vadd.f32 %v4235, %v4198
  %v4284 = vadd.f32 %v4235, %v4200
  %v4285 = vadd.f32 %v4236, %v4188
  %v4286 = vadd.f32 %v4236, %v4190
  %v4287 = vadd.f32 %v4236, %v4193
  %v4288 = vadd.f32 %v4236, %v4195
  %v4289 = vadd.f32 %v4236, %v4198
  %v4290 = vadd.f32 %v4236, %v4200
  %v4291 = vadd.f32 %v4237, %v4188
  %v4292 = vadd.f32 %v4237, %v4190
  %v4293 = vadd.f32 %v4237, %v4193
  %v4294 = vadd.f32 %v4237, %v4195
  %v4295 = vadd.f32 %v4237, %v4198
  %v4296 = vadd.f32 %v4237, %v4200
  %v4297 = vadd.f32 %v4238, %v4188
  %v4298 = vadd.f32 %v4238, %v4190
  %v4299 = vadd.f32 %v4238, %v4193
  %v4300 = vadd.f32 %v4238, %v4195
  %v4301 = vadd.f32 %v4238, %v4198
  %v4302 = vadd.f32 %v4238, %v4200
  %v4303 = vadd.f32 %v4239, %v4188
  %v4304 = vadd.f32 %v4239, %v4190
  %v4305 = vadd.f32 %v4239, %v4193
  %v4306 = vadd.f32 %v4239, %v4195
  %v4307 = vadd.f32 %v4239, %v4198
  %v4308 = vadd.f32 %v4239, %v4200
  %v4309 = vadd.f32 %v4240, %v4188
  %v4310 = vadd.f32 %v4240, %v4190
  %v4311 = vadd.f32 %v4240, %v4193
  %v4312 = vadd.f32 %v4240, %v4195
  %v4313 = vadd.f32 %v4240, %v4198
  %v4314 = vadd.f32 %v4240, %v4200
  %v4315 = vadd.f32 %v4241, %v4188
  %v4316 = vadd.f32 %v4241, %v4190
  %v4317 = vadd.f32 %v4241, %v4193
  %v4318 = vadd.f32 %v4241, %v4195
  %v4319 = vadd.f32 %v4241, %v4198
  %v4320 = vadd.f32 %v4241, %v4200
  %v4321 = vadd.f32 %v4242, %v4188
  %v4322 = vadd.f32 %v4242, %v4190
  %v4323 = vadd.f32 %v4242, %v4193
  %v4324 = vadd.f32 %v4242, %v4195
  %v4325 = vadd.f32 %v4242, %v4198
  %v4326 = vadd.f32 %v4242, %v4200
  %v4327 = vadd.f32 %v4243, %v4188
  %v4328 = vadd.f32 %v4243, %v4190
  %v4329 = vadd.f32 %v4243, %v4193
  %v4330 = vadd.f32 %v4243, %v4195
  %v4331 = vadd.f32 %v4243, %v4198
  %v4332 = vadd.f32 %v4243, %v4200
  %v4333 = vadd.f32 %v4244, %v4188
  %v4334 = vadd.f32 %v4244, %v4190
  %v4335 = vadd.f32 %v4244, %v4193
  %v4336 = vadd.f32 %v4244, %v4195
  %v4337 = vadd.f32 %v4244, %v4198
  %v4338 = vadd.f32 %v4244, %v4200
  %v4339 = vadd.f32 %v4245, %v4188
  %v4340 = vadd.f32 %v4245, %v4190
  %v4341 = vadd.f32 %v4245, %v4193
  %v4342 = vadd.f32 %v4245, %v4195
  %v4343 = vadd.f32 %v4245, %v4198
  %v4344 = vadd.f32 %v4245, %v4200
  %v4345 = vadd.f32 %v4246, %v4188
  %v4346 = vadd.f32 %v4246, %v4190
  %v4347 = vadd.f32 %v4246, %v4193
  %v4348 = vadd.f32 %v4246, %v4195
  %v4349 = vadd.f32 %v4246, %v4198
  %v4350 = vadd.f32 %v4246, %v4200
  %v4351 = vadd.f32 %v4247, %v4188
  %v4352 = vadd.f32 %v4247, %v4190
  %v4353 = vadd.f32 %v4247, %v4193
  %v4354 = vadd.f32 %v4247, %v4195
  %v4355 = vadd.f32 %v4247, %v4198
  %v4356 = vadd.f32 %v4247, %v4200
  %v4357 = vadd.f32 %v4248, %v4188
  %v4358 = vadd.f32 %v4248, %v4190
  %v4359 = vadd.f32 %v4248, %v4193
  %v4360 = vadd.f32 %v4248, %v4195
  %v4361 = vadd.f32 %v4248, %v4198
  %v4362 = vadd.f32 %v4248, %v4200
  %v4363 = vadd.f32 %v4249, %v4188
  %v4364 = vadd.f32 %v4249, %v4190
  %v4365 = vadd.f32 %v4249, %v4193
  %v4366 = vadd.f32 %v4249, %v4195
  %v4367 = vadd.f32 %v4249, %v4198
  %v4368 = vadd.f32 %v4249, %v4200
  %v4369 = vmax.f32 %v4267, 0.0
  %v4370 = vmax.f32 %v4268, 0.0
  %v4371 = vmax.f32 %v4269, 0.0
  %v4372 = vmax.f32 %v4270, 0.0
  %v4373 = vmax.f32 %v4271, 0.0
  %v4374 = vmax.f32 %v4272, 0.0
  %v4375 = vmax.f32 %v4273, 0.0
  %v4376 = vmax.f32 %v4274, 0.0
  %v4377 = vmax.f32 %v4275, 0.0
  %v4378 = vmax.f32 %v4276, 0.0
  %v4379 = vmax.f32 %v4277, 0.0
  %v4380 = vmax.f32 %v4278, 0.0
  %v4381 = vmax.f32 %v4279, 0.0
  %v4382 = vmax.f32 %v4280, 0.0
  %v4383 = vmax.f32 %v4281, 0.0
  %v4384 = vmax.f32 %v4282, 0.0
  %v4385 = vmax.f32 %v4283, 0.0
  %v4386 = vmax.f32 %v4284, 0.0
  %v4387 = vmax.f32 %v4285, 0.0
  %v4388 = vmax.f32 %v4286, 0.0
  %v4389 = vmax.f32 %v4287, 0.0
  %v4390 = vmax.f32 %v4288, 0.0
  %v4391 = vmax.f32 %v4289, 0.0
  %v4392 = vmax.f32 %v4290, 0.0
  %v4393 = vmax.f32 %v4291, 0.0
  %v4394 = vmax.f32 %v4292, 0.0
  %v4395 = vmax.f32 %v4293, 0.0
  %v4396 = vmax.f32 %v4294, 0.0
  %v4397 = vmax.f32 %v4295, 0.0
  %v4398 = vmax.f32 %v4296, 0.0
  %v4399 = vmax.f32 %v4297, 0.0
  %v4400 = vmax.f32 %v4298, 0.0
  %v4401 = vmax.f32 %v4299, 0.0
  %v4402 = vmax.f32 %v4300, 0.0
  %v4403 = vmax.f32 %v4301, 0.0
  %v4404 = vmax.f32 %v4302, 0.0
  %v4405 = vmax.f32 %v4303, 0.0
  %v4406 = vmax.f32 %v4304, 0.0
  %v4407 = vmax.f32 %v4305, 0.0
  %v4408 = vmax.f32 %v4306, 0.0
  %v4409 = vmax.f32 %v4307, 0.0
  %v4410 = vmax.f32 %v4308, 0.0
  %v4411 = vmax.f32 %v4309, 0.0
  %v4412 = vmax.f32 %v4310, 0.0
  %v4413 = vmax.f32 %v4311, 0.0
  %v4414 = vmax.f32 %v4312, 0.0
  %v4415 = vmax.f32 %v4313, 0.0
  %v4416 = vmax.f32 %v4314, 0.0
  %v4417 = vmax.f32 %v4315, 0.0
  %v4418 = vmax.f32 %v4316, 0.0
  %v4419 = vmax.f32 %v4317, 0.0
  %v4420 = vmax.f32 %v4318, 0.0
  %v4421 = vmax.f32 %v4319, 0.0
  %v4422 = vmax.f32 %v4320, 0.0
  %v4423 = vmax.f32 %v4321, 0.0
  %v4424 = vmax.f32 %v4322, 0.0
  %v4425 = vmax.f32 %v4323, 0.0
  %v4426 = vmax.f32 %v4324, 0.0
  %v4427 = vmax.f32 %v4325, 0.0
  %v4428 = vmax.f32 %v4326, 0.0
  %v4429 = vmax.f32 %v4327, 0.0
  %v4430 = vmax.f32 %v4328, 0.0
  %v4431 = vmax.f32 %v4329, 0.0
  %v4432 = vmax.f32 %v4330, 0.0
  %v4433 = vmax.f32 %v4331, 0.0
  %v4434 = vmax.f32 %v4332, 0.0
  %v4435 = vmax.f32 %v4333, 0.0
  %v4436 = vmax.f32 %v4334, 0.0
  %v4437 = vmax.f32 %v4335, 0.0
  %v4438 = vmax.f32 %v4336, 0.0
  %v4439 = vmax.f32 %v4337, 0.0
  %v4440 = vmax.f32 %v4338, 0.0
  %v4441 = vmax.f32 %v4339, 0.0
  %v4442 = vmax.f32 %v4340, 0.0
  %v4443 = vmax.f32 %v4341, 0.0
  %v4444 = vmax.f32 %v4342, 0.0
  %v4445 = vmax.f32 %v4343, 0.0
  %v4446 = vmax.f32 %v4344, 0.0
  %v4447 = vmax.f32 %v4345, 0.0
  %v4448 = vmax.f32 %v4346, 0.0
  %v4449 = vmax.f32 %v4347, 0.0
  %v4450 = vmax.f32 %v4348, 0.0
  %v4451 = vmax.f32 %v4349, 0.0
  %v4452 = vmax.f32 %v4350, 0.0
  %v4453 = vmax.f32 %v4351, 0.0
  %v4454 = vmax.f32 %v4352, 0.0
  %v4455 = vmax.f32 %v4353, 0.0
  %v4456 = vmax.f32 %v4354, 0.0
  %v4457 = vmax.f32 %v4355, 0.0
  %v4458 = vmax.f32 %v4356, 0.0
  %v4459 = vmax.f32 %v4357, 0.0
  %v4460 = vmax.f32 %v4358, 0.0
  %v4461 = vmax.f32 %v4359, 0.0
  %v4462 = vmax.f32 %v4360, 0.0
  %v4463 = vmax.f32 %v4361, 0.0
  %v4464 = vmax.f32 %v4362, 0.0
  %v4465 = vmax.f32 %v4363, 0.0
  %v4466 = vmax.f32 %v4364, 0.0
  %v4467 = vmax.f32 %v4365, 0.0
  %v4468 = vmax.f32 %v4366, 0.0
  %v4469 = vmax.f32 %v4367, 0.0
  %v4470 = vmax.f32 %v4368, 0.0
  %v4471 = vadd.f32 %v4369, %v4370
  %v4472 = vadd.f32 %v4471, %v4371
  %v4473 = vadd.f32 %v4472, %v4372
  %v4474 = vadd.f32 %v4473, %v4373
  %v4475 = vsel %vm431, %v4374, 0.0
  %v4476 = vadd.f32 %v4474, %v4475
  %v4477 = vrot.slane %v4476, 4
  %v4478 = vadd.f32 %v4476, %v4477
  %v4479 = vrot.slane %v4478, 2
  %v4480 = vadd.f32 %v4478, %v4479
  %v4481 = vrot.slane %v4480, 1
  %v4482 = vadd.f32 %v4480, %v4481
  %v4483 = vadd.f32 %v4375, %v4376
  %v4484 = vadd.f32 %v4483, %v4377
  %v4485 = vadd.f32 %v4484, %v4378
  %v4486 = vadd.f32 %v4485, %v4379
  %v4487 = vsel %vm431, %v4380, 0.0
  %v4488 = vadd.f32 %v4486, %v4487
  %v4489 = vrot.slane %v4488, 4
  %v4490 = vadd.f32 %v4488, %v4489
  %v4491 = vrot.slane %v4490, 2
  %v4492 = vadd.f32 %v4490, %v4491
  %v4493 = vrot.slane %v4492, 1
  %v4494 = vadd.f32 %v4492, %v4493
  %v4495 = vadd.f32 %v4381, %v4382
  %v4496 = vadd.f32 %v4495, %v4383
  %v4497 = vadd.f32 %v4496, %v4384
  %v4498 = vadd.f32 %v4497, %v4385
  %v4499 = vsel %vm431, %v4386, 0.0
  %v4500 = vadd.f32 %v4498, %v4499
  %v4501 = vrot.slane %v4500, 4
  %v4502 = vadd.f32 %v4500, %v4501
  %v4503 = vrot.slane %v4502, 2
  %v4504 = vadd.f32 %v4502, %v4503
  %v4505 = vrot.slane %v4504, 1
  %v4506 = vadd.f32 %v4504, %v4505
  %v4507 = vadd.f32 %v4387, %v4388
  %v4508 = vadd.f32 %v4507, %v4389
  %v4509 = vadd.f32 %v4508, %v4390
  %v4510 = vadd.f32 %v4509, %v4391
  %v4511 = vsel %vm431, %v4392, 0.0
  %v4512 = vadd.f32 %v4510, %v4511
  %v4513 = vrot.slane %v4512, 4
  %v4514 = vadd.f32 %v4512, %v4513
  %v4515 = vrot.slane %v4514, 2
  %v4516 = vadd.f32 %v4514, %v4515
  %v4517 = vrot.slane %v4516, 1
  %v4518 = vadd.f32 %v4516, %v4517
  %v4519 = vadd.f32 %v4393, %v4394
  %v4520 = vadd.f32 %v4519, %v4395
  %v4521 = vadd.f32 %v4520, %v4396
  %v4522 = vadd.f32 %v4521, %v4397
  %v4523 = vsel %vm431, %v4398, 0.0
  %v4524 = vadd.f32 %v4522, %v4523
  %v4525 = vrot.slane %v4524, 4
  %v4526 = vadd.f32 %v4524, %v4525
  %v4527 = vrot.slane %v4526, 2
  %v4528 = vadd.f32 %v4526, %v4527
  %v4529 = vrot.slane %v4528, 1
  %v4530 = vadd.f32 %v4528, %v4529
  %v4531 = vadd.f32 %v4399, %v4400
  %v4532 = vadd.f32 %v4531, %v4401
  %v4533 = vadd.f32 %v4532, %v4402
  %v4534 = vadd.f32 %v4533, %v4403
  %v4535 = vsel %vm431, %v4404, 0.0
  %v4536 = vadd.f32 %v4534, %v4535
  %v4537 = vrot.slane %v4536, 4
  %v4538 = vadd.f32 %v4536, %v4537
  %v4539 = vrot.slane %v4538, 2
  %v4540 = vadd.f32 %v4538, %v4539
  %v4541 = vrot.slane %v4540, 1
  %v4542 = vadd.f32 %v4540, %v4541
  %v4543 = vadd.f32 %v4405, %v4406
  %v4544 = vadd.f32 %v4543, %v4407
  %v4545 = vadd.f32 %v4544, %v4408
  %v4546 = vadd.f32 %v4545, %v4409
  %v4547 = vsel %vm431, %v4410, 0.0
  %v4548 = vadd.f32 %v4546, %v4547
  %v4549 = vrot.slane %v4548, 4
  %v4550 = vadd.f32 %v4548, %v4549
  %v4551 = vrot.slane %v4550, 2
  %v4552 = vadd.f32 %v4550, %v4551
  %v4553 = vrot.slane %v4552, 1
  %v4554 = vadd.f32 %v4552, %v4553
  %v4555 = vadd.f32 %v4411, %v4412
  %v4556 = vadd.f32 %v4555, %v4413
  %v4557 = vadd.f32 %v4556, %v4414
  %v4558 = vadd.f32 %v4557, %v4415
  %v4559 = vsel %vm431, %v4416, 0.0
  %v4560 = vadd.f32 %v4558, %v4559
  %v4561 = vrot.slane %v4560, 4
  %v4562 = vadd.f32 %v4560, %v4561
  %v4563 = vrot.slane %v4562, 2
  %v4564 = vadd.f32 %v4562, %v4563
  %v4565 = vrot.slane %v4564, 1
  %v4566 = vadd.f32 %v4564, %v4565
  %v4567 = vadd.f32 %v4417, %v4418
  %v4568 = vadd.f32 %v4567, %v4419
  %v4569 = vadd.f32 %v4568, %v4420
  %v4570 = vadd.f32 %v4569, %v4421
  %v4571 = vsel %vm431, %v4422, 0.0
  %v4572 = vadd.f32 %v4570, %v4571
  %v4573 = vrot.slane %v4572, 4
  %v4574 = vadd.f32 %v4572, %v4573
  %v4575 = vrot.slane %v4574, 2
  %v4576 = vadd.f32 %v4574, %v4575
  %v4577 = vrot.slane %v4576, 1
  %v4578 = vadd.f32 %v4576, %v4577
  %v4579 = vadd.f32 %v4423, %v4424
  %v4580 = vadd.f32 %v4579, %v4425
  %v4581 = vadd.f32 %v4580, %v4426
  %v4582 = vadd.f32 %v4581, %v4427
  %v4583 = vsel %vm431, %v4428, 0.0
  %v4584 = vadd.f32 %v4582, %v4583
  %v4585 = vrot.slane %v4584, 4
  %v4586 = vadd.f32 %v4584, %v4585
  %v4587 = vrot.slane %v4586, 2
  %v4588 = vadd.f32 %v4586, %v4587
  %v4589 = vrot.slane %v4588, 1
  %v4590 = vadd.f32 %v4588, %v4589
  %v4591 = vadd.f32 %v4429, %v4430
  %v4592 = vadd.f32 %v4591, %v4431
  %v4593 = vadd.f32 %v4592, %v4432
  %v4594 = vadd.f32 %v4593, %v4433
  %v4595 = vsel %vm431, %v4434, 0.0
  %v4596 = vadd.f32 %v4594, %v4595
  %v4597 = vrot.slane %v4596, 4
  %v4598 = vadd.f32 %v4596, %v4597
  %v4599 = vrot.slane %v4598, 2
  %v4600 = vadd.f32 %v4598, %v4599
  %v4601 = vrot.slane %v4600, 1
  %v4602 = vadd.f32 %v4600, %v4601
  %v4603 = vadd.f32 %v4435, %v4436
  %v4604 = vadd.f32 %v4603, %v4437
  %v4605 = vadd.f32 %v4604, %v4438
  %v4606 = vadd.f32 %v4605, %v4439
  %v4607 = vsel %vm431, %v4440, 0.0
  %v4608 = vadd.f32 %v4606, %v4607
  %v4609 = vrot.slane %v4608, 4
  %v4610 = vadd.f32 %v4608, %v4609
  %v4611 = vrot.slane %v4610, 2
  %v4612 = vadd.f32 %v4610, %v4611
  %v4613 = vrot.slane %v4612, 1
  %v4614 = vadd.f32 %v4612, %v4613
  %v4615 = vadd.f32 %v4441, %v4442
  %v4616 = vadd.f32 %v4615, %v4443
  %v4617 = vadd.f32 %v4616, %v4444
  %v4618 = vadd.f32 %v4617, %v4445
  %v4619 = vsel %vm431, %v4446, 0.0
  %v4620 = vadd.f32 %v4618, %v4619
  %v4621 = vrot.slane %v4620, 4
  %v4622 = vadd.f32 %v4620, %v4621
  %v4623 = vrot.slane %v4622, 2
  %v4624 = vadd.f32 %v4622, %v4623
  %v4625 = vrot.slane %v4624, 1
  %v4626 = vadd.f32 %v4624, %v4625
  %v4627 = vadd.f32 %v4447, %v4448
  %v4628 = vadd.f32 %v4627, %v4449
  %v4629 = vadd.f32 %v4628, %v4450
  %v4630 = vadd.f32 %v4629, %v4451
  %v4631 = vsel %vm431, %v4452, 0.0
  %v4632 = vadd.f32 %v4630, %v4631
  %v4633 = vrot.slane %v4632, 4
  %v4634 = vadd.f32 %v4632, %v4633
  %v4635 = vrot.slane %v4634, 2
  %v4636 = vadd.f32 %v4634, %v4635
  %v4637 = vrot.slane %v4636, 1
  %v4638 = vadd.f32 %v4636, %v4637
  %v4639 = vadd.f32 %v4453, %v4454
  %v4640 = vadd.f32 %v4639, %v4455
  %v4641 = vadd.f32 %v4640, %v4456
  %v4642 = vadd.f32 %v4641, %v4457
  %v4643 = vsel %vm431, %v4458, 0.0
  %v4644 = vadd.f32 %v4642, %v4643
  %v4645 = vrot.slane %v4644, 4
  %v4646 = vadd.f32 %v4644, %v4645
  %v4647 = vrot.slane %v4646, 2
  %v4648 = vadd.f32 %v4646, %v4647
  %v4649 = vrot.slane %v4648, 1
  %v4650 = vadd.f32 %v4648, %v4649
  %v4651 = vadd.f32 %v4459, %v4460
  %v4652 = vadd.f32 %v4651, %v4461
  %v4653 = vadd.f32 %v4652, %v4462
  %v4654 = vadd.f32 %v4653, %v4463
  %v4655 = vsel %vm431, %v4464, 0.0
  %v4656 = vadd.f32 %v4654, %v4655
  %v4657 = vrot.slane %v4656, 4
  %v4658 = vadd.f32 %v4656, %v4657
  %v4659 = vrot.slane %v4658, 2
  %v4660 = vadd.f32 %v4658, %v4659
  %v4661 = vrot.slane %v4660, 1
  %v4662 = vadd.f32 %v4660, %v4661
  %v4663 = vadd.f32 %v4465, %v4466
  %v4664 = vadd.f32 %v4663, %v4467
  %v4665 = vadd.f32 %v4664, %v4468
  %v4666 = vadd.f32 %v4665, %v4469
  %v4667 = vsel %vm431, %v4470, 0.0
  %v4668 = vadd.f32 %v4666, %v4667
  %v4669 = vrot.slane %v4668, 4
  %v4670 = vadd.f32 %v4668, %v4669
  %v4671 = vrot.slane %v4670, 2
  %v4672 = vadd.f32 %v4670, %v4671
  %v4673 = vrot.slane %v4672, 1
  %v4674 = vadd.f32 %v4672, %v4673
  %v4675 = vadd.f32 %v4482, 0.0
  %v4676 = vadd.f32 %v4494, 0.0
  %v4677 = vadd.f32 %v4506, 0.0
  %v4678 = vadd.f32 %v4518, 0.0
  %v4679 = vadd.f32 %v4530, 0.0
  %v4680 = vadd.f32 %v4542, 0.0
  %v4681 = vadd.f32 %v4554, 0.0
  %v4682 = vadd.f32 %v4566, 0.0
  %v4683 = vadd.f32 %v4578, 0.0
  %v4684 = vadd.f32 %v4590, 0.0
  %v4685 = vadd.f32 %v4602, 0.0
  %v4686 = vadd.f32 %v4614, 0.0
  %v4687 = vadd.f32 %v4626, 0.0
  %v4688 = vadd.f32 %v4638, 0.0
  %v4689 = vadd.f32 %v4650, 0.0
  %v4690 = vadd.f32 %v4662, 0.0
  %v4691 = vadd.f32 %v4674, 0.0
  %v4692 = vadd.f32 %v4369, %v4375
  %v4693 = vadd.f32 %v4692, %v4381
  %v4694 = vadd.f32 %v4693, %v4387
  %v4695 = vadd.f32 %v4694, %v4393
  %v4696 = vadd.f32 %v4695, %v4399
  %v4697 = vadd.f32 %v4696, %v4405
  %v4698 = vadd.f32 %v4697, %v4411
  %v4699 = vadd.f32 %v4698, %v4417
  %v4700 = vadd.f32 %v4699, %v4423
  %v4701 = vadd.f32 %v4700, %v4429
  %v4702 = vadd.f32 %v4701, %v4435
  %v4703 = vadd.f32 %v4702, %v4441
  %v4704 = vadd.f32 %v4703, %v4447
  %v4705 = vadd.f32 %v4704, %v4453
  %v4706 = vadd.f32 %v4705, %v4459
  %v4707 = vadd.f32 %v4706, %v4465
  %v4708 = vadd.f32 %v4370, %v4376
  %v4709 = vadd.f32 %v4708, %v4382
  %v4710 = vadd.f32 %v4709, %v4388
  %v4711 = vadd.f32 %v4710, %v4394
  %v4712 = vadd.f32 %v4711, %v4400
  %v4713 = vadd.f32 %v4712, %v4406
  %v4714 = vadd.f32 %v4713, %v4412
  %v4715 = vadd.f32 %v4714, %v4418
  %v4716 = vadd.f32 %v4715, %v4424
  %v4717 = vadd.f32 %v4716, %v4430
  %v4718 = vadd.f32 %v4717, %v4436
  %v4719 = vadd.f32 %v4718, %v4442
  %v4720 = vadd.f32 %v4719, %v4448
  %v4721 = vadd.f32 %v4720, %v4454
  %v4722 = vadd.f32 %v4721, %v4460
  %v4723 = vadd.f32 %v4722, %v4466
  %v4724 = vadd.f32 %v4371, %v4377
  %v4725 = vadd.f32 %v4724, %v4383
  %v4726 = vadd.f32 %v4725, %v4389
  %v4727 = vadd.f32 %v4726, %v4395
  %v4728 = vadd.f32 %v4727, %v4401
  %v4729 = vadd.f32 %v4728, %v4407
  %v4730 = vadd.f32 %v4729, %v4413
  %v4731 = vadd.f32 %v4730, %v4419
  %v4732 = vadd.f32 %v4731, %v4425
  %v4733 = vadd.f32 %v4732, %v4431
  %v4734 = vadd.f32 %v4733, %v4437
  %v4735 = vadd.f32 %v4734, %v4443
  %v4736 = vadd.f32 %v4735, %v4449
  %v4737 = vadd.f32 %v4736, %v4455
  %v4738 = vadd.f32 %v4737, %v4461
  %v4739 = vadd.f32 %v4738, %v4467
  %v4740 = vadd.f32 %v4372, %v4378
  %v4741 = vadd.f32 %v4740, %v4384
  %v4742 = vadd.f32 %v4741, %v4390
  %v4743 = vadd.f32 %v4742, %v4396
  %v4744 = vadd.f32 %v4743, %v4402
  %v4745 = vadd.f32 %v4744, %v4408
  %v4746 = vadd.f32 %v4745, %v4414
  %v4747 = vadd.f32 %v4746, %v4420
  %v4748 = vadd.f32 %v4747, %v4426
  %v4749 = vadd.f32 %v4748, %v4432
  %v4750 = vadd.f32 %v4749, %v4438
  %v4751 = vadd.f32 %v4750, %v4444
  %v4752 = vadd.f32 %v4751, %v4450
  %v4753 = vadd.f32 %v4752, %v4456
  %v4754 = vadd.f32 %v4753, %v4462
  %v4755 = vadd.f32 %v4754, %v4468
  %v4756 = vadd.f32 %v4373, %v4379
  %v4757 = vadd.f32 %v4756, %v4385
  %v4758 = vadd.f32 %v4757, %v4391
  %v4759 = vadd.f32 %v4758, %v4397
  %v4760 = vadd.f32 %v4759, %v4403
  %v4761 = vadd.f32 %v4760, %v4409
  %v4762 = vadd.f32 %v4761, %v4415
  %v4763 = vadd.f32 %v4762, %v4421
  %v4764 = vadd.f32 %v4763, %v4427
  %v4765 = vadd.f32 %v4764, %v4433
  %v4766 = vadd.f32 %v4765, %v4439
  %v4767 = vadd.f32 %v4766, %v4445
  %v4768 = vadd.f32 %v4767, %v4451
  %v4769 = vadd.f32 %v4768, %v4457
  %v4770 = vadd.f32 %v4769, %v4463
  %v4771 = vadd.f32 %v4770, %v4469
  %v4772 = vadd.f32 %v4475, %v4487
  %v4773 = vadd.f32 %v4772, %v4499
  %v4774 = vadd.f32 %v4773, %v4511
  %v4775 = vadd.f32 %v4774, %v4523
  %v4776 = vadd.f32 %v4775, %v4535
  %v4777 = vadd.f32 %v4776, %v4547
  %v4778 = vadd.f32 %v4777, %v4559
  %v4779 = vadd.f32 %v4778, %v4571
  %v4780 = vadd.f32 %v4779, %v4583
  %v4781 = vadd.f32 %v4780, %v4595
  %v4782 = vadd.f32 %v4781, %v4607
  %v4783 = vadd.f32 %v4782, %v4619
  %v4784 = vadd.f32 %v4783, %v4631
  %v4785 = vadd.f32 %v4784, %v4643
  %v4786 = vadd.f32 %v4785, %v4655
  %v4787 = vadd.f32 %v4786, %v4667
  %v4788 = vrcp.pop 17.0
  %v4789 = vmul.f32 17.0, %v4788
  %v4790 = vsub.f32 1.0, %v4789
  %v4791 = vmul.f32 %v4788, %v4790
  %v4792 = vadd.f32 %v4788, %v4791
  %vm4793 = vweird.f32 %v4788
  %v4794 = vsel %vm4793, %v4788, %v4792
  %v4795 = vmul.f32 %v4707, %v4794
  %v4796 = vmul.f32 %v4723, %v4794
  %v4797 = vmul.f32 %v4739, %v4794
  %v4798 = vmul.f32 %v4755, %v4794
  %v4799 = vmul.f32 %v4771, %v4794
  %v4800 = vmul.f32 %v4787, %v4794
  %v4801 = vmul.f32 %v4675, 0.023255814
  %v4802 = vmul.f32 %v4676, 0.023255814
  %v4803 = vmul.f32 %v4677, 0.023255814
  %v4804 = vmul.f32 %v4678, 0.023255814
  %v4805 = vmul.f32 %v4679, 0.023255814
  %v4806 = vmul.f32 %v4680, 0.023255814
  %v4807 = vmul.f32 %v4681, 0.023255814
  %v4808 = vmul.f32 %v4682, 0.023255814
  %v4809 = vmul.f32 %v4683, 0.023255814
  %v4810 = vmul.f32 %v4684, 0.023255814
  %v4811 = vmul.f32 %v4685, 0.023255814
  %v4812 = vmul.f32 %v4686, 0.023255814
  %v4813 = vmul.f32 %v4687, 0.023255814
  %v4814 = vmul.f32 %v4688, 0.023255814
  %v4815 = vmul.f32 %v4689, 0.023255814
  %v4816 = vmul.f32 %v4690, 0.023255814
  %v4817 = vmul.f32 %v4691, 0.023255814
  %4820 = vst [vmem:[#allocation1] sm:$0xff] %v4096
  %s4821 = scalar_lea.vmem [#allocation1], 1
  %v4822 = vld [vmem:[%s4821] ss:$9 sm:$0xff]
  %s4823 = scalar_lea.vmem [#allocation1], 2
  %v4824 = vld [vmem:[%s4823] ss:$9 sm:$0xff]
  %s4825 = scalar_lea.vmem [#allocation1], 3
  %v4826 = vld [vmem:[%s4825] ss:$9 sm:$0xff]
  %s4827 = scalar_lea.vmem [#allocation1], 4
  %v4828 = vld [vmem:[%s4827] ss:$9 sm:$0xff]
  %s4829 = scalar_lea.vmem [#allocation1], 5
  %v4830 = vld [vmem:[%s4829] ss:$9 sm:$0xff]
  %s4831 = scalar_lea.vmem [#allocation1], 6
  %v4832 = vld [vmem:[%s4831] ss:$9 sm:$0xff]
  %s4833 = scalar_lea.vmem [#allocation1], 7
  %v4834 = vld [vmem:[%s4833] ss:$9 sm:$0xff]
  %4835 = vst [vmem:[#allocation1] sm:$0xff] %v4098
  %v4836 = vld [vmem:[#allocation1] ss:$9 sm:$0xff]
  %v4837 = vld [vmem:[%s4821] ss:$9 sm:$0xff]
  %v4838 = vld [vmem:[%s4823] ss:$9 sm:$0xff]
  %v4839 = vld [vmem:[%s4825] ss:$9 sm:$0xff]
  %v4840 = vld [vmem:[%s4827] ss:$9 sm:$0xff]
  %v4841 = vld [vmem:[%s4829] ss:$9 sm:$0xff]
  %v4842 = vld [vmem:[%s4831] ss:$9 sm:$0xff]
  %v4843 = vld [vmem:[%s4833] ss:$9 sm:$0xff]
  %4844 = vst [vmem:[#allocation1] sm:$0xff] %v4101
  %v4845 = vld [vmem:[#allocation1] ss:$9 sm:$0xff]
  %v4846 = vld [vmem:[%s4821] ss:$9 sm:$0xff]
  %v4847 = vperm.slane %v4822, 0
  %v4848 = vperm.slane %v4824, 0
  %v4849 = vperm.slane %v4826, 0
  %v4850 = vperm.slane %v4828, 0
  %v4851 = vperm.slane %v4830, 0
  %v4852 = vperm.slane %v4832, 0
  %v4853 = vperm.slane %v4834, 0
  %v4854 = vperm.slane %v4836, 0
  %v4855 = vperm.slane %v4837, 0
  %v4856 = vperm.slane %v4838, 0
  %v4857 = vperm.slane %v4839, 0
  %v4858 = vperm.slane %v4840, 0
  %v4859 = vperm.slane %v4841, 0
  %v4860 = vperm.slane %v4842, 0
  %v4861 = vperm.slane %v4843, 0
  %v4862 = vperm.slane %v4845, 0
  %v4863 = vperm.slane %v4846, 0
  %v4881 = vadd.f32 %v4847, %v4200
  %v4882 = vadd.f32 %v4847, %v4203
  %v4883 = vadd.f32 %v4847, %v4205
  %v4884 = vadd.f32 %v4847, %v4208
  %v4885 = vadd.f32 %v4847, %v4210
  %v4886 = vadd.f32 %v4847, %v4213
  %v4887 = vadd.f32 %v4848, %v4200
  %v4888 = vadd.f32 %v4848, %v4203
  %v4889 = vadd.f32 %v4848, %v4205
  %v4890 = vadd.f32 %v4848, %v4208
  %v4891 = vadd.f32 %v4848, %v4210
  %v4892 = vadd.f32 %v4848, %v4213
  %v4893 = vadd.f32 %v4849, %v4200
  %v4894 = vadd.f32 %v4849, %v4203
  %v4895 = vadd.f32 %v4849, %v4205
  %v4896 = vadd.f32 %v4849, %v4208
  %v4897 = vadd.f32 %v4849, %v4210
  %v4898 = vadd.f32 %v4849, %v4213
  %v4899 = vadd.f32 %v4850, %v4200
  %v4900 = vadd.f32 %v4850, %v4203
  %v4901 = vadd.f32 %v4850, %v4205
  %v4902 = vadd.f32 %v4850, %v4208
  %v4903 = vadd.f32 %v4850, %v4210
  %v4904 = vadd.f32 %v4850, %v4213
  %v4905 = vadd.f32 %v4851, %v4200
  %v4906 = vadd.f32 %v4851, %v4203
  %v4907 = vadd.f32 %v4851, %v4205
  %v4908 = vadd.f32 %v4851, %v4208
  %v4909 = vadd.f32 %v4851, %v4210
  %v4910 = vadd.f32 %v4851, %v4213
  %v4911 = vadd.f32 %v4852, %v4200
  %v4912 = vadd.f32 %v4852, %v4203
  %v4913 = vadd.f32 %v4852, %v4205
  %v4914 = vadd.f32 %v4852, %v4208
  %v4915 = vadd.f32 %v4852, %v4210
  %v4916 = vadd.f32 %v4852, %v4213
  %v4917 = vadd.f32 %v4853, %v4200
  %v4918 = vadd.f32 %v4853, %v4203
  %v4919 = vadd.f32 %v4853, %v4205
  %v4920 = vadd.f32 %v4853, %v4208
  %v4921 = vadd.f32 %v4853, %v4210
  %v4922 = vadd.f32 %v4853, %v4213
  %v4923 = vadd.f32 %v4854, %v4200
  %v4924 = vadd.f32 %v4854, %v4203
  %v4925 = vadd.f32 %v4854, %v4205
  %v4926 = vadd.f32 %v4854, %v4208
  %v4927 = vadd.f32 %v4854, %v4210
  %v4928 = vadd.f32 %v4854, %v4213
  %v4929 = vadd.f32 %v4855, %v4200
  %v4930 = vadd.f32 %v4855, %v4203
  %v4931 = vadd.f32 %v4855, %v4205
  %v4932 = vadd.f32 %v4855, %v4208
  %v4933 = vadd.f32 %v4855, %v4210
  %v4934 = vadd.f32 %v4855, %v4213
  %v4935 = vadd.f32 %v4856, %v4200
  %v4936 = vadd.f32 %v4856, %v4203
  %v4937 = vadd.f32 %v4856, %v4205
  %v4938 = vadd.f32 %v4856, %v4208
  %v4939 = vadd.f32 %v4856, %v4210
  %v4940 = vadd.f32 %v4856, %v4213
  %v4941 = vadd.f32 %v4857, %v4200
  %v4942 = vadd.f32 %v4857, %v4203
  %v4943 = vadd.f32 %v4857, %v4205
  %v4944 = vadd.f32 %v4857, %v4208
  %v4945 = vadd.f32 %v4857, %v4210
  %v4946 = vadd.f32 %v4857, %v4213
  %v4947 = vadd.f32 %v4858, %v4200
  %v4948 = vadd.f32 %v4858, %v4203
  %v4949 = vadd.f32 %v4858, %v4205
  %v4950 = vadd.f32 %v4858, %v4208
  %v4951 = vadd.f32 %v4858, %v4210
  %v4952 = vadd.f32 %v4858, %v4213
  %v4953 = vadd.f32 %v4859, %v4200
  %v4954 = vadd.f32 %v4859, %v4203
  %v4955 = vadd.f32 %v4859, %v4205
  %v4956 = vadd.f32 %v4859, %v4208
  %v4957 = vadd.f32 %v4859, %v4210
  %v4958 = vadd.f32 %v4859, %v4213
  %v4959 = vadd.f32 %v4860, %v4200
  %v4960 = vadd.f32 %v4860, %v4203
  %v4961 = vadd.f32 %v4860, %v4205
  %v4962 = vadd.f32 %v4860, %v4208
  %v4963 = vadd.f32 %v4860, %v4210
  %v4964 = vadd.f32 %v4860, %v4213
  %v4965 = vadd.f32 %v4861, %v4200
  %v4966 = vadd.f32 %v4861, %v4203
  %v4967 = vadd.f32 %v4861, %v4205
  %v4968 = vadd.f32 %v4861, %v4208
  %v4969 = vadd.f32 %v4861, %v4210
  %v4970 = vadd.f32 %v4861, %v4213
  %v4971 = vadd.f32 %v4862, %v4200
  %v4972 = vadd.f32 %v4862, %v4203
  %v4973 = vadd.f32 %v4862, %v4205
  %v4974 = vadd.f32 %v4862, %v4208
  %v4975 = vadd.f32 %v4862, %v4210
  %v4976 = vadd.f32 %v4862, %v4213
  %v4977 = vadd.f32 %v4863, %v4200
  %v4978 = vadd.f32 %v4863, %v4203
  %v4979 = vadd.f32 %v4863, %v4205
  %v4980 = vadd.f32 %v4863, %v4208
  %v4981 = vadd.f32 %v4863, %v4210
  %v4982 = vadd.f32 %v4863, %v4213
  %v4983 = vmax.f32 %v4881, 0.0
  %v4984 = vmax.f32 %v4882, 0.0
  %v4985 = vmax.f32 %v4883, 0.0
  %v4986 = vmax.f32 %v4884, 0.0
  %v4987 = vmax.f32 %v4885, 0.0
  %v4988 = vmax.f32 %v4886, 0.0
  %v4989 = vmax.f32 %v4887, 0.0
  %v4990 = vmax.f32 %v4888, 0.0
  %v4991 = vmax.f32 %v4889, 0.0
  %v4992 = vmax.f32 %v4890, 0.0
  %v4993 = vmax.f32 %v4891, 0.0
  %v4994 = vmax.f32 %v4892, 0.0
  %v4995 = vmax.f32 %v4893, 0.0
  %v4996 = vmax.f32 %v4894, 0.0
  %v4997 = vmax.f32 %v4895, 0.0
  %v4998 = vmax.f32 %v4896, 0.0
  %v4999 = vmax.f32 %v4897, 0.0
  %v5000 = vmax.f32 %v4898, 0.0
  %v5001 = vmax.f32 %v4899, 0.0
  %v5002 = vmax.f32 %v4900, 0.0
  %v5003 = vmax.f32 %v4901, 0.0
  %v5004 = vmax.f32 %v4902, 0.0
  %v5005 = vmax.f32 %v4903, 0.0
  %v5006 = vmax.f32 %v4904, 0.0
  %v5007 = vmax.f32 %v4905, 0.0
  %v5008 = vmax.f32 %v4906, 0.0
  %v5009 = vmax.f32 %v4907, 0.0
  %v5010 = vmax.f32 %v4908, 0.0
  %v5011 = vmax.f32 %v4909, 0.0
  %v5012 = vmax.f32 %v4910, 0.0
  %v5013 = vmax.f32 %v4911, 0.0
  %v5014 = vmax.f32 %v4912, 0.0
  %v5015 = vmax.f32 %v4913, 0.0
  %v5016 = vmax.f32 %v4914, 0.0
  %v5017 = vmax.f32 %v4915, 0.0
  %v5018 = vmax.f32 %v4916, 0.0
  %v5019 = vmax.f32 %v4917, 0.0
  %v5020 = vmax.f32 %v4918, 0.0
  %v5021 = vmax.f32 %v4919, 0.0
  %v5022 = vmax.f32 %v4920, 0.0
  %v5023 = vmax.f32 %v4921, 0.0
  %v5024 = vmax.f32 %v4922, 0.0
  %v5025 = vmax.f32 %v4923, 0.0
  %v5026 = vmax.f32 %v4924, 0.0
  %v5027 = vmax.f32 %v4925, 0.0
  %v5028 = vmax.f32 %v4926, 0.0
  %v5029 = vmax.f32 %v4927, 0.0
  %v5030 = vmax.f32 %v4928, 0.0
  %v5031 = vmax.f32 %v4929, 0.0
  %v5032 = vmax.f32 %v4930, 0.0
  %v5033 = vmax.f32 %v4931, 0.0
  %v5034 = vmax.f32 %v4932, 0.0
  %v5035 = vmax.f32 %v4933, 0.0
  %v5036 = vmax.f32 %v4934, 0.0
  %v5037 = vmax.f32 %v4935, 0.0
  %v5038 = vmax.f32 %v4936, 0.0
  %v5039 = vmax.f32 %v4937, 0.0
  %v5040 = vmax.f32 %v4938, 0.0
  %v5041 = vmax.f32 %v4939, 0.0
  %v5042 = vmax.f32 %v4940, 0.0
  %v5043 = vmax.f32 %v4941, 0.0
  %v5044 = vmax.f32 %v4942, 0.0
  %v5045 = vmax.f32 %v4943, 0.0
  %v5046 = vmax.f32 %v4944, 0.0
  %v5047 = vmax.f32 %v4945, 0.0
  %v5048 = vmax.f32 %v4946, 0.0
  %v5049 = vmax.f32 %v4947, 0.0
  %v5050 = vmax.f32 %v4948, 0.0
  %v5051 = vmax.f32 %v4949, 0.0
  %v5052 = vmax.f32 %v4950, 0.0
  %v5053 = vmax.f32 %v4951, 0.0
  %v5054 = vmax.f32 %v4952, 0.0
  %v5055 = vmax.f32 %v4953, 0.0
  %v5056 = vmax.f32 %v4954, 0.0
  %v5057 = vmax.f32 %v4955, 0.0
  %v5058 = vmax.f32 %v4956, 0.0
  %v5059 = vmax.f32 %v4957, 0.0
  %v5060 = vmax.f32 %v4958, 0.0
  %v5061 = vmax.f32 %v4959, 0.0
  %v5062 = vmax.f32 %v4960, 0.0
  %v5063 = vmax.f32 %v4961, 0.0
  %v5064 = vmax.f32 %v4962, 0.0
  %v5065 = vmax.f32 %v4963, 0.0
  %v5066 = vmax.f32 %v4964, 0.0
  %v5067 = vmax.f32 %v4965, 0.0
  %v5068 = vmax.f32 %v4966, 0.0
  %v5069 = vmax.f32 %v4967, 0.0
  %v5070 = vmax.f32 %v4968, 0.0
  %v5071 = vmax.f32 %v4969, 0.0
  %v5072 = vmax.f32 %v4970, 0.0
  %v5073 = vmax.f32 %v4971, 0.0
  %v5074 = vmax.f32 %v4972, 0.0
  %v5075 = vmax.f32 %v4973, 0.0
  %v5076 = vmax.f32 %v4974, 0.0
  %v5077 = vmax.f32 %v4975, 0.0
  %v5078 = vmax.f32 %v4976, 0.0
  %v5079 = vmax.f32 %v4977, 0.0
  %v5080 = vmax.f32 %v4978, 0.0
  %v5081 = vmax.f32 %v4979, 0.0
  %v5082 = vmax.f32 %v4980, 0.0
  %v5083 = vmax.f32 %v4981, 0.0
  %v5084 = vmax.f32 %v4982, 0.0
  %v5187 = vrot.slane %v4983, 3
  %v5188 = vrot.slane %v4984, 3
  %v5189 = vsel %vm134, %v5187, %v5188
  %v5190 = vrot.slane %v4985, 3
  %v5191 = vsel %vm134, %v5188, %v5190
  %v5192 = vrot.slane %v4986, 3
  %v5193 = vsel %vm134, %v5190, %v5192
  %v5194 = vrot.slane %v4987, 3
  %v5195 = vsel %vm134, %v5192, %v5194
  %v5196 = vrot.slane %v4988, 3
  %v5197 = vsel %vm134, %v5194, %v5196
  %v5198 = vrot.slane %v4989, 3
  %v5199 = vrot.slane %v4990, 3
  %v5200 = vsel %vm134, %v5198, %v5199
  %v5201 = vrot.slane %v4991, 3
  %v5202 = vsel %vm134, %v5199, %v5201
  %v5203 = vrot.slane %v4992, 3
  %v5204 = vsel %vm134, %v5201, %v5203
  %v5205 = vrot.slane %v4993, 3
  %v5206 = vsel %vm134, %v5203, %v5205
  %v5207 = vrot.slane %v4994, 3
  %v5208 = vsel %vm134, %v5205, %v5207
  %v5209 = vrot.slane %v4995, 3
  %v5210 = vrot.slane %v4996, 3
  %v5211 = vsel %vm134, %v5209, %v5210
  %v5212 = vrot.slane %v4997, 3
  %v5213 = vsel %vm134, %v5210, %v5212
  %v5214 = vrot.slane %v4998, 3
  %v5215 = vsel %vm134, %v5212, %v5214
  %v5216 = vrot.slane %v4999, 3
  %v5217 = vsel %vm134, %v5214, %v5216
  %v5218 = vrot.slane %v5000, 3
  %v5219 = vsel %vm134, %v5216, %v5218
  %v5220 = vrot.slane %v5001, 3
  %v5221 = vrot.slane %v5002, 3
  %v5222 = vsel %vm134, %v5220, %v5221
  %v5223 = vrot.slane %v5003, 3
  %v5224 = vsel %vm134, %v5221, %v5223
  %v5225 = vrot.slane %v5004, 3
  %v5226 = vsel %vm134, %v5223, %v5225
  %v5227 = vrot.slane %v5005, 3
  %v5228 = vsel %vm134, %v5225, %v5227
  %v5229 = vrot.slane %v5006, 3
  %v5230 = vsel %vm134, %v5227, %v5229
  %v5231 = vrot.slane %v5007, 3
  %v5232 = vrot.slane %v5008, 3
  %v5233 = vsel %vm134, %v5231, %v5232
  %v5234 = vrot.slane %v5009, 3
  %v5235 = vsel %vm134, %v5232, %v5234
  %v5236 = vrot.slane %v5010, 3
  %v5237 = vsel %vm134, %v5234, %v5236
  %v5238 = vrot.slane %v5011, 3
  %v5239 = vsel %vm134, %v5236, %v5238
  %v5240 = vrot.slane %v5012, 3
  %v5241 = vsel %vm134, %v5238, %v5240
  %v5242 = vrot.slane %v5013, 3
  %v5243 = vrot.slane %v5014, 3
  %v5244 = vsel %vm134, %v5242, %v5243
  %v5245 = vrot.slane %v5015, 3
  %v5246 = vsel %vm134, %v5243, %v5245
  %v5247 = vrot.slane %v5016, 3
  %v5248 = vsel %vm134, %v5245, %v5247
  %v5249 = vrot.slane %v5017, 3
  %v5250 = vsel %vm134, %v5247, %v5249
  %v5251 = vrot.slane %v5018, 3
  %v5252 = vsel %vm134, %v5249, %v5251
  %v5253 = vrot.slane %v5019, 3
  %v5254 = vrot.slane %v5020, 3
  %v5255 = vsel %vm134, %v5253, %v5254
  %v5256 = vrot.slane %v5021, 3
  %v5257 = vsel %vm134, %v5254, %v5256
  %v5258 = vrot.slane %v5022, 3
  %v5259 = vsel %vm134, %v5256, %v5258
  %v5260 = vrot.slane %v5023, 3
  %v5261 = vsel %vm134, %v5258, %v5260
  %v5262 = vrot.slane %v5024, 3
  %v5263 = vsel %vm134, %v5260, %v5262
  %v5264 = vrot.slane %v5025, 3
  %v5265 = vrot.slane %v5026, 3
  %v5266 = vsel %vm134, %v5264, %v5265
  %v5267 = vrot.slane %v5027, 3
  %v5268 = vsel %vm134, %v5265, %v5267
  %v5269 = vrot.slane %v5028, 3
  %v5270 = vsel %vm134, %v5267, %v5269
  %v5271 = vrot.slane %v5029, 3
  %v5272 = vsel %vm134, %v5269, %v5271
  %v5273 = vrot.slane %v5030, 3
  %v5274 = vsel %vm134, %v5271, %v5273
  %v5275 = vrot.slane %v5031, 3
  %v5276 = vrot.slane %v5032, 3
  %v5277 = vsel %vm134, %v5275, %v5276
  %v5278 = vrot.slane %v5033, 3
  %v5279 = vsel %vm134, %v5276, %v5278
  %v5280 = vrot.slane %v5034, 3
  %v5281 = vsel %vm134, %v5278, %v5280
  %v5282 = vrot.slane %v5035, 3
  %v5283 = vsel %vm134, %v5280, %v5282
  %v5284 = vrot.slane %v5036, 3
  %v5285 = vsel %vm134, %v5282, %v5284
  %v5286 = vrot.slane %v5037, 3
  %v5287 = vrot.slane %v5038, 3
  %v5288 = vsel %vm134, %v5286, %v5287
  %v5289 = vrot.slane %v5039, 3
  %v5290 = vsel %vm134, %v5287, %v5289
  %v5291 = vrot.slane %v5040, 3
  %v5292 = vsel %vm134, %v5289, %v5291
  %v5293 = vrot.slane %v5041, 3
  %v5294 = vsel %vm134, %v5291, %v5293
  %v5295 = vrot.slane %v5042, 3
  %v5296 = vsel %vm134, %v5293, %v5295
  %v5297 = vrot.slane %v5043, 3
  %v5298 = vrot.slane %v5044, 3
  %v5299 = vsel %vm134, %v5297, %v5298
  %v5300 = vrot.slane %v5045, 3
  %v5301 = vsel %vm134, %v5298, %v5300
  %v5302 = vrot.slane %v5046, 3
  %v5303 = vsel %vm134, %v5300, %v5302
  %v5304 = vrot.slane %v5047, 3
  %v5305 = vsel %vm134, %v5302, %v5304
  %v5306 = vrot.slane %v5048, 3
  %v5307 = vsel %vm134, %v5304, %v5306
  %v5308 = vrot.slane %v5049, 3
  %v5309 = vrot.slane %v5050, 3
  %v5310 = vsel %vm134, %v5308, %v5309
  %v5311 = vrot.slane %v5051, 3
  %v5312 = vsel %vm134, %v5309, %v5311
  %v5313 = vrot.slane %v5052, 3
  %v5314 = vsel %vm134, %v5311, %v5313
  %v5315 = vrot.slane %v5053, 3
  %v5316 = vsel %vm134, %v5313, %v5315
  %v5317 = vrot.slane %v5054, 3
  %v5318 = vsel %vm134, %v5315, %v5317
  %v5319 = vrot.slane %v5055, 3
  %v5320 = vrot.slane %v5056, 3
  %v5321 = vsel %vm134, %v5319, %v5320
  %v5322 = vrot.slane %v5057, 3
  %v5323 = vsel %vm134, %v5320, %v5322
  %v5324 = vrot.slane %v5058, 3
  %v5325 = vsel %vm134, %v5322, %v5324
  %v5326 = vrot.slane %v5059, 3
  %v5327 = vsel %vm134, %v5324, %v5326
  %v5328 = vrot.slane %v5060, 3
  %v5329 = vsel %vm134, %v5326, %v5328
  %v5330 = vrot.slane %v5061, 3
  %v5331 = vrot.slane %v5062, 3
  %v5332 = vsel %vm134, %v5330, %v5331
  %v5333 = vrot.slane %v5063, 3
  %v5334 = vsel %vm134, %v5331, %v5333
  %v5335 = vrot.slane %v5064, 3
  %v5336 = vsel %vm134, %v5333, %v5335
  %v5337 = vrot.slane %v5065, 3
  %v5338 = vsel %vm134, %v5335, %v5337
  %v5339 = vrot.slane %v5066, 3
  %v5340 = vsel %vm134, %v5337, %v5339
  %v5341 = vrot.slane %v5067, 3
  %v5342 = vrot.slane %v5068, 3
  %v5343 = vsel %vm134, %v5341, %v5342
  %v5344 = vrot.slane %v5069, 3
  %v5345 = vsel %vm134, %v5342, %v5344
  %v5346 = vrot.slane %v5070, 3
  %v5347 = vsel %vm134, %v5344, %v5346
  %v5348 = vrot.slane %v5071, 3
  %v5349 = vsel %vm134, %v5346, %v5348
  %v5350 = vrot.slane %v5072, 3
  %v5351 = vsel %vm134, %v5348, %v5350
  %v5352 = vrot.slane %v5073, 3
  %v5353 = vrot.slane %v5074, 3
  %v5354 = vsel %vm134, %v5352, %v5353
  %v5355 = vrot.slane %v5075, 3
  %v5356 = vsel %vm134, %v5353, %v5355
  %v5357 = vrot.slane %v5076, 3
  %v5358 = vsel %vm134, %v5355, %v5357
  %v5359 = vrot.slane %v5077, 3
  %v5360 = vsel %vm134, %v5357, %v5359
  %v5361 = vrot.slane %v5078, 3
  %v5362 = vsel %vm134, %v5359, %v5361
  %v5363 = vrot.slane %v5079, 3
  %v5364 = vrot.slane %v5080, 3
  %v5365 = vsel %vm134, %v5363, %v5364
  %v5366 = vrot.slane %v5081, 3
  %v5367 = vsel %vm134, %v5364, %v5366
  %v5368 = vrot.slane %v5082, 3
  %v5369 = vsel %vm134, %v5366, %v5368
  %v5370 = vrot.slane %v5083, 3
  %v5371 = vsel %vm134, %v5368, %v5370
  %v5372 = vrot.slane %v5084, 3
  %v5373 = vsel %vm134, %v5370, %v5372
  %v5476 = vadd.f32 %v5189, %v5191
  %v5477 = vadd.f32 %v5476, %v5193
  %v5478 = vadd.f32 %v5477, %v5195
  %v5479 = vadd.f32 %v5478, %v5197
  %v5480 = vsel %vm431, %v5196, 0.0
  %v5481 = vadd.f32 %v5479, %v5480
  %v5482 = vrot.slane %v5481, 4
  %v5483 = vadd.f32 %v5481, %v5482
  %v5484 = vrot.slane %v5483, 2
  %v5485 = vadd.f32 %v5483, %v5484
  %v5486 = vrot.slane %v5485, 1
  %v5487 = vadd.f32 %v5485, %v5486
  %v5488 = vadd.f32 %v5200, %v5202
  %v5489 = vadd.f32 %v5488, %v5204
  %v5490 = vadd.f32 %v5489, %v5206
  %v5491 = vadd.f32 %v5490, %v5208
  %v5492 = vsel %vm431, %v5207, 0.0
  %v5493 = vadd.f32 %v5491, %v5492
  %v5494 = vrot.slane %v5493, 4
  %v5495 = vadd.f32 %v5493, %v5494
  %v5496 = vrot.slane %v5495, 2
  %v5497 = vadd.f32 %v5495, %v5496
  %v5498 = vrot.slane %v5497, 1
  %v5499 = vadd.f32 %v5497, %v5498
  %v5500 = vadd.f32 %v5211, %v5213
  %v5501 = vadd.f32 %v5500, %v5215
  %v5502 = vadd.f32 %v5501, %v5217
  %v5503 = vadd.f32 %v5502, %v5219
  %v5504 = vsel %vm431, %v5218, 0.0
  %v5505 = vadd.f32 %v5503, %v5504
  %v5506 = vrot.slane %v5505, 4
  %v5507 = vadd.f32 %v5505, %v5506
  %v5508 = vrot.slane %v5507, 2
  %v5509 = vadd.f32 %v5507, %v5508
  %v5510 = vrot.slane %v5509, 1
  %v5511 = vadd.f32 %v5509, %v5510
  %v5512 = vadd.f32 %v5222, %v5224
  %v5513 = vadd.f32 %v5512, %v5226
  %v5514 = vadd.f32 %v5513, %v5228
  %v5515 = vadd.f32 %v5514, %v5230
  %v5516 = vsel %vm431, %v5229, 0.0
  %v5517 = vadd.f32 %v5515, %v5516
  %v5518 = vrot.slane %v5517, 4
  %v5519 = vadd.f32 %v5517, %v5518
  %v5520 = vrot.slane %v5519, 2
  %v5521 = vadd.f32 %v5519, %v5520
  %v5522 = vrot.slane %v5521, 1
  %v5523 = vadd.f32 %v5521, %v5522
  %v5524 = vadd.f32 %v5233, %v5235
  %v5525 = vadd.f32 %v5524, %v5237
  %v5526 = vadd.f32 %v5525, %v5239
  %v5527 = vadd.f32 %v5526, %v5241
  %v5528 = vsel %vm431, %v5240, 0.0
  %v5529 = vadd.f32 %v5527, %v5528
  %v5530 = vrot.slane %v5529, 4
  %v5531 = vadd.f32 %v5529, %v5530
  %v5532 = vrot.slane %v5531, 2
  %v5533 = vadd.f32 %v5531, %v5532
  %v5534 = vrot.slane %v5533, 1
  %v5535 = vadd.f32 %v5533, %v5534
  %v5536 = vadd.f32 %v5244, %v5246
  %v5537 = vadd.f32 %v5536, %v5248
  %v5538 = vadd.f32 %v5537, %v5250
  %v5539 = vadd.f32 %v5538, %v5252
  %v5540 = vsel %vm431, %v5251, 0.0
  %v5541 = vadd.f32 %v5539, %v5540
  %v5542 = vrot.slane %v5541, 4
  %v5543 = vadd.f32 %v5541, %v5542
  %v5544 = vrot.slane %v5543, 2
  %v5545 = vadd.f32 %v5543, %v5544
  %v5546 = vrot.slane %v5545, 1
  %v5547 = vadd.f32 %v5545, %v5546
  %v5548 = vadd.f32 %v5255, %v5257
  %v5549 = vadd.f32 %v5548, %v5259
  %v5550 = vadd.f32 %v5549, %v5261
  %v5551 = vadd.f32 %v5550, %v5263
  %v5552 = vsel %vm431, %v5262, 0.0
  %v5553 = vadd.f32 %v5551, %v5552
  %v5554 = vrot.slane %v5553, 4
  %v5555 = vadd.f32 %v5553, %v5554
  %v5556 = vrot.slane %v5555, 2
  %v5557 = vadd.f32 %v5555, %v5556
  %v5558 = vrot.slane %v5557, 1
  %v5559 = vadd.f32 %v5557, %v5558
  %v5560 = vadd.f32 %v5266, %v5268
  %v5561 = vadd.f32 %v5560, %v5270
  %v5562 = vadd.f32 %v5561, %v5272
  %v5563 = vadd.f32 %v5562, %v5274
  %v5564 = vsel %vm431, %v5273, 0.0
  %v5565 = vadd.f32 %v5563, %v5564
  %v5566 = vrot.slane %v5565, 4
  %v5567 = vadd.f32 %v5565, %v5566
  %v5568 = vrot.slane %v5567, 2
  %v5569 = vadd.f32 %v5567, %v5568
  %v5570 = vrot.slane %v5569, 1
  %v5571 = vadd.f32 %v5569, %v5570
  %v5572 = vadd.f32 %v5277, %v5279
  %v5573 = vadd.f32 %v5572, %v5281
  %v5574 = vadd.f32 %v5573, %v5283
  %v5575 = vadd.f32 %v5574, %v5285
  %v5576 = vsel %vm431, %v5284, 0.0
  %v5577 = vadd.f32 %v5575, %v5576
  %v5578 = vrot.slane %v5577, 4
  %v5579 = vadd.f32 %v5577, %v5578
  %v5580 = vrot.slane %v5579, 2
  %v5581 = vadd.f32 %v5579, %v5580
  %v5582 = vrot.slane %v5581, 1
  %v5583 = vadd.f32 %v5581, %v5582
  %v5584 = vadd.f32 %v5288, %v5290
  %v5585 = vadd.f32 %v5584, %v5292
  %v5586 = vadd.f32 %v5585, %v5294
  %v5587 = vadd.f32 %v5586, %v5296
  %v5588 = vsel %vm431, %v5295, 0.0
  %v5589 = vadd.f32 %v5587, %v5588
  %v5590 = vrot.slane %v5589, 4
  %v5591 = vadd.f32 %v5589, %v5590
  %v5592 = vrot.slane %v5591, 2
  %v5593 = vadd.f32 %v5591, %v5592
  %v5594 = vrot.slane %v5593, 1
  %v5595 = vadd.f32 %v5593, %v5594
  %v5596 = vadd.f32 %v5299, %v5301
  %v5597 = vadd.f32 %v5596, %v5303
  %v5598 = vadd.f32 %v5597, %v5305
  %v5599 = vadd.f32 %v5598, %v5307
  %v5600 = vsel %vm431, %v5306, 0.0
  %v5601 = vadd.f32 %v5599, %v5600
  %v5602 = vrot.slane %v5601, 4
  %v5603 = vadd.f32 %v5601, %v5602
  %v5604 = vrot.slane %v5603, 2
  %v5605 = vadd.f32 %v5603, %v5604
  %v5606 = vrot.slane %v5605, 1
  %v5607 = vadd.f32 %v5605, %v5606
  %v5608 = vadd.f32 %v5310, %v5312
  %v5609 = vadd.f32 %v5608, %v5314
  %v5610 = vadd.f32 %v5609, %v5316
  %v5611 = vadd.f32 %v5610, %v5318
  %v5612 = vsel %vm431, %v5317, 0.0
  %v5613 = vadd.f32 %v5611, %v5612
  %v5614 = vrot.slane %v5613, 4
  %v5615 = vadd.f32 %v5613, %v5614
  %v5616 = vrot.slane %v5615, 2
  %v5617 = vadd.f32 %v5615, %v5616
  %v5618 = vrot.slane %v5617, 1
  %v5619 = vadd.f32 %v5617, %v5618
  %v5620 = vadd.f32 %v5321, %v5323
  %v5621 = vadd.f32 %v5620, %v5325
  %v5622 = vadd.f32 %v5621, %v5327
  %v5623 = vadd.f32 %v5622, %v5329
  %v5624 = vsel %vm431, %v5328, 0.0
  %v5625 = vadd.f32 %v5623, %v5624
  %v5626 = vrot.slane %v5625, 4
  %v5627 = vadd.f32 %v5625, %v5626
  %v5628 = vrot.slane %v5627, 2
  %v5629 = vadd.f32 %v5627, %v5628
  %v5630 = vrot.slane %v5629, 1
  %v5631 = vadd.f32 %v5629, %v5630
  %v5632 = vadd.f32 %v5332, %v5334
  %v5633 = vadd.f32 %v5632, %v5336
  %v5634 = vadd.f32 %v5633, %v5338
  %v5635 = vadd.f32 %v5634, %v5340
  %v5636 = vsel %vm431, %v5339, 0.0
  %v5637 = vadd.f32 %v5635, %v5636
  %v5638 = vrot.slane %v5637, 4
  %v5639 = vadd.f32 %v5637, %v5638
  %v5640 = vrot.slane %v5639, 2
  %v5641 = vadd.f32 %v5639, %v5640
  %v5642 = vrot.slane %v5641, 1
  %v5643 = vadd.f32 %v5641, %v5642
  %v5644 = vadd.f32 %v5343, %v5345
  %v5645 = vadd.f32 %v5644, %v5347
  %v5646 = vadd.f32 %v5645, %v5349
  %v5647 = vadd.f32 %v5646, %v5351
  %v5648 = vsel %vm431, %v5350, 0.0
  %v5649 = vadd.f32 %v5647, %v5648
  %v5650 = vrot.slane %v5649, 4
  %v5651 = vadd.f32 %v5649, %v5650
  %v5652 = vrot.slane %v5651, 2
  %v5653 = vadd.f32 %v5651, %v5652
  %v5654 = vrot.slane %v5653, 1
  %v5655 = vadd.f32 %v5653, %v5654
  %v5656 = vadd.f32 %v5354, %v5356
  %v5657 = vadd.f32 %v5656, %v5358
  %v5658 = vadd.f32 %v5657, %v5360
  %v5659 = vadd.f32 %v5658, %v5362
  %v5660 = vsel %vm431, %v5361, 0.0
  %v5661 = vadd.f32 %v5659, %v5660
  %v5662 = vrot.slane %v5661, 4
  %v5663 = vadd.f32 %v5661, %v5662
  %v5664 = vrot.slane %v5663, 2
  %v5665 = vadd.f32 %v5663, %v5664
  %v5666 = vrot.slane %v5665, 1
  %v5667 = vadd.f32 %v5665, %v5666
  %v5668 = vadd.f32 %v5365, %v5367
  %v5669 = vadd.f32 %v5668, %v5369
  %v5670 = vadd.f32 %v5669, %v5371
  %v5671 = vadd.f32 %v5670, %v5373
  %v5672 = vsel %vm431, %v5372, 0.0
  %v5673 = vadd.f32 %v5671, %v5672
  %v5674 = vrot.slane %v5673, 4
  %v5675 = vadd.f32 %v5673, %v5674
  %v5676 = vrot.slane %v5675, 2
  %v5677 = vadd.f32 %v5675, %v5676
  %v5678 = vrot.slane %v5677, 1
  %v5679 = vadd.f32 %v5677, %v5678
  %v5680 = vadd.f32 %v5487, 0.0
  %v5681 = vadd.f32 %v5499, 0.0
  %v5682 = vadd.f32 %v5511, 0.0
  %v5683 = vadd.f32 %v5523, 0.0
  %v5684 = vadd.f32 %v5535, 0.0
  %v5685 = vadd.f32 %v5547, 0.0
  %v5686 = vadd.f32 %v5559, 0.0
  %v5687 = vadd.f32 %v5571, 0.0
  %v5688 = vadd.f32 %v5583, 0.0
  %v5689 = vadd.f32 %v5595, 0.0
  %v5690 = vadd.f32 %v5607, 0.0
  %v5691 = vadd.f32 %v5619, 0.0
  %v5692 = vadd.f32 %v5631, 0.0
  %v5693 = vadd.f32 %v5643, 0.0
  %v5694 = vadd.f32 %v5655, 0.0
  %v5695 = vadd.f32 %v5667, 0.0
  %v5696 = vadd.f32 %v5679, 0.0
  %vm5697 = vcmask 1047555
  %v5698 = vsel %vm5697, %v4983, 0.0
  %v5699 = vsel %vm5697, %v4989, 0.0
  %v5700 = vadd.f32 %v5698, %v5699
  %v5701 = vsel %vm5697, %v4995, 0.0
  %v5702 = vadd.f32 %v5700, %v5701
  %v5703 = vsel %vm5697, %v5001, 0.0
  %v5704 = vadd.f32 %v5702, %v5703
  %v5705 = vsel %vm5697, %v5007, 0.0
  %v5706 = vadd.f32 %v5704, %v5705
  %v5707 = vsel %vm5697, %v5013, 0.0
  %v5708 = vadd.f32 %v5706, %v5707
  %v5709 = vsel %vm5697, %v5019, 0.0
  %v5710 = vadd.f32 %v5708, %v5709
  %v5711 = vsel %vm5697, %v5025, 0.0
  %v5712 = vadd.f32 %v5710, %v5711
  %v5713 = vsel %vm5697, %v5031, 0.0
  %v5714 = vadd.f32 %v5712, %v5713
  %v5715 = vsel %vm5697, %v5037, 0.0
  %v5716 = vadd.f32 %v5714, %v5715
  %v5717 = vsel %vm5697, %v5043, 0.0
  %v5718 = vadd.f32 %v5716, %v5717
  %v5719 = vsel %vm5697, %v5049, 0.0
  %v5720 = vadd.f32 %v5718, %v5719
  %v5721 = vsel %vm5697, %v5055, 0.0
  %v5722 = vadd.f32 %v5720, %v5721
  %v5723 = vsel %vm5697, %v5061, 0.0
  %v5724 = vadd.f32 %v5722, %v5723
  %v5725 = vsel %vm5697, %v5067, 0.0
  %v5726 = vadd.f32 %v5724, %v5725
  %v5727 = vsel %vm5697, %v5073, 0.0
  %v5728 = vadd.f32 %v5726, %v5727
  %v5729 = vsel %vm5697, %v5079, 0.0
  %v5730 = vadd.f32 %v5728, %v5729
  %v5731 = vadd.f32 %v4984, %v4990
  %v5732 = vadd.f32 %v5731, %v4996
  %v5733 = vadd.f32 %v5732, %v5002
  %v5734 = vadd.f32 %v5733, %v5008
  %v5735 = vadd.f32 %v5734, %v5014
  %v5736 = vadd.f32 %v5735, %v5020
  %v5737 = vadd.f32 %v5736, %v5026
  %v5738 = vadd.f32 %v5737, %v5032
  %v5739 = vadd.f32 %v5738, %v5038
  %v5740 = vadd.f32 %v5739, %v5044
  %v5741 = vadd.f32 %v5740, %v5050
  %v5742 = vadd.f32 %v5741, %v5056
  %v5743 = vadd.f32 %v5742, %v5062
  %v5744 = vadd.f32 %v5743, %v5068
  %v5745 = vadd.f32 %v5744, %v5074
  %v5746 = vadd.f32 %v5745, %v5080
  %v5747 = vadd.f32 %v4985, %v4991
  %v5748 = vadd.f32 %v5747, %v4997
  %v5749 = vadd.f32 %v5748, %v5003
  %v5750 = vadd.f32 %v5749, %v5009
  %v5751 = vadd.f32 %v5750, %v5015
  %v5752 = vadd.f32 %v5751, %v5021
  %v5753 = vadd.f32 %v5752, %v5027
  %v5754 = vadd.f32 %v5753, %v5033
  %v5755 = vadd.f32 %v5754, %v5039
  %v5756 = vadd.f32 %v5755, %v5045
  %v5757 = vadd.f32 %v5756, %v5051
  %v5758 = vadd.f32 %v5757, %v5057
  %v5759 = vadd.f32 %v5758, %v5063
  %v5760 = vadd.f32 %v5759, %v5069
  %v5761 = vadd.f32 %v5760, %v5075
  %v5762 = vadd.f32 %v5761, %v5081
  %v5763 = vadd.f32 %v4986, %v4992
  %v5764 = vadd.f32 %v5763, %v4998
  %v5765 = vadd.f32 %v5764, %v5004
  %v5766 = vadd.f32 %v5765, %v5010
  %v5767 = vadd.f32 %v5766, %v5016
  %v5768 = vadd.f32 %v5767, %v5022
  %v5769 = vadd.f32 %v5768, %v5028
  %v5770 = vadd.f32 %v5769, %v5034
  %v5771 = vadd.f32 %v5770, %v5040
  %v5772 = vadd.f32 %v5771, %v5046
  %v5773 = vadd.f32 %v5772, %v5052
  %v5774 = vadd.f32 %v5773, %v5058
  %v5775 = vadd.f32 %v5774, %v5064
  %v5776 = vadd.f32 %v5775, %v5070
  %v5777 = vadd.f32 %v5776, %v5076
  %v5778 = vadd.f32 %v5777, %v5082
  %v5779 = vadd.f32 %v4987, %v4993
  %v5780 = vadd.f32 %v5779, %v4999
  %v5781 = vadd.f32 %v5780, %v5005
  %v5782 = vadd.f32 %v5781, %v5011
  %v5783 = vadd.f32 %v5782, %v5017
  %v5784 = vadd.f32 %v5783, %v5023
  %v5785 = vadd.f32 %v5784, %v5029
  %v5786 = vadd.f32 %v5785, %v5035
  %v5787 = vadd.f32 %v5786, %v5041
  %v5788 = vadd.f32 %v5787, %v5047
  %v5789 = vadd.f32 %v5788, %v5053
  %v5790 = vadd.f32 %v5789, %v5059
  %v5791 = vadd.f32 %v5790, %v5065
  %v5792 = vadd.f32 %v5791, %v5071
  %v5793 = vadd.f32 %v5792, %v5077
  %v5794 = vadd.f32 %v5793, %v5083
  %v5795 = vsel %vm114, %v4988, 0.0
  %v5796 = vsel %vm114, %v4994, 0.0
  %v5797 = vadd.f32 %v5795, %v5796
  %v5798 = vsel %vm114, %v5000, 0.0
  %v5799 = vadd.f32 %v5797, %v5798
  %v5800 = vsel %vm114, %v5006, 0.0
  %v5801 = vadd.f32 %v5799, %v5800
  %v5802 = vsel %vm114, %v5012, 0.0
  %v5803 = vadd.f32 %v5801, %v5802
  %v5804 = vsel %vm114, %v5018, 0.0
  %v5805 = vadd.f32 %v5803, %v5804
  %v5806 = vsel %vm114, %v5024, 0.0
  %v5807 = vadd.f32 %v5805, %v5806
  %v5808 = vsel %vm114, %v5030, 0.0
  %v5809 = vadd.f32 %v5807, %v5808
  %v5810 = vsel %vm114, %v5036, 0.0
  %v5811 = vadd.f32 %v5809, %v5810
  %v5812 = vsel %vm114, %v5042, 0.0
  %v5813 = vadd.f32 %v5811, %v5812
  %v5814 = vsel %vm114, %v5048, 0.0
  %v5815 = vadd.f32 %v5813, %v5814
  %v5816 = vsel %vm114, %v5054, 0.0
  %v5817 = vadd.f32 %v5815, %v5816
  %v5818 = vsel %vm114, %v5060, 0.0
  %v5819 = vadd.f32 %v5817, %v5818
  %v5820 = vsel %vm114, %v5066, 0.0
  %v5821 = vadd.f32 %v5819, %v5820
  %v5822 = vsel %vm114, %v5072, 0.0
  %v5823 = vadd.f32 %v5821, %v5822
  %v5824 = vsel %vm114, %v5078, 0.0
  %v5825 = vadd.f32 %v5823, %v5824
  %v5826 = vsel %vm114, %v5084, 0.0
  %v5827 = vadd.f32 %v5825, %v5826
  %v5828 = vmul.f32 %v5730, %v4794
  %v5829 = vmul.f32 %v5746, %v4794
  %v5830 = vmul.f32 %v5762, %v4794
  %v5831 = vmul.f32 %v5778, %v4794
  %v5832 = vmul.f32 %v5794, %v4794
  %v5833 = vmul.f32 %v5827, %v4794
  %v5834 = vmul.f32 %v5680, 0.023255814
  %v5835 = vmul.f32 %v5681, 0.023255814
  %v5836 = vmul.f32 %v5682, 0.023255814
  %v5837 = vmul.f32 %v5683, 0.023255814
  %v5838 = vmul.f32 %v5684, 0.023255814
  %v5839 = vmul.f32 %v5685, 0.023255814
  %v5840 = vmul.f32 %v5686, 0.023255814
  %v5841 = vmul.f32 %v5687, 0.023255814
  %v5842 = vmul.f32 %v5688, 0.023255814
  %v5843 = vmul.f32 %v5689, 0.023255814
  %v5844 = vmul.f32 %v5690, 0.023255814
  %v5845 = vmul.f32 %v5691, 0.023255814
  %v5846 = vmul.f32 %v5692, 0.023255814
  %v5847 = vmul.f32 %v5693, 0.023255814
  %v5848 = vmul.f32 %v5694, 0.023255814
  %v5849 = vmul.f32 %v5695, 0.023255814
  %v5850 = vmul.f32 %v5696, 0.023255814
  %vm5868 = vcmask 1041409
  %v5869 = vsel %vm5868, %v4802, %v4801
  %vm5870 = vcmask 1042434
  %v5871 = vsel %vm5870, %v4803, %v5869
  %vm5872 = vcmask 1043459
  %v5873 = vsel %vm5872, %v4804, %v5871
  %vm5874 = vcmask 1044484
  %v5875 = vsel %vm5874, %v4805, %v5873
  %vm5876 = vcmask 1045509
  %v5877 = vsel %vm5876, %v4806, %v5875
  %vm5878 = vcmask 1046534
  %v5879 = vsel %vm5878, %v4807, %v5877
  %vm5880 = vcmask 1047559
  %v5881 = vsel %vm5880, %v4808, %v5879
  %v5882 = vsel %vm5868, %v4810, %v4809
  %v5883 = vsel %vm5870, %v4811, %v5882
  %v5884 = vsel %vm5872, %v4812, %v5883
  %v5885 = vsel %vm5874, %v4813, %v5884
  %v5886 = vsel %vm5876, %v4814, %v5885
  %v5887 = vsel %vm5878, %v4815, %v5886
  %v5888 = vsel %vm5880, %v4816, %v5887
  %v5909 = vsel %vm5870, %v5835, %v5834
  %v5910 = vsel %vm5872, %v5836, %v5909
  %v5911 = vsel %vm5874, %v5837, %v5910
  %v5912 = vsel %vm5876, %v5838, %v5911
  %v5913 = vsel %vm5878, %v5839, %v5912
  %v5914 = vsel %vm5880, %v5840, %v5913
  %v5915 = vsel %vm5868, %v5842, %v5841
  %v5916 = vsel %vm5870, %v5843, %v5915
  %v5917 = vsel %vm5872, %v5844, %v5916
  %v5918 = vsel %vm5874, %v5845, %v5917
  %v5919 = vsel %vm5876, %v5846, %v5918
  %v5920 = vsel %vm5878, %v5847, %v5919
  %v5921 = vsel %vm5880, %v5848, %v5920
  %v5922 = vsel %vm5868, %v5850, %v5849
  %v5926 = vsel %vm830, %v4817, %v5914
  %v5927 = vsel %vm431, %v4800, %v5828
  %v5939 = vrot.slane %v4795, 6
  %v5940 = vrot.slane %v4796, 6
  %v5941 = vsel %vm821, %v5939, %v5940
  %v5942 = vrot.slane %v4797, 6
  %v5943 = vsel %vm821, %v5940, %v5942
  %v5944 = vrot.slane %v4798, 6
  %v5945 = vsel %vm821, %v5942, %v5944
  %v5946 = vrot.slane %v4799, 6
  %v5947 = vsel %vm821, %v5944, %v5946
  %v5948 = vrot.slane %v5927, 6
  %v5949 = vsel %vm821, %v5946, %v5948
  %v5950 = vrot.slane %v5829, 6
  %v5951 = vsel %vm821, %v5948, %v5950
  %v5952 = vrot.slane %v5830, 6
  %v5953 = vsel %vm821, %v5950, %v5952
  %v5954 = vrot.slane %v5831, 6
  %v5955 = vsel %vm821, %v5952, %v5954
  %v5956 = vrot.slane %v5832, 6
  %v5957 = vsel %vm821, %v5954, %v5956
  %v5958 = vrot.slane %v5833, 6
  %v5959 = vsel %vm821, %v5956, %v5958
  %v5971 = vsel %vm821, %v5922, %v5939
  %v5972 = vpack.c.bf16 %v5888, %v5881
  %v5973 = vpack.c.bf16 %v5921, %v5926
  %v5974 = vpack.c.bf16 %v5941, %v5971
  %v5975 = vpack.c.bf16 %v5945, %v5943
  %v5976 = vpack.c.bf16 %v5949, %v5947
  %v5977 = vpack.c.bf16 %v5953, %v5951
  %v5978 = vpack.c.bf16 %v5957, %v5955
  %v5979 = vpack.c.bf16 %v5959, %v5959
  %v5980 = vld [vmem:[%s18] sm:$0xf]
  %v5981 = vld [vmem:[%s18 + $0x4] sm:$0xf]
  %v5982 = vld [vmem:[%s18 + $0x8] sm:$0xf]
  %v5983 = vld [vmem:[%s18 + $0xc] sm:$0xf]
  %v5984 = vld [vmem:[%s18 + $0x10] sm:$0xf]
  %v5985 = vld [vmem:[%s18 + $0x14] sm:$0xf]
  %v5986 = vld [vmem:[%s18 + $0x18] sm:$0xf]
  %v5987 = vld [vmem:[%s18 + $0x1c] sm:$0xf]
  %v5988 = vld [vmem:[%s18 + $0x20] sm:$0xf]
  %v5989 = vld [vmem:[%s18 + $0x24] sm:$0xf]
  %v5990 = vld [vmem:[%s18 + $0x28] sm:$0xf]
  %v5991 = vld [vmem:[%s18 + $0x2c] sm:$0xf]
  %v5992 = vld [vmem:[%s18 + $0x30] sm:$0xf]
  %v5993 = vld [vmem:[%s18 + $0x34] sm:$0xf]
  %v5994 = vld [vmem:[%s18 + $0x38] sm:$0xf]
  %v5995 = vld [vmem:[%s18 + $0x3c] sm:$0xf]
  %v5996 = vld [vmem:[%s19] sm:$0x1]
  %v5998 = vperm.slane %v5996, 0
  %v6016 = vunpack.c.l.b16 %v5980
  %v6017 = vunpack.c.l.b16 %v5981
  %v6018 = vunpack.c.l.b16 %v5982
  %v6019 = vunpack.c.l.b16 %v5983
  %v6020 = vunpack.c.l.b16 %v5984
  %v6021 = vunpack.c.l.b16 %v5985
  %v6022 = vunpack.c.l.b16 %v5986
  %v6023 = vunpack.c.l.b16 %v5987
  %v6024 = vunpack.c.l.b16 %v5988
  %v6025 = vunpack.c.l.b16 %v5989
  %v6026 = vunpack.c.l.b16 %v5990
  %v6027 = vunpack.c.l.b16 %v5991
  %v6028 = vunpack.c.l.b16 %v5992
  %v6029 = vunpack.c.l.b16 %v5993
  %v6030 = vunpack.c.l.b16 %v5994
  %v6031 = vunpack.c.l.b16 %v5995
  %v6032 = vpack.c.b16 %v6017, %v6016
  %v6033 = vpack.c.b16 %v6019, %v6018
  %v6034 = vpack.c.b16 %v6021, %v6020
  %v6035 = vpack.c.b16 %v6023, %v6022
  %v6036 = vpack.c.b16 %v6025, %v6024
  %v6037 = vpack.c.b16 %v6027, %v6026
  %v6038 = vpack.c.b16 %v6029, %v6028
  %v6039 = vpack.c.b16 %v6031, %v6030
  %6048 = vmatpush.bf16.msra.mxu0 %v6039
  %6049 = vmatpush.bf16.msra.mxu0 %v6038
  %6050 = vmatpush.bf16.msra.mxu0 %v6037
  %6051 = vmatpush.bf16.msra.mxu0 %v6036
  %6052 = vmatpush.bf16.msra.mxu0 %v6035
  %6053 = vmatpush.bf16.msra.mxu0 %v6034
  %6054 = vmatpush.bf16.msra.mxu0 %v6033
  %6055 = vmatpush.bf16.msra.mxu0 %v6032
  %6056 = vmatmul.bf16.gmra.mxu0 %v5972
  %v6057 = vpop.f32.mrf.mxu0
  %v6058 = vadd.f32 %v5998, %v6057
  %v6059 = vpop.f32.mrf.mxu0
  %v6060 = vadd.f32 %v5998, %v6059
  %6061 = vmatmul.bf16.gmra.mxu0 %v5973
  %v6062 = vpop.f32.mrf.mxu0
  %v6063 = vadd.f32 %v5998, %v6062
  %v6064 = vpop.f32.mrf.mxu0
  %v6065 = vadd.f32 %v5998, %v6064
  %6066 = vmatmul.bf16.gmra.mxu0 %v5974
  %v6067 = vpop.f32.mrf.mxu0
  %v6068 = vadd.f32 %v5998, %v6067
  %v6069 = vpop.f32.mrf.mxu0
  %v6070 = vadd.f32 %v5998, %v6069
  %6071 = vmatmul.bf16.gmra.mxu0 %v5975
  %v6072 = vpop.f32.mrf.mxu0
  %v6073 = vadd.f32 %v5998, %v6072
  %v6074 = vpop.f32.mrf.mxu0
  %v6075 = vadd.f32 %v5998, %v6074
  %6076 = vmatmul.bf16.gmra.mxu0 %v5976
  %v6077 = vpop.f32.mrf.mxu0
  %v6078 = vadd.f32 %v5998, %v6077
  %v6079 = vpop.f32.mrf.mxu0
  %v6080 = vadd.f32 %v5998, %v6079
  %6081 = vmatmul.bf16.gmra.mxu0 %v5977
  %v6082 = vpop.f32.mrf.mxu0
  %v6083 = vadd.f32 %v5998, %v6082
  %v6084 = vpop.f32.mrf.mxu0
  %v6085 = vadd.f32 %v5998, %v6084
  %6086 = vmatmul.bf16.gmra.mxu0 %v5978
  %v6087 = vpop.f32.mrf.mxu0
  %v6088 = vadd.f32 %v5998, %v6087
  %v6089 = vpop.f32.mrf.mxu0
  %v6090 = vadd.f32 %v5998, %v6089
  %6091 = vmatmul.bf16.gmra.mxu0 %v5979
  %v6092 = vpop.f32.mrf.mxu0
  %v6093 = vadd.f32 %v5998, %v6092
  %v6094 = vpop.f32.mrf.mxu0
  %6095 = vdwg.mxu0
  %v6096 = vxor.u32 %v6058, 2147483648
  %v6097 = vxor.u32 %v6060, 2147483648
  %v6098 = vxor.u32 %v6063, 2147483648
  %v6099 = vxor.u32 %v6065, 2147483648
  %v6100 = vxor.u32 %v6068, 2147483648
  %v6101 = vxor.u32 %v6070, 2147483648
  %v6102 = vxor.u32 %v6073, 2147483648
  %v6103 = vxor.u32 %v6075, 2147483648
  %v6104 = vxor.u32 %v6078, 2147483648
  %v6105 = vxor.u32 %v6080, 2147483648
  %v6106 = vxor.u32 %v6083, 2147483648
  %v6107 = vxor.u32 %v6085, 2147483648
  %v6108 = vxor.u32 %v6088, 2147483648
  %v6109 = vxor.u32 %v6090, 2147483648
  %v6110 = vxor.u32 %v6093, 2147483648
  %v6111 = vmul.f32 %v6096, 1.442695
  %v6112 = vpow.pop %v6111
  %v6113 = vmul.f32 %v6097, 1.442695
  %v6114 = vpow.pop %v6113
  %v6115 = vmul.f32 %v6098, 1.442695
  %v6116 = vpow.pop %v6115
  %v6117 = vmul.f32 %v6099, 1.442695
  %v6118 = vpow.pop %v6117
  %v6119 = vmul.f32 %v6100, 1.442695
  %v6120 = vpow.pop %v6119
  %v6121 = vmul.f32 %v6101, 1.442695
  %v6122 = vpow.pop %v6121
  %v6123 = vmul.f32 %v6102, 1.442695
  %v6124 = vpow.pop %v6123
  %v6125 = vmul.f32 %v6103, 1.442695
  %v6126 = vpow.pop %v6125
  %v6127 = vmul.f32 %v6104, 1.442695
  %v6128 = vpow.pop %v6127
  %v6129 = vmul.f32 %v6105, 1.442695
  %v6130 = vpow.pop %v6129
  %v6131 = vmul.f32 %v6106, 1.442695
  %v6132 = vpow.pop %v6131
  %v6133 = vmul.f32 %v6107, 1.442695
  %v6134 = vpow.pop %v6133
  %v6135 = vmul.f32 %v6108, 1.442695
  %v6136 = vpow.pop %v6135
  %v6137 = vmul.f32 %v6109, 1.442695
  %v6138 = vpow.pop %v6137
  %v6139 = vmul.f32 %v6110, 1.442695
  %v6140 = vpow.pop %v6139
  %v6141 = vadd.f32 %v6112, 1.0
  %v6142 = vadd.f32 %v6114, 1.0
  %v6143 = vadd.f32 %v6116, 1.0
  %v6144 = vadd.f32 %v6118, 1.0
  %v6145 = vadd.f32 %v6120, 1.0
  %v6146 = vadd.f32 %v6122, 1.0
  %v6147 = vadd.f32 %v6124, 1.0
  %v6148 = vadd.f32 %v6126, 1.0
  %v6149 = vadd.f32 %v6128, 1.0
  %v6150 = vadd.f32 %v6130, 1.0
  %v6151 = vadd.f32 %v6132, 1.0
  %v6152 = vadd.f32 %v6134, 1.0
  %v6153 = vadd.f32 %v6136, 1.0
  %v6154 = vadd.f32 %v6138, 1.0
  %v6155 = vadd.f32 %v6140, 1.0
  %v6156 = vrcp.pop %v6141
  %v6157 = vmul.f32 %v6141, %v6156
  %v6158 = vsub.f32 1.0, %v6157
  %v6159 = vmul.f32 %v6156, %v6158
  %v6160 = vadd.f32 %v6156, %v6159
  %vm6161 = vweird.f32 %v6141
  %vm6162 = vweird.f32 %v6156
  %vm6163 = vmor %vm6161, %vm6162
  %v6164 = vsel %vm6163, %v6156, %v6160
  %v6165 = vand.u32 2147483647, %v6141
  %vm6166 = vcmp.eq.f32.partialorder %v6165, 8.507059e+37
  %v6167 = vand.u32 %v6141, 2147483648
  %v6168 = vor.u32 1.1754944e-38, %v6167
  %v6169 = vsel %vm6166, %v6168, %v6164
  %v6170 = vmul.f32 1.0, %v6169
  %v6171 = vrcp.pop %v6142
  %v6172 = vmul.f32 %v6142, %v6171
  %v6173 = vsub.f32 1.0, %v6172
  %v6174 = vmul.f32 %v6171, %v6173
  %v6175 = vadd.f32 %v6171, %v6174
  %vm6176 = vweird.f32 %v6142
  %vm6177 = vweird.f32 %v6171
  %vm6178 = vmor %vm6176, %vm6177
  %v6179 = vsel %vm6178, %v6171, %v6175
  %v6180 = vand.u32 2147483647, %v6142
  %vm6181 = vcmp.eq.f32.partialorder %v6180, 8.507059e+37
  %v6182 = vand.u32 %v6142, 2147483648
  %v6183 = vor.u32 1.1754944e-38, %v6182
  %v6184 = vsel %vm6181, %v6183, %v6179
  %v6185 = vmul.f32 1.0, %v6184
  %v6186 = vrcp.pop %v6143
  %v6187 = vmul.f32 %v6143, %v6186
  %v6188 = vsub.f32 1.0, %v6187
  %v6189 = vmul.f32 %v6186, %v6188
  %v6190 = vadd.f32 %v6186, %v6189
  %vm6191 = vweird.f32 %v6143
  %vm6192 = vweird.f32 %v6186
  %vm6193 = vmor %vm6191, %vm6192
  %v6194 = vsel %vm6193, %v6186, %v6190
  %v6195 = vand.u32 2147483647, %v6143
  %vm6196 = vcmp.eq.f32.partialorder %v6195, 8.507059e+37
  %v6197 = vand.u32 %v6143, 2147483648
  %v6198 = vor.u32 1.1754944e-38, %v6197
  %v6199 = vsel %vm6196, %v6198, %v6194
  %v6200 = vmul.f32 1.0, %v6199
  %v6201 = vrcp.pop %v6144
  %v6202 = vmul.f32 %v6144, %v6201
  %v6203 = vsub.f32 1.0, %v6202
  %v6204 = vmul.f32 %v6201, %v6203
  %v6205 = vadd.f32 %v6201, %v6204
  %vm6206 = vweird.f32 %v6144
  %vm6207 = vweird.f32 %v6201
  %vm6208 = vmor %vm6206, %vm6207
  %v6209 = vsel %vm6208, %v6201, %v6205
  %v6210 = vand.u32 2147483647, %v6144
  %vm6211 = vcmp.eq.f32.partialorder %v6210, 8.507059e+37
  %v6212 = vand.u32 %v6144, 2147483648
  %v6213 = vor.u32 1.1754944e-38, %v6212
  %v6214 = vsel %vm6211, %v6213, %v6209
  %v6215 = vmul.f32 1.0, %v6214
  %v6216 = vrcp.pop %v6145
  %v6217 = vmul.f32 %v6145, %v6216
  %v6218 = vsub.f32 1.0, %v6217
  %v6219 = vmul.f32 %v6216, %v6218
  %v6220 = vadd.f32 %v6216, %v6219
  %vm6221 = vweird.f32 %v6145
  %vm6222 = vweird.f32 %v6216
  %vm6223 = vmor %vm6221, %vm6222
  %v6224 = vsel %vm6223, %v6216, %v6220
  %v6225 = vand.u32 2147483647, %v6145
  %vm6226 = vcmp.eq.f32.partialorder %v6225, 8.507059e+37
  %v6227 = vand.u32 %v6145, 2147483648
  %v6228 = vor.u32 1.1754944e-38, %v6227
  %v6229 = vsel %vm6226, %v6228, %v6224
  %v6230 = vmul.f32 1.0, %v6229
  %v6231 = vrcp.pop %v6146
  %v6232 = vmul.f32 %v6146, %v6231
  %v6233 = vsub.f32 1.0, %v6232
  %v6234 = vmul.f32 %v6231, %v6233
  %v6235 = vadd.f32 %v6231, %v6234
  %vm6236 = vweird.f32 %v6146
  %vm6237 = vweird.f32 %v6231
  %vm6238 = vmor %vm6236, %vm6237
  %v6239 = vsel %vm6238, %v6231, %v6235
  %v6240 = vand.u32 2147483647, %v6146
  %vm6241 = vcmp.eq.f32.partialorder %v6240, 8.507059e+37
  %v6242 = vand.u32 %v6146, 2147483648
  %v6243 = vor.u32 1.1754944e-38, %v6242
  %v6244 = vsel %vm6241, %v6243, %v6239
  %v6245 = vmul.f32 1.0, %v6244
  %v6246 = vrcp.pop %v6147
  %v6247 = vmul.f32 %v6147, %v6246
  %v6248 = vsub.f32 1.0, %v6247
  %v6249 = vmul.f32 %v6246, %v6248
  %v6250 = vadd.f32 %v6246, %v6249
  %vm6251 = vweird.f32 %v6147
  %vm6252 = vweird.f32 %v6246
  %vm6253 = vmor %vm6251, %vm6252
  %v6254 = vsel %vm6253, %v6246, %v6250
  %v6255 = vand.u32 2147483647, %v6147
  %vm6256 = vcmp.eq.f32.partialorder %v6255, 8.507059e+37
  %v6257 = vand.u32 %v6147, 2147483648
  %v6258 = vor.u32 1.1754944e-38, %v6257
  %v6259 = vsel %vm6256, %v6258, %v6254
  %v6260 = vmul.f32 1.0, %v6259
  %v6261 = vrcp.pop %v6148
  %v6262 = vmul.f32 %v6148, %v6261
  %v6263 = vsub.f32 1.0, %v6262
  %v6264 = vmul.f32 %v6261, %v6263
  %v6265 = vadd.f32 %v6261, %v6264
  %vm6266 = vweird.f32 %v6148
  %vm6267 = vweird.f32 %v6261
  %vm6268 = vmor %vm6266, %vm6267
  %v6269 = vsel %vm6268, %v6261, %v6265
  %v6270 = vand.u32 2147483647, %v6148
  %vm6271 = vcmp.eq.f32.partialorder %v6270, 8.507059e+37
  %v6272 = vand.u32 %v6148, 2147483648
  %v6273 = vor.u32 1.1754944e-38, %v6272
  %v6274 = vsel %vm6271, %v6273, %v6269
  %v6275 = vmul.f32 1.0, %v6274
  %v6276 = vrcp.pop %v6149
  %v6277 = vmul.f32 %v6149, %v6276
  %v6278 = vsub.f32 1.0, %v6277
  %v6279 = vmul.f32 %v6276, %v6278
  %v6280 = vadd.f32 %v6276, %v6279
  %vm6281 = vweird.f32 %v6149
  %vm6282 = vweird.f32 %v6276
  %vm6283 = vmor %vm6281, %vm6282
  %v6284 = vsel %vm6283, %v6276, %v6280
  %v6285 = vand.u32 2147483647, %v6149
  %vm6286 = vcmp.eq.f32.partialorder %v6285, 8.507059e+37
  %v6287 = vand.u32 %v6149, 2147483648
  %v6288 = vor.u32 1.1754944e-38, %v6287
  %v6289 = vsel %vm6286, %v6288, %v6284
  %v6290 = vmul.f32 1.0, %v6289
  %v6291 = vrcp.pop %v6150
  %v6292 = vmul.f32 %v6150, %v6291
  %v6293 = vsub.f32 1.0, %v6292
  %v6294 = vmul.f32 %v6291, %v6293
  %v6295 = vadd.f32 %v6291, %v6294
  %vm6296 = vweird.f32 %v6150
  %vm6297 = vweird.f32 %v6291
  %vm6298 = vmor %vm6296, %vm6297
  %v6299 = vsel %vm6298, %v6291, %v6295
  %v6300 = vand.u32 2147483647, %v6150
  %vm6301 = vcmp.eq.f32.partialorder %v6300, 8.507059e+37
  %v6302 = vand.u32 %v6150, 2147483648
  %v6303 = vor.u32 1.1754944e-38, %v6302
  %v6304 = vsel %vm6301, %v6303, %v6299
  %v6305 = vmul.f32 1.0, %v6304
  %v6306 = vrcp.pop %v6151
  %v6307 = vmul.f32 %v6151, %v6306
  %v6308 = vsub.f32 1.0, %v6307
  %v6309 = vmul.f32 %v6306, %v6308
  %v6310 = vadd.f32 %v6306, %v6309
  %vm6311 = vweird.f32 %v6151
  %vm6312 = vweird.f32 %v6306
  %vm6313 = vmor %vm6311, %vm6312
  %v6314 = vsel %vm6313, %v6306, %v6310
  %v6315 = vand.u32 2147483647, %v6151
  %vm6316 = vcmp.eq.f32.partialorder %v6315, 8.507059e+37
  %v6317 = vand.u32 %v6151, 2147483648
  %v6318 = vor.u32 1.1754944e-38, %v6317
  %v6319 = vsel %vm6316, %v6318, %v6314
  %v6320 = vmul.f32 1.0, %v6319
  %v6321 = vrcp.pop %v6152
  %v6322 = vmul.f32 %v6152, %v6321
  %v6323 = vsub.f32 1.0, %v6322
  %v6324 = vmul.f32 %v6321, %v6323
  %v6325 = vadd.f32 %v6321, %v6324
  %vm6326 = vweird.f32 %v6152
  %vm6327 = vweird.f32 %v6321
  %vm6328 = vmor %vm6326, %vm6327
  %v6329 = vsel %vm6328, %v6321, %v6325
  %v6330 = vand.u32 2147483647, %v6152
  %vm6331 = vcmp.eq.f32.partialorder %v6330, 8.507059e+37
  %v6332 = vand.u32 %v6152, 2147483648
  %v6333 = vor.u32 1.1754944e-38, %v6332
  %v6334 = vsel %vm6331, %v6333, %v6329
  %v6335 = vmul.f32 1.0, %v6334
  %v6336 = vrcp.pop %v6153
  %v6337 = vmul.f32 %v6153, %v6336
  %v6338 = vsub.f32 1.0, %v6337
  %v6339 = vmul.f32 %v6336, %v6338
  %v6340 = vadd.f32 %v6336, %v6339
  %vm6341 = vweird.f32 %v6153
  %vm6342 = vweird.f32 %v6336
  %vm6343 = vmor %vm6341, %vm6342
  %v6344 = vsel %vm6343, %v6336, %v6340
  %v6345 = vand.u32 2147483647, %v6153
  %vm6346 = vcmp.eq.f32.partialorder %v6345, 8.507059e+37
  %v6347 = vand.u32 %v6153, 2147483648
  %v6348 = vor.u32 1.1754944e-38, %v6347
  %v6349 = vsel %vm6346, %v6348, %v6344
  %v6350 = vmul.f32 1.0, %v6349
  %v6351 = vrcp.pop %v6154
  %v6352 = vmul.f32 %v6154, %v6351
  %v6353 = vsub.f32 1.0, %v6352
  %v6354 = vmul.f32 %v6351, %v6353
  %v6355 = vadd.f32 %v6351, %v6354
  %vm6356 = vweird.f32 %v6154
  %vm6357 = vweird.f32 %v6351
  %vm6358 = vmor %vm6356, %vm6357
  %v6359 = vsel %vm6358, %v6351, %v6355
  %v6360 = vand.u32 2147483647, %v6154
  %vm6361 = vcmp.eq.f32.partialorder %v6360, 8.507059e+37
  %v6362 = vand.u32 %v6154, 2147483648
  %v6363 = vor.u32 1.1754944e-38, %v6362
  %v6364 = vsel %vm6361, %v6363, %v6359
  %v6365 = vmul.f32 1.0, %v6364
  %v6366 = vrcp.pop %v6155
  %v6367 = vmul.f32 %v6155, %v6366
  %v6368 = vsub.f32 1.0, %v6367
  %v6369 = vmul.f32 %v6366, %v6368
  %v6370 = vadd.f32 %v6366, %v6369
  %vm6371 = vweird.f32 %v6155
  %vm6372 = vweird.f32 %v6366
  %vm6373 = vmor %vm6371, %vm6372
  %v6374 = vsel %vm6373, %v6366, %v6370
  %v6375 = vand.u32 2147483647, %v6155
  %vm6376 = vcmp.eq.f32.partialorder %v6375, 8.507059e+37
  %v6377 = vand.u32 %v6155, 2147483648
  %v6378 = vor.u32 1.1754944e-38, %v6377
  %v6379 = vsel %vm6376, %v6378, %v6374
  %v6380 = vmul.f32 1.0, %v6379
  %v6381 = vadd.f32 %v6170, 0.5
  %v6382 = vadd.f32 %v6185, 0.5
  %v6383 = vadd.f32 %v6200, 0.5
  %v6384 = vadd.f32 %v6215, 0.5
  %v6385 = vadd.f32 %v6230, 0.5
  %v6386 = vmul.f32 %v1364, %v6381
  %v6387 = vmul.f32 %v1365, %v6382
  %v6388 = vmul.f32 %v1366, %v6383
  %v6389 = vmul.f32 %v1367, %v6384
  %v6390 = vmul.f32 %v1368, %v6385
  %v6391 = vadd.f32 %v6245, 0.5
  %v6392 = vadd.f32 %v6260, 0.5
  %v6393 = vadd.f32 %v6275, 0.5
  %v6394 = vadd.f32 %v6290, 0.5
  %v6395 = vadd.f32 %v6305, 0.5
  %v6396 = vadd.f32 %v6320, 0.5
  %v6397 = vadd.f32 %v6335, 0.5
  %v6398 = vadd.f32 %v6350, 0.5
  %v6399 = vadd.f32 %v6365, 0.5
  %v6400 = vadd.f32 %v6380, 0.5
  %v6412 = vrot.slane %v6385, 2
  %v6413 = vrot.slane %v6391, 2
  %v6414 = vsel %vm114, %v6412, %v6413
  %v6415 = vrot.slane %v6392, 2
  %v6416 = vsel %vm114, %v6413, %v6415
  %v6417 = vrot.slane %v6393, 2
  %v6418 = vsel %vm114, %v6415, %v6417
  %v6419 = vrot.slane %v6394, 2
  %v6420 = vsel %vm114, %v6417, %v6419
  %v6421 = vrot.slane %v6395, 2
  %v6422 = vsel %vm114, %v6419, %v6421
  %v6423 = vrot.slane %v6396, 2
  %v6424 = vsel %vm114, %v6421, %v6423
  %v6425 = vrot.slane %v6397, 2
  %v6426 = vsel %vm114, %v6423, %v6425
  %v6427 = vrot.slane %v6398, 2
  %v6428 = vsel %vm114, %v6425, %v6427
  %v6429 = vrot.slane %v6399, 2
  %v6430 = vsel %vm114, %v6427, %v6429
  %v6431 = vrot.slane %v6400, 2
  %v6432 = vsel %vm114, %v6429, %v6431
  %v6444 = vmul.f32 %v3999, %v6414
  %v6445 = vmul.f32 %v4000, %v6416
  %v6446 = vmul.f32 %v4001, %v6418
  %v6447 = vmul.f32 %v4002, %v6420
  %v6448 = vmul.f32 %v4003, %v6422
  %v6449 = vmul.f32 %v4004, %v6424
  %v6450 = vmul.f32 %v4005, %v6426
  %v6451 = vmul.f32 %v4006, %v6428
  %v6452 = vmul.f32 %v4007, %v6430
  %v6453 = vmul.f32 %v4008, %v6432
  %v6454 = vmul.f32 %v4009, %v6431
  %v6455 = vsel %vm830, %v6388, -inf
  %v6456 = vmax.f32 %v6386, %v6387
  %v6457 = vmax.f32 %v6456, %v6455
  %v6458 = vrot.slane %v6457, 4
  %v6459 = vmax.f32 %v6457, %v6458
  %v6460 = vrot.slane %v6459, 2
  %v6461 = vmax.f32 %v6459, %v6460
  %v6462 = vrot.slane %v6461, 1
  %v6463 = vmax.f32 %v6461, %v6462
  %v6464 = vmax.f32 %v6444, %v6448
  %v6465 = vsel %vm431, %v6449, -inf
  %v6466 = vmax.f32 %v6445, %v6465
  %v6467 = vmax.f32 %v6464, %v6466
  %v6468 = vmax.f32 %v6446, %v6447
  %v6469 = vmax.f32 %v6467, %v6468
  %v6470 = vrot.slane %v6469, 4
  %v6471 = vmax.f32 %v6469, %v6470
  %v6472 = vrot.slane %v6471, 2
  %v6473 = vmax.f32 %v6471, %v6472
  %v6474 = vrot.slane %v6473, 1
  %v6475 = vmax.f32 %v6473, %v6474
  %vm6476 = vcmask 1047553
  %v6477 = vsel %vm6476, %v6388, -inf
  %v6478 = vsel %vm821, %v6390, -inf
  %v6479 = vmax.f32 %v6477, %v6389
  %v6480 = vmax.f32 %v6479, %v6478
  %v6481 = vrot.slane %v6480, 4
  %v6482 = vmax.f32 %v6480, %v6481
  %v6483 = vrot.slane %v6482, 2
  %v6484 = vmax.f32 %v6482, %v6483
  %v6485 = vrot.slane %v6484, 1
  %v6486 = vmax.f32 %v6484, %v6485
  %v6487 = vsel %vm5697, %v6449, -inf
  %v6488 = vmax.f32 %v6487, %v6453
  %v6489 = vsel %vm114, %v6454, -inf
  %v6490 = vmax.f32 %v6450, %v6489
  %v6491 = vmax.f32 %v6488, %v6490
  %v6492 = vmax.f32 %v6451, %v6452
  %v6493 = vmax.f32 %v6491, %v6492
  %v6494 = vrot.slane %v6493, 4
  %v6495 = vmax.f32 %v6493, %v6494
  %v6496 = vrot.slane %v6495, 2
  %v6497 = vmax.f32 %v6495, %v6496
  %v6498 = vrot.slane %v6497, 1
  %v6499 = vmax.f32 %v6497, %v6498
  %v6502 = vrot.slane %v6486, 7
  %v6503 = vrot.slane %v6499, 7
  %v6506 = vsel %vm830, %v6463, %v6502
  %v6507 = vsel %vm830, %v6475, %v6503
  %v6510 = vrot.slane %v6507, 6
  %v6511 = vsel %vm821, %v6506, %v6510
  %6513 = vst [vmem:[%s20] sm:$0xf] %v6511
  // Predicated region
  $region82: #{attention_dti_forward.2} parent=0 // pred_check
    _
  $region83: #{attention_dti_forward.2} parent=0 // pred_check_branch
    %6515 = sbr.rel (0) target = $region85
  $region84: #{attention_dti_forward.2} parent=0 // pred_region
    _
  $region85: #{attention_dti_forward.2} parent=0 // pred_fallthru
    _
  // Predicated region
  $region86: #{attention_dti_forward.2} parent=0 // pred_check
    _
  $region87: #{attention_dti_forward.2} parent=0 // pred_check_branch
    %6517 = sbr.rel (0) target = $region89
  $region88: #{attention_dti_forward.2} parent=0 // pred_region
    _
  $region89: #{attention_dti_forward.2} parent=0 // pred_fallthru
    _

// kernel: attention_dti_forward.3
$region0: #{attention_dti_forward.3}
  #allocation0 [shape = 'u32[]', space=smem, size = 0x4, offset = 0x4, fixed_abs, tag = 'smem constant byte address 0x4 - core index']
  #allocation1 [shape = 'u32[72,128]{1,0:T(1,128)}', space=vmem, size = 0x9000, scoped, tag = 'internal scratch']
  %s0 = inlined_call_operand.vmem [shape: f32[2,256], index: 0, kind: input, shape index: {}]
  %s1 = inlined_call_operand.vmem [shape: bf16[256,1024], index: 1, kind: input, shape index: {}]
  %s2 = inlined_call_operand.vmem [shape: f32[1,1024], index: 2, kind: input, shape index: {}]
  %s3 = inlined_call_operand.vmem [shape: bf16[1024,1024], index: 3, kind: input, shape index: {}]
  %s4 = inlined_call_operand.vmem [shape: f32[1,1024], index: 4, kind: input, shape index: {}]
  %s5 = inlined_call_operand.vmem [shape: bf16[1024,512], index: 5, kind: input, shape index: {}]
  %s6 = inlined_call_operand.vmem [shape: f32[1,512], index: 6, kind: input, shape index: {}]
  %s7 = inlined_call_operand.vmem [shape: bf16[512,128], index: 7, kind: input, shape index: {}]
  %s8 = inlined_call_operand.vmem [shape: f32[1,128], index: 8, kind: input, shape index: {}]
  %s9 = inlined_call_operand.hbm [shape: f32[2,128], index: 9, kind: output, shape index: {}]
  %s10 = sld [smem:[#allocation0]]
  $region46: #{attention_dti_forward.3} parent=0
    _
  %s12 = ssub.s32 1, %s10
  %s13 = scalar_select 0, %s12, %s10
  $region1: #{attention_dti_forward.3} parent=0
    #allocation2 [shape = 'u8[1024]{0}', space=vmem, size = 0x400, scoped, tag = 'output window, operand 0, single buffered']
    #allocation3 [shape = 's32[1]{0}', space=sflag, size = 0x4, scoped, tag = 'scoped memory for attention_dti_forward.3']
    %14 = vsyncpa [#allocation3], 0
    // Predicated region
    $region2: #{attention_dti_forward.3} parent=1 // pred_check
      _
    $region3: #{attention_dti_forward.3} parent=1 // pred_check_branch
      %16 = sbr.rel (0) target = $region5
    $region4: #{attention_dti_forward.3} parent=1 // pred_region
      _
    $region5: #{attention_dti_forward.3} parent=1 // pred_fallthru
      _
    // Predicated region
    $region6: #{attention_dti_forward.3} parent=1 // pred_check
      _
    $region7: #{attention_dti_forward.3} parent=1 // pred_check_branch
      %18 = sbr.rel (0) target = $region9
    $region8: #{attention_dti_forward.3} parent=1 // pred_region
      _
    $region9: #{attention_dti_forward.3} parent=1 // pred_fallthru
      _
    // Predicated region
    $region10: #{attention_dti_forward.3} parent=1 // pred_check
      _
    $region11: #{attention_dti_forward.3} parent=1 // pred_check_branch
      %20 = sbr.rel (0) target = $region13
    $region12: #{attention_dti_forward.3} parent=1 // pred_region
      _
    $region13: #{attention_dti_forward.3} parent=1 // pred_fallthru
      _
    // Predicated region
    $region14: #{attention_dti_forward.3} parent=1 // pred_check
      _
    $region15: #{attention_dti_forward.3} parent=1 // pred_check_branch
      %22 = sbr.rel (0) target = $region17
    $region16: #{attention_dti_forward.3} parent=1 // pred_region
      _
    $region17: #{attention_dti_forward.3} parent=1 // pred_fallthru
      _
    // Predicated region
    $region18: #{attention_dti_forward.3} parent=1 // pred_check
      _
    $region19: #{attention_dti_forward.3} parent=1 // pred_check_branch
      %24 = sbr.rel (0) target = $region21
    $region20: #{attention_dti_forward.3} parent=1 // pred_region
      _
    $region21: #{attention_dti_forward.3} parent=1 // pred_fallthru
      _
    // Predicated region
    $region22: #{attention_dti_forward.3} parent=1 // pred_check
      _
    $region23: #{attention_dti_forward.3} parent=1 // pred_check_branch
      %26 = sbr.rel (0) target = $region25
    $region24: #{attention_dti_forward.3} parent=1 // pred_region
      _
    $region25: #{attention_dti_forward.3} parent=1 // pred_fallthru
      _
    // Predicated region
    $region26: #{attention_dti_forward.3} parent=1 // pred_check
      _
    $region27: #{attention_dti_forward.3} parent=1 // pred_check_branch
      %28 = sbr.rel (0) target = $region29
    $region28: #{attention_dti_forward.3} parent=1 // pred_region
      _
    $region29: #{attention_dti_forward.3} parent=1 // pred_fallthru
      _
    // Predicated region
    $region30: #{attention_dti_forward.3} parent=1 // pred_check
      _
    $region31: #{attention_dti_forward.3} parent=1 // pred_check_branch
      %30 = sbr.rel (0) target = $region33
    $region32: #{attention_dti_forward.3} parent=1 // pred_region
      _
    $region33: #{attention_dti_forward.3} parent=1 // pred_fallthru
      _
    // Predicated region
    $region34: #{attention_dti_forward.3} parent=1 // pred_check
      _
    $region35: #{attention_dti_forward.3} parent=1 // pred_check_branch
      %32 = sbr.rel (0) target = $region37
    $region36: #{attention_dti_forward.3} parent=1 // pred_region
      _
    $region37: #{attention_dti_forward.3} parent=1 // pred_fallthru
      _
    %v33 = vld [vmem:[%s0] sm:$0xf]
    %35 = vst [vmem:[#allocation1] ss:$4 sm:$0xff] %v33
    %v36 = vld.sshfl [vmem:[#allocation1] sm:$0xff pattern:$0x73625140]
    %v37 = vld.sshfl [vmem:[#allocation1 + $0x8] sm:$0xff pattern:$0x73625140]
    %v40 = vpack.c.bf16 %v36, %v36
    %v41 = vpack.c.bf16 %v37, %v37
    %v42 = vld [vmem:[%s1] sm:$0xff]
    %v43 = vld [vmem:[%s1 + $0x8] sm:$0xff]
    %v44 = vld [vmem:[%s1 + $0x10] sm:$0xff]
    %v45 = vld [vmem:[%s1 + $0x18] sm:$0xff]
    %v46 = vld [vmem:[%s1 + $0x20] sm:$0xff]
    %v47 = vld [vmem:[%s1 + $0x28] sm:$0xff]
    %v48 = vld [vmem:[%s1 + $0x30] sm:$0xff]
    %v49 = vld [vmem:[%s1 + $0x38] sm:$0xff]
    %v50 = vld [vmem:[%s1 + $0x40] sm:$0xff]
    %v51 = vld [vmem:[%s1 + $0x48] sm:$0xff]
    %v52 = vld [vmem:[%s1 + $0x50] sm:$0xff]
    %v53 = vld [vmem:[%s1 + $0x58] sm:$0xff]
    %v54 = vld [vmem:[%s1 + $0x60] sm:$0xff]
    %v55 = vld [vmem:[%s1 + $0x68] sm:$0xff]
    %v56 = vld [vmem:[%s1 + $0x70] sm:$0xff]
    %v57 = vld [vmem:[%s1 + $0x78] sm:$0xff]
    %v58 = vld [vmem:[%s1 + $0x80] sm:$0xff]
    %v59 = vld [vmem:[%s1 + $0x88] sm:$0xff]
    %v60 = vld [vmem:[%s1 + $0x90] sm:$0xff]
    %v61 = vld [vmem:[%s1 + $0x98] sm:$0xff]
    %v62 = vld [vmem:[%s1 + $0xa0] sm:$0xff]
    %v63 = vld [vmem:[%s1 + $0xa8] sm:$0xff]
    %v64 = vld [vmem:[%s1 + $0xb0] sm:$0xff]
    %v65 = vld [vmem:[%s1 + $0xb8] sm:$0xff]
    %v66 = vld [vmem:[%s1 + $0xc0] sm:$0xff]
    %v67 = vld [vmem:[%s1 + $0xc8] sm:$0xff]
    %v68 = vld [vmem:[%s1 + $0xd0] sm:$0xff]
    %v69 = vld [vmem:[%s1 + $0xd8] sm:$0xff]
    %v70 = vld [vmem:[%s1 + $0xe0] sm:$0xff]
    %v71 = vld [vmem:[%s1 + $0xe8] sm:$0xff]
    %v72 = vld [vmem:[%s1 + $0xf0] sm:$0xff]
    %v73 = vld [vmem:[%s1 + $0xf8] sm:$0xff]
    %v74 = vld [vmem:[%s1 + $0x100] sm:$0xff]
    %v75 = vld [vmem:[%s1 + $0x108] sm:$0xff]
    %v76 = vld [vmem:[%s1 + $0x110] sm:$0xff]
    %v77 = vld [vmem:[%s1 + $0x118] sm:$0xff]
    %v78 = vld [vmem:[%s1 + $0x120] sm:$0xff]
    %v79 = vld [vmem:[%s1 + $0x128] sm:$0xff]
    %v80 = vld [vmem:[%s1 + $0x130] sm:$0xff]
    %v81 = vld [vmem:[%s1 + $0x138] sm:$0xff]
    %v82 = vld [vmem:[%s1 + $0x140] sm:$0xff]
    %v83 = vld [vmem:[%s1 + $0x148] sm:$0xff]
    %v84 = vld [vmem:[%s1 + $0x150] sm:$0xff]
    %v85 = vld [vmem:[%s1 + $0x158] sm:$0xff]
    %v86 = vld [vmem:[%s1 + $0x160] sm:$0xff]
    %v87 = vld [vmem:[%s1 + $0x168] sm:$0xff]
    %v88 = vld [vmem:[%s1 + $0x170] sm:$0xff]
    %v89 = vld [vmem:[%s1 + $0x178] sm:$0xff]
    %v90 = vld [vmem:[%s1 + $0x180] sm:$0xff]
    %v91 = vld [vmem:[%s1 + $0x188] sm:$0xff]
    %v92 = vld [vmem:[%s1 + $0x190] sm:$0xff]
    %v93 = vld [vmem:[%s1 + $0x198] sm:$0xff]
    %v94 = vld [vmem:[%s1 + $0x1a0] sm:$0xff]
    %v95 = vld [vmem:[%s1 + $0x1a8] sm:$0xff]
    %v96 = vld [vmem:[%s1 + $0x1b0] sm:$0xff]
    %v97 = vld [vmem:[%s1 + $0x1b8] sm:$0xff]
    %v98 = vld [vmem:[%s1 + $0x1c0] sm:$0xff]
    %v99 = vld [vmem:[%s1 + $0x1c8] sm:$0xff]
    %v100 = vld [vmem:[%s1 + $0x1d0] sm:$0xff]
    %v101 = vld [vmem:[%s1 + $0x1d8] sm:$0xff]
    %v102 = vld [vmem:[%s1 + $0x1e0] sm:$0xff]
    %v103 = vld [vmem:[%s1 + $0x1e8] sm:$0xff]
    %v104 = vld [vmem:[%s1 + $0x1f0] sm:$0xff]
    %v105 = vld [vmem:[%s1 + $0x1f8] sm:$0xff]
    %v106 = vld [vmem:[%s1 + $0x200] sm:$0xff]
    %v107 = vld [vmem:[%s1 + $0x208] sm:$0xff]
    %v108 = vld [vmem:[%s1 + $0x210] sm:$0xff]
    %v109 = vld [vmem:[%s1 + $0x218] sm:$0xff]
    %v110 = vld [vmem:[%s1 + $0x220] sm:$0xff]
    %v111 = vld [vmem:[%s1 + $0x228] sm:$0xff]
    %v112 = vld [vmem:[%s1 + $0x230] sm:$0xff]
    %v113 = vld [vmem:[%s1 + $0x238] sm:$0xff]
    %v114 = vld [vmem:[%s1 + $0x240] sm:$0xff]
    %v115 = vld [vmem:[%s1 + $0x248] sm:$0xff]
    %v116 = vld [vmem:[%s1 + $0x250] sm:$0xff]
    %v117 = vld [vmem:[%s1 + $0x258] sm:$0xff]
    %v118 = vld [vmem:[%s1 + $0x260] sm:$0xff]
    %v119 = vld [vmem:[%s1 + $0x268] sm:$0xff]
    %v120 = vld [vmem:[%s1 + $0x270] sm:$0xff]
    %v121 = vld [vmem:[%s1 + $0x278] sm:$0xff]
    %v122 = vld [vmem:[%s1 + $0x280] sm:$0xff]
    %v123 = vld [vmem:[%s1 + $0x288] sm:$0xff]
    %v124 = vld [vmem:[%s1 + $0x290] sm:$0xff]
    %v125 = vld [vmem:[%s1 + $0x298] sm:$0xff]
    %v126 = vld [vmem:[%s1 + $0x2a0] sm:$0xff]
    %v127 = vld [vmem:[%s1 + $0x2a8] sm:$0xff]
    %v128 = vld [vmem:[%s1 + $0x2b0] sm:$0xff]
    %v129 = vld [vmem:[%s1 + $0x2b8] sm:$0xff]
    %v130 = vld [vmem:[%s1 + $0x2c0] sm:$0xff]
    %v131 = vld [vmem:[%s1 + $0x2c8] sm:$0xff]
    %v132 = vld [vmem:[%s1 + $0x2d0] sm:$0xff]
    %v133 = vld [vmem:[%s1 + $0x2d8] sm:$0xff]
    %v134 = vld [vmem:[%s1 + $0x2e0] sm:$0xff]
    %v135 = vld [vmem:[%s1 + $0x2e8] sm:$0xff]
    %v136 = vld [vmem:[%s1 + $0x2f0] sm:$0xff]
    %v137 = vld [vmem:[%s1 + $0x2f8] sm:$0xff]
    %v138 = vld [vmem:[%s1 + $0x300] sm:$0xff]
    %v139 = vld [vmem:[%s1 + $0x308] sm:$0xff]
    %v140 = vld [vmem:[%s1 + $0x310] sm:$0xff]
    %v141 = vld [vmem:[%s1 + $0x318] sm:$0xff]
    %v142 = vld [vmem:[%s1 + $0x320] sm:$0xff]
    %v143 = vld [vmem:[%s1 + $0x328] sm:$0xff]
    %v144 = vld [vmem:[%s1 + $0x330] sm:$0xff]
    %v145 = vld [vmem:[%s1 + $0x338] sm:$0xff]
    %v146 = vld [vmem:[%s1 + $0x340] sm:$0xff]
    %v147 = vld [vmem:[%s1 + $0x348] sm:$0xff]
    %v148 = vld [vmem:[%s1 + $0x350] sm:$0xff]
    %v149 = vld [vmem:[%s1 + $0x358] sm:$0xff]
    %v150 = vld [vmem:[%s1 + $0x360] sm:$0xff]
    %v151 = vld [vmem:[%s1 + $0x368] sm:$0xff]
    %v152 = vld [vmem:[%s1 + $0x370] sm:$0xff]
    %v153 = vld [vmem:[%s1 + $0x378] sm:$0xff]
    %v154 = vld [vmem:[%s1 + $0x380] sm:$0xff]
    %v155 = vld [vmem:[%s1 + $0x388] sm:$0xff]
    %v156 = vld [vmem:[%s1 + $0x390] sm:$0xff]
    %v157 = vld [vmem:[%s1 + $0x398] sm:$0xff]
    %v158 = vld [vmem:[%s1 + $0x3a0] sm:$0xff]
    %v159 = vld [vmem:[%s1 + $0x3a8] sm:$0xff]
    %v160 = vld [vmem:[%s1 + $0x3b0] sm:$0xff]
    %v161 = vld [vmem:[%s1 + $0x3b8] sm:$0xff]
    %v162 = vld [vmem:[%s1 + $0x3c0] sm:$0xff]
    %v163 = vld [vmem:[%s1 + $0x3c8] sm:$0xff]
    %v164 = vld [vmem:[%s1 + $0x3d0] sm:$0xff]
    %v165 = vld [vmem:[%s1 + $0x3d8] sm:$0xff]
    %v166 = vld [vmem:[%s1 + $0x3e0] sm:$0xff]
    %v167 = vld [vmem:[%s1 + $0x3e8] sm:$0xff]
    %v168 = vld [vmem:[%s1 + $0x3f0] sm:$0xff]
    %v169 = vld [vmem:[%s1 + $0x3f8] sm:$0xff]
    %v170 = vld [vmem:[%s2] sm:$0xff]
    %v172 = vperm.slane %v170, 0
    %v173 = vperm.slane %v170, 1
    %v174 = vperm.slane %v170, 2
    %v175 = vperm.slane %v170, 3
    %v176 = vperm.slane %v170, 4
    %v177 = vperm.slane %v170, 5
    %v178 = vperm.slane %v170, 6
    %v179 = vperm.slane %v170, 7
    %v316 = vunpack.c.l.b16 %v42
    %v317 = vunpack.c.h.b16 %v42
    %v318 = vunpack.c.l.b16 %v43
    %v319 = vunpack.c.h.b16 %v43
    %v320 = vunpack.c.l.b16 %v44
    %v321 = vunpack.c.h.b16 %v44
    %v322 = vunpack.c.l.b16 %v45
    %v323 = vunpack.c.h.b16 %v45
    %v324 = vunpack.c.l.b16 %v46
    %v325 = vunpack.c.h.b16 %v46
    %v326 = vunpack.c.l.b16 %v47
    %v327 = vunpack.c.h.b16 %v47
    %v328 = vunpack.c.l.b16 %v48
    %v329 = vunpack.c.h.b16 %v48
    %v330 = vunpack.c.l.b16 %v49
    %v331 = vunpack.c.h.b16 %v49
    %v332 = vunpack.c.l.b16 %v50
    %v333 = vunpack.c.h.b16 %v50
    %v334 = vunpack.c.l.b16 %v51
    %v335 = vunpack.c.h.b16 %v51
    %v336 = vunpack.c.l.b16 %v52
    %v337 = vunpack.c.h.b16 %v52
    %v338 = vunpack.c.l.b16 %v53
    %v339 = vunpack.c.h.b16 %v53
    %v340 = vunpack.c.l.b16 %v54
    %v341 = vunpack.c.h.b16 %v54
    %v342 = vunpack.c.l.b16 %v55
    %v343 = vunpack.c.h.b16 %v55
    %v344 = vunpack.c.l.b16 %v56
    %v345 = vunpack.c.h.b16 %v56
    %v346 = vunpack.c.l.b16 %v57
    %v347 = vunpack.c.h.b16 %v57
    %v348 = vunpack.c.l.b16 %v58
    %v349 = vunpack.c.h.b16 %v58
    %v350 = vunpack.c.l.b16 %v59
    %v351 = vunpack.c.h.b16 %v59
    %v352 = vunpack.c.l.b16 %v60
    %v353 = vunpack.c.h.b16 %v60
    %v354 = vunpack.c.l.b16 %v61
    %v355 = vunpack.c.h.b16 %v61
    %v356 = vunpack.c.l.b16 %v62
    %v357 = vunpack.c.h.b16 %v62
    %v358 = vunpack.c.l.b16 %v63
    %v359 = vunpack.c.h.b16 %v63
    %v360 = vunpack.c.l.b16 %v64
    %v361 = vunpack.c.h.b16 %v64
    %v362 = vunpack.c.l.b16 %v65
    %v363 = vunpack.c.h.b16 %v65
    %v364 = vunpack.c.l.b16 %v66
    %v365 = vunpack.c.h.b16 %v66
    %v366 = vunpack.c.l.b16 %v67
    %v367 = vunpack.c.h.b16 %v67
    %v368 = vunpack.c.l.b16 %v68
    %v369 = vunpack.c.h.b16 %v68
    %v370 = vunpack.c.l.b16 %v69
    %v371 = vunpack.c.h.b16 %v69
    %v372 = vunpack.c.l.b16 %v70
    %v373 = vunpack.c.h.b16 %v70
    %v374 = vunpack.c.l.b16 %v71
    %v375 = vunpack.c.h.b16 %v71
    %v376 = vunpack.c.l.b16 %v72
    %v377 = vunpack.c.h.b16 %v72
    %v378 = vunpack.c.l.b16 %v73
    %v379 = vunpack.c.h.b16 %v73
    %v380 = vunpack.c.l.b16 %v74
    %v381 = vunpack.c.h.b16 %v74
    %v382 = vunpack.c.l.b16 %v75
    %v383 = vunpack.c.h.b16 %v75
    %v384 = vunpack.c.l.b16 %v76
    %v385 = vunpack.c.h.b16 %v76
    %v386 = vunpack.c.l.b16 %v77
    %v387 = vunpack.c.h.b16 %v77
    %v388 = vunpack.c.l.b16 %v78
    %v389 = vunpack.c.h.b16 %v78
    %v390 = vunpack.c.l.b16 %v79
    %v391 = vunpack.c.h.b16 %v79
    %v392 = vunpack.c.l.b16 %v80
    %v393 = vunpack.c.h.b16 %v80
    %v394 = vunpack.c.l.b16 %v81
    %v395 = vunpack.c.h.b16 %v81
    %v396 = vunpack.c.l.b16 %v82
    %v397 = vunpack.c.h.b16 %v82
    %v398 = vunpack.c.l.b16 %v83
    %v399 = vunpack.c.h.b16 %v83
    %v400 = vunpack.c.l.b16 %v84
    %v401 = vunpack.c.h.b16 %v84
    %v402 = vunpack.c.l.b16 %v85
    %v403 = vunpack.c.h.b16 %v85
    %v404 = vunpack.c.l.b16 %v86
    %v405 = vunpack.c.h.b16 %v86
    %v406 = vunpack.c.l.b16 %v87
    %v407 = vunpack.c.h.b16 %v87
    %v408 = vunpack.c.l.b16 %v88
    %v409 = vunpack.c.h.b16 %v88
    %v410 = vunpack.c.l.b16 %v89
    %v411 = vunpack.c.h.b16 %v89
    %v412 = vunpack.c.l.b16 %v90
    %v413 = vunpack.c.h.b16 %v90
    %v414 = vunpack.c.l.b16 %v91
    %v415 = vunpack.c.h.b16 %v91
    %v416 = vunpack.c.l.b16 %v92
    %v417 = vunpack.c.h.b16 %v92
    %v418 = vunpack.c.l.b16 %v93
    %v419 = vunpack.c.h.b16 %v93
    %v420 = vunpack.c.l.b16 %v94
    %v421 = vunpack.c.h.b16 %v94
    %v422 = vunpack.c.l.b16 %v95
    %v423 = vunpack.c.h.b16 %v95
    %v424 = vunpack.c.l.b16 %v96
    %v425 = vunpack.c.h.b16 %v96
    %v426 = vunpack.c.l.b16 %v97
    %v427 = vunpack.c.h.b16 %v97
    %v428 = vunpack.c.l.b16 %v98
    %v429 = vunpack.c.h.b16 %v98
    %v430 = vunpack.c.l.b16 %v99
    %v431 = vunpack.c.h.b16 %v99
    %v432 = vunpack.c.l.b16 %v100
    %v433 = vunpack.c.h.b16 %v100
    %v434 = vunpack.c.l.b16 %v101
    %v435 = vunpack.c.h.b16 %v101
    %v436 = vunpack.c.l.b16 %v102
    %v437 = vunpack.c.h.b16 %v102
    %v438 = vunpack.c.l.b16 %v103
    %v439 = vunpack.c.h.b16 %v103
    %v440 = vunpack.c.l.b16 %v104
    %v441 = vunpack.c.h.b16 %v104
    %v442 = vunpack.c.l.b16 %v105
    %v443 = vunpack.c.h.b16 %v105
    %v444 = vunpack.c.l.b16 %v106
    %v445 = vunpack.c.h.b16 %v106
    %v446 = vunpack.c.l.b16 %v107
    %v447 = vunpack.c.h.b16 %v107
    %v448 = vunpack.c.l.b16 %v108
    %v449 = vunpack.c.h.b16 %v108
    %v450 = vunpack.c.l.b16 %v109
    %v451 = vunpack.c.h.b16 %v109
    %v452 = vunpack.c.l.b16 %v110
    %v453 = vunpack.c.h.b16 %v110
    %v454 = vunpack.c.l.b16 %v111
    %v455 = vunpack.c.h.b16 %v111
    %v456 = vunpack.c.l.b16 %v112
    %v457 = vunpack.c.h.b16 %v112
    %v458 = vunpack.c.l.b16 %v113
    %v459 = vunpack.c.h.b16 %v113
    %v460 = vunpack.c.l.b16 %v114
    %v461 = vunpack.c.h.b16 %v114
    %v462 = vunpack.c.l.b16 %v115
    %v463 = vunpack.c.h.b16 %v115
    %v464 = vunpack.c.l.b16 %v116
    %v465 = vunpack.c.h.b16 %v116
    %v466 = vunpack.c.l.b16 %v117
    %v467 = vunpack.c.h.b16 %v117
    %v468 = vunpack.c.l.b16 %v118
    %v469 = vunpack.c.h.b16 %v118
    %v470 = vunpack.c.l.b16 %v119
    %v471 = vunpack.c.h.b16 %v119
    %v472 = vunpack.c.l.b16 %v120
    %v473 = vunpack.c.h.b16 %v120
    %v474 = vunpack.c.l.b16 %v121
    %v475 = vunpack.c.h.b16 %v121
    %v476 = vunpack.c.l.b16 %v122
    %v477 = vunpack.c.h.b16 %v122
    %v478 = vunpack.c.l.b16 %v123
    %v479 = vunpack.c.h.b16 %v123
    %v480 = vunpack.c.l.b16 %v124
    %v481 = vunpack.c.h.b16 %v124
    %v482 = vunpack.c.l.b16 %v125
    %v483 = vunpack.c.h.b16 %v125
    %v484 = vunpack.c.l.b16 %v126
    %v485 = vunpack.c.h.b16 %v126
    %v486 = vunpack.c.l.b16 %v127
    %v487 = vunpack.c.h.b16 %v127
    %v488 = vunpack.c.l.b16 %v128
    %v489 = vunpack.c.h.b16 %v128
    %v490 = vunpack.c.l.b16 %v129
    %v491 = vunpack.c.h.b16 %v129
    %v492 = vunpack.c.l.b16 %v130
    %v493 = vunpack.c.h.b16 %v130
    %v494 = vunpack.c.l.b16 %v131
    %v495 = vunpack.c.h.b16 %v131
    %v496 = vunpack.c.l.b16 %v132
    %v497 = vunpack.c.h.b16 %v132
    %v498 = vunpack.c.l.b16 %v133
    %v499 = vunpack.c.h.b16 %v133
    %v500 = vunpack.c.l.b16 %v134
    %v501 = vunpack.c.h.b16 %v134
    %v502 = vunpack.c.l.b16 %v135
    %v503 = vunpack.c.h.b16 %v135
    %v504 = vunpack.c.l.b16 %v136
    %v505 = vunpack.c.h.b16 %v136
    %v506 = vunpack.c.l.b16 %v137
    %v507 = vunpack.c.h.b16 %v137
    %v508 = vunpack.c.l.b16 %v138
    %v509 = vunpack.c.h.b16 %v138
    %v510 = vunpack.c.l.b16 %v139
    %v511 = vunpack.c.h.b16 %v139
    %v512 = vunpack.c.l.b16 %v140
    %v513 = vunpack.c.h.b16 %v140
    %v514 = vunpack.c.l.b16 %v141
    %v515 = vunpack.c.h.b16 %v141
    %v516 = vunpack.c.l.b16 %v142
    %v517 = vunpack.c.h.b16 %v142
    %v518 = vunpack.c.l.b16 %v143
    %v519 = vunpack.c.h.b16 %v143
    %v520 = vunpack.c.l.b16 %v144
    %v521 = vunpack.c.h.b16 %v144
    %v522 = vunpack.c.l.b16 %v145
    %v523 = vunpack.c.h.b16 %v145
    %v524 = vunpack.c.l.b16 %v146
    %v525 = vunpack.c.h.b16 %v146
    %v526 = vunpack.c.l.b16 %v147
    %v527 = vunpack.c.h.b16 %v147
    %v528 = vunpack.c.l.b16 %v148
    %v529 = vunpack.c.h.b16 %v148
    %v530 = vunpack.c.l.b16 %v149
    %v531 = vunpack.c.h.b16 %v149
    %v532 = vunpack.c.l.b16 %v150
    %v533 = vunpack.c.h.b16 %v150
    %v534 = vunpack.c.l.b16 %v151
    %v535 = vunpack.c.h.b16 %v151
    %v536 = vunpack.c.l.b16 %v152
    %v537 = vunpack.c.h.b16 %v152
    %v538 = vunpack.c.l.b16 %v153
    %v539 = vunpack.c.h.b16 %v153
    %v540 = vunpack.c.l.b16 %v154
    %v541 = vunpack.c.h.b16 %v154
    %v542 = vunpack.c.l.b16 %v155
    %v543 = vunpack.c.h.b16 %v155
    %v544 = vunpack.c.l.b16 %v156
    %v545 = vunpack.c.h.b16 %v156
    %v546 = vunpack.c.l.b16 %v157
    %v547 = vunpack.c.h.b16 %v157
    %v548 = vunpack.c.l.b16 %v158
    %v549 = vunpack.c.h.b16 %v158
    %v550 = vunpack.c.l.b16 %v159
    %v551 = vunpack.c.h.b16 %v159
    %v552 = vunpack.c.l.b16 %v160
    %v553 = vunpack.c.h.b16 %v160
    %v554 = vunpack.c.l.b16 %v161
    %v555 = vunpack.c.h.b16 %v161
    %v556 = vunpack.c.l.b16 %v162
    %v557 = vunpack.c.h.b16 %v162
    %v558 = vunpack.c.l.b16 %v163
    %v559 = vunpack.c.h.b16 %v163
    %v560 = vunpack.c.l.b16 %v164
    %v561 = vunpack.c.h.b16 %v164
    %v562 = vunpack.c.l.b16 %v165
    %v563 = vunpack.c.h.b16 %v165
    %v564 = vunpack.c.l.b16 %v166
    %v565 = vunpack.c.h.b16 %v166
    %v566 = vunpack.c.l.b16 %v167
    %v567 = vunpack.c.h.b16 %v167
    %v568 = vunpack.c.l.b16 %v168
    %v569 = vunpack.c.h.b16 %v168
    %v570 = vunpack.c.l.b16 %v169
    %v571 = vunpack.c.h.b16 %v169
    %v572 = vpack.c.b16 %v324, %v316
    %v573 = vpack.c.b16 %v325, %v317
    %v574 = vpack.c.b16 %v326, %v318
    %v575 = vpack.c.b16 %v327, %v319
    %v576 = vpack.c.b16 %v328, %v320
    %v577 = vpack.c.b16 %v329, %v321
    %v578 = vpack.c.b16 %v330, %v322
    %v579 = vpack.c.b16 %v331, %v323
    %v580 = vpack.c.b16 %v340, %v332
    %v581 = vpack.c.b16 %v341, %v333
    %v582 = vpack.c.b16 %v342, %v334
    %v583 = vpack.c.b16 %v343, %v335
    %v584 = vpack.c.b16 %v344, %v336
    %v585 = vpack.c.b16 %v345, %v337
    %v586 = vpack.c.b16 %v346, %v338
    %v587 = vpack.c.b16 %v347, %v339
    %v588 = vpack.c.b16 %v356, %v348
    %v589 = vpack.c.b16 %v357, %v349
    %v590 = vpack.c.b16 %v358, %v350
    %v591 = vpack.c.b16 %v359, %v351
    %v592 = vpack.c.b16 %v360, %v352
    %v593 = vpack.c.b16 %v361, %v353
    %v594 = vpack.c.b16 %v362, %v354
    %v595 = vpack.c.b16 %v363, %v355
    %v596 = vpack.c.b16 %v372, %v364
    %v597 = vpack.c.b16 %v373, %v365
    %v598 = vpack.c.b16 %v374, %v366
    %v599 = vpack.c.b16 %v375, %v367
    %v600 = vpack.c.b16 %v376, %v368
    %v601 = vpack.c.b16 %v377, %v369
    %v602 = vpack.c.b16 %v378, %v370
    %v603 = vpack.c.b16 %v379, %v371
    %v604 = vpack.c.b16 %v388, %v380
    %v605 = vpack.c.b16 %v389, %v381
    %v606 = vpack.c.b16 %v390, %v382
    %v607 = vpack.c.b16 %v391, %v383
    %v608 = vpack.c.b16 %v392, %v384
    %v609 = vpack.c.b16 %v393, %v385
    %v610 = vpack.c.b16 %v394, %v386
    %v611 = vpack.c.b16 %v395, %v387
    %v612 = vpack.c.b16 %v404, %v396
    %v613 = vpack.c.b16 %v405, %v397
    %v614 = vpack.c.b16 %v406, %v398
    %v615 = vpack.c.b16 %v407, %v399
    %v616 = vpack.c.b16 %v408, %v400
    %v617 = vpack.c.b16 %v409, %v401
    %v618 = vpack.c.b16 %v410, %v402
    %v619 = vpack.c.b16 %v411, %v403
    %v620 = vpack.c.b16 %v420, %v412
    %v621 = vpack.c.b16 %v421, %v413
    %v622 = vpack.c.b16 %v422, %v414
    %v623 = vpack.c.b16 %v423, %v415
    %v624 = vpack.c.b16 %v424, %v416
    %v625 = vpack.c.b16 %v425, %v417
    %v626 = vpack.c.b16 %v426, %v418
    %v627 = vpack.c.b16 %v427, %v419
    %v628 = vpack.c.b16 %v436, %v428
    %v629 = vpack.c.b16 %v437, %v429
    %v630 = vpack.c.b16 %v438, %v430
    %v631 = vpack.c.b16 %v439, %v431
    %v632 = vpack.c.b16 %v440, %v432
    %v633 = vpack.c.b16 %v441, %v433
    %v634 = vpack.c.b16 %v442, %v434
    %v635 = vpack.c.b16 %v443, %v435
    %v636 = vpack.c.b16 %v452, %v444
    %v637 = vpack.c.b16 %v453, %v445
    %v638 = vpack.c.b16 %v454, %v446
    %v639 = vpack.c.b16 %v455, %v447
    %v640 = vpack.c.b16 %v456, %v448
    %v641 = vpack.c.b16 %v457, %v449
    %v642 = vpack.c.b16 %v458, %v450
    %v643 = vpack.c.b16 %v459, %v451
    %v644 = vpack.c.b16 %v468, %v460
    %v645 = vpack.c.b16 %v469, %v461
    %v646 = vpack.c.b16 %v470, %v462
    %v647 = vpack.c.b16 %v471, %v463
    %v648 = vpack.c.b16 %v472, %v464
    %v649 = vpack.c.b16 %v473, %v465
    %v650 = vpack.c.b16 %v474, %v466
    %v651 = vpack.c.b16 %v475, %v467
    %v652 = vpack.c.b16 %v484, %v476
    %v653 = vpack.c.b16 %v485, %v477
    %v654 = vpack.c.b16 %v486, %v478
    %v655 = vpack.c.b16 %v487, %v479
    %v656 = vpack.c.b16 %v488, %v480
    %v657 = vpack.c.b16 %v489, %v481
    %v658 = vpack.c.b16 %v490, %v482
    %v659 = vpack.c.b16 %v491, %v483
    %v660 = vpack.c.b16 %v500, %v492
    %v661 = vpack.c.b16 %v501, %v493
    %v662 = vpack.c.b16 %v502, %v494
    %v663 = vpack.c.b16 %v503, %v495
    %v664 = vpack.c.b16 %v504, %v496
    %v665 = vpack.c.b16 %v505, %v497
    %v666 = vpack.c.b16 %v506, %v498
    %v667 = vpack.c.b16 %v507, %v499
    %v668 = vpack.c.b16 %v516, %v508
    %v669 = vpack.c.b16 %v517, %v509
    %v670 = vpack.c.b16 %v518, %v510
    %v671 = vpack.c.b16 %v519, %v511
    %v672 = vpack.c.b16 %v520, %v512
    %v673 = vpack.c.b16 %v521, %v513
    %v674 = vpack.c.b16 %v522, %v514
    %v675 = vpack.c.b16 %v523, %v515
    %v676 = vpack.c.b16 %v532, %v524
    %v677 = vpack.c.b16 %v533, %v525
    %v678 = vpack.c.b16 %v534, %v526
    %v679 = vpack.c.b16 %v535, %v527
    %v680 = vpack.c.b16 %v536, %v528
    %v681 = vpack.c.b16 %v537, %v529
    %v682 = vpack.c.b16 %v538, %v530
    %v683 = vpack.c.b16 %v539, %v531
    %v684 = vpack.c.b16 %v548, %v540
    %v685 = vpack.c.b16 %v549, %v541
    %v686 = vpack.c.b16 %v550, %v542
    %v687 = vpack.c.b16 %v551, %v543
    %v688 = vpack.c.b16 %v552, %v544
    %v689 = vpack.c.b16 %v553, %v545
    %v690 = vpack.c.b16 %v554, %v546
    %v691 = vpack.c.b16 %v555, %v547
    %v692 = vpack.c.b16 %v564, %v556
    %v693 = vpack.c.b16 %v565, %v557
    %v694 = vpack.c.b16 %v566, %v558
    %v695 = vpack.c.b16 %v567, %v559
    %v696 = vpack.c.b16 %v568, %v560
    %v697 = vpack.c.b16 %v569, %v561
    %v698 = vpack.c.b16 %v570, %v562
    %v699 = vpack.c.b16 %v571, %v563
    %828 = vmatpush.bf16.msra.mxu0 %v628
    %829 = vmatpush.bf16.msra.mxu0 %v620
    %830 = vmatpush.bf16.msra.mxu0 %v612
    %831 = vmatpush.bf16.msra.mxu0 %v604
    %832 = vmatpush.bf16.msra.mxu0 %v596
    %833 = vmatpush.bf16.msra.mxu0 %v588
    %834 = vmatpush.bf16.msra.mxu0 %v580
    %835 = vmatpush.bf16.msra.mxu0 %v572
    %836 = vmatmul.bf16.gmra.mxu0 %v40
    %v837 = vpop.f32.mrf.mxu0
    %v838 = vadd.f32 %v172, %v837
    %v839 = vpop.f32.mrf.mxu0
    %840 = vdwg.mxu0
    %841 = vmatpush.bf16.msra.mxu0 %v692
    %842 = vmatpush.bf16.msra.mxu0 %v684
    %843 = vmatpush.bf16.msra.mxu0 %v676
    %844 = vmatpush.bf16.msra.mxu0 %v668
    %845 = vmatpush.bf16.msra.mxu0 %v660
    %846 = vmatpush.bf16.msra.mxu0 %v652
    %847 = vmatpush.bf16.msra.mxu0 %v644
    %848 = vmatpush.bf16.msra.mxu0 %v636
    %849 = vmatmul.bf16.gmra.mxu0 %v41
    %v850 = vpop.f32.mrf.mxu0
    %v851 = vadd.f32 %v838, %v850
    %v852 = vpop.f32.mrf.mxu0
    %853 = vdwg.mxu0
    %854 = vmatpush.bf16.msra.mxu0 %v629
    %855 = vmatpush.bf16.msra.mxu0 %v621
    %856 = vmatpush.bf16.msra.mxu0 %v613
    %857 = vmatpush.bf16.msra.mxu0 %v605
    %858 = vmatpush.bf16.msra.mxu0 %v597
    %859 = vmatpush.bf16.msra.mxu0 %v589
    %860 = vmatpush.bf16.msra.mxu0 %v581
    %861 = vmatpush.bf16.msra.mxu0 %v573
    %862 = vmatmul.bf16.gmra.mxu0 %v40
    %v863 = vpop.f32.mrf.mxu0
    %v864 = vadd.f32 %v173, %v863
    %v865 = vpop.f32.mrf.mxu0
    %866 = vdwg.mxu0
    %867 = vmatpush.bf16.msra.mxu0 %v693
    %868 = vmatpush.bf16.msra.mxu0 %v685
    %869 = vmatpush.bf16.msra.mxu0 %v677
    %870 = vmatpush.bf16.msra.mxu0 %v669
    %871 = vmatpush.bf16.msra.mxu0 %v661
    %872 = vmatpush.bf16.msra.mxu0 %v653
    %873 = vmatpush.bf16.msra.mxu0 %v645
    %874 = vmatpush.bf16.msra.mxu0 %v637
    %875 = vmatmul.bf16.gmra.mxu0 %v41
    %v876 = vpop.f32.mrf.mxu0
    %v877 = vadd.f32 %v864, %v876
    %v878 = vpop.f32.mrf.mxu0
    %879 = vdwg.mxu0
    %880 = vmatpush.bf16.msra.mxu0 %v630
    %881 = vmatpush.bf16.msra.mxu0 %v622
    %882 = vmatpush.bf16.msra.mxu0 %v614
    %883 = vmatpush.bf16.msra.mxu0 %v606
    %884 = vmatpush.bf16.msra.mxu0 %v598
    %885 = vmatpush.bf16.msra.mxu0 %v590
    %886 = vmatpush.bf16.msra.mxu0 %v582
    %887 = vmatpush.bf16.msra.mxu0 %v574
    %888 = vmatmul.bf16.gmra.mxu0 %v40
    %v889 = vpop.f32.mrf.mxu0
    %v890 = vadd.f32 %v174, %v889
    %v891 = vpop.f32.mrf.mxu0
    %892 = vdwg.mxu0
    %893 = vmatpush.bf16.msra.mxu0 %v694
    %894 = vmatpush.bf16.msra.mxu0 %v686
    %895 = vmatpush.bf16.msra.mxu0 %v678
    %896 = vmatpush.bf16.msra.mxu0 %v670
    %897 = vmatpush.bf16.msra.mxu0 %v662
    %898 = vmatpush.bf16.msra.mxu0 %v654
    %899 = vmatpush.bf16.msra.mxu0 %v646
    %900 = vmatpush.bf16.msra.mxu0 %v638
    %901 = vmatmul.bf16.gmra.mxu0 %v41
    %v902 = vpop.f32.mrf.mxu0
    %v903 = vadd.f32 %v890, %v902
    %v904 = vpop.f32.mrf.mxu0
    %905 = vdwg.mxu0
    %906 = vmatpush.bf16.msra.mxu0 %v631
    %907 = vmatpush.bf16.msra.mxu0 %v623
    %908 = vmatpush.bf16.msra.mxu0 %v615
    %909 = vmatpush.bf16.msra.mxu0 %v607
    %910 = vmatpush.bf16.msra.mxu0 %v599
    %911 = vmatpush.bf16.msra.mxu0 %v591
    %912 = vmatpush.bf16.msra.mxu0 %v583
    %913 = vmatpush.bf16.msra.mxu0 %v575
    %914 = vmatmul.bf16.gmra.mxu0 %v40
    %v915 = vpop.f32.mrf.mxu0
    %v916 = vadd.f32 %v175, %v915
    %v917 = vpop.f32.mrf.mxu0
    %918 = vdwg.mxu0
    %919 = vmatpush.bf16.msra.mxu0 %v695
    %920 = vmatpush.bf16.msra.mxu0 %v687
    %921 = vmatpush.bf16.msra.mxu0 %v679
    %922 = vmatpush.bf16.msra.mxu0 %v671
    %923 = vmatpush.bf16.msra.mxu0 %v663
    %924 = vmatpush.bf16.msra.mxu0 %v655
    %925 = vmatpush.bf16.msra.mxu0 %v647
    %926 = vmatpush.bf16.msra.mxu0 %v639
    %927 = vmatmul.bf16.gmra.mxu0 %v41
    %v928 = vpop.f32.mrf.mxu0
    %v929 = vadd.f32 %v916, %v928
    %v930 = vpop.f32.mrf.mxu0
    %931 = vdwg.mxu0
    %932 = vmatpush.bf16.msra.mxu0 %v632
    %933 = vmatpush.bf16.msra.mxu0 %v624
    %934 = vmatpush.bf16.msra.mxu0 %v616
    %935 = vmatpush.bf16.msra.mxu0 %v608
    %936 = vmatpush.bf16.msra.mxu0 %v600
    %937 = vmatpush.bf16.msra.mxu0 %v592
    %938 = vmatpush.bf16.msra.mxu0 %v584
    %939 = vmatpush.bf16.msra.mxu0 %v576
    %940 = vmatmul.bf16.gmra.mxu0 %v40
    %v941 = vpop.f32.mrf.mxu0
    %v942 = vadd.f32 %v176, %v941
    %v943 = vpop.f32.mrf.mxu0
    %944 = vdwg.mxu0
    %945 = vmatpush.bf16.msra.mxu0 %v696
    %946 = vmatpush.bf16.msra.mxu0 %v688
    %947 = vmatpush.bf16.msra.mxu0 %v680
    %948 = vmatpush.bf16.msra.mxu0 %v672
    %949 = vmatpush.bf16.msra.mxu0 %v664
    %950 = vmatpush.bf16.msra.mxu0 %v656
    %951 = vmatpush.bf16.msra.mxu0 %v648
    %952 = vmatpush.bf16.msra.mxu0 %v640
    %953 = vmatmul.bf16.gmra.mxu0 %v41
    %v954 = vpop.f32.mrf.mxu0
    %v955 = vadd.f32 %v942, %v954
    %v956 = vpop.f32.mrf.mxu0
    %957 = vdwg.mxu0
    %958 = vmatpush.bf16.msra.mxu0 %v633
    %959 = vmatpush.bf16.msra.mxu0 %v625
    %960 = vmatpush.bf16.msra.mxu0 %v617
    %961 = vmatpush.bf16.msra.mxu0 %v609
    %962 = vmatpush.bf16.msra.mxu0 %v601
    %963 = vmatpush.bf16.msra.mxu0 %v593
    %964 = vmatpush.bf16.msra.mxu0 %v585
    %965 = vmatpush.bf16.msra.mxu0 %v577
    %966 = vmatmul.bf16.gmra.mxu0 %v40
    %v967 = vpop.f32.mrf.mxu0
    %v968 = vadd.f32 %v177, %v967
    %v969 = vpop.f32.mrf.mxu0
    %970 = vdwg.mxu0
    %971 = vmatpush.bf16.msra.mxu0 %v697
    %972 = vmatpush.bf16.msra.mxu0 %v689
    %973 = vmatpush.bf16.msra.mxu0 %v681
    %974 = vmatpush.bf16.msra.mxu0 %v673
    %975 = vmatpush.bf16.msra.mxu0 %v665
    %976 = vmatpush.bf16.msra.mxu0 %v657
    %977 = vmatpush.bf16.msra.mxu0 %v649
    %978 = vmatpush.bf16.msra.mxu0 %v641
    %979 = vmatmul.bf16.gmra.mxu0 %v41
    %v980 = vpop.f32.mrf.mxu0
    %v981 = vadd.f32 %v968, %v980
    %v982 = vpop.f32.mrf.mxu0
    %983 = vdwg.mxu0
    %984 = vmatpush.bf16.msra.mxu0 %v634
    %985 = vmatpush.bf16.msra.mxu0 %v626
    %986 = vmatpush.bf16.msra.mxu0 %v618
    %987 = vmatpush.bf16.msra.mxu0 %v610
    %988 = vmatpush.bf16.msra.mxu0 %v602
    %989 = vmatpush.bf16.msra.mxu0 %v594
    %990 = vmatpush.bf16.msra.mxu0 %v586
    %991 = vmatpush.bf16.msra.mxu0 %v578
    %992 = vmatmul.bf16.gmra.mxu0 %v40
    %v993 = vpop.f32.mrf.mxu0
    %v994 = vadd.f32 %v178, %v993
    %v995 = vpop.f32.mrf.mxu0
    %996 = vdwg.mxu0
    %997 = vmatpush.bf16.msra.mxu0 %v698
    %998 = vmatpush.bf16.msra.mxu0 %v690
    %999 = vmatpush.bf16.msra.mxu0 %v682
    %1000 = vmatpush.bf16.msra.mxu0 %v674
    %1001 = vmatpush.bf16.msra.mxu0 %v666
    %1002 = vmatpush.bf16.msra.mxu0 %v658
    %1003 = vmatpush.bf16.msra.mxu0 %v650
    %1004 = vmatpush.bf16.msra.mxu0 %v642
    %1005 = vmatmul.bf16.gmra.mxu0 %v41
    %v1006 = vpop.f32.mrf.mxu0
    %v1007 = vadd.f32 %v994, %v1006
    %v1008 = vpop.f32.mrf.mxu0
    %1009 = vdwg.mxu0
    %1010 = vmatpush.bf16.msra.mxu0 %v635
    %1011 = vmatpush.bf16.msra.mxu0 %v627
    %1012 = vmatpush.bf16.msra.mxu0 %v619
    %1013 = vmatpush.bf16.msra.mxu0 %v611
    %1014 = vmatpush.bf16.msra.mxu0 %v603
    %1015 = vmatpush.bf16.msra.mxu0 %v595
    %1016 = vmatpush.bf16.msra.mxu0 %v587
    %1017 = vmatpush.bf16.msra.mxu0 %v579
    %1018 = vmatmul.bf16.gmra.mxu0 %v40
    %v1019 = vpop.f32.mrf.mxu0
    %v1020 = vadd.f32 %v179, %v1019
    %v1021 = vpop.f32.mrf.mxu0
    %1022 = vdwg.mxu0
    %1023 = vmatpush.bf16.msra.mxu0 %v699
    %1024 = vmatpush.bf16.msra.mxu0 %v691
    %1025 = vmatpush.bf16.msra.mxu0 %v683
    %1026 = vmatpush.bf16.msra.mxu0 %v675
    %1027 = vmatpush.bf16.msra.mxu0 %v667
    %1028 = vmatpush.bf16.msra.mxu0 %v659
    %1029 = vmatpush.bf16.msra.mxu0 %v651
    %1030 = vmatpush.bf16.msra.mxu0 %v643
    %1031 = vmatmul.bf16.gmra.mxu0 %v41
    %v1032 = vpop.f32.mrf.mxu0
    %v1033 = vadd.f32 %v1020, %v1032
    %v1034 = vpop.f32.mrf.mxu0
    %1035 = vdwg.mxu0
    %vm1036 = vcmp.gt.f32.partialorder %v851, 0.0
    %vm1037 = vcmp.gt.f32.partialorder %v877, 0.0
    %vm1038 = vcmp.gt.f32.partialorder %v903, 0.0
    %vm1039 = vcmp.gt.f32.partialorder %v929, 0.0
    %vm1040 = vcmp.gt.f32.partialorder %v955, 0.0
    %vm1041 = vcmp.gt.f32.partialorder %v981, 0.0
    %vm1042 = vcmp.gt.f32.partialorder %v1007, 0.0
    %vm1043 = vcmp.gt.f32.partialorder %v1033, 0.0
    %v1044 = vmul.f32 %v851, 0.01
    %v1045 = vmul.f32 %v877, 0.01
    %v1046 = vmul.f32 %v903, 0.01
    %v1047 = vmul.f32 %v929, 0.01
    %v1048 = vmul.f32 %v955, 0.01
    %v1049 = vmul.f32 %v981, 0.01
    %v1050 = vmul.f32 %v1007, 0.01
    %v1051 = vmul.f32 %v1033, 0.01
    %v1052 = vsel %vm1036, %v851, %v1044
    %v1053 = vsel %vm1037, %v877, %v1045
    %v1054 = vsel %vm1038, %v903, %v1046
    %v1055 = vsel %vm1039, %v929, %v1047
    %v1056 = vsel %vm1040, %v955, %v1048
    %v1057 = vsel %vm1041, %v981, %v1049
    %v1058 = vsel %vm1042, %v1007, %v1050
    %v1059 = vsel %vm1043, %v1033, %v1051
    %v1060 = vpack.c.bf16 %v1052, %v1052
    %v1061 = vpack.c.bf16 %v1053, %v1053
    %v1062 = vpack.c.bf16 %v1054, %v1054
    %v1063 = vpack.c.bf16 %v1055, %v1055
    %v1064 = vpack.c.bf16 %v1056, %v1056
    %v1065 = vpack.c.bf16 %v1057, %v1057
    %v1066 = vpack.c.bf16 %v1058, %v1058
    %v1067 = vpack.c.bf16 %v1059, %v1059
    %v1068 = vld [vmem:[%s3] sm:$0xff]
    %v1069 = vld [vmem:[%s3 + $0x8] sm:$0xff]
    %v1070 = vld [vmem:[%s3 + $0x10] sm:$0xff]
    %v1071 = vld [vmem:[%s3 + $0x18] sm:$0xff]
    %v1072 = vld [vmem:[%s3 + $0x20] sm:$0xff]
    %v1073 = vld [vmem:[%s3 + $0x28] sm:$0xff]
    %v1074 = vld [vmem:[%s3 + $0x30] sm:$0xff]
    %v1075 = vld [vmem:[%s3 + $0x38] sm:$0xff]
    %v1076 = vld [vmem:[%s3 + $0x40] sm:$0xff]
    %v1077 = vld [vmem:[%s3 + $0x48] sm:$0xff]
    %v1078 = vld [vmem:[%s3 + $0x50] sm:$0xff]
    %v1079 = vld [vmem:[%s3 + $0x58] sm:$0xff]
    %v1080 = vld [vmem:[%s3 + $0x60] sm:$0xff]
    %v1081 = vld [vmem:[%s3 + $0x68] sm:$0xff]
    %v1082 = vld [vmem:[%s3 + $0x70] sm:$0xff]
    %v1083 = vld [vmem:[%s3 + $0x78] sm:$0xff]
    %v1084 = vld [vmem:[%s3 + $0x80] sm:$0xff]
    %v1085 = vld [vmem:[%s3 + $0x88] sm:$0xff]
    %v1086 = vld [vmem:[%s3 + $0x90] sm:$0xff]
    %v1087 = vld [vmem:[%s3 + $0x98] sm:$0xff]
    %v1088 = vld [vmem:[%s3 + $0xa0] sm:$0xff]
    %v1089 = vld [vmem:[%s3 + $0xa8] sm:$0xff]
    %v1090 = vld [vmem:[%s3 + $0xb0] sm:$0xff]
    %v1091 = vld [vmem:[%s3 + $0xb8] sm:$0xff]
    %v1092 = vld [vmem:[%s3 + $0xc0] sm:$0xff]
    %v1093 = vld [vmem:[%s3 + $0xc8] sm:$0xff]
    %v1094 = vld [vmem:[%s3 + $0xd0] sm:$0xff]
    %v1095 = vld [vmem:[%s3 + $0xd8] sm:$0xff]
    %v1096 = vld [vmem:[%s3 + $0xe0] sm:$0xff]
    %v1097 = vld [vmem:[%s3 + $0xe8] sm:$0xff]
    %v1098 = vld [vmem:[%s3 + $0xf0] sm:$0xff]
    %v1099 = vld [vmem:[%s3 + $0xf8] sm:$0xff]
    %v1100 = vld [vmem:[%s3 + $0x100] sm:$0xff]
    %v1101 = vld [vmem:[%s3 + $0x108] sm:$0xff]
    %v1102 = vld [vmem:[%s3 + $0x110] sm:$0xff]
    %v1103 = vld [vmem:[%s3 + $0x118] sm:$0xff]
    %v1104 = vld [vmem:[%s3 + $0x120] sm:$0xff]
    %v1105 = vld [vmem:[%s3 + $0x128] sm:$0xff]
    %v1106 = vld [vmem:[%s3 + $0x130] sm:$0xff]
    %v1107 = vld [vmem:[%s3 + $0x138] sm:$0xff]
    %v1108 = vld [vmem:[%s3 + $0x140] sm:$0xff]
    %v1109 = vld [vmem:[%s3 + $0x148] sm:$0xff]
    %v1110 = vld [vmem:[%s3 + $0x150] sm:$0xff]
    %v1111 = vld [vmem:[%s3 + $0x158] sm:$0xff]
    %v1112 = vld [vmem:[%s3 + $0x160] sm:$0xff]
    %v1113 = vld [vmem:[%s3 + $0x168] sm:$0xff]
    %v1114 = vld [vmem:[%s3 + $0x170] sm:$0xff]
    %v1115 = vld [vmem:[%s3 + $0x178] sm:$0xff]
    %v1116 = vld [vmem:[%s3 + $0x180] sm:$0xff]
    %v1117 = vld [vmem:[%s3 + $0x188] sm:$0xff]
    %v1118 = vld [vmem:[%s3 + $0x190] sm:$0xff]
    %v1119 = vld [vmem:[%s3 + $0x198] sm:$0xff]
    %v1120 = vld [vmem:[%s3 + $0x1a0] sm:$0xff]
    %v1121 = vld [vmem:[%s3 + $0x1a8] sm:$0xff]
    %v1122 = vld [vmem:[%s3 + $0x1b0] sm:$0xff]
    %v1123 = vld [vmem:[%s3 + $0x1b8] sm:$0xff]
    %v1124 = vld [vmem:[%s3 + $0x1c0] sm:$0xff]
    %v1125 = vld [vmem:[%s3 + $0x1c8] sm:$0xff]
    %v1126 = vld [vmem:[%s3 + $0x1d0] sm:$0xff]
    %v1127 = vld [vmem:[%s3 + $0x1d8] sm:$0xff]
    %v1128 = vld [vmem:[%s3 + $0x1e0] sm:$0xff]
    %v1129 = vld [vmem:[%s3 + $0x1e8] sm:$0xff]
    %v1130 = vld [vmem:[%s3 + $0x1f0] sm:$0xff]
    %v1131 = vld [vmem:[%s3 + $0x1f8] sm:$0xff]
    %v1132 = vld [vmem:[%s3 + $0x200] sm:$0xff]
    %v1133 = vld [vmem:[%s3 + $0x208] sm:$0xff]
    %v1134 = vld [vmem:[%s3 + $0x210] sm:$0xff]
    %v1135 = vld [vmem:[%s3 + $0x218] sm:$0xff]
    %v1136 = vld [vmem:[%s3 + $0x220] sm:$0xff]
    %v1137 = vld [vmem:[%s3 + $0x228] sm:$0xff]
    %v1138 = vld [vmem:[%s3 + $0x230] sm:$0xff]
    %v1139 = vld [vmem:[%s3 + $0x238] sm:$0xff]
    %v1140 = vld [vmem:[%s3 + $0x240] sm:$0xff]
    %v1141 = vld [vmem:[%s3 + $0x248] sm:$0xff]
    %v1142 = vld [vmem:[%s3 + $0x250] sm:$0xff]
    %v1143 = vld [vmem:[%s3 + $0x258] sm:$0xff]
    %v1144 = vld [vmem:[%s3 + $0x260] sm:$0xff]
    %v1145 = vld [vmem:[%s3 + $0x268] sm:$0xff]
    %v1146 = vld [vmem:[%s3 + $0x270] sm:$0xff]
    %v1147 = vld [vmem:[%s3 + $0x278] sm:$0xff]
    %v1148 = vld [vmem:[%s3 + $0x280] sm:$0xff]
    %v1149 = vld [vmem:[%s3 + $0x288] sm:$0xff]
    %v1150 = vld [vmem:[%s3 + $0x290] sm:$0xff]
    %v1151 = vld [vmem:[%s3 + $0x298] sm:$0xff]
    %v1152 = vld [vmem:[%s3 + $0x2a0] sm:$0xff]
    %v1153 = vld [vmem:[%s3 + $0x2a8] sm:$0xff]
    %v1154 = vld [vmem:[%s3 + $0x2b0] sm:$0xff]
    %v1155 = vld [vmem:[%s3 + $0x2b8] sm:$0xff]
    %v1156 = vld [vmem:[%s3 + $0x2c0] sm:$0xff]
    %v1157 = vld [vmem:[%s3 + $0x2c8] sm:$0xff]
    %v1158 = vld [vmem:[%s3 + $0x2d0] sm:$0xff]
    %v1159 = vld [vmem:[%s3 + $0x2d8] sm:$0xff]
    %v1160 = vld [vmem:[%s3 + $0x2e0] sm:$0xff]
    %v1161 = vld [vmem:[%s3 + $0x2e8] sm:$0xff]
    %v1162 = vld [vmem:[%s3 + $0x2f0] sm:$0xff]
    %v1163 = vld [vmem:[%s3 + $0x2f8] sm:$0xff]
    %v1164 = vld [vmem:[%s3 + $0x300] sm:$0xff]
    %v1165 = vld [vmem:[%s3 + $0x308] sm:$0xff]
    %v1166 = vld [vmem:[%s3 + $0x310] sm:$0xff]
    %v1167 = vld [vmem:[%s3 + $0x318] sm:$0xff]
    %v1168 = vld [vmem:[%s3 + $0x320] sm:$0xff]
    %v1169 = vld [vmem:[%s3 + $0x328] sm:$0xff]
    %v1170 = vld [vmem:[%s3 + $0x330] sm:$0xff]
    %v1171 = vld [vmem:[%s3 + $0x338] sm:$0xff]
    %v1172 = vld [vmem:[%s3 + $0x340] sm:$0xff]
    %v1173 = vld [vmem:[%s3 + $0x348] sm:$0xff]
    %v1174 = vld [vmem:[%s3 + $0x350] sm:$0xff]
    %v1175 = vld [vmem:[%s3 + $0x358] sm:$0xff]
    %v1176 = vld [vmem:[%s3 + $0x360] sm:$0xff]
    %v1177 = vld [vmem:[%s3 + $0x368] sm:$0xff]
    %v1178 = vld [vmem:[%s3 + $0x370] sm:$0xff]
    %v1179 = vld [vmem:[%s3 + $0x378] sm:$0xff]
    %v1180 = vld [vmem:[%s3 + $0x380] sm:$0xff]
    %v1181 = vld [vmem:[%s3 + $0x388] sm:$0xff]
    %v1182 = vld [vmem:[%s3 + $0x390] sm:$0xff]
    %v1183 = vld [vmem:[%s3 + $0x398] sm:$0xff]
    %v1184 = vld [vmem:[%s3 + $0x3a0] sm:$0xff]
    %v1185 = vld [vmem:[%s3 + $0x3a8] sm:$0xff]
    %v1186 = vld [vmem:[%s3 + $0x3b0] sm:$0xff]
    %v1187 = vld [vmem:[%s3 + $0x3b8] sm:$0xff]
    %v1188 = vld [vmem:[%s3 + $0x3c0] sm:$0xff]
    %v1189 = vld [vmem:[%s3 + $0x3c8] sm:$0xff]
    %v1190 = vld [vmem:[%s3 + $0x3d0] sm:$0xff]
    %v1191 = vld [vmem:[%s3 + $0x3d8] sm:$0xff]
    %v1192 = vld [vmem:[%s3 + $0x3e0] sm:$0xff]
    %v1193 = vld [vmem:[%s3 + $0x3e8] sm:$0xff]
    %v1194 = vld [vmem:[%s3 + $0x3f0] sm:$0xff]
    %v1195 = vld [vmem:[%s3 + $0x3f8] sm:$0xff]
    %v1196 = vld [vmem:[%s3 + $0x400] sm:$0xff]
    %v1197 = vld [vmem:[%s3 + $0x408] sm:$0xff]
    %v1198 = vld [vmem:[%s3 + $0x410] sm:$0xff]
    %v1199 = vld [vmem:[%s3 + $0x418] sm:$0xff]
    %v1200 = vld [vmem:[%s3 + $0x420] sm:$0xff]
    %v1201 = vld [vmem:[%s3 + $0x428] sm:$0xff]
    %v1202 = vld [vmem:[%s3 + $0x430] sm:$0xff]
    %v1203 = vld [vmem:[%s3 + $0x438] sm:$0xff]
    %v1204 = vld [vmem:[%s3 + $0x440] sm:$0xff]
    %v1205 = vld [vmem:[%s3 + $0x448] sm:$0xff]
    %v1206 = vld [vmem:[%s3 + $0x450] sm:$0xff]
    %v1207 = vld [vmem:[%s3 + $0x458] sm:$0xff]
    %v1208 = vld [vmem:[%s3 + $0x460] sm:$0xff]
    %v1209 = vld [vmem:[%s3 + $0x468] sm:$0xff]
    %v1210 = vld [vmem:[%s3 + $0x470] sm:$0xff]
    %v1211 = vld [vmem:[%s3 + $0x478] sm:$0xff]
    %v1212 = vld [vmem:[%s3 + $0x480] sm:$0xff]
    %v1213 = vld [vmem:[%s3 + $0x488] sm:$0xff]
    %v1214 = vld [vmem:[%s3 + $0x490] sm:$0xff]
    %v1215 = vld [vmem:[%s3 + $0x498] sm:$0xff]
    %v1216 = vld [vmem:[%s3 + $0x4a0] sm:$0xff]
    %v1217 = vld [vmem:[%s3 + $0x4a8] sm:$0xff]
    %v1218 = vld [vmem:[%s3 + $0x4b0] sm:$0xff]
    %v1219 = vld [vmem:[%s3 + $0x4b8] sm:$0xff]
    %v1220 = vld [vmem:[%s3 + $0x4c0] sm:$0xff]
    %v1221 = vld [vmem:[%s3 + $0x4c8] sm:$0xff]
    %v1222 = vld [vmem:[%s3 + $0x4d0] sm:$0xff]
    %v1223 = vld [vmem:[%s3 + $0x4d8] sm:$0xff]
    %v1224 = vld [vmem:[%s3 + $0x4e0] sm:$0xff]
    %v1225 = vld [vmem:[%s3 + $0x4e8] sm:$0xff]
    %v1226 = vld [vmem:[%s3 + $0x4f0] sm:$0xff]
    %v1227 = vld [vmem:[%s3 + $0x4f8] sm:$0xff]
    %v1228 = vld [vmem:[%s3 + $0x500] sm:$0xff]
    %v1229 = vld [vmem:[%s3 + $0x508] sm:$0xff]
    %v1230 = vld [vmem:[%s3 + $0x510] sm:$0xff]
    %v1231 = vld [vmem:[%s3 + $0x518] sm:$0xff]
    %v1232 = vld [vmem:[%s3 + $0x520] sm:$0xff]
    %v1233 = vld [vmem:[%s3 + $0x528] sm:$0xff]
    %v1234 = vld [vmem:[%s3 + $0x530] sm:$0xff]
    %v1235 = vld [vmem:[%s3 + $0x538] sm:$0xff]
    %v1236 = vld [vmem:[%s3 + $0x540] sm:$0xff]
    %v1237 = vld [vmem:[%s3 + $0x548] sm:$0xff]
    %v1238 = vld [vmem:[%s3 + $0x550] sm:$0xff]
    %v1239 = vld [vmem:[%s3 + $0x558] sm:$0xff]
    %v1240 = vld [vmem:[%s3 + $0x560] sm:$0xff]
    %v1241 = vld [vmem:[%s3 + $0x568] sm:$0xff]
    %v1242 = vld [vmem:[%s3 + $0x570] sm:$0xff]
    %v1243 = vld [vmem:[%s3 + $0x578] sm:$0xff]
    %v1244 = vld [vmem:[%s3 + $0x580] sm:$0xff]
    %v1245 = vld [vmem:[%s3 + $0x588] sm:$0xff]
    %v1246 = vld [vmem:[%s3 + $0x590] sm:$0xff]
    %v1247 = vld [vmem:[%s3 + $0x598] sm:$0xff]
    %v1248 = vld [vmem:[%s3 + $0x5a0] sm:$0xff]
    %v1249 = vld [vmem:[%s3 + $0x5a8] sm:$0xff]
    %v1250 = vld [vmem:[%s3 + $0x5b0] sm:$0xff]
    %v1251 = vld [vmem:[%s3 + $0x5b8] sm:$0xff]
    %v1252 = vld [vmem:[%s3 + $0x5c0] sm:$0xff]
    %v1253 = vld [vmem:[%s3 + $0x5c8] sm:$0xff]
    %v1254 = vld [vmem:[%s3 + $0x5d0] sm:$0xff]
    %v1255 = vld [vmem:[%s3 + $0x5d8] sm:$0xff]
    %v1256 = vld [vmem:[%s3 + $0x5e0] sm:$0xff]
    %v1257 = vld [vmem:[%s3 + $0x5e8] sm:$0xff]
    %v1258 = vld [vmem:[%s3 + $0x5f0] sm:$0xff]
    %v1259 = vld [vmem:[%s3 + $0x5f8] sm:$0xff]
    %v1260 = vld [vmem:[%s3 + $0x600] sm:$0xff]
    %v1261 = vld [vmem:[%s3 + $0x608] sm:$0xff]
    %v1262 = vld [vmem:[%s3 + $0x610] sm:$0xff]
    %v1263 = vld [vmem:[%s3 + $0x618] sm:$0xff]
    %v1264 = vld [vmem:[%s3 + $0x620] sm:$0xff]
    %v1265 = vld [vmem:[%s3 + $0x628] sm:$0xff]
    %v1266 = vld [vmem:[%s3 + $0x630] sm:$0xff]
    %v1267 = vld [vmem:[%s3 + $0x638] sm:$0xff]
    %v1268 = vld [vmem:[%s3 + $0x640] sm:$0xff]
    %v1269 = vld [vmem:[%s3 + $0x648] sm:$0xff]
    %v1270 = vld [vmem:[%s3 + $0x650] sm:$0xff]
    %v1271 = vld [vmem:[%s3 + $0x658] sm:$0xff]
    %v1272 = vld [vmem:[%s3 + $0x660] sm:$0xff]
    %v1273 = vld [vmem:[%s3 + $0x668] sm:$0xff]
    %v1274 = vld [vmem:[%s3 + $0x670] sm:$0xff]
    %v1275 = vld [vmem:[%s3 + $0x678] sm:$0xff]
    %v1276 = vld [vmem:[%s3 + $0x680] sm:$0xff]
    %v1277 = vld [vmem:[%s3 + $0x688] sm:$0xff]
    %v1278 = vld [vmem:[%s3 + $0x690] sm:$0xff]
    %v1279 = vld [vmem:[%s3 + $0x698] sm:$0xff]
    %v1280 = vld [vmem:[%s3 + $0x6a0] sm:$0xff]
    %v1281 = vld [vmem:[%s3 + $0x6a8] sm:$0xff]
    %v1282 = vld [vmem:[%s3 + $0x6b0] sm:$0xff]
    %v1283 = vld [vmem:[%s3 + $0x6b8] sm:$0xff]
    %v1284 = vld [vmem:[%s3 + $0x6c0] sm:$0xff]
    %v1285 = vld [vmem:[%s3 + $0x6c8] sm:$0xff]
    %v1286 = vld [vmem:[%s3 + $0x6d0] sm:$0xff]
    %v1287 = vld [vmem:[%s3 + $0x6d8] sm:$0xff]
    %v1288 = vld [vmem:[%s3 + $0x6e0] sm:$0xff]
    %v1289 = vld [vmem:[%s3 + $0x6e8] sm:$0xff]
    %v1290 = vld [vmem:[%s3 + $0x6f0] sm:$0xff]
    %v1291 = vld [vmem:[%s3 + $0x6f8] sm:$0xff]
    %v1292 = vld [vmem:[%s3 + $0x700] sm:$0xff]
    %v1293 = vld [vmem:[%s3 + $0x708] sm:$0xff]
    %v1294 = vld [vmem:[%s3 + $0x710] sm:$0xff]
    %v1295 = vld [vmem:[%s3 + $0x718] sm:$0xff]
    %v1296 = vld [vmem:[%s3 + $0x720] sm:$0xff]
    %v1297 = vld [vmem:[%s3 + $0x728] sm:$0xff]
    %v1298 = vld [vmem:[%s3 + $0x730] sm:$0xff]
    %v1299 = vld [vmem:[%s3 + $0x738] sm:$0xff]
    %v1300 = vld [vmem:[%s3 + $0x740] sm:$0xff]
    %v1301 = vld [vmem:[%s3 + $0x748] sm:$0xff]
    %v1302 = vld [vmem:[%s3 + $0x750] sm:$0xff]
    %v1303 = vld [vmem:[%s3 + $0x758] sm:$0xff]
    %v1304 = vld [vmem:[%s3 + $0x760] sm:$0xff]
    %v1305 = vld [vmem:[%s3 + $0x768] sm:$0xff]
    %v1306 = vld [vmem:[%s3 + $0x770] sm:$0xff]
    %v1307 = vld [vmem:[%s3 + $0x778] sm:$0xff]
    %v1308 = vld [vmem:[%s3 + $0x780] sm:$0xff]
    %v1309 = vld [vmem:[%s3 + $0x788] sm:$0xff]
    %v1310 = vld [vmem:[%s3 + $0x790] sm:$0xff]
    %v1311 = vld [vmem:[%s3 + $0x798] sm:$0xff]
    %v1312 = vld [vmem:[%s3 + $0x7a0] sm:$0xff]
    %v1313 = vld [vmem:[%s3 + $0x7a8] sm:$0xff]
    %v1314 = vld [vmem:[%s3 + $0x7b0] sm:$0xff]
    %v1315 = vld [vmem:[%s3 + $0x7b8] sm:$0xff]
    %v1316 = vld [vmem:[%s3 + $0x7c0] sm:$0xff]
    %v1317 = vld [vmem:[%s3 + $0x7c8] sm:$0xff]
    %v1318 = vld [vmem:[%s3 + $0x7d0] sm:$0xff]
    %v1319 = vld [vmem:[%s3 + $0x7d8] sm:$0xff]
    %v1320 = vld [vmem:[%s3 + $0x7e0] sm:$0xff]
    %v1321 = vld [vmem:[%s3 + $0x7e8] sm:$0xff]
    %v1322 = vld [vmem:[%s3 + $0x7f0] sm:$0xff]
    %v1323 = vld [vmem:[%s3 + $0x7f8] sm:$0xff]
    %v1324 = vld [vmem:[%s3 + $0x800] sm:$0xff]
    %v1325 = vld [vmem:[%s3 + $0x808] sm:$0xff]
    %v1326 = vld [vmem:[%s3 + $0x810] sm:$0xff]
    %v1327 = vld [vmem:[%s3 + $0x818] sm:$0xff]
    %v1328 = vld [vmem:[%s3 + $0x820] sm:$0xff]
    %v1329 = vld [vmem:[%s3 + $0x828] sm:$0xff]
    %v1330 = vld [vmem:[%s3 + $0x830] sm:$0xff]
    %v1331 = vld [vmem:[%s3 + $0x838] sm:$0xff]
    %v1332 = vld [vmem:[%s3 + $0x840] sm:$0xff]
    %v1333 = vld [vmem:[%s3 + $0x848] sm:$0xff]
    %v1334 = vld [vmem:[%s3 + $0x850] sm:$0xff]
    %v1335 = vld [vmem:[%s3 + $0x858] sm:$0xff]
    %v1336 = vld [vmem:[%s3 + $0x860] sm:$0xff]
    %v1337 = vld [vmem:[%s3 + $0x868] sm:$0xff]
    %v1338 = vld [vmem:[%s3 + $0x870] sm:$0xff]
    %v1339 = vld [vmem:[%s3 + $0x878] sm:$0xff]
    %v1340 = vld [vmem:[%s3 + $0x880] sm:$0xff]
    %v1341 = vld [vmem:[%s3 + $0x888] sm:$0xff]
    %v1342 = vld [vmem:[%s3 + $0x890] sm:$0xff]
    %v1343 = vld [vmem:[%s3 + $0x898] sm:$0xff]
    %v1344 = vld [vmem:[%s3 + $0x8a0] sm:$0xff]
    %v1345 = vld [vmem:[%s3 + $0x8a8] sm:$0xff]
    %v1346 = vld [vmem:[%s3 + $0x8b0] sm:$0xff]
    %v1347 = vld [vmem:[%s3 + $0x8b8] sm:$0xff]
    %v1348 = vld [vmem:[%s3 + $0x8c0] sm:$0xff]
    %v1349 = vld [vmem:[%s3 + $0x8c8] sm:$0xff]
    %v1350 = vld [vmem:[%s3 + $0x8d0] sm:$0xff]
    %v1351 = vld [vmem:[%s3 + $0x8d8] sm:$0xff]
    %v1352 = vld [vmem:[%s3 + $0x8e0] sm:$0xff]
    %v1353 = vld [vmem:[%s3 + $0x8e8] sm:$0xff]
    %v1354 = vld [vmem:[%s3 + $0x8f0] sm:$0xff]
    %v1355 = vld [vmem:[%s3 + $0x8f8] sm:$0xff]
    %v1356 = vld [vmem:[%s3 + $0x900] sm:$0xff]
    %v1357 = vld [vmem:[%s3 + $0x908] sm:$0xff]
    %v1358 = vld [vmem:[%s3 + $0x910] sm:$0xff]
    %v1359 = vld [vmem:[%s3 + $0x918] sm:$0xff]
    %v1360 = vld [vmem:[%s3 + $0x920] sm:$0xff]
    %v1361 = vld [vmem:[%s3 + $0x928] sm:$0xff]
    %v1362 = vld [vmem:[%s3 + $0x930] sm:$0xff]
    %v1363 = vld [vmem:[%s3 + $0x938] sm:$0xff]
    %v1364 = vld [vmem:[%s3 + $0x940] sm:$0xff]
    %v1365 = vld [vmem:[%s3 + $0x948] sm:$0xff]
    %v1366 = vld [vmem:[%s3 + $0x950] sm:$0xff]
    %v1367 = vld [vmem:[%s3 + $0x958] sm:$0xff]
    %v1368 = vld [vmem:[%s3 + $0x960] sm:$0xff]
    %v1369 = vld [vmem:[%s3 + $0x968] sm:$0xff]
    %v1370 = vld [vmem:[%s3 + $0x970] sm:$0xff]
    %v1371 = vld [vmem:[%s3 + $0x978] sm:$0xff]
    %v1372 = vld [vmem:[%s3 + $0x980] sm:$0xff]
    %v1373 = vld [vmem:[%s3 + $0x988] sm:$0xff]
    %v1374 = vld [vmem:[%s3 + $0x990] sm:$0xff]
    %v1375 = vld [vmem:[%s3 + $0x998] sm:$0xff]
    %v1376 = vld [vmem:[%s3 + $0x9a0] sm:$0xff]
    %v1377 = vld [vmem:[%s3 + $0x9a8] sm:$0xff]
    %v1378 = vld [vmem:[%s3 + $0x9b0] sm:$0xff]
    %v1379 = vld [vmem:[%s3 + $0x9b8] sm:$0xff]
    %v1380 = vld [vmem:[%s3 + $0x9c0] sm:$0xff]
    %v1381 = vld [vmem:[%s3 + $0x9c8] sm:$0xff]
    %v1382 = vld [vmem:[%s3 + $0x9d0] sm:$0xff]
    %v1383 = vld [vmem:[%s3 + $0x9d8] sm:$0xff]
    %v1384 = vld [vmem:[%s3 + $0x9e0] sm:$0xff]
    %v1385 = vld [vmem:[%s3 + $0x9e8] sm:$0xff]
    %v1386 = vld [vmem:[%s3 + $0x9f0] sm:$0xff]
    %v1387 = vld [vmem:[%s3 + $0x9f8] sm:$0xff]
    %v1388 = vld [vmem:[%s3 + $0xa00] sm:$0xff]
    %v1389 = vld [vmem:[%s3 + $0xa08] sm:$0xff]
    %v1390 = vld [vmem:[%s3 + $0xa10] sm:$0xff]
    %v1391 = vld [vmem:[%s3 + $0xa18] sm:$0xff]
    %v1392 = vld [vmem:[%s3 + $0xa20] sm:$0xff]
    %v1393 = vld [vmem:[%s3 + $0xa28] sm:$0xff]
    %v1394 = vld [vmem:[%s3 + $0xa30] sm:$0xff]
    %v1395 = vld [vmem:[%s3 + $0xa38] sm:$0xff]
    %v1396 = vld [vmem:[%s3 + $0xa40] sm:$0xff]
    %v1397 = vld [vmem:[%s3 + $0xa48] sm:$0xff]
    %v1398 = vld [vmem:[%s3 + $0xa50] sm:$0xff]
    %v1399 = vld [vmem:[%s3 + $0xa58] sm:$0xff]
    %v1400 = vld [vmem:[%s3 + $0xa60] sm:$0xff]
    %v1401 = vld [vmem:[%s3 + $0xa68] sm:$0xff]
    %v1402 = vld [vmem:[%s3 + $0xa70] sm:$0xff]
    %v1403 = vld [vmem:[%s3 + $0xa78] sm:$0xff]
    %v1404 = vld [vmem:[%s3 + $0xa80] sm:$0xff]
    %v1405 = vld [vmem:[%s3 + $0xa88] sm:$0xff]
    %v1406 = vld [vmem:[%s3 + $0xa90] sm:$0xff]
    %v1407 = vld [vmem:[%s3 + $0xa98] sm:$0xff]
    %v1408 = vld [vmem:[%s3 + $0xaa0] sm:$0xff]
    %v1409 = vld [vmem:[%s3 + $0xaa8] sm:$0xff]
    %v1410 = vld [vmem:[%s3 + $0xab0] sm:$0xff]
    %v1411 = vld [vmem:[%s3 + $0xab8] sm:$0xff]
    %v1412 = vld [vmem:[%s3 + $0xac0] sm:$0xff]
    %v1413 = vld [vmem:[%s3 + $0xac8] sm:$0xff]
    %v1414 = vld [vmem:[%s3 + $0xad0] sm:$0xff]
    %v1415 = vld [vmem:[%s3 + $0xad8] sm:$0xff]
    %v1416 = vld [vmem:[%s3 + $0xae0] sm:$0xff]
    %v1417 = vld [vmem:[%s3 + $0xae8] sm:$0xff]
    %v1418 = vld [vmem:[%s3 + $0xaf0] sm:$0xff]
    %v1419 = vld [vmem:[%s3 + $0xaf8] sm:$0xff]
    %v1420 = vld [vmem:[%s3 + $0xb00] sm:$0xff]
    %v1421 = vld [vmem:[%s3 + $0xb08] sm:$0xff]
    %v1422 = vld [vmem:[%s3 + $0xb10] sm:$0xff]
    %v1423 = vld [vmem:[%s3 + $0xb18] sm:$0xff]
    %v1424 = vld [vmem:[%s3 + $0xb20] sm:$0xff]
    %v1425 = vld [vmem:[%s3 + $0xb28] sm:$0xff]
    %v1426 = vld [vmem:[%s3 + $0xb30] sm:$0xff]
    %v1427 = vld [vmem:[%s3 + $0xb38] sm:$0xff]
    %v1428 = vld [vmem:[%s3 + $0xb40] sm:$0xff]
    %v1429 = vld [vmem:[%s3 + $0xb48] sm:$0xff]
    %v1430 = vld [vmem:[%s3 + $0xb50] sm:$0xff]
    %v1431 = vld [vmem:[%s3 + $0xb58] sm:$0xff]
    %v1432 = vld [vmem:[%s3 + $0xb60] sm:$0xff]
    %v1433 = vld [vmem:[%s3 + $0xb68] sm:$0xff]
    %v1434 = vld [vmem:[%s3 + $0xb70] sm:$0xff]
    %v1435 = vld [vmem:[%s3 + $0xb78] sm:$0xff]
    %v1436 = vld [vmem:[%s3 + $0xb80] sm:$0xff]
    %v1437 = vld [vmem:[%s3 + $0xb88] sm:$0xff]
    %v1438 = vld [vmem:[%s3 + $0xb90] sm:$0xff]
    %v1439 = vld [vmem:[%s3 + $0xb98] sm:$0xff]
    %v1440 = vld [vmem:[%s3 + $0xba0] sm:$0xff]
    %v1441 = vld [vmem:[%s3 + $0xba8] sm:$0xff]
    %v1442 = vld [vmem:[%s3 + $0xbb0] sm:$0xff]
    %v1443 = vld [vmem:[%s3 + $0xbb8] sm:$0xff]
    %v1444 = vld [vmem:[%s3 + $0xbc0] sm:$0xff]
    %v1445 = vld [vmem:[%s3 + $0xbc8] sm:$0xff]
    %v1446 = vld [vmem:[%s3 + $0xbd0] sm:$0xff]
    %v1447 = vld [vmem:[%s3 + $0xbd8] sm:$0xff]
    %v1448 = vld [vmem:[%s3 + $0xbe0] sm:$0xff]
    %v1449 = vld [vmem:[%s3 + $0xbe8] sm:$0xff]
    %v1450 = vld [vmem:[%s3 + $0xbf0] sm:$0xff]
    %v1451 = vld [vmem:[%s3 + $0xbf8] sm:$0xff]
    %v1452 = vld [vmem:[%s3 + $0xc00] sm:$0xff]
    %v1453 = vld [vmem:[%s3 + $0xc08] sm:$0xff]
    %v1454 = vld [vmem:[%s3 + $0xc10] sm:$0xff]
    %v1455 = vld [vmem:[%s3 + $0xc18] sm:$0xff]
    %v1456 = vld [vmem:[%s3 + $0xc20] sm:$0xff]
    %v1457 = vld [vmem:[%s3 + $0xc28] sm:$0xff]
    %v1458 = vld [vmem:[%s3 + $0xc30] sm:$0xff]
    %v1459 = vld [vmem:[%s3 + $0xc38] sm:$0xff]
    %v1460 = vld [vmem:[%s3 + $0xc40] sm:$0xff]
    %v1461 = vld [vmem:[%s3 + $0xc48] sm:$0xff]
    %v1462 = vld [vmem:[%s3 + $0xc50] sm:$0xff]
    %v1463 = vld [vmem:[%s3 + $0xc58] sm:$0xff]
    %v1464 = vld [vmem:[%s3 + $0xc60] sm:$0xff]
    %v1465 = vld [vmem:[%s3 + $0xc68] sm:$0xff]
    %v1466 = vld [vmem:[%s3 + $0xc70] sm:$0xff]
    %v1467 = vld [vmem:[%s3 + $0xc78] sm:$0xff]
    %v1468 = vld [vmem:[%s3 + $0xc80] sm:$0xff]
    %v1469 = vld [vmem:[%s3 + $0xc88] sm:$0xff]
    %v1470 = vld [vmem:[%s3 + $0xc90] sm:$0xff]
    %v1471 = vld [vmem:[%s3 + $0xc98] sm:$0xff]
    %v1472 = vld [vmem:[%s3 + $0xca0] sm:$0xff]
    %v1473 = vld [vmem:[%s3 + $0xca8] sm:$0xff]
    %v1474 = vld [vmem:[%s3 + $0xcb0] sm:$0xff]
    %v1475 = vld [vmem:[%s3 + $0xcb8] sm:$0xff]
    %v1476 = vld [vmem:[%s3 + $0xcc0] sm:$0xff]
    %v1477 = vld [vmem:[%s3 + $0xcc8] sm:$0xff]
    %v1478 = vld [vmem:[%s3 + $0xcd0] sm:$0xff]
    %v1479 = vld [vmem:[%s3 + $0xcd8] sm:$0xff]
    %v1480 = vld [vmem:[%s3 + $0xce0] sm:$0xff]
    %v1481 = vld [vmem:[%s3 + $0xce8] sm:$0xff]
    %v1482 = vld [vmem:[%s3 + $0xcf0] sm:$0xff]
    %v1483 = vld [vmem:[%s3 + $0xcf8] sm:$0xff]
    %v1484 = vld [vmem:[%s3 + $0xd00] sm:$0xff]
    %v1485 = vld [vmem:[%s3 + $0xd08] sm:$0xff]
    %v1486 = vld [vmem:[%s3 + $0xd10] sm:$0xff]
    %v1487 = vld [vmem:[%s3 + $0xd18] sm:$0xff]
    %v1488 = vld [vmem:[%s3 + $0xd20] sm:$0xff]
    %v1489 = vld [vmem:[%s3 + $0xd28] sm:$0xff]
    %v1490 = vld [vmem:[%s3 + $0xd30] sm:$0xff]
    %v1491 = vld [vmem:[%s3 + $0xd38] sm:$0xff]
    %v1492 = vld [vmem:[%s3 + $0xd40] sm:$0xff]
    %v1493 = vld [vmem:[%s3 + $0xd48] sm:$0xff]
    %v1494 = vld [vmem:[%s3 + $0xd50] sm:$0xff]
    %v1495 = vld [vmem:[%s3 + $0xd58] sm:$0xff]
    %v1496 = vld [vmem:[%s3 + $0xd60] sm:$0xff]
    %v1497 = vld [vmem:[%s3 + $0xd68] sm:$0xff]
    %v1498 = vld [vmem:[%s3 + $0xd70] sm:$0xff]
    %v1499 = vld [vmem:[%s3 + $0xd78] sm:$0xff]
    %v1500 = vld [vmem:[%s3 + $0xd80] sm:$0xff]
    %v1501 = vld [vmem:[%s3 + $0xd88] sm:$0xff]
    %v1502 = vld [vmem:[%s3 + $0xd90] sm:$0xff]
    %v1503 = vld [vmem:[%s3 + $0xd98] sm:$0xff]
    %v1504 = vld [vmem:[%s3 + $0xda0] sm:$0xff]
    %v1505 = vld [vmem:[%s3 + $0xda8] sm:$0xff]
    %v1506 = vld [vmem:[%s3 + $0xdb0] sm:$0xff]
    %v1507 = vld [vmem:[%s3 + $0xdb8] sm:$0xff]
    %v1508 = vld [vmem:[%s3 + $0xdc0] sm:$0xff]
    %v1509 = vld [vmem:[%s3 + $0xdc8] sm:$0xff]
    %v1510 = vld [vmem:[%s3 + $0xdd0] sm:$0xff]
    %v1511 = vld [vmem:[%s3 + $0xdd8] sm:$0xff]
    %v1512 = vld [vmem:[%s3 + $0xde0] sm:$0xff]
    %v1513 = vld [vmem:[%s3 + $0xde8] sm:$0xff]
    %v1514 = vld [vmem:[%s3 + $0xdf0] sm:$0xff]
    %v1515 = vld [vmem:[%s3 + $0xdf8] sm:$0xff]
    %v1516 = vld [vmem:[%s3 + $0xe00] sm:$0xff]
    %v1517 = vld [vmem:[%s3 + $0xe08] sm:$0xff]
    %v1518 = vld [vmem:[%s3 + $0xe10] sm:$0xff]
    %v1519 = vld [vmem:[%s3 + $0xe18] sm:$0xff]
    %v1520 = vld [vmem:[%s3 + $0xe20] sm:$0xff]
    %v1521 = vld [vmem:[%s3 + $0xe28] sm:$0xff]
    %v1522 = vld [vmem:[%s3 + $0xe30] sm:$0xff]
    %v1523 = vld [vmem:[%s3 + $0xe38] sm:$0xff]
    %v1524 = vld [vmem:[%s3 + $0xe40] sm:$0xff]
    %v1525 = vld [vmem:[%s3 + $0xe48] sm:$0xff]
    %v1526 = vld [vmem:[%s3 + $0xe50] sm:$0xff]
    %v1527 = vld [vmem:[%s3 + $0xe58] sm:$0xff]
    %v1528 = vld [vmem:[%s3 + $0xe60] sm:$0xff]
    %v1529 = vld [vmem:[%s3 + $0xe68] sm:$0xff]
    %v1530 = vld [vmem:[%s3 + $0xe70] sm:$0xff]
    %v1531 = vld [vmem:[%s3 + $0xe78] sm:$0xff]
    %v1532 = vld [vmem:[%s3 + $0xe80] sm:$0xff]
    %v1533 = vld [vmem:[%s3 + $0xe88] sm:$0xff]
    %v1534 = vld [vmem:[%s3 + $0xe90] sm:$0xff]
    %v1535 = vld [vmem:[%s3 + $0xe98] sm:$0xff]
    %v1536 = vld [vmem:[%s3 + $0xea0] sm:$0xff]
    %v1537 = vld [vmem:[%s3 + $0xea8] sm:$0xff]
    %v1538 = vld [vmem:[%s3 + $0xeb0] sm:$0xff]
    %v1539 = vld [vmem:[%s3 + $0xeb8] sm:$0xff]
    %v1540 = vld [vmem:[%s3 + $0xec0] sm:$0xff]
    %v1541 = vld [vmem:[%s3 + $0xec8] sm:$0xff]
    %v1542 = vld [vmem:[%s3 + $0xed0] sm:$0xff]
    %v1543 = vld [vmem:[%s3 + $0xed8] sm:$0xff]
    %v1544 = vld [vmem:[%s3 + $0xee0] sm:$0xff]
    %v1545 = vld [vmem:[%s3 + $0xee8] sm:$0xff]
    %v1546 = vld [vmem:[%s3 + $0xef0] sm:$0xff]
    %v1547 = vld [vmem:[%s3 + $0xef8] sm:$0xff]
    %v1548 = vld [vmem:[%s3 + $0xf00] sm:$0xff]
    %v1549 = vld [vmem:[%s3 + $0xf08] sm:$0xff]
    %v1550 = vld [vmem:[%s3 + $0xf10] sm:$0xff]
    %v1551 = vld [vmem:[%s3 + $0xf18] sm:$0xff]
    %v1552 = vld [vmem:[%s3 + $0xf20] sm:$0xff]
    %v1553 = vld [vmem:[%s3 + $0xf28] sm:$0xff]
    %v1554 = vld [vmem:[%s3 + $0xf30] sm:$0xff]
    %v1555 = vld [vmem:[%s3 + $0xf38] sm:$0xff]
    %v1556 = vld [vmem:[%s3 + $0xf40] sm:$0xff]
    %v1557 = vld [vmem:[%s3 + $0xf48] sm:$0xff]
    %v1558 = vld [vmem:[%s3 + $0xf50] sm:$0xff]
    %v1559 = vld [vmem:[%s3 + $0xf58] sm:$0xff]
    %v1560 = vld [vmem:[%s3 + $0xf60] sm:$0xff]
    %v1561 = vld [vmem:[%s3 + $0xf68] sm:$0xff]
    %v1562 = vld [vmem:[%s3 + $0xf70] sm:$0xff]
    %v1563 = vld [vmem:[%s3 + $0xf78] sm:$0xff]
    %v1564 = vld [vmem:[%s3 + $0xf80] sm:$0xff]
    %v1565 = vld [vmem:[%s3 + $0xf88] sm:$0xff]
    %v1566 = vld [vmem:[%s3 + $0xf90] sm:$0xff]
    %v1567 = vld [vmem:[%s3 + $0xf98] sm:$0xff]
    %v1568 = vld [vmem:[%s3 + $0xfa0] sm:$0xff]
    %v1569 = vld [vmem:[%s3 + $0xfa8] sm:$0xff]
    %v1570 = vld [vmem:[%s3 + $0xfb0] sm:$0xff]
    %v1571 = vld [vmem:[%s3 + $0xfb8] sm:$0xff]
    %v1572 = vld [vmem:[%s3 + $0xfc0] sm:$0xff]
    %v1573 = vld [vmem:[%s3 + $0xfc8] sm:$0xff]
    %v1574 = vld [vmem:[%s3 + $0xfd0] sm:$0xff]
    %v1575 = vld [vmem:[%s3 + $0xfd8] sm:$0xff]
    %v1576 = vld [vmem:[%s3 + $0xfe0] sm:$0xff]
    %v1577 = vld [vmem:[%s3 + $0xfe8] sm:$0xff]
    %v1578 = vld [vmem:[%s3 + $0xff0] sm:$0xff]
    %v1579 = vld [vmem:[%s3 + $0xff8] sm:$0xff]
    %v1580 = vld [vmem:[%s4] sm:$0xff]
    %v1582 = vperm.slane %v1580, 0
    %v1583 = vperm.slane %v1580, 1
    %v1584 = vperm.slane %v1580, 2
    %v1585 = vperm.slane %v1580, 3
    %v1586 = vperm.slane %v1580, 4
    %v1587 = vperm.slane %v1580, 5
    %v1588 = vperm.slane %v1580, 6
    %v1589 = vperm.slane %v1580, 7
    %v2110 = vunpack.c.l.b16 %v1068
    %v2111 = vunpack.c.h.b16 %v1068
    %v2112 = vunpack.c.l.b16 %v1069
    %v2113 = vunpack.c.h.b16 %v1069
    %v2114 = vunpack.c.l.b16 %v1070
    %v2115 = vunpack.c.h.b16 %v1070
    %v2116 = vunpack.c.l.b16 %v1071
    %v2117 = vunpack.c.h.b16 %v1071
    %v2118 = vunpack.c.l.b16 %v1072
    %v2119 = vunpack.c.h.b16 %v1072
    %v2120 = vunpack.c.l.b16 %v1073
    %v2121 = vunpack.c.h.b16 %v1073
    %v2122 = vunpack.c.l.b16 %v1074
    %v2123 = vunpack.c.h.b16 %v1074
    %v2124 = vunpack.c.l.b16 %v1075
    %v2125 = vunpack.c.h.b16 %v1075
    %v2126 = vunpack.c.l.b16 %v1076
    %v2127 = vunpack.c.h.b16 %v1076
    %v2128 = vunpack.c.l.b16 %v1077
    %v2129 = vunpack.c.h.b16 %v1077
    %v2130 = vunpack.c.l.b16 %v1078
    %v2131 = vunpack.c.h.b16 %v1078
    %v2132 = vunpack.c.l.b16 %v1079
    %v2133 = vunpack.c.h.b16 %v1079
    %v2134 = vunpack.c.l.b16 %v1080
    %v2135 = vunpack.c.h.b16 %v1080
    %v2136 = vunpack.c.l.b16 %v1081
    %v2137 = vunpack.c.h.b16 %v1081
    %v2138 = vunpack.c.l.b16 %v1082
    %v2139 = vunpack.c.h.b16 %v1082
    %v2140 = vunpack.c.l.b16 %v1083
    %v2141 = vunpack.c.h.b16 %v1083
    %v2142 = vunpack.c.l.b16 %v1084
    %v2143 = vunpack.c.h.b16 %v1084
    %v2144 = vunpack.c.l.b16 %v1085
    %v2145 = vunpack.c.h.b16 %v1085
    %v2146 = vunpack.c.l.b16 %v1086
    %v2147 = vunpack.c.h.b16 %v1086
    %v2148 = vunpack.c.l.b16 %v1087
    %v2149 = vunpack.c.h.b16 %v1087
    %v2150 = vunpack.c.l.b16 %v1088
    %v2151 = vunpack.c.h.b16 %v1088
    %v2152 = vunpack.c.l.b16 %v1089
    %v2153 = vunpack.c.h.b16 %v1089
    %v2154 = vunpack.c.l.b16 %v1090
    %v2155 = vunpack.c.h.b16 %v1090
    %v2156 = vunpack.c.l.b16 %v1091
    %v2157 = vunpack.c.h.b16 %v1091
    %v2158 = vunpack.c.l.b16 %v1092
    %v2159 = vunpack.c.h.b16 %v1092
    %v2160 = vunpack.c.l.b16 %v1093
    %v2161 = vunpack.c.h.b16 %v1093
    %v2162 = vunpack.c.l.b16 %v1094
    %v2163 = vunpack.c.h.b16 %v1094
    %v2164 = vunpack.c.l.b16 %v1095
    %v2165 = vunpack.c.h.b16 %v1095
    %v2166 = vunpack.c.l.b16 %v1096
    %v2167 = vunpack.c.h.b16 %v1096
    %v2168 = vunpack.c.l.b16 %v1097
    %v2169 = vunpack.c.h.b16 %v1097
    %v2170 = vunpack.c.l.b16 %v1098
    %v2171 = vunpack.c.h.b16 %v1098
    %v2172 = vunpack.c.l.b16 %v1099
    %v2173 = vunpack.c.h.b16 %v1099
    %v2174 = vunpack.c.l.b16 %v1100
    %v2175 = vunpack.c.h.b16 %v1100
    %v2176 = vunpack.c.l.b16 %v1101
    %v2177 = vunpack.c.h.b16 %v1101
    %v2178 = vunpack.c.l.b16 %v1102
    %v2179 = vunpack.c.h.b16 %v1102
    %v2180 = vunpack.c.l.b16 %v1103
    %v2181 = vunpack.c.h.b16 %v1103
    %v2182 = vunpack.c.l.b16 %v1104
    %v2183 = vunpack.c.h.b16 %v1104
    %v2184 = vunpack.c.l.b16 %v1105
    %v2185 = vunpack.c.h.b16 %v1105
    %v2186 = vunpack.c.l.b16 %v1106
    %v2187 = vunpack.c.h.b16 %v1106
    %v2188 = vunpack.c.l.b16 %v1107
    %v2189 = vunpack.c.h.b16 %v1107
    %v2190 = vunpack.c.l.b16 %v1108
    %v2191 = vunpack.c.h.b16 %v1108
    %v2192 = vunpack.c.l.b16 %v1109
    %v2193 = vunpack.c.h.b16 %v1109
    %v2194 = vunpack.c.l.b16 %v1110
    %v2195 = vunpack.c.h.b16 %v1110
    %v2196 = vunpack.c.l.b16 %v1111
    %v2197 = vunpack.c.h.b16 %v1111
    %v2198 = vunpack.c.l.b16 %v1112
    %v2199 = vunpack.c.h.b16 %v1112
    %v2200 = vunpack.c.l.b16 %v1113
    %v2201 = vunpack.c.h.b16 %v1113
    %v2202 = vunpack.c.l.b16 %v1114
    %v2203 = vunpack.c.h.b16 %v1114
    %v2204 = vunpack.c.l.b16 %v1115
    %v2205 = vunpack.c.h.b16 %v1115
    %v2206 = vunpack.c.l.b16 %v1116
    %v2207 = vunpack.c.h.b16 %v1116
    %v2208 = vunpack.c.l.b16 %v1117
    %v2209 = vunpack.c.h.b16 %v1117
    %v2210 = vunpack.c.l.b16 %v1118
    %v2211 = vunpack.c.h.b16 %v1118
    %v2212 = vunpack.c.l.b16 %v1119
    %v2213 = vunpack.c.h.b16 %v1119
    %v2214 = vunpack.c.l.b16 %v1120
    %v2215 = vunpack.c.h.b16 %v1120
    %v2216 = vunpack.c.l.b16 %v1121
    %v2217 = vunpack.c.h.b16 %v1121
    %v2218 = vunpack.c.l.b16 %v1122
    %v2219 = vunpack.c.h.b16 %v1122
    %v2220 = vunpack.c.l.b16 %v1123
    %v2221 = vunpack.c.h.b16 %v1123
    %v2222 = vunpack.c.l.b16 %v1124
    %v2223 = vunpack.c.h.b16 %v1124
    %v2224 = vunpack.c.l.b16 %v1125
    %v2225 = vunpack.c.h.b16 %v1125
    %v2226 = vunpack.c.l.b16 %v1126
    %v2227 = vunpack.c.h.b16 %v1126
    %v2228 = vunpack.c.l.b16 %v1127
    %v2229 = vunpack.c.h.b16 %v1127
    %v2230 = vunpack.c.l.b16 %v1128
    %v2231 = vunpack.c.h.b16 %v1128
    %v2232 = vunpack.c.l.b16 %v1129
    %v2233 = vunpack.c.h.b16 %v1129
    %v2234 = vunpack.c.l.b16 %v1130
    %v2235 = vunpack.c.h.b16 %v1130
    %v2236 = vunpack.c.l.b16 %v1131
    %v2237 = vunpack.c.h.b16 %v1131
    %v2238 = vunpack.c.l.b16 %v1132
    %v2239 = vunpack.c.h.b16 %v1132
    %v2240 = vunpack.c.l.b16 %v1133
    %v2241 = vunpack.c.h.b16 %v1133
    %v2242 = vunpack.c.l.b16 %v1134
    %v2243 = vunpack.c.h.b16 %v1134
    %v2244 = vunpack.c.l.b16 %v1135
    %v2245 = vunpack.c.h.b16 %v1135
    %v2246 = vunpack.c.l.b16 %v1136
    %v2247 = vunpack.c.h.b16 %v1136
    %v2248 = vunpack.c.l.b16 %v1137
    %v2249 = vunpack.c.h.b16 %v1137
    %v2250 = vunpack.c.l.b16 %v1138
    %v2251 = vunpack.c.h.b16 %v1138
    %v2252 = vunpack.c.l.b16 %v1139
    %v2253 = vunpack.c.h.b16 %v1139
    %v2254 = vunpack.c.l.b16 %v1140
    %v2255 = vunpack.c.h.b16 %v1140
    %v2256 = vunpack.c.l.b16 %v1141
    %v2257 = vunpack.c.h.b16 %v1141
    %v2258 = vunpack.c.l.b16 %v1142
    %v2259 = vunpack.c.h.b16 %v1142
    %v2260 = vunpack.c.l.b16 %v1143
    %v2261 = vunpack.c.h.b16 %v1143
    %v2262 = vunpack.c.l.b16 %v1144
    %v2263 = vunpack.c.h.b16 %v1144
    %v2264 = vunpack.c.l.b16 %v1145
    %v2265 = vunpack.c.h.b16 %v1145
    %v2266 = vunpack.c.l.b16 %v1146
    %v2267 = vunpack.c.h.b16 %v1146
    %v2268 = vunpack.c.l.b16 %v1147
    %v2269 = vunpack.c.h.b16 %v1147
    %v2270 = vunpack.c.l.b16 %v1148
    %v2271 = vunpack.c.h.b16 %v1148
    %v2272 = vunpack.c.l.b16 %v1149
    %v2273 = vunpack.c.h.b16 %v1149
    %v2274 = vunpack.c.l.b16 %v1150
    %v2275 = vunpack.c.h.b16 %v1150
    %v2276 = vunpack.c.l.b16 %v1151
    %v2277 = vunpack.c.h.b16 %v1151
    %v2278 = vunpack.c.l.b16 %v1152
    %v2279 = vunpack.c.h.b16 %v1152
    %v2280 = vunpack.c.l.b16 %v1153
    %v2281 = vunpack.c.h.b16 %v1153
    %v2282 = vunpack.c.l.b16 %v1154
    %v2283 = vunpack.c.h.b16 %v1154
    %v2284 = vunpack.c.l.b16 %v1155
    %v2285 = vunpack.c.h.b16 %v1155
    %v2286 = vunpack.c.l.b16 %v1156
    %v2287 = vunpack.c.h.b16 %v1156
    %v2288 = vunpack.c.l.b16 %v1157
    %v2289 = vunpack.c.h.b16 %v1157
    %v2290 = vunpack.c.l.b16 %v1158
    %v2291 = vunpack.c.h.b16 %v1158
    %v2292 = vunpack.c.l.b16 %v1159
    %v2293 = vunpack.c.h.b16 %v1159
    %v2294 = vunpack.c.l.b16 %v1160
    %v2295 = vunpack.c.h.b16 %v1160
    %v2296 = vunpack.c.l.b16 %v1161
    %v2297 = vunpack.c.h.b16 %v1161
    %v2298 = vunpack.c.l.b16 %v1162
    %v2299 = vunpack.c.h.b16 %v1162
    %v2300 = vunpack.c.l.b16 %v1163
    %v2301 = vunpack.c.h.b16 %v1163
    %v2302 = vunpack.c.l.b16 %v1164
    %v2303 = vunpack.c.h.b16 %v1164
    %v2304 = vunpack.c.l.b16 %v1165
    %v2305 = vunpack.c.h.b16 %v1165
    %v2306 = vunpack.c.l.b16 %v1166
    %v2307 = vunpack.c.h.b16 %v1166
    %v2308 = vunpack.c.l.b16 %v1167
    %v2309 = vunpack.c.h.b16 %v1167
    %v2310 = vunpack.c.l.b16 %v1168
    %v2311 = vunpack.c.h.b16 %v1168
    %v2312 = vunpack.c.l.b16 %v1169
    %v2313 = vunpack.c.h.b16 %v1169
    %v2314 = vunpack.c.l.b16 %v1170
    %v2315 = vunpack.c.h.b16 %v1170
    %v2316 = vunpack.c.l.b16 %v1171
    %v2317 = vunpack.c.h.b16 %v1171
    %v2318 = vunpack.c.l.b16 %v1172
    %v2319 = vunpack.c.h.b16 %v1172
    %v2320 = vunpack.c.l.b16 %v1173
    %v2321 = vunpack.c.h.b16 %v1173
    %v2322 = vunpack.c.l.b16 %v1174
    %v2323 = vunpack.c.h.b16 %v1174
    %v2324 = vunpack.c.l.b16 %v1175
    %v2325 = vunpack.c.h.b16 %v1175
    %v2326 = vunpack.c.l.b16 %v1176
    %v2327 = vunpack.c.h.b16 %v1176
    %v2328 = vunpack.c.l.b16 %v1177
    %v2329 = vunpack.c.h.b16 %v1177
    %v2330 = vunpack.c.l.b16 %v1178
    %v2331 = vunpack.c.h.b16 %v1178
    %v2332 = vunpack.c.l.b16 %v1179
    %v2333 = vunpack.c.h.b16 %v1179
    %v2334 = vunpack.c.l.b16 %v1180
    %v2335 = vunpack.c.h.b16 %v1180
    %v2336 = vunpack.c.l.b16 %v1181
    %v2337 = vunpack.c.h.b16 %v1181
    %v2338 = vunpack.c.l.b16 %v1182
    %v2339 = vunpack.c.h.b16 %v1182
    %v2340 = vunpack.c.l.b16 %v1183
    %v2341 = vunpack.c.h.b16 %v1183
    %v2342 = vunpack.c.l.b16 %v1184
    %v2343 = vunpack.c.h.b16 %v1184
    %v2344 = vunpack.c.l.b16 %v1185
    %v2345 = vunpack.c.h.b16 %v1185
    %v2346 = vunpack.c.l.b16 %v1186
    %v2347 = vunpack.c.h.b16 %v1186
    %v2348 = vunpack.c.l.b16 %v1187
    %v2349 = vunpack.c.h.b16 %v1187
    %v2350 = vunpack.c.l.b16 %v1188
    %v2351 = vunpack.c.h.b16 %v1188
    %v2352 = vunpack.c.l.b16 %v1189
    %v2353 = vunpack.c.h.b16 %v1189
    %v2354 = vunpack.c.l.b16 %v1190
    %v2355 = vunpack.c.h.b16 %v1190
    %v2356 = vunpack.c.l.b16 %v1191
    %v2357 = vunpack.c.h.b16 %v1191
    %v2358 = vunpack.c.l.b16 %v1192
    %v2359 = vunpack.c.h.b16 %v1192
    %v2360 = vunpack.c.l.b16 %v1193
    %v2361 = vunpack.c.h.b16 %v1193
    %v2362 = vunpack.c.l.b16 %v1194
    %v2363 = vunpack.c.h.b16 %v1194
    %v2364 = vunpack.c.l.b16 %v1195
    %v2365 = vunpack.c.h.b16 %v1195
    %v2366 = vunpack.c.l.b16 %v1196
    %v2367 = vunpack.c.h.b16 %v1196
    %v2368 = vunpack.c.l.b16 %v1197
    %v2369 = vunpack.c.h.b16 %v1197
    %v2370 = vunpack.c.l.b16 %v1198
    %v2371 = vunpack.c.h.b16 %v1198
    %v2372 = vunpack.c.l.b16 %v1199
    %v2373 = vunpack.c.h.b16 %v1199
    %v2374 = vunpack.c.l.b16 %v1200
    %v2375 = vunpack.c.h.b16 %v1200
    %v2376 = vunpack.c.l.b16 %v1201
    %v2377 = vunpack.c.h.b16 %v1201
    %v2378 = vunpack.c.l.b16 %v1202
    %v2379 = vunpack.c.h.b16 %v1202
    %v2380 = vunpack.c.l.b16 %v1203
    %v2381 = vunpack.c.h.b16 %v1203
    %v2382 = vunpack.c.l.b16 %v1204
    %v2383 = vunpack.c.h.b16 %v1204
    %v2384 = vunpack.c.l.b16 %v1205
    %v2385 = vunpack.c.h.b16 %v1205
    %v2386 = vunpack.c.l.b16 %v1206
    %v2387 = vunpack.c.h.b16 %v1206
    %v2388 = vunpack.c.l.b16 %v1207
    %v2389 = vunpack.c.h.b16 %v1207
    %v2390 = vunpack.c.l.b16 %v1208
    %v2391 = vunpack.c.h.b16 %v1208
    %v2392 = vunpack.c.l.b16 %v1209
    %v2393 = vunpack.c.h.b16 %v1209
    %v2394 = vunpack.c.l.b16 %v1210
    %v2395 = vunpack.c.h.b16 %v1210
    %v2396 = vunpack.c.l.b16 %v1211
    %v2397 = vunpack.c.h.b16 %v1211
    %v2398 = vunpack.c.l.b16 %v1212
    %v2399 = vunpack.c.h.b16 %v1212
    %v2400 = vunpack.c.l.b16 %v1213
    %v2401 = vunpack.c.h.b16 %v1213
    %v2402 = vunpack.c.l.b16 %v1214
    %v2403 = vunpack.c.h.b16 %v1214
    %v2404 = vunpack.c.l.b16 %v1215
    %v2405 = vunpack.c.h.b16 %v1215
    %v2406 = vunpack.c.l.b16 %v1216
    %v2407 = vunpack.c.h.b16 %v1216
    %v2408 = vunpack.c.l.b16 %v1217
    %v2409 = vunpack.c.h.b16 %v1217
    %v2410 = vunpack.c.l.b16 %v1218
    %v2411 = vunpack.c.h.b16 %v1218
    %v2412 = vunpack.c.l.b16 %v1219
    %v2413 = vunpack.c.h.b16 %v1219
    %v2414 = vunpack.c.l.b16 %v1220
    %v2415 = vunpack.c.h.b16 %v1220
    %v2416 = vunpack.c.l.b16 %v1221
    %v2417 = vunpack.c.h.b16 %v1221
    %v2418 = vunpack.c.l.b16 %v1222
    %v2419 = vunpack.c.h.b16 %v1222
    %v2420 = vunpack.c.l.b16 %v1223
    %v2421 = vunpack.c.h.b16 %v1223
    %v2422 = vunpack.c.l.b16 %v1224
    %v2423 = vunpack.c.h.b16 %v1224
    %v2424 = vunpack.c.l.b16 %v1225
    %v2425 = vunpack.c.h.b16 %v1225
    %v2426 = vunpack.c.l.b16 %v1226
    %v2427 = vunpack.c.h.b16 %v1226
    %v2428 = vunpack.c.l.b16 %v1227
    %v2429 = vunpack.c.h.b16 %v1227
    %v2430 = vunpack.c.l.b16 %v1228
    %v2431 = vunpack.c.h.b16 %v1228
    %v2432 = vunpack.c.l.b16 %v1229
    %v2433 = vunpack.c.h.b16 %v1229
    %v2434 = vunpack.c.l.b16 %v1230
    %v2435 = vunpack.c.h.b16 %v1230
    %v2436 = vunpack.c.l.b16 %v1231
    %v2437 = vunpack.c.h.b16 %v1231
    %v2438 = vunpack.c.l.b16 %v1232
    %v2439 = vunpack.c.h.b16 %v1232
    %v2440 = vunpack.c.l.b16 %v1233
    %v2441 = vunpack.c.h.b16 %v1233
    %v2442 = vunpack.c.l.b16 %v1234
    %v2443 = vunpack.c.h.b16 %v1234
    %v2444 = vunpack.c.l.b16 %v1235
    %v2445 = vunpack.c.h.b16 %v1235
    %v2446 = vunpack.c.l.b16 %v1236
    %v2447 = vunpack.c.h.b16 %v1236
    %v2448 = vunpack.c.l.b16 %v1237
    %v2449 = vunpack.c.h.b16 %v1237
    %v2450 = vunpack.c.l.b16 %v1238
    %v2451 = vunpack.c.h.b16 %v1238
    %v2452 = vunpack.c.l.b16 %v1239
    %v2453 = vunpack.c.h.b16 %v1239
    %v2454 = vunpack.c.l.b16 %v1240
    %v2455 = vunpack.c.h.b16 %v1240
    %v2456 = vunpack.c.l.b16 %v1241
    %v2457 = vunpack.c.h.b16 %v1241
    %v2458 = vunpack.c.l.b16 %v1242
    %v2459 = vunpack.c.h.b16 %v1242
    %v2460 = vunpack.c.l.b16 %v1243
    %v2461 = vunpack.c.h.b16 %v1243
    %v2462 = vunpack.c.l.b16 %v1244
    %v2463 = vunpack.c.h.b16 %v1244
    %v2464 = vunpack.c.l.b16 %v1245
    %v2465 = vunpack.c.h.b16 %v1245
    %v2466 = vunpack.c.l.b16 %v1246
    %v2467 = vunpack.c.h.b16 %v1246
    %v2468 = vunpack.c.l.b16 %v1247
    %v2469 = vunpack.c.h.b16 %v1247
    %v2470 = vunpack.c.l.b16 %v1248
    %v2471 = vunpack.c.h.b16 %v1248
    %v2472 = vunpack.c.l.b16 %v1249
    %v2473 = vunpack.c.h.b16 %v1249
    %v2474 = vunpack.c.l.b16 %v1250
    %v2475 = vunpack.c.h.b16 %v1250
    %v2476 = vunpack.c.l.b16 %v1251
    %v2477 = vunpack.c.h.b16 %v1251
    %v2478 = vunpack.c.l.b16 %v1252
    %v2479 = vunpack.c.h.b16 %v1252
    %v2480 = vunpack.c.l.b16 %v1253
    %v2481 = vunpack.c.h.b16 %v1253
    %v2482 = vunpack.c.l.b16 %v1254
    %v2483 = vunpack.c.h.b16 %v1254
    %v2484 = vunpack.c.l.b16 %v1255
    %v2485 = vunpack.c.h.b16 %v1255
    %v2486 = vunpack.c.l.b16 %v1256
    %v2487 = vunpack.c.h.b16 %v1256
    %v2488 = vunpack.c.l.b16 %v1257
    %v2489 = vunpack.c.h.b16 %v1257
    %v2490 = vunpack.c.l.b16 %v1258
    %v2491 = vunpack.c.h.b16 %v1258
    %v2492 = vunpack.c.l.b16 %v1259
    %v2493 = vunpack.c.h.b16 %v1259
    %v2494 = vunpack.c.l.b16 %v1260
    %v2495 = vunpack.c.h.b16 %v1260
    %v2496 = vunpack.c.l.b16 %v1261
    %v2497 = vunpack.c.h.b16 %v1261
    %v2498 = vunpack.c.l.b16 %v1262
    %v2499 = vunpack.c.h.b16 %v1262
    %v2500 = vunpack.c.l.b16 %v1263
    %v2501 = vunpack.c.h.b16 %v1263
    %v2502 = vunpack.c.l.b16 %v1264
    %v2503 = vunpack.c.h.b16 %v1264
    %v2504 = vunpack.c.l.b16 %v1265
    %v2505 = vunpack.c.h.b16 %v1265
    %v2506 = vunpack.c.l.b16 %v1266
    %v2507 = vunpack.c.h.b16 %v1266
    %v2508 = vunpack.c.l.b16 %v1267
    %v2509 = vunpack.c.h.b16 %v1267
    %v2510 = vunpack.c.l.b16 %v1268
    %v2511 = vunpack.c.h.b16 %v1268
    %v2512 = vunpack.c.l.b16 %v1269
    %v2513 = vunpack.c.h.b16 %v1269
    %v2514 = vunpack.c.l.b16 %v1270
    %v2515 = vunpack.c.h.b16 %v1270
    %v2516 = vunpack.c.l.b16 %v1271
    %v2517 = vunpack.c.h.b16 %v1271
    %v2518 = vunpack.c.l.b16 %v1272
    %v2519 = vunpack.c.h.b16 %v1272
    %v2520 = vunpack.c.l.b16 %v1273
    %v2521 = vunpack.c.h.b16 %v1273
    %v2522 = vunpack.c.l.b16 %v1274
    %v2523 = vunpack.c.h.b16 %v1274
    %v2524 = vunpack.c.l.b16 %v1275
    %v2525 = vunpack.c.h.b16 %v1275
    %v2526 = vunpack.c.l.b16 %v1276
    %v2527 = vunpack.c.h.b16 %v1276
    %v2528 = vunpack.c.l.b16 %v1277
    %v2529 = vunpack.c.h.b16 %v1277
    %v2530 = vunpack.c.l.b16 %v1278
    %v2531 = vunpack.c.h.b16 %v1278
    %v2532 = vunpack.c.l.b16 %v1279
    %v2533 = vunpack.c.h.b16 %v1279
    %v2534 = vunpack.c.l.b16 %v1280
    %v2535 = vunpack.c.h.b16 %v1280
    %v2536 = vunpack.c.l.b16 %v1281
    %v2537 = vunpack.c.h.b16 %v1281
    %v2538 = vunpack.c.l.b16 %v1282
    %v2539 = vunpack.c.h.b16 %v1282
    %v2540 = vunpack.c.l.b16 %v1283
    %v2541 = vunpack.c.h.b16 %v1283
    %v2542 = vunpack.c.l.b16 %v1284
    %v2543 = vunpack.c.h.b16 %v1284
    %v2544 = vunpack.c.l.b16 %v1285
    %v2545 = vunpack.c.h.b16 %v1285
    %v2546 = vunpack.c.l.b16 %v1286
    %v2547 = vunpack.c.h.b16 %v1286
    %v2548 = vunpack.c.l.b16 %v1287
    %v2549 = vunpack.c.h.b16 %v1287
    %v2550 = vunpack.c.l.b16 %v1288
    %v2551 = vunpack.c.h.b16 %v1288
    %v2552 = vunpack.c.l.b16 %v1289
    %v2553 = vunpack.c.h.b16 %v1289
    %v2554 = vunpack.c.l.b16 %v1290
    %v2555 = vunpack.c.h.b16 %v1290
    %v2556 = vunpack.c.l.b16 %v1291
    %v2557 = vunpack.c.h.b16 %v1291
    %v2558 = vunpack.c.l.b16 %v1292
    %v2559 = vunpack.c.h.b16 %v1292
    %v2560 = vunpack.c.l.b16 %v1293
    %v2561 = vunpack.c.h.b16 %v1293
    %v2562 = vunpack.c.l.b16 %v1294
    %v2563 = vunpack.c.h.b16 %v1294
    %v2564 = vunpack.c.l.b16 %v1295
    %v2565 = vunpack.c.h.b16 %v1295
    %v2566 = vunpack.c.l.b16 %v1296
    %v2567 = vunpack.c.h.b16 %v1296
    %v2568 = vunpack.c.l.b16 %v1297
    %v2569 = vunpack.c.h.b16 %v1297
    %v2570 = vunpack.c.l.b16 %v1298
    %v2571 = vunpack.c.h.b16 %v1298
    %v2572 = vunpack.c.l.b16 %v1299
    %v2573 = vunpack.c.h.b16 %v1299
    %v2574 = vunpack.c.l.b16 %v1300
    %v2575 = vunpack.c.h.b16 %v1300
    %v2576 = vunpack.c.l.b16 %v1301
    %v2577 = vunpack.c.h.b16 %v1301
    %v2578 = vunpack.c.l.b16 %v1302
    %v2579 = vunpack.c.h.b16 %v1302
    %v2580 = vunpack.c.l.b16 %v1303
    %v2581 = vunpack.c.h.b16 %v1303
    %v2582 = vunpack.c.l.b16 %v1304
    %v2583 = vunpack.c.h.b16 %v1304
    %v2584 = vunpack.c.l.b16 %v1305
    %v2585 = vunpack.c.h.b16 %v1305
    %v2586 = vunpack.c.l.b16 %v1306
    %v2587 = vunpack.c.h.b16 %v1306
    %v2588 = vunpack.c.l.b16 %v1307
    %v2589 = vunpack.c.h.b16 %v1307
    %v2590 = vunpack.c.l.b16 %v1308
    %v2591 = vunpack.c.h.b16 %v1308
    %v2592 = vunpack.c.l.b16 %v1309
    %v2593 = vunpack.c.h.b16 %v1309
    %v2594 = vunpack.c.l.b16 %v1310
    %v2595 = vunpack.c.h.b16 %v1310
    %v2596 = vunpack.c.l.b16 %v1311
    %v2597 = vunpack.c.h.b16 %v1311
    %v2598 = vunpack.c.l.b16 %v1312
    %v2599 = vunpack.c.h.b16 %v1312
    %v2600 = vunpack.c.l.b16 %v1313
    %v2601 = vunpack.c.h.b16 %v1313
    %v2602 = vunpack.c.l.b16 %v1314
    %v2603 = vunpack.c.h.b16 %v1314
    %v2604 = vunpack.c.l.b16 %v1315
    %v2605 = vunpack.c.h.b16 %v1315
    %v2606 = vunpack.c.l.b16 %v1316
    %v2607 = vunpack.c.h.b16 %v1316
    %v2608 = vunpack.c.l.b16 %v1317
    %v2609 = vunpack.c.h.b16 %v1317
    %v2610 = vunpack.c.l.b16 %v1318
    %v2611 = vunpack.c.h.b16 %v1318
    %v2612 = vunpack.c.l.b16 %v1319
    %v2613 = vunpack.c.h.b16 %v1319
    %v2614 = vunpack.c.l.b16 %v1320
    %v2615 = vunpack.c.h.b16 %v1320
    %v2616 = vunpack.c.l.b16 %v1321
    %v2617 = vunpack.c.h.b16 %v1321
    %v2618 = vunpack.c.l.b16 %v1322
    %v2619 = vunpack.c.h.b16 %v1322
    %v2620 = vunpack.c.l.b16 %v1323
    %v2621 = vunpack.c.h.b16 %v1323
    %v2622 = vunpack.c.l.b16 %v1324
    %v2623 = vunpack.c.h.b16 %v1324
    %v2624 = vunpack.c.l.b16 %v1325
    %v2625 = vunpack.c.h.b16 %v1325
    %v2626 = vunpack.c.l.b16 %v1326
    %v2627 = vunpack.c.h.b16 %v1326
    %v2628 = vunpack.c.l.b16 %v1327
    %v2629 = vunpack.c.h.b16 %v1327
    %v2630 = vunpack.c.l.b16 %v1328
    %v2631 = vunpack.c.h.b16 %v1328
    %v2632 = vunpack.c.l.b16 %v1329
    %v2633 = vunpack.c.h.b16 %v1329
    %v2634 = vunpack.c.l.b16 %v1330
    %v2635 = vunpack.c.h.b16 %v1330
    %v2636 = vunpack.c.l.b16 %v1331
    %v2637 = vunpack.c.h.b16 %v1331
    %v2638 = vunpack.c.l.b16 %v1332
    %v2639 = vunpack.c.h.b16 %v1332
    %v2640 = vunpack.c.l.b16 %v1333
    %v2641 = vunpack.c.h.b16 %v1333
    %v2642 = vunpack.c.l.b16 %v1334
    %v2643 = vunpack.c.h.b16 %v1334
    %v2644 = vunpack.c.l.b16 %v1335
    %v2645 = vunpack.c.h.b16 %v1335
    %v2646 = vunpack.c.l.b16 %v1336
    %v2647 = vunpack.c.h.b16 %v1336
    %v2648 = vunpack.c.l.b16 %v1337
    %v2649 = vunpack.c.h.b16 %v1337
    %v2650 = vunpack.c.l.b16 %v1338
    %v2651 = vunpack.c.h.b16 %v1338
    %v2652 = vunpack.c.l.b16 %v1339
    %v2653 = vunpack.c.h.b16 %v1339
    %v2654 = vunpack.c.l.b16 %v1340
    %v2655 = vunpack.c.h.b16 %v1340
    %v2656 = vunpack.c.l.b16 %v1341
    %v2657 = vunpack.c.h.b16 %v1341
    %v2658 = vunpack.c.l.b16 %v1342
    %v2659 = vunpack.c.h.b16 %v1342
    %v2660 = vunpack.c.l.b16 %v1343
    %v2661 = vunpack.c.h.b16 %v1343
    %v2662 = vunpack.c.l.b16 %v1344
    %v2663 = vunpack.c.h.b16 %v1344
    %v2664 = vunpack.c.l.b16 %v1345
    %v2665 = vunpack.c.h.b16 %v1345
    %v2666 = vunpack.c.l.b16 %v1346
    %v2667 = vunpack.c.h.b16 %v1346
    %v2668 = vunpack.c.l.b16 %v1347
    %v2669 = vunpack.c.h.b16 %v1347
    %v2670 = vunpack.c.l.b16 %v1348
    %v2671 = vunpack.c.h.b16 %v1348
    %v2672 = vunpack.c.l.b16 %v1349
    %v2673 = vunpack.c.h.b16 %v1349
    %v2674 = vunpack.c.l.b16 %v1350
    %v2675 = vunpack.c.h.b16 %v1350
    %v2676 = vunpack.c.l.b16 %v1351
    %v2677 = vunpack.c.h.b16 %v1351
    %v2678 = vunpack.c.l.b16 %v1352
    %v2679 = vunpack.c.h.b16 %v1352
    %v2680 = vunpack.c.l.b16 %v1353
    %v2681 = vunpack.c.h.b16 %v1353
    %v2682 = vunpack.c.l.b16 %v1354
    %v2683 = vunpack.c.h.b16 %v1354
    %v2684 = vunpack.c.l.b16 %v1355
    %v2685 = vunpack.c.h.b16 %v1355
    %v2686 = vunpack.c.l.b16 %v1356
    %v2687 = vunpack.c.h.b16 %v1356
    %v2688 = vunpack.c.l.b16 %v1357
    %v2689 = vunpack.c.h.b16 %v1357
    %v2690 = vunpack.c.l.b16 %v1358
    %v2691 = vunpack.c.h.b16 %v1358
    %v2692 = vunpack.c.l.b16 %v1359
    %v2693 = vunpack.c.h.b16 %v1359
    %v2694 = vunpack.c.l.b16 %v1360
    %v2695 = vunpack.c.h.b16 %v1360
    %v2696 = vunpack.c.l.b16 %v1361
    %v2697 = vunpack.c.h.b16 %v1361
    %v2698 = vunpack.c.l.b16 %v1362
    %v2699 = vunpack.c.h.b16 %v1362
    %v2700 = vunpack.c.l.b16 %v1363
    %v2701 = vunpack.c.h.b16 %v1363
    %v2702 = vunpack.c.l.b16 %v1364
    %v2703 = vunpack.c.h.b16 %v1364
    %v2704 = vunpack.c.l.b16 %v1365
    %v2705 = vunpack.c.h.b16 %v1365
    %v2706 = vunpack.c.l.b16 %v1366
    %v2707 = vunpack.c.h.b16 %v1366
    %v2708 = vunpack.c.l.b16 %v1367
    %v2709 = vunpack.c.h.b16 %v1367
    %v2710 = vunpack.c.l.b16 %v1368
    %v2711 = vunpack.c.h.b16 %v1368
    %v2712 = vunpack.c.l.b16 %v1369
    %v2713 = vunpack.c.h.b16 %v1369
    %v2714 = vunpack.c.l.b16 %v1370
    %v2715 = vunpack.c.h.b16 %v1370
    %v2716 = vunpack.c.l.b16 %v1371
    %v2717 = vunpack.c.h.b16 %v1371
    %v2718 = vunpack.c.l.b16 %v1372
    %v2719 = vunpack.c.h.b16 %v1372
    %v2720 = vunpack.c.l.b16 %v1373
    %v2721 = vunpack.c.h.b16 %v1373
    %v2722 = vunpack.c.l.b16 %v1374
    %v2723 = vunpack.c.h.b16 %v1374
    %v2724 = vunpack.c.l.b16 %v1375
    %v2725 = vunpack.c.h.b16 %v1375
    %v2726 = vunpack.c.l.b16 %v1376
    %v2727 = vunpack.c.h.b16 %v1376
    %v2728 = vunpack.c.l.b16 %v1377
    %v2729 = vunpack.c.h.b16 %v1377
    %v2730 = vunpack.c.l.b16 %v1378
    %v2731 = vunpack.c.h.b16 %v1378
    %v2732 = vunpack.c.l.b16 %v1379
    %v2733 = vunpack.c.h.b16 %v1379
    %v2734 = vunpack.c.l.b16 %v1380
    %v2735 = vunpack.c.h.b16 %v1380
    %v2736 = vunpack.c.l.b16 %v1381
    %v2737 = vunpack.c.h.b16 %v1381
    %v2738 = vunpack.c.l.b16 %v1382
    %v2739 = vunpack.c.h.b16 %v1382
    %v2740 = vunpack.c.l.b16 %v1383
    %v2741 = vunpack.c.h.b16 %v1383
    %v2742 = vunpack.c.l.b16 %v1384
    %v2743 = vunpack.c.h.b16 %v1384
    %v2744 = vunpack.c.l.b16 %v1385
    %v2745 = vunpack.c.h.b16 %v1385
    %v2746 = vunpack.c.l.b16 %v1386
    %v2747 = vunpack.c.h.b16 %v1386
    %v2748 = vunpack.c.l.b16 %v1387
    %v2749 = vunpack.c.h.b16 %v1387
    %v2750 = vunpack.c.l.b16 %v1388
    %v2751 = vunpack.c.h.b16 %v1388
    %v2752 = vunpack.c.l.b16 %v1389
    %v2753 = vunpack.c.h.b16 %v1389
    %v2754 = vunpack.c.l.b16 %v1390
    %v2755 = vunpack.c.h.b16 %v1390
    %v2756 = vunpack.c.l.b16 %v1391
    %v2757 = vunpack.c.h.b16 %v1391
    %v2758 = vunpack.c.l.b16 %v1392
    %v2759 = vunpack.c.h.b16 %v1392
    %v2760 = vunpack.c.l.b16 %v1393
    %v2761 = vunpack.c.h.b16 %v1393
    %v2762 = vunpack.c.l.b16 %v1394
    %v2763 = vunpack.c.h.b16 %v1394
    %v2764 = vunpack.c.l.b16 %v1395
    %v2765 = vunpack.c.h.b16 %v1395
    %v2766 = vunpack.c.l.b16 %v1396
    %v2767 = vunpack.c.h.b16 %v1396
    %v2768 = vunpack.c.l.b16 %v1397
    %v2769 = vunpack.c.h.b16 %v1397
    %v2770 = vunpack.c.l.b16 %v1398
    %v2771 = vunpack.c.h.b16 %v1398
    %v2772 = vunpack.c.l.b16 %v1399
    %v2773 = vunpack.c.h.b16 %v1399
    %v2774 = vunpack.c.l.b16 %v1400
    %v2775 = vunpack.c.h.b16 %v1400
    %v2776 = vunpack.c.l.b16 %v1401
    %v2777 = vunpack.c.h.b16 %v1401
    %v2778 = vunpack.c.l.b16 %v1402
    %v2779 = vunpack.c.h.b16 %v1402
    %v2780 = vunpack.c.l.b16 %v1403
    %v2781 = vunpack.c.h.b16 %v1403
    %v2782 = vunpack.c.l.b16 %v1404
    %v2783 = vunpack.c.h.b16 %v1404
    %v2784 = vunpack.c.l.b16 %v1405
    %v2785 = vunpack.c.h.b16 %v1405
    %v2786 = vunpack.c.l.b16 %v1406
    %v2787 = vunpack.c.h.b16 %v1406
    %v2788 = vunpack.c.l.b16 %v1407
    %v2789 = vunpack.c.h.b16 %v1407
    %v2790 = vunpack.c.l.b16 %v1408
    %v2791 = vunpack.c.h.b16 %v1408
    %v2792 = vunpack.c.l.b16 %v1409
    %v2793 = vunpack.c.h.b16 %v1409
    %v2794 = vunpack.c.l.b16 %v1410
    %v2795 = vunpack.c.h.b16 %v1410
    %v2796 = vunpack.c.l.b16 %v1411
    %v2797 = vunpack.c.h.b16 %v1411
    %v2798 = vunpack.c.l.b16 %v1412
    %v2799 = vunpack.c.h.b16 %v1412
    %v2800 = vunpack.c.l.b16 %v1413
    %v2801 = vunpack.c.h.b16 %v1413
    %v2802 = vunpack.c.l.b16 %v1414
    %v2803 = vunpack.c.h.b16 %v1414
    %v2804 = vunpack.c.l.b16 %v1415
    %v2805 = vunpack.c.h.b16 %v1415
    %v2806 = vunpack.c.l.b16 %v1416
    %v2807 = vunpack.c.h.b16 %v1416
    %v2808 = vunpack.c.l.b16 %v1417
    %v2809 = vunpack.c.h.b16 %v1417
    %v2810 = vunpack.c.l.b16 %v1418
    %v2811 = vunpack.c.h.b16 %v1418
    %v2812 = vunpack.c.l.b16 %v1419
    %v2813 = vunpack.c.h.b16 %v1419
    %v2814 = vunpack.c.l.b16 %v1420
    %v2815 = vunpack.c.h.b16 %v1420
    %v2816 = vunpack.c.l.b16 %v1421
    %v2817 = vunpack.c.h.b16 %v1421
    %v2818 = vunpack.c.l.b16 %v1422
    %v2819 = vunpack.c.h.b16 %v1422
    %v2820 = vunpack.c.l.b16 %v1423
    %v2821 = vunpack.c.h.b16 %v1423
    %v2822 = vunpack.c.l.b16 %v1424
    %v2823 = vunpack.c.h.b16 %v1424
    %v2824 = vunpack.c.l.b16 %v1425
    %v2825 = vunpack.c.h.b16 %v1425
    %v2826 = vunpack.c.l.b16 %v1426
    %v2827 = vunpack.c.h.b16 %v1426
    %v2828 = vunpack.c.l.b16 %v1427
    %v2829 = vunpack.c.h.b16 %v1427
    %v2830 = vunpack.c.l.b16 %v1428
    %v2831 = vunpack.c.h.b16 %v1428
    %v2832 = vunpack.c.l.b16 %v1429
    %v2833 = vunpack.c.h.b16 %v1429
    %v2834 = vunpack.c.l.b16 %v1430
    %v2835 = vunpack.c.h.b16 %v1430
    %v2836 = vunpack.c.l.b16 %v1431
    %v2837 = vunpack.c.h.b16 %v1431
    %v2838 = vunpack.c.l.b16 %v1432
    %v2839 = vunpack.c.h.b16 %v1432
    %v2840 = vunpack.c.l.b16 %v1433
    %v2841 = vunpack.c.h.b16 %v1433
    %v2842 = vunpack.c.l.b16 %v1434
    %v2843 = vunpack.c.h.b16 %v1434
    %v2844 = vunpack.c.l.b16 %v1435
    %v2845 = vunpack.c.h.b16 %v1435
    %v2846 = vunpack.c.l.b16 %v1436
    %v2847 = vunpack.c.h.b16 %v1436
    %v2848 = vunpack.c.l.b16 %v1437
    %v2849 = vunpack.c.h.b16 %v1437
    %v2850 = vunpack.c.l.b16 %v1438
    %v2851 = vunpack.c.h.b16 %v1438
    %v2852 = vunpack.c.l.b16 %v1439
    %v2853 = vunpack.c.h.b16 %v1439
    %v2854 = vunpack.c.l.b16 %v1440
    %v2855 = vunpack.c.h.b16 %v1440
    %v2856 = vunpack.c.l.b16 %v1441
    %v2857 = vunpack.c.h.b16 %v1441
    %v2858 = vunpack.c.l.b16 %v1442
    %v2859 = vunpack.c.h.b16 %v1442
    %v2860 = vunpack.c.l.b16 %v1443
    %v2861 = vunpack.c.h.b16 %v1443
    %v2862 = vunpack.c.l.b16 %v1444
    %v2863 = vunpack.c.h.b16 %v1444
    %v2864 = vunpack.c.l.b16 %v1445
    %v2865 = vunpack.c.h.b16 %v1445
    %v2866 = vunpack.c.l.b16 %v1446
    %v2867 = vunpack.c.h.b16 %v1446
    %v2868 = vunpack.c.l.b16 %v1447
    %v2869 = vunpack.c.h.b16 %v1447
    %v2870 = vunpack.c.l.b16 %v1448
    %v2871 = vunpack.c.h.b16 %v1448
    %v2872 = vunpack.c.l.b16 %v1449
    %v2873 = vunpack.c.h.b16 %v1449
    %v2874 = vunpack.c.l.b16 %v1450
    %v2875 = vunpack.c.h.b16 %v1450
    %v2876 = vunpack.c.l.b16 %v1451
    %v2877 = vunpack.c.h.b16 %v1451
    %v2878 = vunpack.c.l.b16 %v1452
    %v2879 = vunpack.c.h.b16 %v1452
    %v2880 = vunpack.c.l.b16 %v1453
    %v2881 = vunpack.c.h.b16 %v1453
    %v2882 = vunpack.c.l.b16 %v1454
    %v2883 = vunpack.c.h.b16 %v1454
    %v2884 = vunpack.c.l.b16 %v1455
    %v2885 = vunpack.c.h.b16 %v1455
    %v2886 = vunpack.c.l.b16 %v1456
    %v2887 = vunpack.c.h.b16 %v1456
    %v2888 = vunpack.c.l.b16 %v1457
    %v2889 = vunpack.c.h.b16 %v1457
    %v2890 = vunpack.c.l.b16 %v1458
    %v2891 = vunpack.c.h.b16 %v1458
    %v2892 = vunpack.c.l.b16 %v1459
    %v2893 = vunpack.c.h.b16 %v1459
    %v2894 = vunpack.c.l.b16 %v1460
    %v2895 = vunpack.c.h.b16 %v1460
    %v2896 = vunpack.c.l.b16 %v1461
    %v2897 = vunpack.c.h.b16 %v1461
    %v2898 = vunpack.c.l.b16 %v1462
    %v2899 = vunpack.c.h.b16 %v1462
    %v2900 = vunpack.c.l.b16 %v1463
    %v2901 = vunpack.c.h.b16 %v1463
    %v2902 = vunpack.c.l.b16 %v1464
    %v2903 = vunpack.c.h.b16 %v1464
    %v2904 = vunpack.c.l.b16 %v1465
    %v2905 = vunpack.c.h.b16 %v1465
    %v2906 = vunpack.c.l.b16 %v1466
    %v2907 = vunpack.c.h.b16 %v1466
    %v2908 = vunpack.c.l.b16 %v1467
    %v2909 = vunpack.c.h.b16 %v1467
    %v2910 = vunpack.c.l.b16 %v1468
    %v2911 = vunpack.c.h.b16 %v1468
    %v2912 = vunpack.c.l.b16 %v1469
    %v2913 = vunpack.c.h.b16 %v1469
    %v2914 = vunpack.c.l.b16 %v1470
    %v2915 = vunpack.c.h.b16 %v1470
    %v2916 = vunpack.c.l.b16 %v1471
    %v2917 = vunpack.c.h.b16 %v1471
    %v2918 = vunpack.c.l.b16 %v1472
    %v2919 = vunpack.c.h.b16 %v1472
    %v2920 = vunpack.c.l.b16 %v1473
    %v2921 = vunpack.c.h.b16 %v1473
    %v2922 = vunpack.c.l.b16 %v1474
    %v2923 = vunpack.c.h.b16 %v1474
    %v2924 = vunpack.c.l.b16 %v1475
    %v2925 = vunpack.c.h.b16 %v1475
    %v2926 = vunpack.c.l.b16 %v1476
    %v2927 = vunpack.c.h.b16 %v1476
    %v2928 = vunpack.c.l.b16 %v1477
    %v2929 = vunpack.c.h.b16 %v1477
    %v2930 = vunpack.c.l.b16 %v1478
    %v2931 = vunpack.c.h.b16 %v1478
    %v2932 = vunpack.c.l.b16 %v1479
    %v2933 = vunpack.c.h.b16 %v1479
    %v2934 = vunpack.c.l.b16 %v1480
    %v2935 = vunpack.c.h.b16 %v1480
    %v2936 = vunpack.c.l.b16 %v1481
    %v2937 = vunpack.c.h.b16 %v1481
    %v2938 = vunpack.c.l.b16 %v1482
    %v2939 = vunpack.c.h.b16 %v1482
    %v2940 = vunpack.c.l.b16 %v1483
    %v2941 = vunpack.c.h.b16 %v1483
    %v2942 = vunpack.c.l.b16 %v1484
    %v2943 = vunpack.c.h.b16 %v1484
    %v2944 = vunpack.c.l.b16 %v1485
    %v2945 = vunpack.c.h.b16 %v1485
    %v2946 = vunpack.c.l.b16 %v1486
    %v2947 = vunpack.c.h.b16 %v1486
    %v2948 = vunpack.c.l.b16 %v1487
    %v2949 = vunpack.c.h.b16 %v1487
    %v2950 = vunpack.c.l.b16 %v1488
    %v2951 = vunpack.c.h.b16 %v1488
    %v2952 = vunpack.c.l.b16 %v1489
    %v2953 = vunpack.c.h.b16 %v1489
    %v2954 = vunpack.c.l.b16 %v1490
    %v2955 = vunpack.c.h.b16 %v1490
    %v2956 = vunpack.c.l.b16 %v1491
    %v2957 = vunpack.c.h.b16 %v1491
    %v2958 = vunpack.c.l.b16 %v1492
    %v2959 = vunpack.c.h.b16 %v1492
    %v2960 = vunpack.c.l.b16 %v1493
    %v2961 = vunpack.c.h.b16 %v1493
    %v2962 = vunpack.c.l.b16 %v1494
    %v2963 = vunpack.c.h.b16 %v1494
    %v2964 = vunpack.c.l.b16 %v1495
    %v2965 = vunpack.c.h.b16 %v1495
    %v2966 = vunpack.c.l.b16 %v1496
    %v2967 = vunpack.c.h.b16 %v1496
    %v2968 = vunpack.c.l.b16 %v1497
    %v2969 = vunpack.c.h.b16 %v1497
    %v2970 = vunpack.c.l.b16 %v1498
    %v2971 = vunpack.c.h.b16 %v1498
    %v2972 = vunpack.c.l.b16 %v1499
    %v2973 = vunpack.c.h.b16 %v1499
    %v2974 = vunpack.c.l.b16 %v1500
    %v2975 = vunpack.c.h.b16 %v1500
    %v2976 = vunpack.c.l.b16 %v1501
    %v2977 = vunpack.c.h.b16 %v1501
    %v2978 = vunpack.c.l.b16 %v1502
    %v2979 = vunpack.c.h.b16 %v1502
    %v2980 = vunpack.c.l.b16 %v1503
    %v2981 = vunpack.c.h.b16 %v1503
    %v2982 = vunpack.c.l.b16 %v1504
    %v2983 = vunpack.c.h.b16 %v1504
    %v2984 = vunpack.c.l.b16 %v1505
    %v2985 = vunpack.c.h.b16 %v1505
    %v2986 = vunpack.c.l.b16 %v1506
    %v2987 = vunpack.c.h.b16 %v1506
    %v2988 = vunpack.c.l.b16 %v1507
    %v2989 = vunpack.c.h.b16 %v1507
    %v2990 = vunpack.c.l.b16 %v1508
    %v2991 = vunpack.c.h.b16 %v1508
    %v2992 = vunpack.c.l.b16 %v1509
    %v2993 = vunpack.c.h.b16 %v1509
    %v2994 = vunpack.c.l.b16 %v1510
    %v2995 = vunpack.c.h.b16 %v1510
    %v2996 = vunpack.c.l.b16 %v1511
    %v2997 = vunpack.c.h.b16 %v1511
    %v2998 = vunpack.c.l.b16 %v1512
    %v2999 = vunpack.c.h.b16 %v1512
    %v3000 = vunpack.c.l.b16 %v1513
    %v3001 = vunpack.c.h.b16 %v1513
    %v3002 = vunpack.c.l.b16 %v1514
    %v3003 = vunpack.c.h.b16 %v1514
    %v3004 = vunpack.c.l.b16 %v1515
    %v3005 = vunpack.c.h.b16 %v1515
    %v3006 = vunpack.c.l.b16 %v1516
    %v3007 = vunpack.c.h.b16 %v1516
    %v3008 = vunpack.c.l.b16 %v1517
    %v3009 = vunpack.c.h.b16 %v1517
    %v3010 = vunpack.c.l.b16 %v1518
    %v3011 = vunpack.c.h.b16 %v1518
    %v3012 = vunpack.c.l.b16 %v1519
    %v3013 = vunpack.c.h.b16 %v1519
    %v3014 = vunpack.c.l.b16 %v1520
    %v3015 = vunpack.c.h.b16 %v1520
    %v3016 = vunpack.c.l.b16 %v1521
    %v3017 = vunpack.c.h.b16 %v1521
    %v3018 = vunpack.c.l.b16 %v1522
    %v3019 = vunpack.c.h.b16 %v1522
    %v3020 = vunpack.c.l.b16 %v1523
    %v3021 = vunpack.c.h.b16 %v1523
    %v3022 = vunpack.c.l.b16 %v1524
    %v3023 = vunpack.c.h.b16 %v1524
    %v3024 = vunpack.c.l.b16 %v1525
    %v3025 = vunpack.c.h.b16 %v1525
    %v3026 = vunpack.c.l.b16 %v1526
    %v3027 = vunpack.c.h.b16 %v1526
    %v3028 = vunpack.c.l.b16 %v1527
    %v3029 = vunpack.c.h.b16 %v1527
    %v3030 = vunpack.c.l.b16 %v1528
    %v3031 = vunpack.c.h.b16 %v1528
    %v3032 = vunpack.c.l.b16 %v1529
    %v3033 = vunpack.c.h.b16 %v1529
    %v3034 = vunpack.c.l.b16 %v1530
    %v3035 = vunpack.c.h.b16 %v1530
    %v3036 = vunpack.c.l.b16 %v1531
    %v3037 = vunpack.c.h.b16 %v1531
    %v3038 = vunpack.c.l.b16 %v1532
    %v3039 = vunpack.c.h.b16 %v1532
    %v3040 = vunpack.c.l.b16 %v1533
    %v3041 = vunpack.c.h.b16 %v1533
    %v3042 = vunpack.c.l.b16 %v1534
    %v3043 = vunpack.c.h.b16 %v1534
    %v3044 = vunpack.c.l.b16 %v1535
    %v3045 = vunpack.c.h.b16 %v1535
    %v3046 = vunpack.c.l.b16 %v1536
    %v3047 = vunpack.c.h.b16 %v1536
    %v3048 = vunpack.c.l.b16 %v1537
    %v3049 = vunpack.c.h.b16 %v1537
    %v3050 = vunpack.c.l.b16 %v1538
    %v3051 = vunpack.c.h.b16 %v1538
    %v3052 = vunpack.c.l.b16 %v1539
    %v3053 = vunpack.c.h.b16 %v1539
    %v3054 = vunpack.c.l.b16 %v1540
    %v3055 = vunpack.c.h.b16 %v1540
    %v3056 = vunpack.c.l.b16 %v1541
    %v3057 = vunpack.c.h.b16 %v1541
    %v3058 = vunpack.c.l.b16 %v1542
    %v3059 = vunpack.c.h.b16 %v1542
    %v3060 = vunpack.c.l.b16 %v1543
    %v3061 = vunpack.c.h.b16 %v1543
    %v3062 = vunpack.c.l.b16 %v1544
    %v3063 = vunpack.c.h.b16 %v1544
    %v3064 = vunpack.c.l.b16 %v1545
    %v3065 = vunpack.c.h.b16 %v1545
    %v3066 = vunpack.c.l.b16 %v1546
    %v3067 = vunpack.c.h.b16 %v1546
    %v3068 = vunpack.c.l.b16 %v1547
    %v3069 = vunpack.c.h.b16 %v1547
    %v3070 = vunpack.c.l.b16 %v1548
    %v3071 = vunpack.c.h.b16 %v1548
    %v3072 = vunpack.c.l.b16 %v1549
    %v3073 = vunpack.c.h.b16 %v1549
    %v3074 = vunpack.c.l.b16 %v1550
    %v3075 = vunpack.c.h.b16 %v1550
    %v3076 = vunpack.c.l.b16 %v1551
    %v3077 = vunpack.c.h.b16 %v1551
    %v3078 = vunpack.c.l.b16 %v1552
    %v3079 = vunpack.c.h.b16 %v1552
    %v3080 = vunpack.c.l.b16 %v1553
    %v3081 = vunpack.c.h.b16 %v1553
    %v3082 = vunpack.c.l.b16 %v1554
    %v3083 = vunpack.c.h.b16 %v1554
    %v3084 = vunpack.c.l.b16 %v1555
    %v3085 = vunpack.c.h.b16 %v1555
    %v3086 = vunpack.c.l.b16 %v1556
    %v3087 = vunpack.c.h.b16 %v1556
    %v3088 = vunpack.c.l.b16 %v1557
    %v3089 = vunpack.c.h.b16 %v1557
    %v3090 = vunpack.c.l.b16 %v1558
    %v3091 = vunpack.c.h.b16 %v1558
    %v3092 = vunpack.c.l.b16 %v1559
    %v3093 = vunpack.c.h.b16 %v1559
    %v3094 = vunpack.c.l.b16 %v1560
    %v3095 = vunpack.c.h.b16 %v1560
    %v3096 = vunpack.c.l.b16 %v1561
    %v3097 = vunpack.c.h.b16 %v1561
    %v3098 = vunpack.c.l.b16 %v1562
    %v3099 = vunpack.c.h.b16 %v1562
    %v3100 = vunpack.c.l.b16 %v1563
    %v3101 = vunpack.c.h.b16 %v1563
    %v3102 = vunpack.c.l.b16 %v1564
    %v3103 = vunpack.c.h.b16 %v1564
    %v3104 = vunpack.c.l.b16 %v1565
    %v3105 = vunpack.c.h.b16 %v1565
    %v3106 = vunpack.c.l.b16 %v1566
    %v3107 = vunpack.c.h.b16 %v1566
    %v3108 = vunpack.c.l.b16 %v1567
    %v3109 = vunpack.c.h.b16 %v1567
    %v3110 = vunpack.c.l.b16 %v1568
    %v3111 = vunpack.c.h.b16 %v1568
    %v3112 = vunpack.c.l.b16 %v1569
    %v3113 = vunpack.c.h.b16 %v1569
    %v3114 = vunpack.c.l.b16 %v1570
    %v3115 = vunpack.c.h.b16 %v1570
    %v3116 = vunpack.c.l.b16 %v1571
    %v3117 = vunpack.c.h.b16 %v1571
    %v3118 = vunpack.c.l.b16 %v1572
    %v3119 = vunpack.c.h.b16 %v1572
    %v3120 = vunpack.c.l.b16 %v1573
    %v3121 = vunpack.c.h.b16 %v1573
    %v3122 = vunpack.c.l.b16 %v1574
    %v3123 = vunpack.c.h.b16 %v1574
    %v3124 = vunpack.c.l.b16 %v1575
    %v3125 = vunpack.c.h.b16 %v1575
    %v3126 = vunpack.c.l.b16 %v1576
    %v3127 = vunpack.c.h.b16 %v1576
    %v3128 = vunpack.c.l.b16 %v1577
    %v3129 = vunpack.c.h.b16 %v1577
    %v3130 = vunpack.c.l.b16 %v1578
    %v3131 = vunpack.c.h.b16 %v1578
    %v3132 = vunpack.c.l.b16 %v1579
    %v3133 = vunpack.c.h.b16 %v1579
    %v3134 = vpack.c.b16 %v2118, %v2110
    %v3135 = vpack.c.b16 %v2119, %v2111
    %v3136 = vpack.c.b16 %v2120, %v2112
    %v3137 = vpack.c.b16 %v2121, %v2113
    %v3138 = vpack.c.b16 %v2122, %v2114
    %v3139 = vpack.c.b16 %v2123, %v2115
    %v3140 = vpack.c.b16 %v2124, %v2116
    %v3141 = vpack.c.b16 %v2125, %v2117
    %v3142 = vpack.c.b16 %v2134, %v2126
    %v3143 = vpack.c.b16 %v2135, %v2127
    %v3144 = vpack.c.b16 %v2136, %v2128
    %v3145 = vpack.c.b16 %v2137, %v2129
    %v3146 = vpack.c.b16 %v2138, %v2130
    %v3147 = vpack.c.b16 %v2139, %v2131
    %v3148 = vpack.c.b16 %v2140, %v2132
    %v3149 = vpack.c.b16 %v2141, %v2133
    %v3150 = vpack.c.b16 %v2150, %v2142
    %v3151 = vpack.c.b16 %v2151, %v2143
    %v3152 = vpack.c.b16 %v2152, %v2144
    %v3153 = vpack.c.b16 %v2153, %v2145
    %v3154 = vpack.c.b16 %v2154, %v2146
    %v3155 = vpack.c.b16 %v2155, %v2147
    %v3156 = vpack.c.b16 %v2156, %v2148
    %v3157 = vpack.c.b16 %v2157, %v2149
    %v3158 = vpack.c.b16 %v2166, %v2158
    %v3159 = vpack.c.b16 %v2167, %v2159
    %v3160 = vpack.c.b16 %v2168, %v2160
    %v3161 = vpack.c.b16 %v2169, %v2161
    %v3162 = vpack.c.b16 %v2170, %v2162
    %v3163 = vpack.c.b16 %v2171, %v2163
    %v3164 = vpack.c.b16 %v2172, %v2164
    %v3165 = vpack.c.b16 %v2173, %v2165
    %v3166 = vpack.c.b16 %v2182, %v2174
    %v3167 = vpack.c.b16 %v2183, %v2175
    %v3168 = vpack.c.b16 %v2184, %v2176
    %v3169 = vpack.c.b16 %v2185, %v2177
    %v3170 = vpack.c.b16 %v2186, %v2178
    %v3171 = vpack.c.b16 %v2187, %v2179
    %v3172 = vpack.c.b16 %v2188, %v2180
    %v3173 = vpack.c.b16 %v2189, %v2181
    %v3174 = vpack.c.b16 %v2198, %v2190
    %v3175 = vpack.c.b16 %v2199, %v2191
    %v3176 = vpack.c.b16 %v2200, %v2192
    %v3177 = vpack.c.b16 %v2201, %v2193
    %v3178 = vpack.c.b16 %v2202, %v2194
    %v3179 = vpack.c.b16 %v2203, %v2195
    %v3180 = vpack.c.b16 %v2204, %v2196
    %v3181 = vpack.c.b16 %v2205, %v2197
    %v3182 = vpack.c.b16 %v2214, %v2206
    %v3183 = vpack.c.b16 %v2215, %v2207
    %v3184 = vpack.c.b16 %v2216, %v2208
    %v3185 = vpack.c.b16 %v2217, %v2209
    %v3186 = vpack.c.b16 %v2218, %v2210
    %v3187 = vpack.c.b16 %v2219, %v2211
    %v3188 = vpack.c.b16 %v2220, %v2212
    %v3189 = vpack.c.b16 %v2221, %v2213
    %v3190 = vpack.c.b16 %v2230, %v2222
    %v3191 = vpack.c.b16 %v2231, %v2223
    %v3192 = vpack.c.b16 %v2232, %v2224
    %v3193 = vpack.c.b16 %v2233, %v2225
    %v3194 = vpack.c.b16 %v2234, %v2226
    %v3195 = vpack.c.b16 %v2235, %v2227
    %v3196 = vpack.c.b16 %v2236, %v2228
    %v3197 = vpack.c.b16 %v2237, %v2229
    %v3198 = vpack.c.b16 %v2246, %v2238
    %v3199 = vpack.c.b16 %v2247, %v2239
    %v3200 = vpack.c.b16 %v2248, %v2240
    %v3201 = vpack.c.b16 %v2249, %v2241
    %v3202 = vpack.c.b16 %v2250, %v2242
    %v3203 = vpack.c.b16 %v2251, %v2243
    %v3204 = vpack.c.b16 %v2252, %v2244
    %v3205 = vpack.c.b16 %v2253, %v2245
    %v3206 = vpack.c.b16 %v2262, %v2254
    %v3207 = vpack.c.b16 %v2263, %v2255
    %v3208 = vpack.c.b16 %v2264, %v2256
    %v3209 = vpack.c.b16 %v2265, %v2257
    %v3210 = vpack.c.b16 %v2266, %v2258
    %v3211 = vpack.c.b16 %v2267, %v2259
    %v3212 = vpack.c.b16 %v2268, %v2260
    %v3213 = vpack.c.b16 %v2269, %v2261
    %v3214 = vpack.c.b16 %v2278, %v2270
    %v3215 = vpack.c.b16 %v2279, %v2271
    %v3216 = vpack.c.b16 %v2280, %v2272
    %v3217 = vpack.c.b16 %v2281, %v2273
    %v3218 = vpack.c.b16 %v2282, %v2274
    %v3219 = vpack.c.b16 %v2283, %v2275
    %v3220 = vpack.c.b16 %v2284, %v2276
    %v3221 = vpack.c.b16 %v2285, %v2277
    %v3222 = vpack.c.b16 %v2294, %v2286
    %v3223 = vpack.c.b16 %v2295, %v2287
    %v3224 = vpack.c.b16 %v2296, %v2288
    %v3225 = vpack.c.b16 %v2297, %v2289
    %v3226 = vpack.c.b16 %v2298, %v2290
    %v3227 = vpack.c.b16 %v2299, %v2291
    %v3228 = vpack.c.b16 %v2300, %v2292
    %v3229 = vpack.c.b16 %v2301, %v2293
    %v3230 = vpack.c.b16 %v2310, %v2302
    %v3231 = vpack.c.b16 %v2311, %v2303
    %v3232 = vpack.c.b16 %v2312, %v2304
    %v3233 = vpack.c.b16 %v2313, %v2305
    %v3234 = vpack.c.b16 %v2314, %v2306
    %v3235 = vpack.c.b16 %v2315, %v2307
    %v3236 = vpack.c.b16 %v2316, %v2308
    %v3237 = vpack.c.b16 %v2317, %v2309
    %v3238 = vpack.c.b16 %v2326, %v2318
    %v3239 = vpack.c.b16 %v2327, %v2319
    %v3240 = vpack.c.b16 %v2328, %v2320
    %v3241 = vpack.c.b16 %v2329, %v2321
    %v3242 = vpack.c.b16 %v2330, %v2322
    %v3243 = vpack.c.b16 %v2331, %v2323
    %v3244 = vpack.c.b16 %v2332, %v2324
    %v3245 = vpack.c.b16 %v2333, %v2325
    %v3246 = vpack.c.b16 %v2342, %v2334
    %v3247 = vpack.c.b16 %v2343, %v2335
    %v3248 = vpack.c.b16 %v2344, %v2336
    %v3249 = vpack.c.b16 %v2345, %v2337
    %v3250 = vpack.c.b16 %v2346, %v2338
    %v3251 = vpack.c.b16 %v2347, %v2339
    %v3252 = vpack.c.b16 %v2348, %v2340
    %v3253 = vpack.c.b16 %v2349, %v2341
    %v3254 = vpack.c.b16 %v2358, %v2350
    %v3255 = vpack.c.b16 %v2359, %v2351
    %v3256 = vpack.c.b16 %v2360, %v2352
    %v3257 = vpack.c.b16 %v2361, %v2353
    %v3258 = vpack.c.b16 %v2362, %v2354
    %v3259 = vpack.c.b16 %v2363, %v2355
    %v3260 = vpack.c.b16 %v2364, %v2356
    %v3261 = vpack.c.b16 %v2365, %v2357
    %v3262 = vpack.c.b16 %v2374, %v2366
    %v3263 = vpack.c.b16 %v2375, %v2367
    %v3264 = vpack.c.b16 %v2376, %v2368
    %v3265 = vpack.c.b16 %v2377, %v2369
    %v3266 = vpack.c.b16 %v2378, %v2370
    %v3267 = vpack.c.b16 %v2379, %v2371
    %v3268 = vpack.c.b16 %v2380, %v2372
    %v3269 = vpack.c.b16 %v2381, %v2373
    %v3270 = vpack.c.b16 %v2390, %v2382
    %v3271 = vpack.c.b16 %v2391, %v2383
    %v3272 = vpack.c.b16 %v2392, %v2384
    %v3273 = vpack.c.b16 %v2393, %v2385
    %v3274 = vpack.c.b16 %v2394, %v2386
    %v3275 = vpack.c.b16 %v2395, %v2387
    %v3276 = vpack.c.b16 %v2396, %v2388
    %v3277 = vpack.c.b16 %v2397, %v2389
    %v3278 = vpack.c.b16 %v2406, %v2398
    %v3279 = vpack.c.b16 %v2407, %v2399
    %v3280 = vpack.c.b16 %v2408, %v2400
    %v3281 = vpack.c.b16 %v2409, %v2401
    %v3282 = vpack.c.b16 %v2410, %v2402
    %v3283 = vpack.c.b16 %v2411, %v2403
    %v3284 = vpack.c.b16 %v2412, %v2404
    %v3285 = vpack.c.b16 %v2413, %v2405
    %v3286 = vpack.c.b16 %v2422, %v2414
    %v3287 = vpack.c.b16 %v2423, %v2415
    %v3288 = vpack.c.b16 %v2424, %v2416
    %v3289 = vpack.c.b16 %v2425, %v2417
    %v3290 = vpack.c.b16 %v2426, %v2418
    %v3291 = vpack.c.b16 %v2427, %v2419
    %v3292 = vpack.c.b16 %v2428, %v2420
    %v3293 = vpack.c.b16 %v2429, %v2421
    %v3294 = vpack.c.b16 %v2438, %v2430
    %v3295 = vpack.c.b16 %v2439, %v2431
    %v3296 = vpack.c.b16 %v2440, %v2432
    %v3297 = vpack.c.b16 %v2441, %v2433
    %v3298 = vpack.c.b16 %v2442, %v2434
    %v3299 = vpack.c.b16 %v2443, %v2435
    %v3300 = vpack.c.b16 %v2444, %v2436
    %v3301 = vpack.c.b16 %v2445, %v2437
    %v3302 = vpack.c.b16 %v2454, %v2446
    %v3303 = vpack.c.b16 %v2455, %v2447
    %v3304 = vpack.c.b16 %v2456, %v2448
    %v3305 = vpack.c.b16 %v2457, %v2449
    %v3306 = vpack.c.b16 %v2458, %v2450
    %v3307 = vpack.c.b16 %v2459, %v2451
    %v3308 = vpack.c.b16 %v2460, %v2452
    %v3309 = vpack.c.b16 %v2461, %v2453
    %v3310 = vpack.c.b16 %v2470, %v2462
    %v3311 = vpack.c.b16 %v2471, %v2463
    %v3312 = vpack.c.b16 %v2472, %v2464
    %v3313 = vpack.c.b16 %v2473, %v2465
    %v3314 = vpack.c.b16 %v2474, %v2466
    %v3315 = vpack.c.b16 %v2475, %v2467
    %v3316 = vpack.c.b16 %v2476, %v2468
    %v3317 = vpack.c.b16 %v2477, %v2469
    %v3318 = vpack.c.b16 %v2486, %v2478
    %v3319 = vpack.c.b16 %v2487, %v2479
    %v3320 = vpack.c.b16 %v2488, %v2480
    %v3321 = vpack.c.b16 %v2489, %v2481
    %v3322 = vpack.c.b16 %v2490, %v2482
    %v3323 = vpack.c.b16 %v2491, %v2483
    %v3324 = vpack.c.b16 %v2492, %v2484
    %v3325 = vpack.c.b16 %v2493, %v2485
    %v3326 = vpack.c.b16 %v2502, %v2494
    %v3327 = vpack.c.b16 %v2503, %v2495
    %v3328 = vpack.c.b16 %v2504, %v2496
    %v3329 = vpack.c.b16 %v2505, %v2497
    %v3330 = vpack.c.b16 %v2506, %v2498
    %v3331 = vpack.c.b16 %v2507, %v2499
    %v3332 = vpack.c.b16 %v2508, %v2500
    %v3333 = vpack.c.b16 %v2509, %v2501
    %v3334 = vpack.c.b16 %v2518, %v2510
    %v3335 = vpack.c.b16 %v2519, %v2511
    %v3336 = vpack.c.b16 %v2520, %v2512
    %v3337 = vpack.c.b16 %v2521, %v2513
    %v3338 = vpack.c.b16 %v2522, %v2514
    %v3339 = vpack.c.b16 %v2523, %v2515
    %v3340 = vpack.c.b16 %v2524, %v2516
    %v3341 = vpack.c.b16 %v2525, %v2517
    %v3342 = vpack.c.b16 %v2534, %v2526
    %v3343 = vpack.c.b16 %v2535, %v2527
    %v3344 = vpack.c.b16 %v2536, %v2528
    %v3345 = vpack.c.b16 %v2537, %v2529
    %v3346 = vpack.c.b16 %v2538, %v2530
    %v3347 = vpack.c.b16 %v2539, %v2531
    %v3348 = vpack.c.b16 %v2540, %v2532
    %v3349 = vpack.c.b16 %v2541, %v2533
    %v3350 = vpack.c.b16 %v2550, %v2542
    %v3351 = vpack.c.b16 %v2551, %v2543
    %v3352 = vpack.c.b16 %v2552, %v2544
    %v3353 = vpack.c.b16 %v2553, %v2545
    %v3354 = vpack.c.b16 %v2554, %v2546
    %v3355 = vpack.c.b16 %v2555, %v2547
    %v3356 = vpack.c.b16 %v2556, %v2548
    %v3357 = vpack.c.b16 %v2557, %v2549
    %v3358 = vpack.c.b16 %v2566, %v2558
    %v3359 = vpack.c.b16 %v2567, %v2559
    %v3360 = vpack.c.b16 %v2568, %v2560
    %v3361 = vpack.c.b16 %v2569, %v2561
    %v3362 = vpack.c.b16 %v2570, %v2562
    %v3363 = vpack.c.b16 %v2571, %v2563
    %v3364 = vpack.c.b16 %v2572, %v2564
    %v3365 = vpack.c.b16 %v2573, %v2565
    %v3366 = vpack.c.b16 %v2582, %v2574
    %v3367 = vpack.c.b16 %v2583, %v2575
    %v3368 = vpack.c.b16 %v2584, %v2576
    %v3369 = vpack.c.b16 %v2585, %v2577
    %v3370 = vpack.c.b16 %v2586, %v2578
    %v3371 = vpack.c.b16 %v2587, %v2579
    %v3372 = vpack.c.b16 %v2588, %v2580
    %v3373 = vpack.c.b16 %v2589, %v2581
    %v3374 = vpack.c.b16 %v2598, %v2590
    %v3375 = vpack.c.b16 %v2599, %v2591
    %v3376 = vpack.c.b16 %v2600, %v2592
    %v3377 = vpack.c.b16 %v2601, %v2593
    %v3378 = vpack.c.b16 %v2602, %v2594
    %v3379 = vpack.c.b16 %v2603, %v2595
    %v3380 = vpack.c.b16 %v2604, %v2596
    %v3381 = vpack.c.b16 %v2605, %v2597
    %v3382 = vpack.c.b16 %v2614, %v2606
    %v3383 = vpack.c.b16 %v2615, %v2607
    %v3384 = vpack.c.b16 %v2616, %v2608
    %v3385 = vpack.c.b16 %v2617, %v2609
    %v3386 = vpack.c.b16 %v2618, %v2610
    %v3387 = vpack.c.b16 %v2619, %v2611
    %v3388 = vpack.c.b16 %v2620, %v2612
    %v3389 = vpack.c.b16 %v2621, %v2613
    %v3390 = vpack.c.b16 %v2630, %v2622
    %v3391 = vpack.c.b16 %v2631, %v2623
    %v3392 = vpack.c.b16 %v2632, %v2624
    %v3393 = vpack.c.b16 %v2633, %v2625
    %v3394 = vpack.c.b16 %v2634, %v2626
    %v3395 = vpack.c.b16 %v2635, %v2627
    %v3396 = vpack.c.b16 %v2636, %v2628
    %v3397 = vpack.c.b16 %v2637, %v2629
    %v3398 = vpack.c.b16 %v2646, %v2638
    %v3399 = vpack.c.b16 %v2647, %v2639
    %v3400 = vpack.c.b16 %v2648, %v2640
    %v3401 = vpack.c.b16 %v2649, %v2641
    %v3402 = vpack.c.b16 %v2650, %v2642
    %v3403 = vpack.c.b16 %v2651, %v2643
    %v3404 = vpack.c.b16 %v2652, %v2644
    %v3405 = vpack.c.b16 %v2653, %v2645
    %v3406 = vpack.c.b16 %v2662, %v2654
    %v3407 = vpack.c.b16 %v2663, %v2655
    %v3408 = vpack.c.b16 %v2664, %v2656
    %v3409 = vpack.c.b16 %v2665, %v2657
    %v3410 = vpack.c.b16 %v2666, %v2658
    %v3411 = vpack.c.b16 %v2667, %v2659
    %v3412 = vpack.c.b16 %v2668, %v2660
    %v3413 = vpack.c.b16 %v2669, %v2661
    %v3414 = vpack.c.b16 %v2678, %v2670
    %v3415 = vpack.c.b16 %v2679, %v2671
    %v3416 = vpack.c.b16 %v2680, %v2672
    %v3417 = vpack.c.b16 %v2681, %v2673
    %v3418 = vpack.c.b16 %v2682, %v2674
    %v3419 = vpack.c.b16 %v2683, %v2675
    %v3420 = vpack.c.b16 %v2684, %v2676
    %v3421 = vpack.c.b16 %v2685, %v2677
    %v3422 = vpack.c.b16 %v2694, %v2686
    %v3423 = vpack.c.b16 %v2695, %v2687
    %v3424 = vpack.c.b16 %v2696, %v2688
    %v3425 = vpack.c.b16 %v2697, %v2689
    %v3426 = vpack.c.b16 %v2698, %v2690
    %v3427 = vpack.c.b16 %v2699, %v2691
    %v3428 = vpack.c.b16 %v2700, %v2692
    %v3429 = vpack.c.b16 %v2701, %v2693
    %v3430 = vpack.c.b16 %v2710, %v2702
    %v3431 = vpack.c.b16 %v2711, %v2703
    %v3432 = vpack.c.b16 %v2712, %v2704
    %v3433 = vpack.c.b16 %v2713, %v2705
    %v3434 = vpack.c.b16 %v2714, %v2706
    %v3435 = vpack.c.b16 %v2715, %v2707
    %v3436 = vpack.c.b16 %v2716, %v2708
    %v3437 = vpack.c.b16 %v2717, %v2709
    %v3438 = vpack.c.b16 %v2726, %v2718
    %v3439 = vpack.c.b16 %v2727, %v2719
    %v3440 = vpack.c.b16 %v2728, %v2720
    %v3441 = vpack.c.b16 %v2729, %v2721
    %v3442 = vpack.c.b16 %v2730, %v2722
    %v3443 = vpack.c.b16 %v2731, %v2723
    %v3444 = vpack.c.b16 %v2732, %v2724
    %v3445 = vpack.c.b16 %v2733, %v2725
    %v3446 = vpack.c.b16 %v2742, %v2734
    %v3447 = vpack.c.b16 %v2743, %v2735
    %v3448 = vpack.c.b16 %v2744, %v2736
    %v3449 = vpack.c.b16 %v2745, %v2737
    %v3450 = vpack.c.b16 %v2746, %v2738
    %v3451 = vpack.c.b16 %v2747, %v2739
    %v3452 = vpack.c.b16 %v2748, %v2740
    %v3453 = vpack.c.b16 %v2749, %v2741
    %v3454 = vpack.c.b16 %v2758, %v2750
    %v3455 = vpack.c.b16 %v2759, %v2751
    %v3456 = vpack.c.b16 %v2760, %v2752
    %v3457 = vpack.c.b16 %v2761, %v2753
    %v3458 = vpack.c.b16 %v2762, %v2754
    %v3459 = vpack.c.b16 %v2763, %v2755
    %v3460 = vpack.c.b16 %v2764, %v2756
    %v3461 = vpack.c.b16 %v2765, %v2757
    %v3462 = vpack.c.b16 %v2774, %v2766
    %v3463 = vpack.c.b16 %v2775, %v2767
    %v3464 = vpack.c.b16 %v2776, %v2768
    %v3465 = vpack.c.b16 %v2777, %v2769
    %v3466 = vpack.c.b16 %v2778, %v2770
    %v3467 = vpack.c.b16 %v2779, %v2771
    %v3468 = vpack.c.b16 %v2780, %v2772
    %v3469 = vpack.c.b16 %v2781, %v2773
    %v3470 = vpack.c.b16 %v2790, %v2782
    %v3471 = vpack.c.b16 %v2791, %v2783
    %v3472 = vpack.c.b16 %v2792, %v2784
    %v3473 = vpack.c.b16 %v2793, %v2785
    %v3474 = vpack.c.b16 %v2794, %v2786
    %v3475 = vpack.c.b16 %v2795, %v2787
    %v3476 = vpack.c.b16 %v2796, %v2788
    %v3477 = vpack.c.b16 %v2797, %v2789
    %v3478 = vpack.c.b16 %v2806, %v2798
    %v3479 = vpack.c.b16 %v2807, %v2799
    %v3480 = vpack.c.b16 %v2808, %v2800
    %v3481 = vpack.c.b16 %v2809, %v2801
    %v3482 = vpack.c.b16 %v2810, %v2802
    %v3483 = vpack.c.b16 %v2811, %v2803
    %v3484 = vpack.c.b16 %v2812, %v2804
    %v3485 = vpack.c.b16 %v2813, %v2805
    %v3486 = vpack.c.b16 %v2822, %v2814
    %v3487 = vpack.c.b16 %v2823, %v2815
    %v3488 = vpack.c.b16 %v2824, %v2816
    %v3489 = vpack.c.b16 %v2825, %v2817
    %v3490 = vpack.c.b16 %v2826, %v2818
    %v3491 = vpack.c.b16 %v2827, %v2819
    %v3492 = vpack.c.b16 %v2828, %v2820
    %v3493 = vpack.c.b16 %v2829, %v2821
    %v3494 = vpack.c.b16 %v2838, %v2830
    %v3495 = vpack.c.b16 %v2839, %v2831
    %v3496 = vpack.c.b16 %v2840, %v2832
    %v3497 = vpack.c.b16 %v2841, %v2833
    %v3498 = vpack.c.b16 %v2842, %v2834
    %v3499 = vpack.c.b16 %v2843, %v2835
    %v3500 = vpack.c.b16 %v2844, %v2836
    %v3501 = vpack.c.b16 %v2845, %v2837
    %v3502 = vpack.c.b16 %v2854, %v2846
    %v3503 = vpack.c.b16 %v2855, %v2847
    %v3504 = vpack.c.b16 %v2856, %v2848
    %v3505 = vpack.c.b16 %v2857, %v2849
    %v3506 = vpack.c.b16 %v2858, %v2850
    %v3507 = vpack.c.b16 %v2859, %v2851
    %v3508 = vpack.c.b16 %v2860, %v2852
    %v3509 = vpack.c.b16 %v2861, %v2853
    %v3510 = vpack.c.b16 %v2870, %v2862
    %v3511 = vpack.c.b16 %v2871, %v2863
    %v3512 = vpack.c.b16 %v2872, %v2864
    %v3513 = vpack.c.b16 %v2873, %v2865
    %v3514 = vpack.c.b16 %v2874, %v2866
    %v3515 = vpack.c.b16 %v2875, %v2867
    %v3516 = vpack.c.b16 %v2876, %v2868
    %v3517 = vpack.c.b16 %v2877, %v2869
    %v3518 = vpack.c.b16 %v2886, %v2878
    %v3519 = vpack.c.b16 %v2887, %v2879
    %v3520 = vpack.c.b16 %v2888, %v2880
    %v3521 = vpack.c.b16 %v2889, %v2881
    %v3522 = vpack.c.b16 %v2890, %v2882
    %v3523 = vpack.c.b16 %v2891, %v2883
    %v3524 = vpack.c.b16 %v2892, %v2884
    %v3525 = vpack.c.b16 %v2893, %v2885
    %v3526 = vpack.c.b16 %v2902, %v2894
    %v3527 = vpack.c.b16 %v2903, %v2895
    %v3528 = vpack.c.b16 %v2904, %v2896
    %v3529 = vpack.c.b16 %v2905, %v2897
    %v3530 = vpack.c.b16 %v2906, %v2898
    %v3531 = vpack.c.b16 %v2907, %v2899
    %v3532 = vpack.c.b16 %v2908, %v2900
    %v3533 = vpack.c.b16 %v2909, %v2901
    %v3534 = vpack.c.b16 %v2918, %v2910
    %v3535 = vpack.c.b16 %v2919, %v2911
    %v3536 = vpack.c.b16 %v2920, %v2912
    %v3537 = vpack.c.b16 %v2921, %v2913
    %v3538 = vpack.c.b16 %v2922, %v2914
    %v3539 = vpack.c.b16 %v2923, %v2915
    %v3540 = vpack.c.b16 %v2924, %v2916
    %v3541 = vpack.c.b16 %v2925, %v2917
    %v3542 = vpack.c.b16 %v2934, %v2926
    %v3543 = vpack.c.b16 %v2935, %v2927
    %v3544 = vpack.c.b16 %v2936, %v2928
    %v3545 = vpack.c.b16 %v2937, %v2929
    %v3546 = vpack.c.b16 %v2938, %v2930
    %v3547 = vpack.c.b16 %v2939, %v2931
    %v3548 = vpack.c.b16 %v2940, %v2932
    %v3549 = vpack.c.b16 %v2941, %v2933
    %v3550 = vpack.c.b16 %v2950, %v2942
    %v3551 = vpack.c.b16 %v2951, %v2943
    %v3552 = vpack.c.b16 %v2952, %v2944
    %v3553 = vpack.c.b16 %v2953, %v2945
    %v3554 = vpack.c.b16 %v2954, %v2946
    %v3555 = vpack.c.b16 %v2955, %v2947
    %v3556 = vpack.c.b16 %v2956, %v2948
    %v3557 = vpack.c.b16 %v2957, %v2949
    %v3558 = vpack.c.b16 %v2966, %v2958
    %v3559 = vpack.c.b16 %v2967, %v2959
    %v3560 = vpack.c.b16 %v2968, %v2960
    %v3561 = vpack.c.b16 %v2969, %v2961
    %v3562 = vpack.c.b16 %v2970, %v2962
    %v3563 = vpack.c.b16 %v2971, %v2963
    %v3564 = vpack.c.b16 %v2972, %v2964
    %v3565 = vpack.c.b16 %v2973, %v2965
    %v3566 = vpack.c.b16 %v2982, %v2974
    %v3567 = vpack.c.b16 %v2983, %v2975
    %v3568 = vpack.c.b16 %v2984, %v2976
    %v3569 = vpack.c.b16 %v2985, %v2977
    %v3570 = vpack.c.b16 %v2986, %v2978
    %v3571 = vpack.c.b16 %v2987, %v2979
    %v3572 = vpack.c.b16 %v2988, %v2980
    %v3573 = vpack.c.b16 %v2989, %v2981
    %v3574 = vpack.c.b16 %v2998, %v2990
    %v3575 = vpack.c.b16 %v2999, %v2991
    %v3576 = vpack.c.b16 %v3000, %v2992
    %v3577 = vpack.c.b16 %v3001, %v2993
    %v3578 = vpack.c.b16 %v3002, %v2994
    %v3579 = vpack.c.b16 %v3003, %v2995
    %v3580 = vpack.c.b16 %v3004, %v2996
    %v3581 = vpack.c.b16 %v3005, %v2997
    %v3582 = vpack.c.b16 %v3014, %v3006
    %v3583 = vpack.c.b16 %v3015, %v3007
    %v3584 = vpack.c.b16 %v3016, %v3008
    %v3585 = vpack.c.b16 %v3017, %v3009
    %v3586 = vpack.c.b16 %v3018, %v3010
    %v3587 = vpack.c.b16 %v3019, %v3011
    %v3588 = vpack.c.b16 %v3020, %v3012
    %v3589 = vpack.c.b16 %v3021, %v3013
    %v3590 = vpack.c.b16 %v3030, %v3022
    %v3591 = vpack.c.b16 %v3031, %v3023
    %v3592 = vpack.c.b16 %v3032, %v3024
    %v3593 = vpack.c.b16 %v3033, %v3025
    %v3594 = vpack.c.b16 %v3034, %v3026
    %v3595 = vpack.c.b16 %v3035, %v3027
    %v3596 = vpack.c.b16 %v3036, %v3028
    %v3597 = vpack.c.b16 %v3037, %v3029
    %v3598 = vpack.c.b16 %v3046, %v3038
    %v3599 = vpack.c.b16 %v3047, %v3039
    %v3600 = vpack.c.b16 %v3048, %v3040
    %v3601 = vpack.c.b16 %v3049, %v3041
    %v3602 = vpack.c.b16 %v3050, %v3042
    %v3603 = vpack.c.b16 %v3051, %v3043
    %v3604 = vpack.c.b16 %v3052, %v3044
    %v3605 = vpack.c.b16 %v3053, %v3045
    %v3606 = vpack.c.b16 %v3062, %v3054
    %v3607 = vpack.c.b16 %v3063, %v3055
    %v3608 = vpack.c.b16 %v3064, %v3056
    %v3609 = vpack.c.b16 %v3065, %v3057
    %v3610 = vpack.c.b16 %v3066, %v3058
    %v3611 = vpack.c.b16 %v3067, %v3059
    %v3612 = vpack.c.b16 %v3068, %v3060
    %v3613 = vpack.c.b16 %v3069, %v3061
    %v3614 = vpack.c.b16 %v3078, %v3070
    %v3615 = vpack.c.b16 %v3079, %v3071
    %v3616 = vpack.c.b16 %v3080, %v3072
    %v3617 = vpack.c.b16 %v3081, %v3073
    %v3618 = vpack.c.b16 %v3082, %v3074
    %v3619 = vpack.c.b16 %v3083, %v3075
    %v3620 = vpack.c.b16 %v3084, %v3076
    %v3621 = vpack.c.b16 %v3085, %v3077
    %v3622 = vpack.c.b16 %v3094, %v3086
    %v3623 = vpack.c.b16 %v3095, %v3087
    %v3624 = vpack.c.b16 %v3096, %v3088
    %v3625 = vpack.c.b16 %v3097, %v3089
    %v3626 = vpack.c.b16 %v3098, %v3090
    %v3627 = vpack.c.b16 %v3099, %v3091
    %v3628 = vpack.c.b16 %v3100, %v3092
    %v3629 = vpack.c.b16 %v3101, %v3093
    %v3630 = vpack.c.b16 %v3110, %v3102
    %v3631 = vpack.c.b16 %v3111, %v3103
    %v3632 = vpack.c.b16 %v3112, %v3104
    %v3633 = vpack.c.b16 %v3113, %v3105
    %v3634 = vpack.c.b16 %v3114, %v3106
    %v3635 = vpack.c.b16 %v3115, %v3107
    %v3636 = vpack.c.b16 %v3116, %v3108
    %v3637 = vpack.c.b16 %v3117, %v3109
    %v3638 = vpack.c.b16 %v3126, %v3118
    %v3639 = vpack.c.b16 %v3127, %v3119
    %v3640 = vpack.c.b16 %v3128, %v3120
    %v3641 = vpack.c.b16 %v3129, %v3121
    %v3642 = vpack.c.b16 %v3130, %v3122
    %v3643 = vpack.c.b16 %v3131, %v3123
    %v3644 = vpack.c.b16 %v3132, %v3124
    %v3645 = vpack.c.b16 %v3133, %v3125
    %4158 = vmatpush.bf16.msra.mxu0 %v3190
    %4159 = vmatpush.bf16.msra.mxu0 %v3182
    %4160 = vmatpush.bf16.msra.mxu0 %v3174
    %4161 = vmatpush.bf16.msra.mxu0 %v3166
    %4162 = vmatpush.bf16.msra.mxu0 %v3158
    %4163 = vmatpush.bf16.msra.mxu0 %v3150
    %4164 = vmatpush.bf16.msra.mxu0 %v3142
    %4165 = vmatpush.bf16.msra.mxu0 %v3134
    %4166 = vmatmul.bf16.gmra.mxu0 %v1060
    %v4167 = vpop.f32.mrf.mxu0
    %v4168 = vadd.f32 %v1582, %v4167
    %v4169 = vpop.f32.mrf.mxu0
    %4170 = vdwg.mxu0
    %4171 = vmatpush.bf16.msra.mxu0 %v3254
    %4172 = vmatpush.bf16.msra.mxu0 %v3246
    %4173 = vmatpush.bf16.msra.mxu0 %v3238
    %4174 = vmatpush.bf16.msra.mxu0 %v3230
    %4175 = vmatpush.bf16.msra.mxu0 %v3222
    %4176 = vmatpush.bf16.msra.mxu0 %v3214
    %4177 = vmatpush.bf16.msra.mxu0 %v3206
    %4178 = vmatpush.bf16.msra.mxu0 %v3198
    %4179 = vmatmul.bf16.gmra.mxu0 %v1061
    %v4180 = vpop.f32.mrf.mxu0
    %v4181 = vadd.f32 %v4168, %v4180
    %v4182 = vpop.f32.mrf.mxu0
    %4183 = vdwg.mxu0
    %4184 = vmatpush.bf16.msra.mxu0 %v3318
    %4185 = vmatpush.bf16.msra.mxu0 %v3310
    %4186 = vmatpush.bf16.msra.mxu0 %v3302
    %4187 = vmatpush.bf16.msra.mxu0 %v3294
    %4188 = vmatpush.bf16.msra.mxu0 %v3286
    %4189 = vmatpush.bf16.msra.mxu0 %v3278
    %4190 = vmatpush.bf16.msra.mxu0 %v3270
    %4191 = vmatpush.bf16.msra.mxu0 %v3262
    %4192 = vmatmul.bf16.gmra.mxu0 %v1062
    %v4193 = vpop.f32.mrf.mxu0
    %v4194 = vadd.f32 %v4181, %v4193
    %v4195 = vpop.f32.mrf.mxu0
    %4196 = vdwg.mxu0
    %4197 = vmatpush.bf16.msra.mxu0 %v3382
    %4198 = vmatpush.bf16.msra.mxu0 %v3374
    %4199 = vmatpush.bf16.msra.mxu0 %v3366
    %4200 = vmatpush.bf16.msra.mxu0 %v3358
    %4201 = vmatpush.bf16.msra.mxu0 %v3350
    %4202 = vmatpush.bf16.msra.mxu0 %v3342
    %4203 = vmatpush.bf16.msra.mxu0 %v3334
    %4204 = vmatpush.bf16.msra.mxu0 %v3326
    %4205 = vmatmul.bf16.gmra.mxu0 %v1063
    %v4206 = vpop.f32.mrf.mxu0
    %v4207 = vadd.f32 %v4194, %v4206
    %v4208 = vpop.f32.mrf.mxu0
    %4209 = vdwg.mxu0
    %4210 = vmatpush.bf16.msra.mxu0 %v3446
    %4211 = vmatpush.bf16.msra.mxu0 %v3438
    %4212 = vmatpush.bf16.msra.mxu0 %v3430
    %4213 = vmatpush.bf16.msra.mxu0 %v3422
    %4214 = vmatpush.bf16.msra.mxu0 %v3414
    %4215 = vmatpush.bf16.msra.mxu0 %v3406
    %4216 = vmatpush.bf16.msra.mxu0 %v3398
    %4217 = vmatpush.bf16.msra.mxu0 %v3390
    %4218 = vmatmul.bf16.gmra.mxu0 %v1064
    %v4219 = vpop.f32.mrf.mxu0
    %v4220 = vadd.f32 %v4207, %v4219
    %v4221 = vpop.f32.mrf.mxu0
    %4222 = vdwg.mxu0
    %4223 = vmatpush.bf16.msra.mxu0 %v3510
    %4224 = vmatpush.bf16.msra.mxu0 %v3502
    %4225 = vmatpush.bf16.msra.mxu0 %v3494
    %4226 = vmatpush.bf16.msra.mxu0 %v3486
    %4227 = vmatpush.bf16.msra.mxu0 %v3478
    %4228 = vmatpush.bf16.msra.mxu0 %v3470
    %4229 = vmatpush.bf16.msra.mxu0 %v3462
    %4230 = vmatpush.bf16.msra.mxu0 %v3454
    %4231 = vmatmul.bf16.gmra.mxu0 %v1065
    %v4232 = vpop.f32.mrf.mxu0
    %v4233 = vadd.f32 %v4220, %v4232
    %v4234 = vpop.f32.mrf.mxu0
    %4235 = vdwg.mxu0
    %4236 = vmatpush.bf16.msra.mxu0 %v3574
    %4237 = vmatpush.bf16.msra.mxu0 %v3566
    %4238 = vmatpush.bf16.msra.mxu0 %v3558
    %4239 = vmatpush.bf16.msra.mxu0 %v3550
    %4240 = vmatpush.bf16.msra.mxu0 %v3542
    %4241 = vmatpush.bf16.msra.mxu0 %v3534
    %4242 = vmatpush.bf16.msra.mxu0 %v3526
    %4243 = vmatpush.bf16.msra.mxu0 %v3518
    %4244 = vmatmul.bf16.gmra.mxu0 %v1066
    %v4245 = vpop.f32.mrf.mxu0
    %v4246 = vadd.f32 %v4233, %v4245
    %v4247 = vpop.f32.mrf.mxu0
    %4248 = vdwg.mxu0
    %4249 = vmatpush.bf16.msra.mxu0 %v3638
    %4250 = vmatpush.bf16.msra.mxu0 %v3630
    %4251 = vmatpush.bf16.msra.mxu0 %v3622
    %4252 = vmatpush.bf16.msra.mxu0 %v3614
    %4253 = vmatpush.bf16.msra.mxu0 %v3606
    %4254 = vmatpush.bf16.msra.mxu0 %v3598
    %4255 = vmatpush.bf16.msra.mxu0 %v3590
    %4256 = vmatpush.bf16.msra.mxu0 %v3582
    %4257 = vmatmul.bf16.gmra.mxu0 %v1067
    %v4258 = vpop.f32.mrf.mxu0
    %v4259 = vadd.f32 %v4246, %v4258
    %v4260 = vpop.f32.mrf.mxu0
    %4261 = vdwg.mxu0
    %4262 = vmatpush.bf16.msra.mxu0 %v3191
    %4263 = vmatpush.bf16.msra.mxu0 %v3183
    %4264 = vmatpush.bf16.msra.mxu0 %v3175
    %4265 = vmatpush.bf16.msra.mxu0 %v3167
    %4266 = vmatpush.bf16.msra.mxu0 %v3159
    %4267 = vmatpush.bf16.msra.mxu0 %v3151
    %4268 = vmatpush.bf16.msra.mxu0 %v3143
    %4269 = vmatpush.bf16.msra.mxu0 %v3135
    %4270 = vmatmul.bf16.gmra.mxu0 %v1060
    %v4271 = vpop.f32.mrf.mxu0
    %v4272 = vadd.f32 %v1583, %v4271
    %v4273 = vpop.f32.mrf.mxu0
    %4274 = vdwg.mxu0
    %4275 = vmatpush.bf16.msra.mxu0 %v3255
    %4276 = vmatpush.bf16.msra.mxu0 %v3247
    %4277 = vmatpush.bf16.msra.mxu0 %v3239
    %4278 = vmatpush.bf16.msra.mxu0 %v3231
    %4279 = vmatpush.bf16.msra.mxu0 %v3223
    %4280 = vmatpush.bf16.msra.mxu0 %v3215
    %4281 = vmatpush.bf16.msra.mxu0 %v3207
    %4282 = vmatpush.bf16.msra.mxu0 %v3199
    %4283 = vmatmul.bf16.gmra.mxu0 %v1061
    %v4284 = vpop.f32.mrf.mxu0
    %v4285 = vadd.f32 %v4272, %v4284
    %v4286 = vpop.f32.mrf.mxu0
    %4287 = vdwg.mxu0
    %4288 = vmatpush.bf16.msra.mxu0 %v3319
    %4289 = vmatpush.bf16.msra.mxu0 %v3311
    %4290 = vmatpush.bf16.msra.mxu0 %v3303
    %4291 = vmatpush.bf16.msra.mxu0 %v3295
    %4292 = vmatpush.bf16.msra.mxu0 %v3287
    %4293 = vmatpush.bf16.msra.mxu0 %v3279
    %4294 = vmatpush.bf16.msra.mxu0 %v3271
    %4295 = vmatpush.bf16.msra.mxu0 %v3263
    %4296 = vmatmul.bf16.gmra.mxu0 %v1062
    %v4297 = vpop.f32.mrf.mxu0
    %v4298 = vadd.f32 %v4285, %v4297
    %v4299 = vpop.f32.mrf.mxu0
    %4300 = vdwg.mxu0
    %4301 = vmatpush.bf16.msra.mxu0 %v3383
    %4302 = vmatpush.bf16.msra.mxu0 %v3375
    %4303 = vmatpush.bf16.msra.mxu0 %v3367
    %4304 = vmatpush.bf16.msra.mxu0 %v3359
    %4305 = vmatpush.bf16.msra.mxu0 %v3351
    %4306 = vmatpush.bf16.msra.mxu0 %v3343
    %4307 = vmatpush.bf16.msra.mxu0 %v3335
    %4308 = vmatpush.bf16.msra.mxu0 %v3327
    %4309 = vmatmul.bf16.gmra.mxu0 %v1063
    %v4310 = vpop.f32.mrf.mxu0
    %v4311 = vadd.f32 %v4298, %v4310
    %v4312 = vpop.f32.mrf.mxu0
    %4313 = vdwg.mxu0
    %4314 = vmatpush.bf16.msra.mxu0 %v3447
    %4315 = vmatpush.bf16.msra.mxu0 %v3439
    %4316 = vmatpush.bf16.msra.mxu0 %v3431
    %4317 = vmatpush.bf16.msra.mxu0 %v3423
    %4318 = vmatpush.bf16.msra.mxu0 %v3415
    %4319 = vmatpush.bf16.msra.mxu0 %v3407
    %4320 = vmatpush.bf16.msra.mxu0 %v3399
    %4321 = vmatpush.bf16.msra.mxu0 %v3391
    %4322 = vmatmul.bf16.gmra.mxu0 %v1064
    %v4323 = vpop.f32.mrf.mxu0
    %v4324 = vadd.f32 %v4311, %v4323
    %v4325 = vpop.f32.mrf.mxu0
    %4326 = vdwg.mxu0
    %4327 = vmatpush.bf16.msra.mxu0 %v3511
    %4328 = vmatpush.bf16.msra.mxu0 %v3503
    %4329 = vmatpush.bf16.msra.mxu0 %v3495
    %4330 = vmatpush.bf16.msra.mxu0 %v3487
    %4331 = vmatpush.bf16.msra.mxu0 %v3479
    %4332 = vmatpush.bf16.msra.mxu0 %v3471
    %4333 = vmatpush.bf16.msra.mxu0 %v3463
    %4334 = vmatpush.bf16.msra.mxu0 %v3455
    %4335 = vmatmul.bf16.gmra.mxu0 %v1065
    %v4336 = vpop.f32.mrf.mxu0
    %v4337 = vadd.f32 %v4324, %v4336
    %v4338 = vpop.f32.mrf.mxu0
    %4339 = vdwg.mxu0
    %4340 = vmatpush.bf16.msra.mxu0 %v3575
    %4341 = vmatpush.bf16.msra.mxu0 %v3567
    %4342 = vmatpush.bf16.msra.mxu0 %v3559
    %4343 = vmatpush.bf16.msra.mxu0 %v3551
    %4344 = vmatpush.bf16.msra.mxu0 %v3543
    %4345 = vmatpush.bf16.msra.mxu0 %v3535
    %4346 = vmatpush.bf16.msra.mxu0 %v3527
    %4347 = vmatpush.bf16.msra.mxu0 %v3519
    %4348 = vmatmul.bf16.gmra.mxu0 %v1066
    %v4349 = vpop.f32.mrf.mxu0
    %v4350 = vadd.f32 %v4337, %v4349
    %v4351 = vpop.f32.mrf.mxu0
    %4352 = vdwg.mxu0
    %4353 = vmatpush.bf16.msra.mxu0 %v3639
    %4354 = vmatpush.bf16.msra.mxu0 %v3631
    %4355 = vmatpush.bf16.msra.mxu0 %v3623
    %4356 = vmatpush.bf16.msra.mxu0 %v3615
    %4357 = vmatpush.bf16.msra.mxu0 %v3607
    %4358 = vmatpush.bf16.msra.mxu0 %v3599
    %4359 = vmatpush.bf16.msra.mxu0 %v3591
    %4360 = vmatpush.bf16.msra.mxu0 %v3583
    %4361 = vmatmul.bf16.gmra.mxu0 %v1067
    %v4362 = vpop.f32.mrf.mxu0
    %v4363 = vadd.f32 %v4350, %v4362
    %v4364 = vpop.f32.mrf.mxu0
    %4365 = vdwg.mxu0
    %4366 = vmatpush.bf16.msra.mxu0 %v3192
    %4367 = vmatpush.bf16.msra.mxu0 %v3184
    %4368 = vmatpush.bf16.msra.mxu0 %v3176
    %4369 = vmatpush.bf16.msra.mxu0 %v3168
    %4370 = vmatpush.bf16.msra.mxu0 %v3160
    %4371 = vmatpush.bf16.msra.mxu0 %v3152
    %4372 = vmatpush.bf16.msra.mxu0 %v3144
    %4373 = vmatpush.bf16.msra.mxu0 %v3136
    %4374 = vmatmul.bf16.gmra.mxu0 %v1060
    %v4375 = vpop.f32.mrf.mxu0
    %v4376 = vadd.f32 %v1584, %v4375
    %v4377 = vpop.f32.mrf.mxu0
    %4378 = vdwg.mxu0
    %4379 = vmatpush.bf16.msra.mxu0 %v3256
    %4380 = vmatpush.bf16.msra.mxu0 %v3248
    %4381 = vmatpush.bf16.msra.mxu0 %v3240
    %4382 = vmatpush.bf16.msra.mxu0 %v3232
    %4383 = vmatpush.bf16.msra.mxu0 %v3224
    %4384 = vmatpush.bf16.msra.mxu0 %v3216
    %4385 = vmatpush.bf16.msra.mxu0 %v3208
    %4386 = vmatpush.bf16.msra.mxu0 %v3200
    %4387 = vmatmul.bf16.gmra.mxu0 %v1061
    %v4388 = vpop.f32.mrf.mxu0
    %v4389 = vadd.f32 %v4376, %v4388
    %v4390 = vpop.f32.mrf.mxu0
    %4391 = vdwg.mxu0
    %4392 = vmatpush.bf16.msra.mxu0 %v3320
    %4393 = vmatpush.bf16.msra.mxu0 %v3312
    %4394 = vmatpush.bf16.msra.mxu0 %v3304
    %4395 = vmatpush.bf16.msra.mxu0 %v3296
    %4396 = vmatpush.bf16.msra.mxu0 %v3288
    %4397 = vmatpush.bf16.msra.mxu0 %v3280
    %4398 = vmatpush.bf16.msra.mxu0 %v3272
    %4399 = vmatpush.bf16.msra.mxu0 %v3264
    %4400 = vmatmul.bf16.gmra.mxu0 %v1062
    %v4401 = vpop.f32.mrf.mxu0
    %v4402 = vadd.f32 %v4389, %v4401
    %v4403 = vpop.f32.mrf.mxu0
    %4404 = vdwg.mxu0
    %4405 = vmatpush.bf16.msra.mxu0 %v3384
    %4406 = vmatpush.bf16.msra.mxu0 %v3376
    %4407 = vmatpush.bf16.msra.mxu0 %v3368
    %4408 = vmatpush.bf16.msra.mxu0 %v3360
    %4409 = vmatpush.bf16.msra.mxu0 %v3352
    %4410 = vmatpush.bf16.msra.mxu0 %v3344
    %4411 = vmatpush.bf16.msra.mxu0 %v3336
    %4412 = vmatpush.bf16.msra.mxu0 %v3328
    %4413 = vmatmul.bf16.gmra.mxu0 %v1063
    %v4414 = vpop.f32.mrf.mxu0
    %v4415 = vadd.f32 %v4402, %v4414
    %v4416 = vpop.f32.mrf.mxu0
    %4417 = vdwg.mxu0
    %4418 = vmatpush.bf16.msra.mxu0 %v3448
    %4419 = vmatpush.bf16.msra.mxu0 %v3440
    %4420 = vmatpush.bf16.msra.mxu0 %v3432
    %4421 = vmatpush.bf16.msra.mxu0 %v3424
    %4422 = vmatpush.bf16.msra.mxu0 %v3416
    %4423 = vmatpush.bf16.msra.mxu0 %v3408
    %4424 = vmatpush.bf16.msra.mxu0 %v3400
    %4425 = vmatpush.bf16.msra.mxu0 %v3392
    %4426 = vmatmul.bf16.gmra.mxu0 %v1064
    %v4427 = vpop.f32.mrf.mxu0
    %v4428 = vadd.f32 %v4415, %v4427
    %v4429 = vpop.f32.mrf.mxu0
    %4430 = vdwg.mxu0
    %4431 = vmatpush.bf16.msra.mxu0 %v3512
    %4432 = vmatpush.bf16.msra.mxu0 %v3504
    %4433 = vmatpush.bf16.msra.mxu0 %v3496
    %4434 = vmatpush.bf16.msra.mxu0 %v3488
    %4435 = vmatpush.bf16.msra.mxu0 %v3480
    %4436 = vmatpush.bf16.msra.mxu0 %v3472
    %4437 = vmatpush.bf16.msra.mxu0 %v3464
    %4438 = vmatpush.bf16.msra.mxu0 %v3456
    %4439 = vmatmul.bf16.gmra.mxu0 %v1065
    %v4440 = vpop.f32.mrf.mxu0
    %v4441 = vadd.f32 %v4428, %v4440
    %v4442 = vpop.f32.mrf.mxu0
    %4443 = vdwg.mxu0
    %4444 = vmatpush.bf16.msra.mxu0 %v3576
    %4445 = vmatpush.bf16.msra.mxu0 %v3568
    %4446 = vmatpush.bf16.msra.mxu0 %v3560
    %4447 = vmatpush.bf16.msra.mxu0 %v3552
    %4448 = vmatpush.bf16.msra.mxu0 %v3544
    %4449 = vmatpush.bf16.msra.mxu0 %v3536
    %4450 = vmatpush.bf16.msra.mxu0 %v3528
    %4451 = vmatpush.bf16.msra.mxu0 %v3520
    %4452 = vmatmul.bf16.gmra.mxu0 %v1066
    %v4453 = vpop.f32.mrf.mxu0
    %v4454 = vadd.f32 %v4441, %v4453
    %v4455 = vpop.f32.mrf.mxu0
    %4456 = vdwg.mxu0
    %4457 = vmatpush.bf16.msra.mxu0 %v3640
    %4458 = vmatpush.bf16.msra.mxu0 %v3632
    %4459 = vmatpush.bf16.msra.mxu0 %v3624
    %4460 = vmatpush.bf16.msra.mxu0 %v3616
    %4461 = vmatpush.bf16.msra.mxu0 %v3608
    %4462 = vmatpush.bf16.msra.mxu0 %v3600
    %4463 = vmatpush.bf16.msra.mxu0 %v3592
    %4464 = vmatpush.bf16.msra.mxu0 %v3584
    %4465 = vmatmul.bf16.gmra.mxu0 %v1067
    %v4466 = vpop.f32.mrf.mxu0
    %v4467 = vadd.f32 %v4454, %v4466
    %v4468 = vpop.f32.mrf.mxu0
    %4469 = vdwg.mxu0
    %4470 = vmatpush.bf16.msra.mxu0 %v3193
    %4471 = vmatpush.bf16.msra.mxu0 %v3185
    %4472 = vmatpush.bf16.msra.mxu0 %v3177
    %4473 = vmatpush.bf16.msra.mxu0 %v3169
    %4474 = vmatpush.bf16.msra.mxu0 %v3161
    %4475 = vmatpush.bf16.msra.mxu0 %v3153
    %4476 = vmatpush.bf16.msra.mxu0 %v3145
    %4477 = vmatpush.bf16.msra.mxu0 %v3137
    %4478 = vmatmul.bf16.gmra.mxu0 %v1060
    %v4479 = vpop.f32.mrf.mxu0
    %v4480 = vadd.f32 %v1585, %v4479
    %v4481 = vpop.f32.mrf.mxu0
    %4482 = vdwg.mxu0
    %4483 = vmatpush.bf16.msra.mxu0 %v3257
    %4484 = vmatpush.bf16.msra.mxu0 %v3249
    %4485 = vmatpush.bf16.msra.mxu0 %v3241
    %4486 = vmatpush.bf16.msra.mxu0 %v3233
    %4487 = vmatpush.bf16.msra.mxu0 %v3225
    %4488 = vmatpush.bf16.msra.mxu0 %v3217
    %4489 = vmatpush.bf16.msra.mxu0 %v3209
    %4490 = vmatpush.bf16.msra.mxu0 %v3201
    %4491 = vmatmul.bf16.gmra.mxu0 %v1061
    %v4492 = vpop.f32.mrf.mxu0
    %v4493 = vadd.f32 %v4480, %v4492
    %v4494 = vpop.f32.mrf.mxu0
    %4495 = vdwg.mxu0
    %4496 = vmatpush.bf16.msra.mxu0 %v3321
    %4497 = vmatpush.bf16.msra.mxu0 %v3313
    %4498 = vmatpush.bf16.msra.mxu0 %v3305
    %4499 = vmatpush.bf16.msra.mxu0 %v3297
    %4500 = vmatpush.bf16.msra.mxu0 %v3289
    %4501 = vmatpush.bf16.msra.mxu0 %v3281
    %4502 = vmatpush.bf16.msra.mxu0 %v3273
    %4503 = vmatpush.bf16.msra.mxu0 %v3265
    %4504 = vmatmul.bf16.gmra.mxu0 %v1062
    %v4505 = vpop.f32.mrf.mxu0
    %v4506 = vadd.f32 %v4493, %v4505
    %v4507 = vpop.f32.mrf.mxu0
    %4508 = vdwg.mxu0
    %4509 = vmatpush.bf16.msra.mxu0 %v3385
    %4510 = vmatpush.bf16.msra.mxu0 %v3377
    %4511 = vmatpush.bf16.msra.mxu0 %v3369
    %4512 = vmatpush.bf16.msra.mxu0 %v3361
    %4513 = vmatpush.bf16.msra.mxu0 %v3353
    %4514 = vmatpush.bf16.msra.mxu0 %v3345
    %4515 = vmatpush.bf16.msra.mxu0 %v3337
    %4516 = vmatpush.bf16.msra.mxu0 %v3329
    %4517 = vmatmul.bf16.gmra.mxu0 %v1063
    %v4518 = vpop.f32.mrf.mxu0
    %v4519 = vadd.f32 %v4506, %v4518
    %v4520 = vpop.f32.mrf.mxu0
    %4521 = vdwg.mxu0
    %4522 = vmatpush.bf16.msra.mxu0 %v3449
    %4523 = vmatpush.bf16.msra.mxu0 %v3441
    %4524 = vmatpush.bf16.msra.mxu0 %v3433
    %4525 = vmatpush.bf16.msra.mxu0 %v3425
    %4526 = vmatpush.bf16.msra.mxu0 %v3417
    %4527 = vmatpush.bf16.msra.mxu0 %v3409
    %4528 = vmatpush.bf16.msra.mxu0 %v3401
    %4529 = vmatpush.bf16.msra.mxu0 %v3393
    %4530 = vmatmul.bf16.gmra.mxu0 %v1064
    %v4531 = vpop.f32.mrf.mxu0
    %v4532 = vadd.f32 %v4519, %v4531
    %v4533 = vpop.f32.mrf.mxu0
    %4534 = vdwg.mxu0
    %4535 = vmatpush.bf16.msra.mxu0 %v3513
    %4536 = vmatpush.bf16.msra.mxu0 %v3505
    %4537 = vmatpush.bf16.msra.mxu0 %v3497
    %4538 = vmatpush.bf16.msra.mxu0 %v3489
    %4539 = vmatpush.bf16.msra.mxu0 %v3481
    %4540 = vmatpush.bf16.msra.mxu0 %v3473
    %4541 = vmatpush.bf16.msra.mxu0 %v3465
    %4542 = vmatpush.bf16.msra.mxu0 %v3457
    %4543 = vmatmul.bf16.gmra.mxu0 %v1065
    %v4544 = vpop.f32.mrf.mxu0
    %v4545 = vadd.f32 %v4532, %v4544
    %v4546 = vpop.f32.mrf.mxu0
    %4547 = vdwg.mxu0
    %4548 = vmatpush.bf16.msra.mxu0 %v3577
    %4549 = vmatpush.bf16.msra.mxu0 %v3569
    %4550 = vmatpush.bf16.msra.mxu0 %v3561
    %4551 = vmatpush.bf16.msra.mxu0 %v3553
    %4552 = vmatpush.bf16.msra.mxu0 %v3545
    %4553 = vmatpush.bf16.msra.mxu0 %v3537
    %4554 = vmatpush.bf16.msra.mxu0 %v3529
    %4555 = vmatpush.bf16.msra.mxu0 %v3521
    %4556 = vmatmul.bf16.gmra.mxu0 %v1066
    %v4557 = vpop.f32.mrf.mxu0
    %v4558 = vadd.f32 %v4545, %v4557
    %v4559 = vpop.f32.mrf.mxu0
    %4560 = vdwg.mxu0
    %4561 = vmatpush.bf16.msra.mxu0 %v3641
    %4562 = vmatpush.bf16.msra.mxu0 %v3633
    %4563 = vmatpush.bf16.msra.mxu0 %v3625
    %4564 = vmatpush.bf16.msra.mxu0 %v3617
    %4565 = vmatpush.bf16.msra.mxu0 %v3609
    %4566 = vmatpush.bf16.msra.mxu0 %v3601
    %4567 = vmatpush.bf16.msra.mxu0 %v3593
    %4568 = vmatpush.bf16.msra.mxu0 %v3585
    %4569 = vmatmul.bf16.gmra.mxu0 %v1067
    %v4570 = vpop.f32.mrf.mxu0
    %v4571 = vadd.f32 %v4558, %v4570
    %v4572 = vpop.f32.mrf.mxu0
    %4573 = vdwg.mxu0
    %4574 = vmatpush.bf16.msra.mxu0 %v3194
    %4575 = vmatpush.bf16.msra.mxu0 %v3186
    %4576 = vmatpush.bf16.msra.mxu0 %v3178
    %4577 = vmatpush.bf16.msra.mxu0 %v3170
    %4578 = vmatpush.bf16.msra.mxu0 %v3162
    %4579 = vmatpush.bf16.msra.mxu0 %v3154
    %4580 = vmatpush.bf16.msra.mxu0 %v3146
    %4581 = vmatpush.bf16.msra.mxu0 %v3138
    %4582 = vmatmul.bf16.gmra.mxu0 %v1060
    %v4583 = vpop.f32.mrf.mxu0
    %v4584 = vadd.f32 %v1586, %v4583
    %v4585 = vpop.f32.mrf.mxu0
    %4586 = vdwg.mxu0
    %4587 = vmatpush.bf16.msra.mxu0 %v3258
    %4588 = vmatpush.bf16.msra.mxu0 %v3250
    %4589 = vmatpush.bf16.msra.mxu0 %v3242
    %4590 = vmatpush.bf16.msra.mxu0 %v3234
    %4591 = vmatpush.bf16.msra.mxu0 %v3226
    %4592 = vmatpush.bf16.msra.mxu0 %v3218
    %4593 = vmatpush.bf16.msra.mxu0 %v3210
    %4594 = vmatpush.bf16.msra.mxu0 %v3202
    %4595 = vmatmul.bf16.gmra.mxu0 %v1061
    %v4596 = vpop.f32.mrf.mxu0
    %v4597 = vadd.f32 %v4584, %v4596
    %v4598 = vpop.f32.mrf.mxu0
    %4599 = vdwg.mxu0
    %4600 = vmatpush.bf16.msra.mxu0 %v3322
    %4601 = vmatpush.bf16.msra.mxu0 %v3314
    %4602 = vmatpush.bf16.msra.mxu0 %v3306
    %4603 = vmatpush.bf16.msra.mxu0 %v3298
    %4604 = vmatpush.bf16.msra.mxu0 %v3290
    %4605 = vmatpush.bf16.msra.mxu0 %v3282
    %4606 = vmatpush.bf16.msra.mxu0 %v3274
    %4607 = vmatpush.bf16.msra.mxu0 %v3266
    %4608 = vmatmul.bf16.gmra.mxu0 %v1062
    %v4609 = vpop.f32.mrf.mxu0
    %v4610 = vadd.f32 %v4597, %v4609
    %v4611 = vpop.f32.mrf.mxu0
    %4612 = vdwg.mxu0
    %4613 = vmatpush.bf16.msra.mxu0 %v3386
    %4614 = vmatpush.bf16.msra.mxu0 %v3378
    %4615 = vmatpush.bf16.msra.mxu0 %v3370
    %4616 = vmatpush.bf16.msra.mxu0 %v3362
    %4617 = vmatpush.bf16.msra.mxu0 %v3354
    %4618 = vmatpush.bf16.msra.mxu0 %v3346
    %4619 = vmatpush.bf16.msra.mxu0 %v3338
    %4620 = vmatpush.bf16.msra.mxu0 %v3330
    %4621 = vmatmul.bf16.gmra.mxu0 %v1063
    %v4622 = vpop.f32.mrf.mxu0
    %v4623 = vadd.f32 %v4610, %v4622
    %v4624 = vpop.f32.mrf.mxu0
    %4625 = vdwg.mxu0
    %4626 = vmatpush.bf16.msra.mxu0 %v3450
    %4627 = vmatpush.bf16.msra.mxu0 %v3442
    %4628 = vmatpush.bf16.msra.mxu0 %v3434
    %4629 = vmatpush.bf16.msra.mxu0 %v3426
    %4630 = vmatpush.bf16.msra.mxu0 %v3418
    %4631 = vmatpush.bf16.msra.mxu0 %v3410
    %4632 = vmatpush.bf16.msra.mxu0 %v3402
    %4633 = vmatpush.bf16.msra.mxu0 %v3394
    %4634 = vmatmul.bf16.gmra.mxu0 %v1064
    %v4635 = vpop.f32.mrf.mxu0
    %v4636 = vadd.f32 %v4623, %v4635
    %v4637 = vpop.f32.mrf.mxu0
    %4638 = vdwg.mxu0
    %4639 = vmatpush.bf16.msra.mxu0 %v3514
    %4640 = vmatpush.bf16.msra.mxu0 %v3506
    %4641 = vmatpush.bf16.msra.mxu0 %v3498
    %4642 = vmatpush.bf16.msra.mxu0 %v3490
    %4643 = vmatpush.bf16.msra.mxu0 %v3482
    %4644 = vmatpush.bf16.msra.mxu0 %v3474
    %4645 = vmatpush.bf16.msra.mxu0 %v3466
    %4646 = vmatpush.bf16.msra.mxu0 %v3458
    %4647 = vmatmul.bf16.gmra.mxu0 %v1065
    %v4648 = vpop.f32.mrf.mxu0
    %v4649 = vadd.f32 %v4636, %v4648
    %v4650 = vpop.f32.mrf.mxu0
    %4651 = vdwg.mxu0
    %4652 = vmatpush.bf16.msra.mxu0 %v3578
    %4653 = vmatpush.bf16.msra.mxu0 %v3570
    %4654 = vmatpush.bf16.msra.mxu0 %v3562
    %4655 = vmatpush.bf16.msra.mxu0 %v3554
    %4656 = vmatpush.bf16.msra.mxu0 %v3546
    %4657 = vmatpush.bf16.msra.mxu0 %v3538
    %4658 = vmatpush.bf16.msra.mxu0 %v3530
    %4659 = vmatpush.bf16.msra.mxu0 %v3522
    %4660 = vmatmul.bf16.gmra.mxu0 %v1066
    %v4661 = vpop.f32.mrf.mxu0
    %v4662 = vadd.f32 %v4649, %v4661
    %v4663 = vpop.f32.mrf.mxu0
    %4664 = vdwg.mxu0
    %4665 = vmatpush.bf16.msra.mxu0 %v3642
    %4666 = vmatpush.bf16.msra.mxu0 %v3634
    %4667 = vmatpush.bf16.msra.mxu0 %v3626
    %4668 = vmatpush.bf16.msra.mxu0 %v3618
    %4669 = vmatpush.bf16.msra.mxu0 %v3610
    %4670 = vmatpush.bf16.msra.mxu0 %v3602
    %4671 = vmatpush.bf16.msra.mxu0 %v3594
    %4672 = vmatpush.bf16.msra.mxu0 %v3586
    %4673 = vmatmul.bf16.gmra.mxu0 %v1067
    %v4674 = vpop.f32.mrf.mxu0
    %v4675 = vadd.f32 %v4662, %v4674
    %v4676 = vpop.f32.mrf.mxu0
    %4677 = vdwg.mxu0
    %4678 = vmatpush.bf16.msra.mxu0 %v3195
    %4679 = vmatpush.bf16.msra.mxu0 %v3187
    %4680 = vmatpush.bf16.msra.mxu0 %v3179
    %4681 = vmatpush.bf16.msra.mxu0 %v3171
    %4682 = vmatpush.bf16.msra.mxu0 %v3163
    %4683 = vmatpush.bf16.msra.mxu0 %v3155
    %4684 = vmatpush.bf16.msra.mxu0 %v3147
    %4685 = vmatpush.bf16.msra.mxu0 %v3139
    %4686 = vmatmul.bf16.gmra.mxu0 %v1060
    %v4687 = vpop.f32.mrf.mxu0
    %v4688 = vadd.f32 %v1587, %v4687
    %v4689 = vpop.f32.mrf.mxu0
    %4690 = vdwg.mxu0
    %4691 = vmatpush.bf16.msra.mxu0 %v3259
    %4692 = vmatpush.bf16.msra.mxu0 %v3251
    %4693 = vmatpush.bf16.msra.mxu0 %v3243
    %4694 = vmatpush.bf16.msra.mxu0 %v3235
    %4695 = vmatpush.bf16.msra.mxu0 %v3227
    %4696 = vmatpush.bf16.msra.mxu0 %v3219
    %4697 = vmatpush.bf16.msra.mxu0 %v3211
    %4698 = vmatpush.bf16.msra.mxu0 %v3203
    %4699 = vmatmul.bf16.gmra.mxu0 %v1061
    %v4700 = vpop.f32.mrf.mxu0
    %v4701 = vadd.f32 %v4688, %v4700
    %v4702 = vpop.f32.mrf.mxu0
    %4703 = vdwg.mxu0
    %4704 = vmatpush.bf16.msra.mxu0 %v3323
    %4705 = vmatpush.bf16.msra.mxu0 %v3315
    %4706 = vmatpush.bf16.msra.mxu0 %v3307
    %4707 = vmatpush.bf16.msra.mxu0 %v3299
    %4708 = vmatpush.bf16.msra.mxu0 %v3291
    %4709 = vmatpush.bf16.msra.mxu0 %v3283
    %4710 = vmatpush.bf16.msra.mxu0 %v3275
    %4711 = vmatpush.bf16.msra.mxu0 %v3267
    %4712 = vmatmul.bf16.gmra.mxu0 %v1062
    %v4713 = vpop.f32.mrf.mxu0
    %v4714 = vadd.f32 %v4701, %v4713
    %v4715 = vpop.f32.mrf.mxu0
    %4716 = vdwg.mxu0
    %4717 = vmatpush.bf16.msra.mxu0 %v3387
    %4718 = vmatpush.bf16.msra.mxu0 %v3379
    %4719 = vmatpush.bf16.msra.mxu0 %v3371
    %4720 = vmatpush.bf16.msra.mxu0 %v3363
    %4721 = vmatpush.bf16.msra.mxu0 %v3355
    %4722 = vmatpush.bf16.msra.mxu0 %v3347
    %4723 = vmatpush.bf16.msra.mxu0 %v3339
    %4724 = vmatpush.bf16.msra.mxu0 %v3331
    %4725 = vmatmul.bf16.gmra.mxu0 %v1063
    %v4726 = vpop.f32.mrf.mxu0
    %v4727 = vadd.f32 %v4714, %v4726
    %v4728 = vpop.f32.mrf.mxu0
    %4729 = vdwg.mxu0
    %4730 = vmatpush.bf16.msra.mxu0 %v3451
    %4731 = vmatpush.bf16.msra.mxu0 %v3443
    %4732 = vmatpush.bf16.msra.mxu0 %v3435
    %4733 = vmatpush.bf16.msra.mxu0 %v3427
    %4734 = vmatpush.bf16.msra.mxu0 %v3419
    %4735 = vmatpush.bf16.msra.mxu0 %v3411
    %4736 = vmatpush.bf16.msra.mxu0 %v3403
    %4737 = vmatpush.bf16.msra.mxu0 %v3395
    %4738 = vmatmul.bf16.gmra.mxu0 %v1064
    %v4739 = vpop.f32.mrf.mxu0
    %v4740 = vadd.f32 %v4727, %v4739
    %v4741 = vpop.f32.mrf.mxu0
    %4742 = vdwg.mxu0
    %4743 = vmatpush.bf16.msra.mxu0 %v3515
    %4744 = vmatpush.bf16.msra.mxu0 %v3507
    %4745 = vmatpush.bf16.msra.mxu0 %v3499
    %4746 = vmatpush.bf16.msra.mxu0 %v3491
    %4747 = vmatpush.bf16.msra.mxu0 %v3483
    %4748 = vmatpush.bf16.msra.mxu0 %v3475
    %4749 = vmatpush.bf16.msra.mxu0 %v3467
    %4750 = vmatpush.bf16.msra.mxu0 %v3459
    %4751 = vmatmul.bf16.gmra.mxu0 %v1065
    %v4752 = vpop.f32.mrf.mxu0
    %v4753 = vadd.f32 %v4740, %v4752
    %v4754 = vpop.f32.mrf.mxu0
    %4755 = vdwg.mxu0
    %4756 = vmatpush.bf16.msra.mxu0 %v3579
    %4757 = vmatpush.bf16.msra.mxu0 %v3571
    %4758 = vmatpush.bf16.msra.mxu0 %v3563
    %4759 = vmatpush.bf16.msra.mxu0 %v3555
    %4760 = vmatpush.bf16.msra.mxu0 %v3547
    %4761 = vmatpush.bf16.msra.mxu0 %v3539
    %4762 = vmatpush.bf16.msra.mxu0 %v3531
    %4763 = vmatpush.bf16.msra.mxu0 %v3523
    %4764 = vmatmul.bf16.gmra.mxu0 %v1066
    %v4765 = vpop.f32.mrf.mxu0
    %v4766 = vadd.f32 %v4753, %v4765
    %v4767 = vpop.f32.mrf.mxu0
    %4768 = vdwg.mxu0
    %4769 = vmatpush.bf16.msra.mxu0 %v3643
    %4770 = vmatpush.bf16.msra.mxu0 %v3635
    %4771 = vmatpush.bf16.msra.mxu0 %v3627
    %4772 = vmatpush.bf16.msra.mxu0 %v3619
    %4773 = vmatpush.bf16.msra.mxu0 %v3611
    %4774 = vmatpush.bf16.msra.mxu0 %v3603
    %4775 = vmatpush.bf16.msra.mxu0 %v3595
    %4776 = vmatpush.bf16.msra.mxu0 %v3587
    %4777 = vmatmul.bf16.gmra.mxu0 %v1067
    %v4778 = vpop.f32.mrf.mxu0
    %v4779 = vadd.f32 %v4766, %v4778
    %v4780 = vpop.f32.mrf.mxu0
    %4781 = vdwg.mxu0
    %4782 = vmatpush.bf16.msra.mxu0 %v3196
    %4783 = vmatpush.bf16.msra.mxu0 %v3188
    %4784 = vmatpush.bf16.msra.mxu0 %v3180
    %4785 = vmatpush.bf16.msra.mxu0 %v3172
    %4786 = vmatpush.bf16.msra.mxu0 %v3164
    %4787 = vmatpush.bf16.msra.mxu0 %v3156
    %4788 = vmatpush.bf16.msra.mxu0 %v3148
    %4789 = vmatpush.bf16.msra.mxu0 %v3140
    %4790 = vmatmul.bf16.gmra.mxu0 %v1060
    %v4791 = vpop.f32.mrf.mxu0
    %v4792 = vadd.f32 %v1588, %v4791
    %v4793 = vpop.f32.mrf.mxu0
    %4794 = vdwg.mxu0
    %4795 = vmatpush.bf16.msra.mxu0 %v3260
    %4796 = vmatpush.bf16.msra.mxu0 %v3252
    %4797 = vmatpush.bf16.msra.mxu0 %v3244
    %4798 = vmatpush.bf16.msra.mxu0 %v3236
    %4799 = vmatpush.bf16.msra.mxu0 %v3228
    %4800 = vmatpush.bf16.msra.mxu0 %v3220
    %4801 = vmatpush.bf16.msra.mxu0 %v3212
    %4802 = vmatpush.bf16.msra.mxu0 %v3204
    %4803 = vmatmul.bf16.gmra.mxu0 %v1061
    %v4804 = vpop.f32.mrf.mxu0
    %v4805 = vadd.f32 %v4792, %v4804
    %v4806 = vpop.f32.mrf.mxu0
    %4807 = vdwg.mxu0
    %4808 = vmatpush.bf16.msra.mxu0 %v3324
    %4809 = vmatpush.bf16.msra.mxu0 %v3316
    %4810 = vmatpush.bf16.msra.mxu0 %v3308
    %4811 = vmatpush.bf16.msra.mxu0 %v3300
    %4812 = vmatpush.bf16.msra.mxu0 %v3292
    %4813 = vmatpush.bf16.msra.mxu0 %v3284
    %4814 = vmatpush.bf16.msra.mxu0 %v3276
    %4815 = vmatpush.bf16.msra.mxu0 %v3268
    %4816 = vmatmul.bf16.gmra.mxu0 %v1062
    %v4817 = vpop.f32.mrf.mxu0
    %v4818 = vadd.f32 %v4805, %v4817
    %v4819 = vpop.f32.mrf.mxu0
    %4820 = vdwg.mxu0
    %4821 = vmatpush.bf16.msra.mxu0 %v3388
    %4822 = vmatpush.bf16.msra.mxu0 %v3380
    %4823 = vmatpush.bf16.msra.mxu0 %v3372
    %4824 = vmatpush.bf16.msra.mxu0 %v3364
    %4825 = vmatpush.bf16.msra.mxu0 %v3356
    %4826 = vmatpush.bf16.msra.mxu0 %v3348
    %4827 = vmatpush.bf16.msra.mxu0 %v3340
    %4828 = vmatpush.bf16.msra.mxu0 %v3332
    %4829 = vmatmul.bf16.gmra.mxu0 %v1063
    %v4830 = vpop.f32.mrf.mxu0
    %v4831 = vadd.f32 %v4818, %v4830
    %v4832 = vpop.f32.mrf.mxu0
    %4833 = vdwg.mxu0
    %4834 = vmatpush.bf16.msra.mxu0 %v3452
    %4835 = vmatpush.bf16.msra.mxu0 %v3444
    %4836 = vmatpush.bf16.msra.mxu0 %v3436
    %4837 = vmatpush.bf16.msra.mxu0 %v3428
    %4838 = vmatpush.bf16.msra.mxu0 %v3420
    %4839 = vmatpush.bf16.msra.mxu0 %v3412
    %4840 = vmatpush.bf16.msra.mxu0 %v3404
    %4841 = vmatpush.bf16.msra.mxu0 %v3396
    %4842 = vmatmul.bf16.gmra.mxu0 %v1064
    %v4843 = vpop.f32.mrf.mxu0
    %v4844 = vadd.f32 %v4831, %v4843
    %v4845 = vpop.f32.mrf.mxu0
    %4846 = vdwg.mxu0
    %4847 = vmatpush.bf16.msra.mxu0 %v3516
    %4848 = vmatpush.bf16.msra.mxu0 %v3508
    %4849 = vmatpush.bf16.msra.mxu0 %v3500
    %4850 = vmatpush.bf16.msra.mxu0 %v3492
    %4851 = vmatpush.bf16.msra.mxu0 %v3484
    %4852 = vmatpush.bf16.msra.mxu0 %v3476
    %4853 = vmatpush.bf16.msra.mxu0 %v3468
    %4854 = vmatpush.bf16.msra.mxu0 %v3460
    %4855 = vmatmul.bf16.gmra.mxu0 %v1065
    %v4856 = vpop.f32.mrf.mxu0
    %v4857 = vadd.f32 %v4844, %v4856
    %v4858 = vpop.f32.mrf.mxu0
    %4859 = vdwg.mxu0
    %4860 = vmatpush.bf16.msra.mxu0 %v3580
    %4861 = vmatpush.bf16.msra.mxu0 %v3572
    %4862 = vmatpush.bf16.msra.mxu0 %v3564
    %4863 = vmatpush.bf16.msra.mxu0 %v3556
    %4864 = vmatpush.bf16.msra.mxu0 %v3548
    %4865 = vmatpush.bf16.msra.mxu0 %v3540
    %4866 = vmatpush.bf16.msra.mxu0 %v3532
    %4867 = vmatpush.bf16.msra.mxu0 %v3524
    %4868 = vmatmul.bf16.gmra.mxu0 %v1066
    %v4869 = vpop.f32.mrf.mxu0
    %v4870 = vadd.f32 %v4857, %v4869
    %v4871 = vpop.f32.mrf.mxu0
    %4872 = vdwg.mxu0
    %4873 = vmatpush.bf16.msra.mxu0 %v3644
    %4874 = vmatpush.bf16.msra.mxu0 %v3636
    %4875 = vmatpush.bf16.msra.mxu0 %v3628
    %4876 = vmatpush.bf16.msra.mxu0 %v3620
    %4877 = vmatpush.bf16.msra.mxu0 %v3612
    %4878 = vmatpush.bf16.msra.mxu0 %v3604
    %4879 = vmatpush.bf16.msra.mxu0 %v3596
    %4880 = vmatpush.bf16.msra.mxu0 %v3588
    %4881 = vmatmul.bf16.gmra.mxu0 %v1067
    %v4882 = vpop.f32.mrf.mxu0
    %v4883 = vadd.f32 %v4870, %v4882
    %v4884 = vpop.f32.mrf.mxu0
    %4885 = vdwg.mxu0
    %4886 = vmatpush.bf16.msra.mxu0 %v3197
    %4887 = vmatpush.bf16.msra.mxu0 %v3189
    %4888 = vmatpush.bf16.msra.mxu0 %v3181
    %4889 = vmatpush.bf16.msra.mxu0 %v3173
    %4890 = vmatpush.bf16.msra.mxu0 %v3165
    %4891 = vmatpush.bf16.msra.mxu0 %v3157
    %4892 = vmatpush.bf16.msra.mxu0 %v3149
    %4893 = vmatpush.bf16.msra.mxu0 %v3141
    %4894 = vmatmul.bf16.gmra.mxu0 %v1060
    %v4895 = vpop.f32.mrf.mxu0
    %v4896 = vadd.f32 %v1589, %v4895
    %v4897 = vpop.f32.mrf.mxu0
    %4898 = vdwg.mxu0
    %4899 = vmatpush.bf16.msra.mxu0 %v3261
    %4900 = vmatpush.bf16.msra.mxu0 %v3253
    %4901 = vmatpush.bf16.msra.mxu0 %v3245
    %4902 = vmatpush.bf16.msra.mxu0 %v3237
    %4903 = vmatpush.bf16.msra.mxu0 %v3229
    %4904 = vmatpush.bf16.msra.mxu0 %v3221
    %4905 = vmatpush.bf16.msra.mxu0 %v3213
    %4906 = vmatpush.bf16.msra.mxu0 %v3205
    %4907 = vmatmul.bf16.gmra.mxu0 %v1061
    %v4908 = vpop.f32.mrf.mxu0
    %v4909 = vadd.f32 %v4896, %v4908
    %v4910 = vpop.f32.mrf.mxu0
    %4911 = vdwg.mxu0
    %4912 = vmatpush.bf16.msra.mxu0 %v3325
    %4913 = vmatpush.bf16.msra.mxu0 %v3317
    %4914 = vmatpush.bf16.msra.mxu0 %v3309
    %4915 = vmatpush.bf16.msra.mxu0 %v3301
    %4916 = vmatpush.bf16.msra.mxu0 %v3293
    %4917 = vmatpush.bf16.msra.mxu0 %v3285
    %4918 = vmatpush.bf16.msra.mxu0 %v3277
    %4919 = vmatpush.bf16.msra.mxu0 %v3269
    %4920 = vmatmul.bf16.gmra.mxu0 %v1062
    %v4921 = vpop.f32.mrf.mxu0
    %v4922 = vadd.f32 %v4909, %v4921
    %v4923 = vpop.f32.mrf.mxu0
    %4924 = vdwg.mxu0
    %4925 = vmatpush.bf16.msra.mxu0 %v3389
    %4926 = vmatpush.bf16.msra.mxu0 %v3381
    %4927 = vmatpush.bf16.msra.mxu0 %v3373
    %4928 = vmatpush.bf16.msra.mxu0 %v3365
    %4929 = vmatpush.bf16.msra.mxu0 %v3357
    %4930 = vmatpush.bf16.msra.mxu0 %v3349
    %4931 = vmatpush.bf16.msra.mxu0 %v3341
    %4932 = vmatpush.bf16.msra.mxu0 %v3333
    %4933 = vmatmul.bf16.gmra.mxu0 %v1063
    %v4934 = vpop.f32.mrf.mxu0
    %v4935 = vadd.f32 %v4922, %v4934
    %v4936 = vpop.f32.mrf.mxu0
    %4937 = vdwg.mxu0
    %4938 = vmatpush.bf16.msra.mxu0 %v3453
    %4939 = vmatpush.bf16.msra.mxu0 %v3445
    %4940 = vmatpush.bf16.msra.mxu0 %v3437
    %4941 = vmatpush.bf16.msra.mxu0 %v3429
    %4942 = vmatpush.bf16.msra.mxu0 %v3421
    %4943 = vmatpush.bf16.msra.mxu0 %v3413
    %4944 = vmatpush.bf16.msra.mxu0 %v3405
    %4945 = vmatpush.bf16.msra.mxu0 %v3397
    %4946 = vmatmul.bf16.gmra.mxu0 %v1064
    %v4947 = vpop.f32.mrf.mxu0
    %v4948 = vadd.f32 %v4935, %v4947
    %v4949 = vpop.f32.mrf.mxu0
    %4950 = vdwg.mxu0
    %4951 = vmatpush.bf16.msra.mxu0 %v3517
    %4952 = vmatpush.bf16.msra.mxu0 %v3509
    %4953 = vmatpush.bf16.msra.mxu0 %v3501
    %4954 = vmatpush.bf16.msra.mxu0 %v3493
    %4955 = vmatpush.bf16.msra.mxu0 %v3485
    %4956 = vmatpush.bf16.msra.mxu0 %v3477
    %4957 = vmatpush.bf16.msra.mxu0 %v3469
    %4958 = vmatpush.bf16.msra.mxu0 %v3461
    %4959 = vmatmul.bf16.gmra.mxu0 %v1065
    %v4960 = vpop.f32.mrf.mxu0
    %v4961 = vadd.f32 %v4948, %v4960
    %v4962 = vpop.f32.mrf.mxu0
    %4963 = vdwg.mxu0
    %4964 = vmatpush.bf16.msra.mxu0 %v3581
    %4965 = vmatpush.bf16.msra.mxu0 %v3573
    %4966 = vmatpush.bf16.msra.mxu0 %v3565
    %4967 = vmatpush.bf16.msra.mxu0 %v3557
    %4968 = vmatpush.bf16.msra.mxu0 %v3549
    %4969 = vmatpush.bf16.msra.mxu0 %v3541
    %4970 = vmatpush.bf16.msra.mxu0 %v3533
    %4971 = vmatpush.bf16.msra.mxu0 %v3525
    %4972 = vmatmul.bf16.gmra.mxu0 %v1066
    %v4973 = vpop.f32.mrf.mxu0
    %v4974 = vadd.f32 %v4961, %v4973
    %v4975 = vpop.f32.mrf.mxu0
    %4976 = vdwg.mxu0
    %4977 = vmatpush.bf16.msra.mxu0 %v3645
    %4978 = vmatpush.bf16.msra.mxu0 %v3637
    %4979 = vmatpush.bf16.msra.mxu0 %v3629
    %4980 = vmatpush.bf16.msra.mxu0 %v3621
    %4981 = vmatpush.bf16.msra.mxu0 %v3613
    %4982 = vmatpush.bf16.msra.mxu0 %v3605
    %4983 = vmatpush.bf16.msra.mxu0 %v3597
    %4984 = vmatpush.bf16.msra.mxu0 %v3589
    %4985 = vmatmul.bf16.gmra.mxu0 %v1067
    %v4986 = vpop.f32.mrf.mxu0
    %v4987 = vadd.f32 %v4974, %v4986
    %v4988 = vpop.f32.mrf.mxu0
    %4989 = vdwg.mxu0
    %vm4990 = vcmp.gt.f32.partialorder %v4259, 0.0
    %vm4991 = vcmp.gt.f32.partialorder %v4363, 0.0
    %vm4992 = vcmp.gt.f32.partialorder %v4467, 0.0
    %vm4993 = vcmp.gt.f32.partialorder %v4571, 0.0
    %vm4994 = vcmp.gt.f32.partialorder %v4675, 0.0
    %vm4995 = vcmp.gt.f32.partialorder %v4779, 0.0
    %vm4996 = vcmp.gt.f32.partialorder %v4883, 0.0
    %vm4997 = vcmp.gt.f32.partialorder %v4987, 0.0
    %v4998 = vmul.f32 %v4259, 0.01
    %v4999 = vmul.f32 %v4363, 0.01
    %v5000 = vmul.f32 %v4467, 0.01
    %v5001 = vmul.f32 %v4571, 0.01
    %v5002 = vmul.f32 %v4675, 0.01
    %v5003 = vmul.f32 %v4779, 0.01
    %v5004 = vmul.f32 %v4883, 0.01
    %v5005 = vmul.f32 %v4987, 0.01
    %v5006 = vsel %vm4990, %v4259, %v4998
    %v5007 = vsel %vm4991, %v4363, %v4999
    %v5008 = vsel %vm4992, %v4467, %v5000
    %v5009 = vsel %vm4993, %v4571, %v5001
    %v5010 = vsel %vm4994, %v4675, %v5002
    %v5011 = vsel %vm4995, %v4779, %v5003
    %v5012 = vsel %vm4996, %v4883, %v5004
    %v5013 = vsel %vm4997, %v4987, %v5005
    %v5014 = vpack.c.bf16 %v5006, %v5006
    %v5015 = vpack.c.bf16 %v5007, %v5007
    %v5016 = vpack.c.bf16 %v5008, %v5008
    %v5017 = vpack.c.bf16 %v5009, %v5009
    %v5018 = vpack.c.bf16 %v5010, %v5010
    %v5019 = vpack.c.bf16 %v5011, %v5011
    %v5020 = vpack.c.bf16 %v5012, %v5012
    %v5021 = vpack.c.bf16 %v5013, %v5013
    %v5022 = vld [vmem:[%s5] sm:$0xff]
    %v5023 = vld [vmem:[%s5 + $0x8] sm:$0xff]
    %v5024 = vld [vmem:[%s5 + $0x10] sm:$0xff]
    %v5025 = vld [vmem:[%s5 + $0x18] sm:$0xff]
    %v5026 = vld [vmem:[%s5 + $0x20] sm:$0xff]
    %v5027 = vld [vmem:[%s5 + $0x28] sm:$0xff]
    %v5028 = vld [vmem:[%s5 + $0x30] sm:$0xff]
    %v5029 = vld [vmem:[%s5 + $0x38] sm:$0xff]
    %v5030 = vld [vmem:[%s5 + $0x40] sm:$0xff]
    %v5031 = vld [vmem:[%s5 + $0x48] sm:$0xff]
    %v5032 = vld [vmem:[%s5 + $0x50] sm:$0xff]
    %v5033 = vld [vmem:[%s5 + $0x58] sm:$0xff]
    %v5034 = vld [vmem:[%s5 + $0x60] sm:$0xff]
    %v5035 = vld [vmem:[%s5 + $0x68] sm:$0xff]
    %v5036 = vld [vmem:[%s5 + $0x70] sm:$0xff]
    %v5037 = vld [vmem:[%s5 + $0x78] sm:$0xff]
    %v5038 = vld [vmem:[%s5 + $0x80] sm:$0xff]
    %v5039 = vld [vmem:[%s5 + $0x88] sm:$0xff]
    %v5040 = vld [vmem:[%s5 + $0x90] sm:$0xff]
    %v5041 = vld [vmem:[%s5 + $0x98] sm:$0xff]
    %v5042 = vld [vmem:[%s5 + $0xa0] sm:$0xff]
    %v5043 = vld [vmem:[%s5 + $0xa8] sm:$0xff]
    %v5044 = vld [vmem:[%s5 + $0xb0] sm:$0xff]
    %v5045 = vld [vmem:[%s5 + $0xb8] sm:$0xff]
    %v5046 = vld [vmem:[%s5 + $0xc0] sm:$0xff]
    %v5047 = vld [vmem:[%s5 + $0xc8] sm:$0xff]
    %v5048 = vld [vmem:[%s5 + $0xd0] sm:$0xff]
    %v5049 = vld [vmem:[%s5 + $0xd8] sm:$0xff]
    %v5050 = vld [vmem:[%s5 + $0xe0] sm:$0xff]
    %v5051 = vld [vmem:[%s5 + $0xe8] sm:$0xff]
    %v5052 = vld [vmem:[%s5 + $0xf0] sm:$0xff]
    %v5053 = vld [vmem:[%s5 + $0xf8] sm:$0xff]
    %v5054 = vld [vmem:[%s5 + $0x100] sm:$0xff]
    %v5055 = vld [vmem:[%s5 + $0x108] sm:$0xff]
    %v5056 = vld [vmem:[%s5 + $0x110] sm:$0xff]
    %v5057 = vld [vmem:[%s5 + $0x118] sm:$0xff]
    %v5058 = vld [vmem:[%s5 + $0x120] sm:$0xff]
    %v5059 = vld [vmem:[%s5 + $0x128] sm:$0xff]
    %v5060 = vld [vmem:[%s5 + $0x130] sm:$0xff]
    %v5061 = vld [vmem:[%s5 + $0x138] sm:$0xff]
    %v5062 = vld [vmem:[%s5 + $0x140] sm:$0xff]
    %v5063 = vld [vmem:[%s5 + $0x148] sm:$0xff]
    %v5064 = vld [vmem:[%s5 + $0x150] sm:$0xff]
    %v5065 = vld [vmem:[%s5 + $0x158] sm:$0xff]
    %v5066 = vld [vmem:[%s5 + $0x160] sm:$0xff]
    %v5067 = vld [vmem:[%s5 + $0x168] sm:$0xff]
    %v5068 = vld [vmem:[%s5 + $0x170] sm:$0xff]
    %v5069 = vld [vmem:[%s5 + $0x178] sm:$0xff]
    %v5070 = vld [vmem:[%s5 + $0x180] sm:$0xff]
    %v5071 = vld [vmem:[%s5 + $0x188] sm:$0xff]
    %v5072 = vld [vmem:[%s5 + $0x190] sm:$0xff]
    %v5073 = vld [vmem:[%s5 + $0x198] sm:$0xff]
    %v5074 = vld [vmem:[%s5 + $0x1a0] sm:$0xff]
    %v5075 = vld [vmem:[%s5 + $0x1a8] sm:$0xff]
    %v5076 = vld [vmem:[%s5 + $0x1b0] sm:$0xff]
    %v5077 = vld [vmem:[%s5 + $0x1b8] sm:$0xff]
    %v5078 = vld [vmem:[%s5 + $0x1c0] sm:$0xff]
    %v5079 = vld [vmem:[%s5 + $0x1c8] sm:$0xff]
    %v5080 = vld [vmem:[%s5 + $0x1d0] sm:$0xff]
    %v5081 = vld [vmem:[%s5 + $0x1d8] sm:$0xff]
    %v5082 = vld [vmem:[%s5 + $0x1e0] sm:$0xff]
    %v5083 = vld [vmem:[%s5 + $0x1e8] sm:$0xff]
    %v5084 = vld [vmem:[%s5 + $0x1f0] sm:$0xff]
    %v5085 = vld [vmem:[%s5 + $0x1f8] sm:$0xff]
    %v5086 = vld [vmem:[%s5 + $0x200] sm:$0xff]
    %v5087 = vld [vmem:[%s5 + $0x208] sm:$0xff]
    %v5088 = vld [vmem:[%s5 + $0x210] sm:$0xff]
    %v5089 = vld [vmem:[%s5 + $0x218] sm:$0xff]
    %v5090 = vld [vmem:[%s5 + $0x220] sm:$0xff]
    %v5091 = vld [vmem:[%s5 + $0x228] sm:$0xff]
    %v5092 = vld [vmem:[%s5 + $0x230] sm:$0xff]
    %v5093 = vld [vmem:[%s5 + $0x238] sm:$0xff]
    %v5094 = vld [vmem:[%s5 + $0x240] sm:$0xff]
    %v5095 = vld [vmem:[%s5 + $0x248] sm:$0xff]
    %v5096 = vld [vmem:[%s5 + $0x250] sm:$0xff]
    %v5097 = vld [vmem:[%s5 + $0x258] sm:$0xff]
    %v5098 = vld [vmem:[%s5 + $0x260] sm:$0xff]
    %v5099 = vld [vmem:[%s5 + $0x268] sm:$0xff]
    %v5100 = vld [vmem:[%s5 + $0x270] sm:$0xff]
    %v5101 = vld [vmem:[%s5 + $0x278] sm:$0xff]
    %v5102 = vld [vmem:[%s5 + $0x280] sm:$0xff]
    %v5103 = vld [vmem:[%s5 + $0x288] sm:$0xff]
    %v5104 = vld [vmem:[%s5 + $0x290] sm:$0xff]
    %v5105 = vld [vmem:[%s5 + $0x298] sm:$0xff]
    %v5106 = vld [vmem:[%s5 + $0x2a0] sm:$0xff]
    %v5107 = vld [vmem:[%s5 + $0x2a8] sm:$0xff]
    %v5108 = vld [vmem:[%s5 + $0x2b0] sm:$0xff]
    %v5109 = vld [vmem:[%s5 + $0x2b8] sm:$0xff]
    %v5110 = vld [vmem:[%s5 + $0x2c0] sm:$0xff]
    %v5111 = vld [vmem:[%s5 + $0x2c8] sm:$0xff]
    %v5112 = vld [vmem:[%s5 + $0x2d0] sm:$0xff]
    %v5113 = vld [vmem:[%s5 + $0x2d8] sm:$0xff]
    %v5114 = vld [vmem:[%s5 + $0x2e0] sm:$0xff]
    %v5115 = vld [vmem:[%s5 + $0x2e8] sm:$0xff]
    %v5116 = vld [vmem:[%s5 + $0x2f0] sm:$0xff]
    %v5117 = vld [vmem:[%s5 + $0x2f8] sm:$0xff]
    %v5118 = vld [vmem:[%s5 + $0x300] sm:$0xff]
    %v5119 = vld [vmem:[%s5 + $0x308] sm:$0xff]
    %v5120 = vld [vmem:[%s5 + $0x310] sm:$0xff]
    %v5121 = vld [vmem:[%s5 + $0x318] sm:$0xff]
    %v5122 = vld [vmem:[%s5 + $0x320] sm:$0xff]
    %v5123 = vld [vmem:[%s5 + $0x328] sm:$0xff]
    %v5124 = vld [vmem:[%s5 + $0x330] sm:$0xff]
    %v5125 = vld [vmem:[%s5 + $0x338] sm:$0xff]
    %v5126 = vld [vmem:[%s5 + $0x340] sm:$0xff]
    %v5127 = vld [vmem:[%s5 + $0x348] sm:$0xff]
    %v5128 = vld [vmem:[%s5 + $0x350] sm:$0xff]
    %v5129 = vld [vmem:[%s5 + $0x358] sm:$0xff]
    %v5130 = vld [vmem:[%s5 + $0x360] sm:$0xff]
    %v5131 = vld [vmem:[%s5 + $0x368] sm:$0xff]
    %v5132 = vld [vmem:[%s5 + $0x370] sm:$0xff]
    %v5133 = vld [vmem:[%s5 + $0x378] sm:$0xff]
    %v5134 = vld [vmem:[%s5 + $0x380] sm:$0xff]
    %v5135 = vld [vmem:[%s5 + $0x388] sm:$0xff]
    %v5136 = vld [vmem:[%s5 + $0x390] sm:$0xff]
    %v5137 = vld [vmem:[%s5 + $0x398] sm:$0xff]
    %v5138 = vld [vmem:[%s5 + $0x3a0] sm:$0xff]
    %v5139 = vld [vmem:[%s5 + $0x3a8] sm:$0xff]
    %v5140 = vld [vmem:[%s5 + $0x3b0] sm:$0xff]
    %v5141 = vld [vmem:[%s5 + $0x3b8] sm:$0xff]
    %v5142 = vld [vmem:[%s5 + $0x3c0] sm:$0xff]
    %v5143 = vld [vmem:[%s5 + $0x3c8] sm:$0xff]
    %v5144 = vld [vmem:[%s5 + $0x3d0] sm:$0xff]
    %v5145 = vld [vmem:[%s5 + $0x3d8] sm:$0xff]
    %v5146 = vld [vmem:[%s5 + $0x3e0] sm:$0xff]
    %v5147 = vld [vmem:[%s5 + $0x3e8] sm:$0xff]
    %v5148 = vld [vmem:[%s5 + $0x3f0] sm:$0xff]
    %v5149 = vld [vmem:[%s5 + $0x3f8] sm:$0xff]
    %v5150 = vld [vmem:[%s5 + $0x400] sm:$0xff]
    %v5151 = vld [vmem:[%s5 + $0x408] sm:$0xff]
    %v5152 = vld [vmem:[%s5 + $0x410] sm:$0xff]
    %v5153 = vld [vmem:[%s5 + $0x418] sm:$0xff]
    %v5154 = vld [vmem:[%s5 + $0x420] sm:$0xff]
    %v5155 = vld [vmem:[%s5 + $0x428] sm:$0xff]
    %v5156 = vld [vmem:[%s5 + $0x430] sm:$0xff]
    %v5157 = vld [vmem:[%s5 + $0x438] sm:$0xff]
    %v5158 = vld [vmem:[%s5 + $0x440] sm:$0xff]
    %v5159 = vld [vmem:[%s5 + $0x448] sm:$0xff]
    %v5160 = vld [vmem:[%s5 + $0x450] sm:$0xff]
    %v5161 = vld [vmem:[%s5 + $0x458] sm:$0xff]
    %v5162 = vld [vmem:[%s5 + $0x460] sm:$0xff]
    %v5163 = vld [vmem:[%s5 + $0x468] sm:$0xff]
    %v5164 = vld [vmem:[%s5 + $0x470] sm:$0xff]
    %v5165 = vld [vmem:[%s5 + $0x478] sm:$0xff]
    %v5166 = vld [vmem:[%s5 + $0x480] sm:$0xff]
    %v5167 = vld [vmem:[%s5 + $0x488] sm:$0xff]
    %v5168 = vld [vmem:[%s5 + $0x490] sm:$0xff]
    %v5169 = vld [vmem:[%s5 + $0x498] sm:$0xff]
    %v5170 = vld [vmem:[%s5 + $0x4a0] sm:$0xff]
    %v5171 = vld [vmem:[%s5 + $0x4a8] sm:$0xff]
    %v5172 = vld [vmem:[%s5 + $0x4b0] sm:$0xff]
    %v5173 = vld [vmem:[%s5 + $0x4b8] sm:$0xff]
    %v5174 = vld [vmem:[%s5 + $0x4c0] sm:$0xff]
    %v5175 = vld [vmem:[%s5 + $0x4c8] sm:$0xff]
    %v5176 = vld [vmem:[%s5 + $0x4d0] sm:$0xff]
    %v5177 = vld [vmem:[%s5 + $0x4d8] sm:$0xff]
    %v5178 = vld [vmem:[%s5 + $0x4e0] sm:$0xff]
    %v5179 = vld [vmem:[%s5 + $0x4e8] sm:$0xff]
    %v5180 = vld [vmem:[%s5 + $0x4f0] sm:$0xff]
    %v5181 = vld [vmem:[%s5 + $0x4f8] sm:$0xff]
    %v5182 = vld [vmem:[%s5 + $0x500] sm:$0xff]
    %v5183 = vld [vmem:[%s5 + $0x508] sm:$0xff]
    %v5184 = vld [vmem:[%s5 + $0x510] sm:$0xff]
    %v5185 = vld [vmem:[%s5 + $0x518] sm:$0xff]
    %v5186 = vld [vmem:[%s5 + $0x520] sm:$0xff]
    %v5187 = vld [vmem:[%s5 + $0x528] sm:$0xff]
    %v5188 = vld [vmem:[%s5 + $0x530] sm:$0xff]
    %v5189 = vld [vmem:[%s5 + $0x538] sm:$0xff]
    %v5190 = vld [vmem:[%s5 + $0x540] sm:$0xff]
    %v5191 = vld [vmem:[%s5 + $0x548] sm:$0xff]
    %v5192 = vld [vmem:[%s5 + $0x550] sm:$0xff]
    %v5193 = vld [vmem:[%s5 + $0x558] sm:$0xff]
    %v5194 = vld [vmem:[%s5 + $0x560] sm:$0xff]
    %v5195 = vld [vmem:[%s5 + $0x568] sm:$0xff]
    %v5196 = vld [vmem:[%s5 + $0x570] sm:$0xff]
    %v5197 = vld [vmem:[%s5 + $0x578] sm:$0xff]
    %v5198 = vld [vmem:[%s5 + $0x580] sm:$0xff]
    %v5199 = vld [vmem:[%s5 + $0x588] sm:$0xff]
    %v5200 = vld [vmem:[%s5 + $0x590] sm:$0xff]
    %v5201 = vld [vmem:[%s5 + $0x598] sm:$0xff]
    %v5202 = vld [vmem:[%s5 + $0x5a0] sm:$0xff]
    %v5203 = vld [vmem:[%s5 + $0x5a8] sm:$0xff]
    %v5204 = vld [vmem:[%s5 + $0x5b0] sm:$0xff]
    %v5205 = vld [vmem:[%s5 + $0x5b8] sm:$0xff]
    %v5206 = vld [vmem:[%s5 + $0x5c0] sm:$0xff]
    %v5207 = vld [vmem:[%s5 + $0x5c8] sm:$0xff]
    %v5208 = vld [vmem:[%s5 + $0x5d0] sm:$0xff]
    %v5209 = vld [vmem:[%s5 + $0x5d8] sm:$0xff]
    %v5210 = vld [vmem:[%s5 + $0x5e0] sm:$0xff]
    %v5211 = vld [vmem:[%s5 + $0x5e8] sm:$0xff]
    %v5212 = vld [vmem:[%s5 + $0x5f0] sm:$0xff]
    %v5213 = vld [vmem:[%s5 + $0x5f8] sm:$0xff]
    %v5214 = vld [vmem:[%s5 + $0x600] sm:$0xff]
    %v5215 = vld [vmem:[%s5 + $0x608] sm:$0xff]
    %v5216 = vld [vmem:[%s5 + $0x610] sm:$0xff]
    %v5217 = vld [vmem:[%s5 + $0x618] sm:$0xff]
    %v5218 = vld [vmem:[%s5 + $0x620] sm:$0xff]
    %v5219 = vld [vmem:[%s5 + $0x628] sm:$0xff]
    %v5220 = vld [vmem:[%s5 + $0x630] sm:$0xff]
    %v5221 = vld [vmem:[%s5 + $0x638] sm:$0xff]
    %v5222 = vld [vmem:[%s5 + $0x640] sm:$0xff]
    %v5223 = vld [vmem:[%s5 + $0x648] sm:$0xff]
    %v5224 = vld [vmem:[%s5 + $0x650] sm:$0xff]
    %v5225 = vld [vmem:[%s5 + $0x658] sm:$0xff]
    %v5226 = vld [vmem:[%s5 + $0x660] sm:$0xff]
    %v5227 = vld [vmem:[%s5 + $0x668] sm:$0xff]
    %v5228 = vld [vmem:[%s5 + $0x670] sm:$0xff]
    %v5229 = vld [vmem:[%s5 + $0x678] sm:$0xff]
    %v5230 = vld [vmem:[%s5 + $0x680] sm:$0xff]
    %v5231 = vld [vmem:[%s5 + $0x688] sm:$0xff]
    %v5232 = vld [vmem:[%s5 + $0x690] sm:$0xff]
    %v5233 = vld [vmem:[%s5 + $0x698] sm:$0xff]
    %v5234 = vld [vmem:[%s5 + $0x6a0] sm:$0xff]
    %v5235 = vld [vmem:[%s5 + $0x6a8] sm:$0xff]
    %v5236 = vld [vmem:[%s5 + $0x6b0] sm:$0xff]
    %v5237 = vld [vmem:[%s5 + $0x6b8] sm:$0xff]
    %v5238 = vld [vmem:[%s5 + $0x6c0] sm:$0xff]
    %v5239 = vld [vmem:[%s5 + $0x6c8] sm:$0xff]
    %v5240 = vld [vmem:[%s5 + $0x6d0] sm:$0xff]
    %v5241 = vld [vmem:[%s5 + $0x6d8] sm:$0xff]
    %v5242 = vld [vmem:[%s5 + $0x6e0] sm:$0xff]
    %v5243 = vld [vmem:[%s5 + $0x6e8] sm:$0xff]
    %v5244 = vld [vmem:[%s5 + $0x6f0] sm:$0xff]
    %v5245 = vld [vmem:[%s5 + $0x6f8] sm:$0xff]
    %v5246 = vld [vmem:[%s5 + $0x700] sm:$0xff]
    %v5247 = vld [vmem:[%s5 + $0x708] sm:$0xff]
    %v5248 = vld [vmem:[%s5 + $0x710] sm:$0xff]
    %v5249 = vld [vmem:[%s5 + $0x718] sm:$0xff]
    %v5250 = vld [vmem:[%s5 + $0x720] sm:$0xff]
    %v5251 = vld [vmem:[%s5 + $0x728] sm:$0xff]
    %v5252 = vld [vmem:[%s5 + $0x730] sm:$0xff]
    %v5253 = vld [vmem:[%s5 + $0x738] sm:$0xff]
    %v5254 = vld [vmem:[%s5 + $0x740] sm:$0xff]
    %v5255 = vld [vmem:[%s5 + $0x748] sm:$0xff]
    %v5256 = vld [vmem:[%s5 + $0x750] sm:$0xff]
    %v5257 = vld [vmem:[%s5 + $0x758] sm:$0xff]
    %v5258 = vld [vmem:[%s5 + $0x760] sm:$0xff]
    %v5259 = vld [vmem:[%s5 + $0x768] sm:$0xff]
    %v5260 = vld [vmem:[%s5 + $0x770] sm:$0xff]
    %v5261 = vld [vmem:[%s5 + $0x778] sm:$0xff]
    %v5262 = vld [vmem:[%s5 + $0x780] sm:$0xff]
    %v5263 = vld [vmem:[%s5 + $0x788] sm:$0xff]
    %v5264 = vld [vmem:[%s5 + $0x790] sm:$0xff]
    %v5265 = vld [vmem:[%s5 + $0x798] sm:$0xff]
    %v5266 = vld [vmem:[%s5 + $0x7a0] sm:$0xff]
    %v5267 = vld [vmem:[%s5 + $0x7a8] sm:$0xff]
    %v5268 = vld [vmem:[%s5 + $0x7b0] sm:$0xff]
    %v5269 = vld [vmem:[%s5 + $0x7b8] sm:$0xff]
    %v5270 = vld [vmem:[%s5 + $0x7c0] sm:$0xff]
    %v5271 = vld [vmem:[%s5 + $0x7c8] sm:$0xff]
    %v5272 = vld [vmem:[%s5 + $0x7d0] sm:$0xff]
    %v5273 = vld [vmem:[%s5 + $0x7d8] sm:$0xff]
    %v5274 = vld [vmem:[%s5 + $0x7e0] sm:$0xff]
    %v5275 = vld [vmem:[%s5 + $0x7e8] sm:$0xff]
    %v5276 = vld [vmem:[%s5 + $0x7f0] sm:$0xff]
    %v5277 = vld [vmem:[%s5 + $0x7f8] sm:$0xff]
    %v5278 = vld [vmem:[%s6] sm:$0xf]
    %v5280 = vperm.slane %v5278, 0
    %v5281 = vperm.slane %v5278, 1
    %v5282 = vperm.slane %v5278, 2
    %v5283 = vperm.slane %v5278, 3
    %v5544 = vunpack.c.l.b16 %v5022
    %v5545 = vunpack.c.h.b16 %v5022
    %v5546 = vunpack.c.l.b16 %v5023
    %v5547 = vunpack.c.h.b16 %v5023
    %v5548 = vunpack.c.l.b16 %v5024
    %v5549 = vunpack.c.h.b16 %v5024
    %v5550 = vunpack.c.l.b16 %v5025
    %v5551 = vunpack.c.h.b16 %v5025
    %v5552 = vunpack.c.l.b16 %v5026
    %v5553 = vunpack.c.h.b16 %v5026
    %v5554 = vunpack.c.l.b16 %v5027
    %v5555 = vunpack.c.h.b16 %v5027
    %v5556 = vunpack.c.l.b16 %v5028
    %v5557 = vunpack.c.h.b16 %v5028
    %v5558 = vunpack.c.l.b16 %v5029
    %v5559 = vunpack.c.h.b16 %v5029
    %v5560 = vunpack.c.l.b16 %v5030
    %v5561 = vunpack.c.h.b16 %v5030
    %v5562 = vunpack.c.l.b16 %v5031
    %v5563 = vunpack.c.h.b16 %v5031
    %v5564 = vunpack.c.l.b16 %v5032
    %v5565 = vunpack.c.h.b16 %v5032
    %v5566 = vunpack.c.l.b16 %v5033
    %v5567 = vunpack.c.h.b16 %v5033
    %v5568 = vunpack.c.l.b16 %v5034
    %v5569 = vunpack.c.h.b16 %v5034
    %v5570 = vunpack.c.l.b16 %v5035
    %v5571 = vunpack.c.h.b16 %v5035
    %v5572 = vunpack.c.l.b16 %v5036
    %v5573 = vunpack.c.h.b16 %v5036
    %v5574 = vunpack.c.l.b16 %v5037
    %v5575 = vunpack.c.h.b16 %v5037
    %v5576 = vunpack.c.l.b16 %v5038
    %v5577 = vunpack.c.h.b16 %v5038
    %v5578 = vunpack.c.l.b16 %v5039
    %v5579 = vunpack.c.h.b16 %v5039
    %v5580 = vunpack.c.l.b16 %v5040
    %v5581 = vunpack.c.h.b16 %v5040
    %v5582 = vunpack.c.l.b16 %v5041
    %v5583 = vunpack.c.h.b16 %v5041
    %v5584 = vunpack.c.l.b16 %v5042
    %v5585 = vunpack.c.h.b16 %v5042
    %v5586 = vunpack.c.l.b16 %v5043
    %v5587 = vunpack.c.h.b16 %v5043
    %v5588 = vunpack.c.l.b16 %v5044
    %v5589 = vunpack.c.h.b16 %v5044
    %v5590 = vunpack.c.l.b16 %v5045
    %v5591 = vunpack.c.h.b16 %v5045
    %v5592 = vunpack.c.l.b16 %v5046
    %v5593 = vunpack.c.h.b16 %v5046
    %v5594 = vunpack.c.l.b16 %v5047
    %v5595 = vunpack.c.h.b16 %v5047
    %v5596 = vunpack.c.l.b16 %v5048
    %v5597 = vunpack.c.h.b16 %v5048
    %v5598 = vunpack.c.l.b16 %v5049
    %v5599 = vunpack.c.h.b16 %v5049
    %v5600 = vunpack.c.l.b16 %v5050
    %v5601 = vunpack.c.h.b16 %v5050
    %v5602 = vunpack.c.l.b16 %v5051
    %v5603 = vunpack.c.h.b16 %v5051
    %v5604 = vunpack.c.l.b16 %v5052
    %v5605 = vunpack.c.h.b16 %v5052
    %v5606 = vunpack.c.l.b16 %v5053
    %v5607 = vunpack.c.h.b16 %v5053
    %v5608 = vunpack.c.l.b16 %v5054
    %v5609 = vunpack.c.h.b16 %v5054
    %v5610 = vunpack.c.l.b16 %v5055
    %v5611 = vunpack.c.h.b16 %v5055
    %v5612 = vunpack.c.l.b16 %v5056
    %v5613 = vunpack.c.h.b16 %v5056
    %v5614 = vunpack.c.l.b16 %v5057
    %v5615 = vunpack.c.h.b16 %v5057
    %v5616 = vunpack.c.l.b16 %v5058
    %v5617 = vunpack.c.h.b16 %v5058
    %v5618 = vunpack.c.l.b16 %v5059
    %v5619 = vunpack.c.h.b16 %v5059
    %v5620 = vunpack.c.l.b16 %v5060
    %v5621 = vunpack.c.h.b16 %v5060
    %v5622 = vunpack.c.l.b16 %v5061
    %v5623 = vunpack.c.h.b16 %v5061
    %v5624 = vunpack.c.l.b16 %v5062
    %v5625 = vunpack.c.h.b16 %v5062
    %v5626 = vunpack.c.l.b16 %v5063
    %v5627 = vunpack.c.h.b16 %v5063
    %v5628 = vunpack.c.l.b16 %v5064
    %v5629 = vunpack.c.h.b16 %v5064
    %v5630 = vunpack.c.l.b16 %v5065
    %v5631 = vunpack.c.h.b16 %v5065
    %v5632 = vunpack.c.l.b16 %v5066
    %v5633 = vunpack.c.h.b16 %v5066
    %v5634 = vunpack.c.l.b16 %v5067
    %v5635 = vunpack.c.h.b16 %v5067
    %v5636 = vunpack.c.l.b16 %v5068
    %v5637 = vunpack.c.h.b16 %v5068
    %v5638 = vunpack.c.l.b16 %v5069
    %v5639 = vunpack.c.h.b16 %v5069
    %v5640 = vunpack.c.l.b16 %v5070
    %v5641 = vunpack.c.h.b16 %v5070
    %v5642 = vunpack.c.l.b16 %v5071
    %v5643 = vunpack.c.h.b16 %v5071
    %v5644 = vunpack.c.l.b16 %v5072
    %v5645 = vunpack.c.h.b16 %v5072
    %v5646 = vunpack.c.l.b16 %v5073
    %v5647 = vunpack.c.h.b16 %v5073
    %v5648 = vunpack.c.l.b16 %v5074
    %v5649 = vunpack.c.h.b16 %v5074
    %v5650 = vunpack.c.l.b16 %v5075
    %v5651 = vunpack.c.h.b16 %v5075
    %v5652 = vunpack.c.l.b16 %v5076
    %v5653 = vunpack.c.h.b16 %v5076
    %v5654 = vunpack.c.l.b16 %v5077
    %v5655 = vunpack.c.h.b16 %v5077
    %v5656 = vunpack.c.l.b16 %v5078
    %v5657 = vunpack.c.h.b16 %v5078
    %v5658 = vunpack.c.l.b16 %v5079
    %v5659 = vunpack.c.h.b16 %v5079
    %v5660 = vunpack.c.l.b16 %v5080
    %v5661 = vunpack.c.h.b16 %v5080
    %v5662 = vunpack.c.l.b16 %v5081
    %v5663 = vunpack.c.h.b16 %v5081
    %v5664 = vunpack.c.l.b16 %v5082
    %v5665 = vunpack.c.h.b16 %v5082
    %v5666 = vunpack.c.l.b16 %v5083
    %v5667 = vunpack.c.h.b16 %v5083
    %v5668 = vunpack.c.l.b16 %v5084
    %v5669 = vunpack.c.h.b16 %v5084
    %v5670 = vunpack.c.l.b16 %v5085
    %v5671 = vunpack.c.h.b16 %v5085
    %v5672 = vunpack.c.l.b16 %v5086
    %v5673 = vunpack.c.h.b16 %v5086
    %v5674 = vunpack.c.l.b16 %v5087
    %v5675 = vunpack.c.h.b16 %v5087
    %v5676 = vunpack.c.l.b16 %v5088
    %v5677 = vunpack.c.h.b16 %v5088
    %v5678 = vunpack.c.l.b16 %v5089
    %v5679 = vunpack.c.h.b16 %v5089
    %v5680 = vunpack.c.l.b16 %v5090
    %v5681 = vunpack.c.h.b16 %v5090
    %v5682 = vunpack.c.l.b16 %v5091
    %v5683 = vunpack.c.h.b16 %v5091
    %v5684 = vunpack.c.l.b16 %v5092
    %v5685 = vunpack.c.h.b16 %v5092
    %v5686 = vunpack.c.l.b16 %v5093
    %v5687 = vunpack.c.h.b16 %v5093
    %v5688 = vunpack.c.l.b16 %v5094
    %v5689 = vunpack.c.h.b16 %v5094
    %v5690 = vunpack.c.l.b16 %v5095
    %v5691 = vunpack.c.h.b16 %v5095
    %v5692 = vunpack.c.l.b16 %v5096
    %v5693 = vunpack.c.h.b16 %v5096
    %v5694 = vunpack.c.l.b16 %v5097
    %v5695 = vunpack.c.h.b16 %v5097
    %v5696 = vunpack.c.l.b16 %v5098
    %v5697 = vunpack.c.h.b16 %v5098
    %v5698 = vunpack.c.l.b16 %v5099
    %v5699 = vunpack.c.h.b16 %v5099
    %v5700 = vunpack.c.l.b16 %v5100
    %v5701 = vunpack.c.h.b16 %v5100
    %v5702 = vunpack.c.l.b16 %v5101
    %v5703 = vunpack.c.h.b16 %v5101
    %v5704 = vunpack.c.l.b16 %v5102
    %v5705 = vunpack.c.h.b16 %v5102
    %v5706 = vunpack.c.l.b16 %v5103
    %v5707 = vunpack.c.h.b16 %v5103
    %v5708 = vunpack.c.l.b16 %v5104
    %v5709 = vunpack.c.h.b16 %v5104
    %v5710 = vunpack.c.l.b16 %v5105
    %v5711 = vunpack.c.h.b16 %v5105
    %v5712 = vunpack.c.l.b16 %v5106
    %v5713 = vunpack.c.h.b16 %v5106
    %v5714 = vunpack.c.l.b16 %v5107
    %v5715 = vunpack.c.h.b16 %v5107
    %v5716 = vunpack.c.l.b16 %v5108
    %v5717 = vunpack.c.h.b16 %v5108
    %v5718 = vunpack.c.l.b16 %v5109
    %v5719 = vunpack.c.h.b16 %v5109
    %v5720 = vunpack.c.l.b16 %v5110
    %v5721 = vunpack.c.h.b16 %v5110
    %v5722 = vunpack.c.l.b16 %v5111
    %v5723 = vunpack.c.h.b16 %v5111
    %v5724 = vunpack.c.l.b16 %v5112
    %v5725 = vunpack.c.h.b16 %v5112
    %v5726 = vunpack.c.l.b16 %v5113
    %v5727 = vunpack.c.h.b16 %v5113
    %v5728 = vunpack.c.l.b16 %v5114
    %v5729 = vunpack.c.h.b16 %v5114
    %v5730 = vunpack.c.l.b16 %v5115
    %v5731 = vunpack.c.h.b16 %v5115
    %v5732 = vunpack.c.l.b16 %v5116
    %v5733 = vunpack.c.h.b16 %v5116
    %v5734 = vunpack.c.l.b16 %v5117
    %v5735 = vunpack.c.h.b16 %v5117
    %v5736 = vunpack.c.l.b16 %v5118
    %v5737 = vunpack.c.h.b16 %v5118
    %v5738 = vunpack.c.l.b16 %v5119
    %v5739 = vunpack.c.h.b16 %v5119
    %v5740 = vunpack.c.l.b16 %v5120
    %v5741 = vunpack.c.h.b16 %v5120
    %v5742 = vunpack.c.l.b16 %v5121
    %v5743 = vunpack.c.h.b16 %v5121
    %v5744 = vunpack.c.l.b16 %v5122
    %v5745 = vunpack.c.h.b16 %v5122
    %v5746 = vunpack.c.l.b16 %v5123
    %v5747 = vunpack.c.h.b16 %v5123
    %v5748 = vunpack.c.l.b16 %v5124
    %v5749 = vunpack.c.h.b16 %v5124
    %v5750 = vunpack.c.l.b16 %v5125
    %v5751 = vunpack.c.h.b16 %v5125
    %v5752 = vunpack.c.l.b16 %v5126
    %v5753 = vunpack.c.h.b16 %v5126
    %v5754 = vunpack.c.l.b16 %v5127
    %v5755 = vunpack.c.h.b16 %v5127
    %v5756 = vunpack.c.l.b16 %v5128
    %v5757 = vunpack.c.h.b16 %v5128
    %v5758 = vunpack.c.l.b16 %v5129
    %v5759 = vunpack.c.h.b16 %v5129
    %v5760 = vunpack.c.l.b16 %v5130
    %v5761 = vunpack.c.h.b16 %v5130
    %v5762 = vunpack.c.l.b16 %v5131
    %v5763 = vunpack.c.h.b16 %v5131
    %v5764 = vunpack.c.l.b16 %v5132
    %v5765 = vunpack.c.h.b16 %v5132
    %v5766 = vunpack.c.l.b16 %v5133
    %v5767 = vunpack.c.h.b16 %v5133
    %v5768 = vunpack.c.l.b16 %v5134
    %v5769 = vunpack.c.h.b16 %v5134
    %v5770 = vunpack.c.l.b16 %v5135
    %v5771 = vunpack.c.h.b16 %v5135
    %v5772 = vunpack.c.l.b16 %v5136
    %v5773 = vunpack.c.h.b16 %v5136
    %v5774 = vunpack.c.l.b16 %v5137
    %v5775 = vunpack.c.h.b16 %v5137
    %v5776 = vunpack.c.l.b16 %v5138
    %v5777 = vunpack.c.h.b16 %v5138
    %v5778 = vunpack.c.l.b16 %v5139
    %v5779 = vunpack.c.h.b16 %v5139
    %v5780 = vunpack.c.l.b16 %v5140
    %v5781 = vunpack.c.h.b16 %v5140
    %v5782 = vunpack.c.l.b16 %v5141
    %v5783 = vunpack.c.h.b16 %v5141
    %v5784 = vunpack.c.l.b16 %v5142
    %v5785 = vunpack.c.h.b16 %v5142
    %v5786 = vunpack.c.l.b16 %v5143
    %v5787 = vunpack.c.h.b16 %v5143
    %v5788 = vunpack.c.l.b16 %v5144
    %v5789 = vunpack.c.h.b16 %v5144
    %v5790 = vunpack.c.l.b16 %v5145
    %v5791 = vunpack.c.h.b16 %v5145
    %v5792 = vunpack.c.l.b16 %v5146
    %v5793 = vunpack.c.h.b16 %v5146
    %v5794 = vunpack.c.l.b16 %v5147
    %v5795 = vunpack.c.h.b16 %v5147
    %v5796 = vunpack.c.l.b16 %v5148
    %v5797 = vunpack.c.h.b16 %v5148
    %v5798 = vunpack.c.l.b16 %v5149
    %v5799 = vunpack.c.h.b16 %v5149
    %v5800 = vunpack.c.l.b16 %v5150
    %v5801 = vunpack.c.h.b16 %v5150
    %v5802 = vunpack.c.l.b16 %v5151
    %v5803 = vunpack.c.h.b16 %v5151
    %v5804 = vunpack.c.l.b16 %v5152
    %v5805 = vunpack.c.h.b16 %v5152
    %v5806 = vunpack.c.l.b16 %v5153
    %v5807 = vunpack.c.h.b16 %v5153
    %v5808 = vunpack.c.l.b16 %v5154
    %v5809 = vunpack.c.h.b16 %v5154
    %v5810 = vunpack.c.l.b16 %v5155
    %v5811 = vunpack.c.h.b16 %v5155
    %v5812 = vunpack.c.l.b16 %v5156
    %v5813 = vunpack.c.h.b16 %v5156
    %v5814 = vunpack.c.l.b16 %v5157
    %v5815 = vunpack.c.h.b16 %v5157
    %v5816 = vunpack.c.l.b16 %v5158
    %v5817 = vunpack.c.h.b16 %v5158
    %v5818 = vunpack.c.l.b16 %v5159
    %v5819 = vunpack.c.h.b16 %v5159
    %v5820 = vunpack.c.l.b16 %v5160
    %v5821 = vunpack.c.h.b16 %v5160
    %v5822 = vunpack.c.l.b16 %v5161
    %v5823 = vunpack.c.h.b16 %v5161
    %v5824 = vunpack.c.l.b16 %v5162
    %v5825 = vunpack.c.h.b16 %v5162
    %v5826 = vunpack.c.l.b16 %v5163
    %v5827 = vunpack.c.h.b16 %v5163
    %v5828 = vunpack.c.l.b16 %v5164
    %v5829 = vunpack.c.h.b16 %v5164
    %v5830 = vunpack.c.l.b16 %v5165
    %v5831 = vunpack.c.h.b16 %v5165
    %v5832 = vunpack.c.l.b16 %v5166
    %v5833 = vunpack.c.h.b16 %v5166
    %v5834 = vunpack.c.l.b16 %v5167
    %v5835 = vunpack.c.h.b16 %v5167
    %v5836 = vunpack.c.l.b16 %v5168
    %v5837 = vunpack.c.h.b16 %v5168
    %v5838 = vunpack.c.l.b16 %v5169
    %v5839 = vunpack.c.h.b16 %v5169
    %v5840 = vunpack.c.l.b16 %v5170
    %v5841 = vunpack.c.h.b16 %v5170
    %v5842 = vunpack.c.l.b16 %v5171
    %v5843 = vunpack.c.h.b16 %v5171
    %v5844 = vunpack.c.l.b16 %v5172
    %v5845 = vunpack.c.h.b16 %v5172
    %v5846 = vunpack.c.l.b16 %v5173
    %v5847 = vunpack.c.h.b16 %v5173
    %v5848 = vunpack.c.l.b16 %v5174
    %v5849 = vunpack.c.h.b16 %v5174
    %v5850 = vunpack.c.l.b16 %v5175
    %v5851 = vunpack.c.h.b16 %v5175
    %v5852 = vunpack.c.l.b16 %v5176
    %v5853 = vunpack.c.h.b16 %v5176
    %v5854 = vunpack.c.l.b16 %v5177
    %v5855 = vunpack.c.h.b16 %v5177
    %v5856 = vunpack.c.l.b16 %v5178
    %v5857 = vunpack.c.h.b16 %v5178
    %v5858 = vunpack.c.l.b16 %v5179
    %v5859 = vunpack.c.h.b16 %v5179
    %v5860 = vunpack.c.l.b16 %v5180
    %v5861 = vunpack.c.h.b16 %v5180
    %v5862 = vunpack.c.l.b16 %v5181
    %v5863 = vunpack.c.h.b16 %v5181
    %v5864 = vunpack.c.l.b16 %v5182
    %v5865 = vunpack.c.h.b16 %v5182
    %v5866 = vunpack.c.l.b16 %v5183
    %v5867 = vunpack.c.h.b16 %v5183
    %v5868 = vunpack.c.l.b16 %v5184
    %v5869 = vunpack.c.h.b16 %v5184
    %v5870 = vunpack.c.l.b16 %v5185
    %v5871 = vunpack.c.h.b16 %v5185
    %v5872 = vunpack.c.l.b16 %v5186
    %v5873 = vunpack.c.h.b16 %v5186
    %v5874 = vunpack.c.l.b16 %v5187
    %v5875 = vunpack.c.h.b16 %v5187
    %v5876 = vunpack.c.l.b16 %v5188
    %v5877 = vunpack.c.h.b16 %v5188
    %v5878 = vunpack.c.l.b16 %v5189
    %v5879 = vunpack.c.h.b16 %v5189
    %v5880 = vunpack.c.l.b16 %v5190
    %v5881 = vunpack.c.h.b16 %v5190
    %v5882 = vunpack.c.l.b16 %v5191
    %v5883 = vunpack.c.h.b16 %v5191
    %v5884 = vunpack.c.l.b16 %v5192
    %v5885 = vunpack.c.h.b16 %v5192
    %v5886 = vunpack.c.l.b16 %v5193
    %v5887 = vunpack.c.h.b16 %v5193
    %v5888 = vunpack.c.l.b16 %v5194
    %v5889 = vunpack.c.h.b16 %v5194
    %v5890 = vunpack.c.l.b16 %v5195
    %v5891 = vunpack.c.h.b16 %v5195
    %v5892 = vunpack.c.l.b16 %v5196
    %v5893 = vunpack.c.h.b16 %v5196
    %v5894 = vunpack.c.l.b16 %v5197
    %v5895 = vunpack.c.h.b16 %v5197
    %v5896 = vunpack.c.l.b16 %v5198
    %v5897 = vunpack.c.h.b16 %v5198
    %v5898 = vunpack.c.l.b16 %v5199
    %v5899 = vunpack.c.h.b16 %v5199
    %v5900 = vunpack.c.l.b16 %v5200
    %v5901 = vunpack.c.h.b16 %v5200
    %v5902 = vunpack.c.l.b16 %v5201
    %v5903 = vunpack.c.h.b16 %v5201
    %v5904 = vunpack.c.l.b16 %v5202
    %v5905 = vunpack.c.h.b16 %v5202
    %v5906 = vunpack.c.l.b16 %v5203
    %v5907 = vunpack.c.h.b16 %v5203
    %v5908 = vunpack.c.l.b16 %v5204
    %v5909 = vunpack.c.h.b16 %v5204
    %v5910 = vunpack.c.l.b16 %v5205
    %v5911 = vunpack.c.h.b16 %v5205
    %v5912 = vunpack.c.l.b16 %v5206
    %v5913 = vunpack.c.h.b16 %v5206
    %v5914 = vunpack.c.l.b16 %v5207
    %v5915 = vunpack.c.h.b16 %v5207
    %v5916 = vunpack.c.l.b16 %v5208
    %v5917 = vunpack.c.h.b16 %v5208
    %v5918 = vunpack.c.l.b16 %v5209
    %v5919 = vunpack.c.h.b16 %v5209
    %v5920 = vunpack.c.l.b16 %v5210
    %v5921 = vunpack.c.h.b16 %v5210
    %v5922 = vunpack.c.l.b16 %v5211
    %v5923 = vunpack.c.h.b16 %v5211
    %v5924 = vunpack.c.l.b16 %v5212
    %v5925 = vunpack.c.h.b16 %v5212
    %v5926 = vunpack.c.l.b16 %v5213
    %v5927 = vunpack.c.h.b16 %v5213
    %v5928 = vunpack.c.l.b16 %v5214
    %v5929 = vunpack.c.h.b16 %v5214
    %v5930 = vunpack.c.l.b16 %v5215
    %v5931 = vunpack.c.h.b16 %v5215
    %v5932 = vunpack.c.l.b16 %v5216
    %v5933 = vunpack.c.h.b16 %v5216
    %v5934 = vunpack.c.l.b16 %v5217
    %v5935 = vunpack.c.h.b16 %v5217
    %v5936 = vunpack.c.l.b16 %v5218
    %v5937 = vunpack.c.h.b16 %v5218
    %v5938 = vunpack.c.l.b16 %v5219
    %v5939 = vunpack.c.h.b16 %v5219
    %v5940 = vunpack.c.l.b16 %v5220
    %v5941 = vunpack.c.h.b16 %v5220
    %v5942 = vunpack.c.l.b16 %v5221
    %v5943 = vunpack.c.h.b16 %v5221
    %v5944 = vunpack.c.l.b16 %v5222
    %v5945 = vunpack.c.h.b16 %v5222
    %v5946 = vunpack.c.l.b16 %v5223
    %v5947 = vunpack.c.h.b16 %v5223
    %v5948 = vunpack.c.l.b16 %v5224
    %v5949 = vunpack.c.h.b16 %v5224
    %v5950 = vunpack.c.l.b16 %v5225
    %v5951 = vunpack.c.h.b16 %v5225
    %v5952 = vunpack.c.l.b16 %v5226
    %v5953 = vunpack.c.h.b16 %v5226
    %v5954 = vunpack.c.l.b16 %v5227
    %v5955 = vunpack.c.h.b16 %v5227
    %v5956 = vunpack.c.l.b16 %v5228
    %v5957 = vunpack.c.h.b16 %v5228
    %v5958 = vunpack.c.l.b16 %v5229
    %v5959 = vunpack.c.h.b16 %v5229
    %v5960 = vunpack.c.l.b16 %v5230
    %v5961 = vunpack.c.h.b16 %v5230
    %v5962 = vunpack.c.l.b16 %v5231
    %v5963 = vunpack.c.h.b16 %v5231
    %v5964 = vunpack.c.l.b16 %v5232
    %v5965 = vunpack.c.h.b16 %v5232
    %v5966 = vunpack.c.l.b16 %v5233
    %v5967 = vunpack.c.h.b16 %v5233
    %v5968 = vunpack.c.l.b16 %v5234
    %v5969 = vunpack.c.h.b16 %v5234
    %v5970 = vunpack.c.l.b16 %v5235
    %v5971 = vunpack.c.h.b16 %v5235
    %v5972 = vunpack.c.l.b16 %v5236
    %v5973 = vunpack.c.h.b16 %v5236
    %v5974 = vunpack.c.l.b16 %v5237
    %v5975 = vunpack.c.h.b16 %v5237
    %v5976 = vunpack.c.l.b16 %v5238
    %v5977 = vunpack.c.h.b16 %v5238
    %v5978 = vunpack.c.l.b16 %v5239
    %v5979 = vunpack.c.h.b16 %v5239
    %v5980 = vunpack.c.l.b16 %v5240
    %v5981 = vunpack.c.h.b16 %v5240
    %v5982 = vunpack.c.l.b16 %v5241
    %v5983 = vunpack.c.h.b16 %v5241
    %v5984 = vunpack.c.l.b16 %v5242
    %v5985 = vunpack.c.h.b16 %v5242
    %v5986 = vunpack.c.l.b16 %v5243
    %v5987 = vunpack.c.h.b16 %v5243
    %v5988 = vunpack.c.l.b16 %v5244
    %v5989 = vunpack.c.h.b16 %v5244
    %v5990 = vunpack.c.l.b16 %v5245
    %v5991 = vunpack.c.h.b16 %v5245
    %v5992 = vunpack.c.l.b16 %v5246
    %v5993 = vunpack.c.h.b16 %v5246
    %v5994 = vunpack.c.l.b16 %v5247
    %v5995 = vunpack.c.h.b16 %v5247
    %v5996 = vunpack.c.l.b16 %v5248
    %v5997 = vunpack.c.h.b16 %v5248
    %v5998 = vunpack.c.l.b16 %v5249
    %v5999 = vunpack.c.h.b16 %v5249
    %v6000 = vunpack.c.l.b16 %v5250
    %v6001 = vunpack.c.h.b16 %v5250
    %v6002 = vunpack.c.l.b16 %v5251
    %v6003 = vunpack.c.h.b16 %v5251
    %v6004 = vunpack.c.l.b16 %v5252
    %v6005 = vunpack.c.h.b16 %v5252
    %v6006 = vunpack.c.l.b16 %v5253
    %v6007 = vunpack.c.h.b16 %v5253
    %v6008 = vunpack.c.l.b16 %v5254
    %v6009 = vunpack.c.h.b16 %v5254
    %v6010 = vunpack.c.l.b16 %v5255
    %v6011 = vunpack.c.h.b16 %v5255
    %v6012 = vunpack.c.l.b16 %v5256
    %v6013 = vunpack.c.h.b16 %v5256
    %v6014 = vunpack.c.l.b16 %v5257
    %v6015 = vunpack.c.h.b16 %v5257
    %v6016 = vunpack.c.l.b16 %v5258
    %v6017 = vunpack.c.h.b16 %v5258
    %v6018 = vunpack.c.l.b16 %v5259
    %v6019 = vunpack.c.h.b16 %v5259
    %v6020 = vunpack.c.l.b16 %v5260
    %v6021 = vunpack.c.h.b16 %v5260
    %v6022 = vunpack.c.l.b16 %v5261
    %v6023 = vunpack.c.h.b16 %v5261
    %v6024 = vunpack.c.l.b16 %v5262
    %v6025 = vunpack.c.h.b16 %v5262
    %v6026 = vunpack.c.l.b16 %v5263
    %v6027 = vunpack.c.h.b16 %v5263
    %v6028 = vunpack.c.l.b16 %v5264
    %v6029 = vunpack.c.h.b16 %v5264
    %v6030 = vunpack.c.l.b16 %v5265
    %v6031 = vunpack.c.h.b16 %v5265
    %v6032 = vunpack.c.l.b16 %v5266
    %v6033 = vunpack.c.h.b16 %v5266
    %v6034 = vunpack.c.l.b16 %v5267
    %v6035 = vunpack.c.h.b16 %v5267
    %v6036 = vunpack.c.l.b16 %v5268
    %v6037 = vunpack.c.h.b16 %v5268
    %v6038 = vunpack.c.l.b16 %v5269
    %v6039 = vunpack.c.h.b16 %v5269
    %v6040 = vunpack.c.l.b16 %v5270
    %v6041 = vunpack.c.h.b16 %v5270
    %v6042 = vunpack.c.l.b16 %v5271
    %v6043 = vunpack.c.h.b16 %v5271
    %v6044 = vunpack.c.l.b16 %v5272
    %v6045 = vunpack.c.h.b16 %v5272
    %v6046 = vunpack.c.l.b16 %v5273
    %v6047 = vunpack.c.h.b16 %v5273
    %v6048 = vunpack.c.l.b16 %v5274
    %v6049 = vunpack.c.h.b16 %v5274
    %v6050 = vunpack.c.l.b16 %v5275
    %v6051 = vunpack.c.h.b16 %v5275
    %v6052 = vunpack.c.l.b16 %v5276
    %v6053 = vunpack.c.h.b16 %v5276
    %v6054 = vunpack.c.l.b16 %v5277
    %v6055 = vunpack.c.h.b16 %v5277
    %v6056 = vpack.c.b16 %v5548, %v5544
    %v6057 = vpack.c.b16 %v5549, %v5545
    %v6058 = vpack.c.b16 %v5550, %v5546
    %v6059 = vpack.c.b16 %v5551, %v5547
    %v6060 = vpack.c.b16 %v5556, %v5552
    %v6061 = vpack.c.b16 %v5557, %v5553
    %v6062 = vpack.c.b16 %v5558, %v5554
    %v6063 = vpack.c.b16 %v5559, %v5555
    %v6064 = vpack.c.b16 %v5564, %v5560
    %v6065 = vpack.c.b16 %v5565, %v5561
    %v6066 = vpack.c.b16 %v5566, %v5562
    %v6067 = vpack.c.b16 %v5567, %v5563
    %v6068 = vpack.c.b16 %v5572, %v5568
    %v6069 = vpack.c.b16 %v5573, %v5569
    %v6070 = vpack.c.b16 %v5574, %v5570
    %v6071 = vpack.c.b16 %v5575, %v5571
    %v6072 = vpack.c.b16 %v5580, %v5576
    %v6073 = vpack.c.b16 %v5581, %v5577
    %v6074 = vpack.c.b16 %v5582, %v5578
    %v6075 = vpack.c.b16 %v5583, %v5579
    %v6076 = vpack.c.b16 %v5588, %v5584
    %v6077 = vpack.c.b16 %v5589, %v5585
    %v6078 = vpack.c.b16 %v5590, %v5586
    %v6079 = vpack.c.b16 %v5591, %v5587
    %v6080 = vpack.c.b16 %v5596, %v5592
    %v6081 = vpack.c.b16 %v5597, %v5593
    %v6082 = vpack.c.b16 %v5598, %v5594
    %v6083 = vpack.c.b16 %v5599, %v5595
    %v6084 = vpack.c.b16 %v5604, %v5600
    %v6085 = vpack.c.b16 %v5605, %v5601
    %v6086 = vpack.c.b16 %v5606, %v5602
    %v6087 = vpack.c.b16 %v5607, %v5603
    %v6088 = vpack.c.b16 %v5612, %v5608
    %v6089 = vpack.c.b16 %v5613, %v5609
    %v6090 = vpack.c.b16 %v5614, %v5610
    %v6091 = vpack.c.b16 %v5615, %v5611
    %v6092 = vpack.c.b16 %v5620, %v5616
    %v6093 = vpack.c.b16 %v5621, %v5617
    %v6094 = vpack.c.b16 %v5622, %v5618
    %v6095 = vpack.c.b16 %v5623, %v5619
    %v6096 = vpack.c.b16 %v5628, %v5624
    %v6097 = vpack.c.b16 %v5629, %v5625
    %v6098 = vpack.c.b16 %v5630, %v5626
    %v6099 = vpack.c.b16 %v5631, %v5627
    %v6100 = vpack.c.b16 %v5636, %v5632
    %v6101 = vpack.c.b16 %v5637, %v5633
    %v6102 = vpack.c.b16 %v5638, %v5634
    %v6103 = vpack.c.b16 %v5639, %v5635
    %v6104 = vpack.c.b16 %v5644, %v5640
    %v6105 = vpack.c.b16 %v5645, %v5641
    %v6106 = vpack.c.b16 %v5646, %v5642
    %v6107 = vpack.c.b16 %v5647, %v5643
    %v6108 = vpack.c.b16 %v5652, %v5648
    %v6109 = vpack.c.b16 %v5653, %v5649
    %v6110 = vpack.c.b16 %v5654, %v5650
    %v6111 = vpack.c.b16 %v5655, %v5651
    %v6112 = vpack.c.b16 %v5660, %v5656
    %v6113 = vpack.c.b16 %v5661, %v5657
    %v6114 = vpack.c.b16 %v5662, %v5658
    %v6115 = vpack.c.b16 %v5663, %v5659
    %v6116 = vpack.c.b16 %v5668, %v5664
    %v6117 = vpack.c.b16 %v5669, %v5665
    %v6118 = vpack.c.b16 %v5670, %v5666
    %v6119 = vpack.c.b16 %v5671, %v5667
    %v6120 = vpack.c.b16 %v5676, %v5672
    %v6121 = vpack.c.b16 %v5677, %v5673
    %v6122 = vpack.c.b16 %v5678, %v5674
    %v6123 = vpack.c.b16 %v5679, %v5675
    %v6124 = vpack.c.b16 %v5684, %v5680
    %v6125 = vpack.c.b16 %v5685, %v5681
    %v6126 = vpack.c.b16 %v5686, %v5682
    %v6127 = vpack.c.b16 %v5687, %v5683
    %v6128 = vpack.c.b16 %v5692, %v5688
    %v6129 = vpack.c.b16 %v5693, %v5689
    %v6130 = vpack.c.b16 %v5694, %v5690
    %v6131 = vpack.c.b16 %v5695, %v5691
    %v6132 = vpack.c.b16 %v5700, %v5696
    %v6133 = vpack.c.b16 %v5701, %v5697
    %v6134 = vpack.c.b16 %v5702, %v5698
    %v6135 = vpack.c.b16 %v5703, %v5699
    %v6136 = vpack.c.b16 %v5708, %v5704
    %v6137 = vpack.c.b16 %v5709, %v5705
    %v6138 = vpack.c.b16 %v5710, %v5706
    %v6139 = vpack.c.b16 %v5711, %v5707
    %v6140 = vpack.c.b16 %v5716, %v5712
    %v6141 = vpack.c.b16 %v5717, %v5713
    %v6142 = vpack.c.b16 %v5718, %v5714
    %v6143 = vpack.c.b16 %v5719, %v5715
    %v6144 = vpack.c.b16 %v5724, %v5720
    %v6145 = vpack.c.b16 %v5725, %v5721
    %v6146 = vpack.c.b16 %v5726, %v5722
    %v6147 = vpack.c.b16 %v5727, %v5723
    %v6148 = vpack.c.b16 %v5732, %v5728
    %v6149 = vpack.c.b16 %v5733, %v5729
    %v6150 = vpack.c.b16 %v5734, %v5730
    %v6151 = vpack.c.b16 %v5735, %v5731
    %v6152 = vpack.c.b16 %v5740, %v5736
    %v6153 = vpack.c.b16 %v5741, %v5737
    %v6154 = vpack.c.b16 %v5742, %v5738
    %v6155 = vpack.c.b16 %v5743, %v5739
    %v6156 = vpack.c.b16 %v5748, %v5744
    %v6157 = vpack.c.b16 %v5749, %v5745
    %v6158 = vpack.c.b16 %v5750, %v5746
    %v6159 = vpack.c.b16 %v5751, %v5747
    %v6160 = vpack.c.b16 %v5756, %v5752
    %v6161 = vpack.c.b16 %v5757, %v5753
    %v6162 = vpack.c.b16 %v5758, %v5754
    %v6163 = vpack.c.b16 %v5759, %v5755
    %v6164 = vpack.c.b16 %v5764, %v5760
    %v6165 = vpack.c.b16 %v5765, %v5761
    %v6166 = vpack.c.b16 %v5766, %v5762
    %v6167 = vpack.c.b16 %v5767, %v5763
    %v6168 = vpack.c.b16 %v5772, %v5768
    %v6169 = vpack.c.b16 %v5773, %v5769
    %v6170 = vpack.c.b16 %v5774, %v5770
    %v6171 = vpack.c.b16 %v5775, %v5771
    %v6172 = vpack.c.b16 %v5780, %v5776
    %v6173 = vpack.c.b16 %v5781, %v5777
    %v6174 = vpack.c.b16 %v5782, %v5778
    %v6175 = vpack.c.b16 %v5783, %v5779
    %v6176 = vpack.c.b16 %v5788, %v5784
    %v6177 = vpack.c.b16 %v5789, %v5785
    %v6178 = vpack.c.b16 %v5790, %v5786
    %v6179 = vpack.c.b16 %v5791, %v5787
    %v6180 = vpack.c.b16 %v5796, %v5792
    %v6181 = vpack.c.b16 %v5797, %v5793
    %v6182 = vpack.c.b16 %v5798, %v5794
    %v6183 = vpack.c.b16 %v5799, %v5795
    %v6184 = vpack.c.b16 %v5804, %v5800
    %v6185 = vpack.c.b16 %v5805, %v5801
    %v6186 = vpack.c.b16 %v5806, %v5802
    %v6187 = vpack.c.b16 %v5807, %v5803
    %v6188 = vpack.c.b16 %v5812, %v5808
    %v6189 = vpack.c.b16 %v5813, %v5809
    %v6190 = vpack.c.b16 %v5814, %v5810
    %v6191 = vpack.c.b16 %v5815, %v5811
    %v6192 = vpack.c.b16 %v5820, %v5816
    %v6193 = vpack.c.b16 %v5821, %v5817
    %v6194 = vpack.c.b16 %v5822, %v5818
    %v6195 = vpack.c.b16 %v5823, %v5819
    %v6196 = vpack.c.b16 %v5828, %v5824
    %v6197 = vpack.c.b16 %v5829, %v5825
    %v6198 = vpack.c.b16 %v5830, %v5826
    %v6199 = vpack.c.b16 %v5831, %v5827
    %v6200 = vpack.c.b16 %v5836, %v5832
    %v6201 = vpack.c.b16 %v5837, %v5833
    %v6202 = vpack.c.b16 %v5838, %v5834
    %v6203 = vpack.c.b16 %v5839, %v5835
    %v6204 = vpack.c.b16 %v5844, %v5840
    %v6205 = vpack.c.b16 %v5845, %v5841
    %v6206 = vpack.c.b16 %v5846, %v5842
    %v6207 = vpack.c.b16 %v5847, %v5843
    %v6208 = vpack.c.b16 %v5852, %v5848
    %v6209 = vpack.c.b16 %v5853, %v5849
    %v6210 = vpack.c.b16 %v5854, %v5850
    %v6211 = vpack.c.b16 %v5855, %v5851
    %v6212 = vpack.c.b16 %v5860, %v5856
    %v6213 = vpack.c.b16 %v5861, %v5857
    %v6214 = vpack.c.b16 %v5862, %v5858
    %v6215 = vpack.c.b16 %v5863, %v5859
    %v6216 = vpack.c.b16 %v5868, %v5864
    %v6217 = vpack.c.b16 %v5869, %v5865
    %v6218 = vpack.c.b16 %v5870, %v5866
    %v6219 = vpack.c.b16 %v5871, %v5867
    %v6220 = vpack.c.b16 %v5876, %v5872
    %v6221 = vpack.c.b16 %v5877, %v5873
    %v6222 = vpack.c.b16 %v5878, %v5874
    %v6223 = vpack.c.b16 %v5879, %v5875
    %v6224 = vpack.c.b16 %v5884, %v5880
    %v6225 = vpack.c.b16 %v5885, %v5881
    %v6226 = vpack.c.b16 %v5886, %v5882
    %v6227 = vpack.c.b16 %v5887, %v5883
    %v6228 = vpack.c.b16 %v5892, %v5888
    %v6229 = vpack.c.b16 %v5893, %v5889
    %v6230 = vpack.c.b16 %v5894, %v5890
    %v6231 = vpack.c.b16 %v5895, %v5891
    %v6232 = vpack.c.b16 %v5900, %v5896
    %v6233 = vpack.c.b16 %v5901, %v5897
    %v6234 = vpack.c.b16 %v5902, %v5898
    %v6235 = vpack.c.b16 %v5903, %v5899
    %v6236 = vpack.c.b16 %v5908, %v5904
    %v6237 = vpack.c.b16 %v5909, %v5905
    %v6238 = vpack.c.b16 %v5910, %v5906
    %v6239 = vpack.c.b16 %v5911, %v5907
    %v6240 = vpack.c.b16 %v5916, %v5912
    %v6241 = vpack.c.b16 %v5917, %v5913
    %v6242 = vpack.c.b16 %v5918, %v5914
    %v6243 = vpack.c.b16 %v5919, %v5915
    %v6244 = vpack.c.b16 %v5924, %v5920
    %v6245 = vpack.c.b16 %v5925, %v5921
    %v6246 = vpack.c.b16 %v5926, %v5922
    %v6247 = vpack.c.b16 %v5927, %v5923
    %v6248 = vpack.c.b16 %v5932, %v5928
    %v6249 = vpack.c.b16 %v5933, %v5929
    %v6250 = vpack.c.b16 %v5934, %v5930
    %v6251 = vpack.c.b16 %v5935, %v5931
    %v6252 = vpack.c.b16 %v5940, %v5936
    %v6253 = vpack.c.b16 %v5941, %v5937
    %v6254 = vpack.c.b16 %v5942, %v5938
    %v6255 = vpack.c.b16 %v5943, %v5939
    %v6256 = vpack.c.b16 %v5948, %v5944
    %v6257 = vpack.c.b16 %v5949, %v5945
    %v6258 = vpack.c.b16 %v5950, %v5946
    %v6259 = vpack.c.b16 %v5951, %v5947
    %v6260 = vpack.c.b16 %v5956, %v5952
    %v6261 = vpack.c.b16 %v5957, %v5953
    %v6262 = vpack.c.b16 %v5958, %v5954
    %v6263 = vpack.c.b16 %v5959, %v5955
    %v6264 = vpack.c.b16 %v5964, %v5960
    %v6265 = vpack.c.b16 %v5965, %v5961
    %v6266 = vpack.c.b16 %v5966, %v5962
    %v6267 = vpack.c.b16 %v5967, %v5963
    %v6268 = vpack.c.b16 %v5972, %v5968
    %v6269 = vpack.c.b16 %v5973, %v5969
    %v6270 = vpack.c.b16 %v5974, %v5970
    %v6271 = vpack.c.b16 %v5975, %v5971
    %v6272 = vpack.c.b16 %v5980, %v5976
    %v6273 = vpack.c.b16 %v5981, %v5977
    %v6274 = vpack.c.b16 %v5982, %v5978
    %v6275 = vpack.c.b16 %v5983, %v5979
    %v6276 = vpack.c.b16 %v5988, %v5984
    %v6277 = vpack.c.b16 %v5989, %v5985
    %v6278 = vpack.c.b16 %v5990, %v5986
    %v6279 = vpack.c.b16 %v5991, %v5987
    %v6280 = vpack.c.b16 %v5996, %v5992
    %v6281 = vpack.c.b16 %v5997, %v5993
    %v6282 = vpack.c.b16 %v5998, %v5994
    %v6283 = vpack.c.b16 %v5999, %v5995
    %v6284 = vpack.c.b16 %v6004, %v6000
    %v6285 = vpack.c.b16 %v6005, %v6001
    %v6286 = vpack.c.b16 %v6006, %v6002
    %v6287 = vpack.c.b16 %v6007, %v6003
    %v6288 = vpack.c.b16 %v6012, %v6008
    %v6289 = vpack.c.b16 %v6013, %v6009
    %v6290 = vpack.c.b16 %v6014, %v6010
    %v6291 = vpack.c.b16 %v6015, %v6011
    %v6292 = vpack.c.b16 %v6020, %v6016
    %v6293 = vpack.c.b16 %v6021, %v6017
    %v6294 = vpack.c.b16 %v6022, %v6018
    %v6295 = vpack.c.b16 %v6023, %v6019
    %v6296 = vpack.c.b16 %v6028, %v6024
    %v6297 = vpack.c.b16 %v6029, %v6025
    %v6298 = vpack.c.b16 %v6030, %v6026
    %v6299 = vpack.c.b16 %v6031, %v6027
    %v6300 = vpack.c.b16 %v6036, %v6032
    %v6301 = vpack.c.b16 %v6037, %v6033
    %v6302 = vpack.c.b16 %v6038, %v6034
    %v6303 = vpack.c.b16 %v6039, %v6035
    %v6304 = vpack.c.b16 %v6044, %v6040
    %v6305 = vpack.c.b16 %v6045, %v6041
    %v6306 = vpack.c.b16 %v6046, %v6042
    %v6307 = vpack.c.b16 %v6047, %v6043
    %v6308 = vpack.c.b16 %v6052, %v6048
    %v6309 = vpack.c.b16 %v6053, %v6049
    %v6310 = vpack.c.b16 %v6054, %v6050
    %v6311 = vpack.c.b16 %v6055, %v6051
    %6568 = vmatpush.bf16.msra.mxu0 %v6084
    %6569 = vmatpush.bf16.msra.mxu0 %v6080
    %6570 = vmatpush.bf16.msra.mxu0 %v6076
    %6571 = vmatpush.bf16.msra.mxu0 %v6072
    %6572 = vmatpush.bf16.msra.mxu0 %v6068
    %6573 = vmatpush.bf16.msra.mxu0 %v6064
    %6574 = vmatpush.bf16.msra.mxu0 %v6060
    %6575 = vmatpush.bf16.msra.mxu0 %v6056
    %6576 = vmatmul.bf16.gmra.mxu0 %v5014
    %v6577 = vpop.f32.mrf.mxu0
    %v6578 = vadd.f32 %v5280, %v6577
    %v6579 = vpop.f32.mrf.mxu0
    %6580 = vdwg.mxu0
    %6581 = vmatpush.bf16.msra.mxu0 %v6116
    %6582 = vmatpush.bf16.msra.mxu0 %v6112
    %6583 = vmatpush.bf16.msra.mxu0 %v6108
    %6584 = vmatpush.bf16.msra.mxu0 %v6104
    %6585 = vmatpush.bf16.msra.mxu0 %v6100
    %6586 = vmatpush.bf16.msra.mxu0 %v6096
    %6587 = vmatpush.bf16.msra.mxu0 %v6092
    %6588 = vmatpush.bf16.msra.mxu0 %v6088
    %6589 = vmatmul.bf16.gmra.mxu0 %v5015
    %v6590 = vpop.f32.mrf.mxu0
    %v6591 = vadd.f32 %v6578, %v6590
    %v6592 = vpop.f32.mrf.mxu0
    %6593 = vdwg.mxu0
    %6594 = vmatpush.bf16.msra.mxu0 %v6148
    %6595 = vmatpush.bf16.msra.mxu0 %v6144
    %6596 = vmatpush.bf16.msra.mxu0 %v6140
    %6597 = vmatpush.bf16.msra.mxu0 %v6136
    %6598 = vmatpush.bf16.msra.mxu0 %v6132
    %6599 = vmatpush.bf16.msra.mxu0 %v6128
    %6600 = vmatpush.bf16.msra.mxu0 %v6124
    %6601 = vmatpush.bf16.msra.mxu0 %v6120
    %6602 = vmatmul.bf16.gmra.mxu0 %v5016
    %v6603 = vpop.f32.mrf.mxu0
    %v6604 = vadd.f32 %v6591, %v6603
    %v6605 = vpop.f32.mrf.mxu0
    %6606 = vdwg.mxu0
    %6607 = vmatpush.bf16.msra.mxu0 %v6180
    %6608 = vmatpush.bf16.msra.mxu0 %v6176
    %6609 = vmatpush.bf16.msra.mxu0 %v6172
    %6610 = vmatpush.bf16.msra.mxu0 %v6168
    %6611 = vmatpush.bf16.msra.mxu0 %v6164
    %6612 = vmatpush.bf16.msra.mxu0 %v6160
    %6613 = vmatpush.bf16.msra.mxu0 %v6156
    %6614 = vmatpush.bf16.msra.mxu0 %v6152
    %6615 = vmatmul.bf16.gmra.mxu0 %v5017
    %v6616 = vpop.f32.mrf.mxu0
    %v6617 = vadd.f32 %v6604, %v6616
    %v6618 = vpop.f32.mrf.mxu0
    %6619 = vdwg.mxu0
    %6620 = vmatpush.bf16.msra.mxu0 %v6212
    %6621 = vmatpush.bf16.msra.mxu0 %v6208
    %6622 = vmatpush.bf16.msra.mxu0 %v6204
    %6623 = vmatpush.bf16.msra.mxu0 %v6200
    %6624 = vmatpush.bf16.msra.mxu0 %v6196
    %6625 = vmatpush.bf16.msra.mxu0 %v6192
    %6626 = vmatpush.bf16.msra.mxu0 %v6188
    %6627 = vmatpush.bf16.msra.mxu0 %v6184
    %6628 = vmatmul.bf16.gmra.mxu0 %v5018
    %v6629 = vpop.f32.mrf.mxu0
    %v6630 = vadd.f32 %v6617, %v6629
    %v6631 = vpop.f32.mrf.mxu0
    %6632 = vdwg.mxu0
    %6633 = vmatpush.bf16.msra.mxu0 %v6244
    %6634 = vmatpush.bf16.msra.mxu0 %v6240
    %6635 = vmatpush.bf16.msra.mxu0 %v6236
    %6636 = vmatpush.bf16.msra.mxu0 %v6232
    %6637 = vmatpush.bf16.msra.mxu0 %v6228
    %6638 = vmatpush.bf16.msra.mxu0 %v6224
    %6639 = vmatpush.bf16.msra.mxu0 %v6220
    %6640 = vmatpush.bf16.msra.mxu0 %v6216
    %6641 = vmatmul.bf16.gmra.mxu0 %v5019
    %v6642 = vpop.f32.mrf.mxu0
    %v6643 = vadd.f32 %v6630, %v6642
    %v6644 = vpop.f32.mrf.mxu0
    %6645 = vdwg.mxu0
    %6646 = vmatpush.bf16.msra.mxu0 %v6276
    %6647 = vmatpush.bf16.msra.mxu0 %v6272
    %6648 = vmatpush.bf16.msra.mxu0 %v6268
    %6649 = vmatpush.bf16.msra.mxu0 %v6264
    %6650 = vmatpush.bf16.msra.mxu0 %v6260
    %6651 = vmatpush.bf16.msra.mxu0 %v6256
    %6652 = vmatpush.bf16.msra.mxu0 %v6252
    %6653 = vmatpush.bf16.msra.mxu0 %v6248
    %6654 = vmatmul.bf16.gmra.mxu0 %v5020
    %v6655 = vpop.f32.mrf.mxu0
    %v6656 = vadd.f32 %v6643, %v6655
    %v6657 = vpop.f32.mrf.mxu0
    %6658 = vdwg.mxu0
    %6659 = vmatpush.bf16.msra.mxu0 %v6308
    %6660 = vmatpush.bf16.msra.mxu0 %v6304
    %6661 = vmatpush.bf16.msra.mxu0 %v6300
    %6662 = vmatpush.bf16.msra.mxu0 %v6296
    %6663 = vmatpush.bf16.msra.mxu0 %v6292
    %6664 = vmatpush.bf16.msra.mxu0 %v6288
    %6665 = vmatpush.bf16.msra.mxu0 %v6284
    %6666 = vmatpush.bf16.msra.mxu0 %v6280
    %6667 = vmatmul.bf16.gmra.mxu0 %v5021
    %v6668 = vpop.f32.mrf.mxu0
    %v6669 = vadd.f32 %v6656, %v6668
    %v6670 = vpop.f32.mrf.mxu0
    %6671 = vdwg.mxu0
    %6672 = vmatpush.bf16.msra.mxu0 %v6085
    %6673 = vmatpush.bf16.msra.mxu0 %v6081
    %6674 = vmatpush.bf16.msra.mxu0 %v6077
    %6675 = vmatpush.bf16.msra.mxu0 %v6073
    %6676 = vmatpush.bf16.msra.mxu0 %v6069
    %6677 = vmatpush.bf16.msra.mxu0 %v6065
    %6678 = vmatpush.bf16.msra.mxu0 %v6061
    %6679 = vmatpush.bf16.msra.mxu0 %v6057
    %6680 = vmatmul.bf16.gmra.mxu0 %v5014
    %v6681 = vpop.f32.mrf.mxu0
    %v6682 = vadd.f32 %v5281, %v6681
    %v6683 = vpop.f32.mrf.mxu0
    %6684 = vdwg.mxu0
    %6685 = vmatpush.bf16.msra.mxu0 %v6117
    %6686 = vmatpush.bf16.msra.mxu0 %v6113
    %6687 = vmatpush.bf16.msra.mxu0 %v6109
    %6688 = vmatpush.bf16.msra.mxu0 %v6105
    %6689 = vmatpush.bf16.msra.mxu0 %v6101
    %6690 = vmatpush.bf16.msra.mxu0 %v6097
    %6691 = vmatpush.bf16.msra.mxu0 %v6093
    %6692 = vmatpush.bf16.msra.mxu0 %v6089
    %6693 = vmatmul.bf16.gmra.mxu0 %v5015
    %v6694 = vpop.f32.mrf.mxu0
    %v6695 = vadd.f32 %v6682, %v6694
    %v6696 = vpop.f32.mrf.mxu0
    %6697 = vdwg.mxu0
    %6698 = vmatpush.bf16.msra.mxu0 %v6149
    %6699 = vmatpush.bf16.msra.mxu0 %v6145
    %6700 = vmatpush.bf16.msra.mxu0 %v6141
    %6701 = vmatpush.bf16.msra.mxu0 %v6137
    %6702 = vmatpush.bf16.msra.mxu0 %v6133
    %6703 = vmatpush.bf16.msra.mxu0 %v6129
    %6704 = vmatpush.bf16.msra.mxu0 %v6125
    %6705 = vmatpush.bf16.msra.mxu0 %v6121
    %6706 = vmatmul.bf16.gmra.mxu0 %v5016
    %v6707 = vpop.f32.mrf.mxu0
    %v6708 = vadd.f32 %v6695, %v6707
    %v6709 = vpop.f32.mrf.mxu0
    %6710 = vdwg.mxu0
    %6711 = vmatpush.bf16.msra.mxu0 %v6181
    %6712 = vmatpush.bf16.msra.mxu0 %v6177
    %6713 = vmatpush.bf16.msra.mxu0 %v6173
    %6714 = vmatpush.bf16.msra.mxu0 %v6169
    %6715 = vmatpush.bf16.msra.mxu0 %v6165
    %6716 = vmatpush.bf16.msra.mxu0 %v6161
    %6717 = vmatpush.bf16.msra.mxu0 %v6157
    %6718 = vmatpush.bf16.msra.mxu0 %v6153
    %6719 = vmatmul.bf16.gmra.mxu0 %v5017
    %v6720 = vpop.f32.mrf.mxu0
    %v6721 = vadd.f32 %v6708, %v6720
    %v6722 = vpop.f32.mrf.mxu0
    %6723 = vdwg.mxu0
    %6724 = vmatpush.bf16.msra.mxu0 %v6213
    %6725 = vmatpush.bf16.msra.mxu0 %v6209
    %6726 = vmatpush.bf16.msra.mxu0 %v6205
    %6727 = vmatpush.bf16.msra.mxu0 %v6201
    %6728 = vmatpush.bf16.msra.mxu0 %v6197
    %6729 = vmatpush.bf16.msra.mxu0 %v6193
    %6730 = vmatpush.bf16.msra.mxu0 %v6189
    %6731 = vmatpush.bf16.msra.mxu0 %v6185
    %6732 = vmatmul.bf16.gmra.mxu0 %v5018
    %v6733 = vpop.f32.mrf.mxu0
    %v6734 = vadd.f32 %v6721, %v6733
    %v6735 = vpop.f32.mrf.mxu0
    %6736 = vdwg.mxu0
    %6737 = vmatpush.bf16.msra.mxu0 %v6245
    %6738 = vmatpush.bf16.msra.mxu0 %v6241
    %6739 = vmatpush.bf16.msra.mxu0 %v6237
    %6740 = vmatpush.bf16.msra.mxu0 %v6233
    %6741 = vmatpush.bf16.msra.mxu0 %v6229
    %6742 = vmatpush.bf16.msra.mxu0 %v6225
    %6743 = vmatpush.bf16.msra.mxu0 %v6221
    %6744 = vmatpush.bf16.msra.mxu0 %v6217
    %6745 = vmatmul.bf16.gmra.mxu0 %v5019
    %v6746 = vpop.f32.mrf.mxu0
    %v6747 = vadd.f32 %v6734, %v6746
    %v6748 = vpop.f32.mrf.mxu0
    %6749 = vdwg.mxu0
    %6750 = vmatpush.bf16.msra.mxu0 %v6277
    %6751 = vmatpush.bf16.msra.mxu0 %v6273
    %6752 = vmatpush.bf16.msra.mxu0 %v6269
    %6753 = vmatpush.bf16.msra.mxu0 %v6265
    %6754 = vmatpush.bf16.msra.mxu0 %v6261
    %6755 = vmatpush.bf16.msra.mxu0 %v6257
    %6756 = vmatpush.bf16.msra.mxu0 %v6253
    %6757 = vmatpush.bf16.msra.mxu0 %v6249
    %6758 = vmatmul.bf16.gmra.mxu0 %v5020
    %v6759 = vpop.f32.mrf.mxu0
    %v6760 = vadd.f32 %v6747, %v6759
    %v6761 = vpop.f32.mrf.mxu0
    %6762 = vdwg.mxu0
    %6763 = vmatpush.bf16.msra.mxu0 %v6309
    %6764 = vmatpush.bf16.msra.mxu0 %v6305
    %6765 = vmatpush.bf16.msra.mxu0 %v6301
    %6766 = vmatpush.bf16.msra.mxu0 %v6297
    %6767 = vmatpush.bf16.msra.mxu0 %v6293
    %6768 = vmatpush.bf16.msra.mxu0 %v6289
    %6769 = vmatpush.bf16.msra.mxu0 %v6285
    %6770 = vmatpush.bf16.msra.mxu0 %v6281
    %6771 = vmatmul.bf16.gmra.mxu0 %v5021
    %v6772 = vpop.f32.mrf.mxu0
    %v6773 = vadd.f32 %v6760, %v6772
    %v6774 = vpop.f32.mrf.mxu0
    %6775 = vdwg.mxu0
    %6776 = vmatpush.bf16.msra.mxu0 %v6086
    %6777 = vmatpush.bf16.msra.mxu0 %v6082
    %6778 = vmatpush.bf16.msra.mxu0 %v6078
    %6779 = vmatpush.bf16.msra.mxu0 %v6074
    %6780 = vmatpush.bf16.msra.mxu0 %v6070
    %6781 = vmatpush.bf16.msra.mxu0 %v6066
    %6782 = vmatpush.bf16.msra.mxu0 %v6062
    %6783 = vmatpush.bf16.msra.mxu0 %v6058
    %6784 = vmatmul.bf16.gmra.mxu0 %v5014
    %v6785 = vpop.f32.mrf.mxu0
    %v6786 = vadd.f32 %v5282, %v6785
    %v6787 = vpop.f32.mrf.mxu0
    %6788 = vdwg.mxu0
    %6789 = vmatpush.bf16.msra.mxu0 %v6118
    %6790 = vmatpush.bf16.msra.mxu0 %v6114
    %6791 = vmatpush.bf16.msra.mxu0 %v6110
    %6792 = vmatpush.bf16.msra.mxu0 %v6106
    %6793 = vmatpush.bf16.msra.mxu0 %v6102
    %6794 = vmatpush.bf16.msra.mxu0 %v6098
    %6795 = vmatpush.bf16.msra.mxu0 %v6094
    %6796 = vmatpush.bf16.msra.mxu0 %v6090
    %6797 = vmatmul.bf16.gmra.mxu0 %v5015
    %v6798 = vpop.f32.mrf.mxu0
    %v6799 = vadd.f32 %v6786, %v6798
    %v6800 = vpop.f32.mrf.mxu0
    %6801 = vdwg.mxu0
    %6802 = vmatpush.bf16.msra.mxu0 %v6150
    %6803 = vmatpush.bf16.msra.mxu0 %v6146
    %6804 = vmatpush.bf16.msra.mxu0 %v6142
    %6805 = vmatpush.bf16.msra.mxu0 %v6138
    %6806 = vmatpush.bf16.msra.mxu0 %v6134
    %6807 = vmatpush.bf16.msra.mxu0 %v6130
    %6808 = vmatpush.bf16.msra.mxu0 %v6126
    %6809 = vmatpush.bf16.msra.mxu0 %v6122
    %6810 = vmatmul.bf16.gmra.mxu0 %v5016
    %v6811 = vpop.f32.mrf.mxu0
    %v6812 = vadd.f32 %v6799, %v6811
    %v6813 = vpop.f32.mrf.mxu0
    %6814 = vdwg.mxu0
    %6815 = vmatpush.bf16.msra.mxu0 %v6182
    %6816 = vmatpush.bf16.msra.mxu0 %v6178
    %6817 = vmatpush.bf16.msra.mxu0 %v6174
    %6818 = vmatpush.bf16.msra.mxu0 %v6170
    %6819 = vmatpush.bf16.msra.mxu0 %v6166
    %6820 = vmatpush.bf16.msra.mxu0 %v6162
    %6821 = vmatpush.bf16.msra.mxu0 %v6158
    %6822 = vmatpush.bf16.msra.mxu0 %v6154
    %6823 = vmatmul.bf16.gmra.mxu0 %v5017
    %v6824 = vpop.f32.mrf.mxu0
    %v6825 = vadd.f32 %v6812, %v6824
    %v6826 = vpop.f32.mrf.mxu0
    %6827 = vdwg.mxu0
    %6828 = vmatpush.bf16.msra.mxu0 %v6214
    %6829 = vmatpush.bf16.msra.mxu0 %v6210
    %6830 = vmatpush.bf16.msra.mxu0 %v6206
    %6831 = vmatpush.bf16.msra.mxu0 %v6202
    %6832 = vmatpush.bf16.msra.mxu0 %v6198
    %6833 = vmatpush.bf16.msra.mxu0 %v6194
    %6834 = vmatpush.bf16.msra.mxu0 %v6190
    %6835 = vmatpush.bf16.msra.mxu0 %v6186
    %6836 = vmatmul.bf16.gmra.mxu0 %v5018
    %v6837 = vpop.f32.mrf.mxu0
    %v6838 = vadd.f32 %v6825, %v6837
    %v6839 = vpop.f32.mrf.mxu0
    %6840 = vdwg.mxu0
    %6841 = vmatpush.bf16.msra.mxu0 %v6246
    %6842 = vmatpush.bf16.msra.mxu0 %v6242
    %6843 = vmatpush.bf16.msra.mxu0 %v6238
    %6844 = vmatpush.bf16.msra.mxu0 %v6234
    %6845 = vmatpush.bf16.msra.mxu0 %v6230
    %6846 = vmatpush.bf16.msra.mxu0 %v6226
    %6847 = vmatpush.bf16.msra.mxu0 %v6222
    %6848 = vmatpush.bf16.msra.mxu0 %v6218
    %6849 = vmatmul.bf16.gmra.mxu0 %v5019
    %v6850 = vpop.f32.mrf.mxu0
    %v6851 = vadd.f32 %v6838, %v6850
    %v6852 = vpop.f32.mrf.mxu0
    %6853 = vdwg.mxu0
    %6854 = vmatpush.bf16.msra.mxu0 %v6278
    %6855 = vmatpush.bf16.msra.mxu0 %v6274
    %6856 = vmatpush.bf16.msra.mxu0 %v6270
    %6857 = vmatpush.bf16.msra.mxu0 %v6266
    %6858 = vmatpush.bf16.msra.mxu0 %v6262
    %6859 = vmatpush.bf16.msra.mxu0 %v6258
    %6860 = vmatpush.bf16.msra.mxu0 %v6254
    %6861 = vmatpush.bf16.msra.mxu0 %v6250
    %6862 = vmatmul.bf16.gmra.mxu0 %v5020
    %v6863 = vpop.f32.mrf.mxu0
    %v6864 = vadd.f32 %v6851, %v6863
    %v6865 = vpop.f32.mrf.mxu0
    %6866 = vdwg.mxu0
    %6867 = vmatpush.bf16.msra.mxu0 %v6310
    %6868 = vmatpush.bf16.msra.mxu0 %v6306
    %6869 = vmatpush.bf16.msra.mxu0 %v6302
    %6870 = vmatpush.bf16.msra.mxu0 %v6298
    %6871 = vmatpush.bf16.msra.mxu0 %v6294
    %6872 = vmatpush.bf16.msra.mxu0 %v6290
    %6873 = vmatpush.bf16.msra.mxu0 %v6286
    %6874 = vmatpush.bf16.msra.mxu0 %v6282
    %6875 = vmatmul.bf16.gmra.mxu0 %v5021
    %v6876 = vpop.f32.mrf.mxu0
    %v6877 = vadd.f32 %v6864, %v6876
    %v6878 = vpop.f32.mrf.mxu0
    %6879 = vdwg.mxu0
    %6880 = vmatpush.bf16.msra.mxu0 %v6087
    %6881 = vmatpush.bf16.msra.mxu0 %v6083
    %6882 = vmatpush.bf16.msra.mxu0 %v6079
    %6883 = vmatpush.bf16.msra.mxu0 %v6075
    %6884 = vmatpush.bf16.msra.mxu0 %v6071
    %6885 = vmatpush.bf16.msra.mxu0 %v6067
    %6886 = vmatpush.bf16.msra.mxu0 %v6063
    %6887 = vmatpush.bf16.msra.mxu0 %v6059
    %6888 = vmatmul.bf16.gmra.mxu0 %v5014
    %v6889 = vpop.f32.mrf.mxu0
    %v6890 = vadd.f32 %v5283, %v6889
    %v6891 = vpop.f32.mrf.mxu0
    %6892 = vdwg.mxu0
    %6893 = vmatpush.bf16.msra.mxu0 %v6119
    %6894 = vmatpush.bf16.msra.mxu0 %v6115
    %6895 = vmatpush.bf16.msra.mxu0 %v6111
    %6896 = vmatpush.bf16.msra.mxu0 %v6107
    %6897 = vmatpush.bf16.msra.mxu0 %v6103
    %6898 = vmatpush.bf16.msra.mxu0 %v6099
    %6899 = vmatpush.bf16.msra.mxu0 %v6095
    %6900 = vmatpush.bf16.msra.mxu0 %v6091
    %6901 = vmatmul.bf16.gmra.mxu0 %v5015
    %v6902 = vpop.f32.mrf.mxu0
    %v6903 = vadd.f32 %v6890, %v6902
    %v6904 = vpop.f32.mrf.mxu0
    %6905 = vdwg.mxu0
    %6906 = vmatpush.bf16.msra.mxu0 %v6151
    %6907 = vmatpush.bf16.msra.mxu0 %v6147
    %6908 = vmatpush.bf16.msra.mxu0 %v6143
    %6909 = vmatpush.bf16.msra.mxu0 %v6139
    %6910 = vmatpush.bf16.msra.mxu0 %v6135
    %6911 = vmatpush.bf16.msra.mxu0 %v6131
    %6912 = vmatpush.bf16.msra.mxu0 %v6127
    %6913 = vmatpush.bf16.msra.mxu0 %v6123
    %6914 = vmatmul.bf16.gmra.mxu0 %v5016
    %v6915 = vpop.f32.mrf.mxu0
    %v6916 = vadd.f32 %v6903, %v6915
    %v6917 = vpop.f32.mrf.mxu0
    %6918 = vdwg.mxu0
    %6919 = vmatpush.bf16.msra.mxu0 %v6183
    %6920 = vmatpush.bf16.msra.mxu0 %v6179
    %6921 = vmatpush.bf16.msra.mxu0 %v6175
    %6922 = vmatpush.bf16.msra.mxu0 %v6171
    %6923 = vmatpush.bf16.msra.mxu0 %v6167
    %6924 = vmatpush.bf16.msra.mxu0 %v6163
    %6925 = vmatpush.bf16.msra.mxu0 %v6159
    %6926 = vmatpush.bf16.msra.mxu0 %v6155
    %6927 = vmatmul.bf16.gmra.mxu0 %v5017
    %v6928 = vpop.f32.mrf.mxu0
    %v6929 = vadd.f32 %v6916, %v6928
    %v6930 = vpop.f32.mrf.mxu0
    %6931 = vdwg.mxu0
    %6932 = vmatpush.bf16.msra.mxu0 %v6215
    %6933 = vmatpush.bf16.msra.mxu0 %v6211
    %6934 = vmatpush.bf16.msra.mxu0 %v6207
    %6935 = vmatpush.bf16.msra.mxu0 %v6203
    %6936 = vmatpush.bf16.msra.mxu0 %v6199
    %6937 = vmatpush.bf16.msra.mxu0 %v6195
    %6938 = vmatpush.bf16.msra.mxu0 %v6191
    %6939 = vmatpush.bf16.msra.mxu0 %v6187
    %6940 = vmatmul.bf16.gmra.mxu0 %v5018
    %v6941 = vpop.f32.mrf.mxu0
    %v6942 = vadd.f32 %v6929, %v6941
    %v6943 = vpop.f32.mrf.mxu0
    %6944 = vdwg.mxu0
    %6945 = vmatpush.bf16.msra.mxu0 %v6247
    %6946 = vmatpush.bf16.msra.mxu0 %v6243
    %6947 = vmatpush.bf16.msra.mxu0 %v6239
    %6948 = vmatpush.bf16.msra.mxu0 %v6235
    %6949 = vmatpush.bf16.msra.mxu0 %v6231
    %6950 = vmatpush.bf16.msra.mxu0 %v6227
    %6951 = vmatpush.bf16.msra.mxu0 %v6223
    %6952 = vmatpush.bf16.msra.mxu0 %v6219
    %6953 = vmatmul.bf16.gmra.mxu0 %v5019
    %v6954 = vpop.f32.mrf.mxu0
    %v6955 = vadd.f32 %v6942, %v6954
    %v6956 = vpop.f32.mrf.mxu0
    %6957 = vdwg.mxu0
    %6958 = vmatpush.bf16.msra.mxu0 %v6279
    %6959 = vmatpush.bf16.msra.mxu0 %v6275
    %6960 = vmatpush.bf16.msra.mxu0 %v6271
    %6961 = vmatpush.bf16.msra.mxu0 %v6267
    %6962 = vmatpush.bf16.msra.mxu0 %v6263
    %6963 = vmatpush.bf16.msra.mxu0 %v6259
    %6964 = vmatpush.bf16.msra.mxu0 %v6255
    %6965 = vmatpush.bf16.msra.mxu0 %v6251
    %6966 = vmatmul.bf16.gmra.mxu0 %v5020
    %v6967 = vpop.f32.mrf.mxu0
    %v6968 = vadd.f32 %v6955, %v6967
    %v6969 = vpop.f32.mrf.mxu0
    %6970 = vdwg.mxu0
    %6971 = vmatpush.bf16.msra.mxu0 %v6311
    %6972 = vmatpush.bf16.msra.mxu0 %v6307
    %6973 = vmatpush.bf16.msra.mxu0 %v6303
    %6974 = vmatpush.bf16.msra.mxu0 %v6299
    %6975 = vmatpush.bf16.msra.mxu0 %v6295
    %6976 = vmatpush.bf16.msra.mxu0 %v6291
    %6977 = vmatpush.bf16.msra.mxu0 %v6287
    %6978 = vmatpush.bf16.msra.mxu0 %v6283
    %6979 = vmatmul.bf16.gmra.mxu0 %v5021
    %v6980 = vpop.f32.mrf.mxu0
    %v6981 = vadd.f32 %v6968, %v6980
    %v6982 = vpop.f32.mrf.mxu0
    %6983 = vdwg.mxu0
    %vm6984 = vcmp.gt.f32.partialorder %v6669, 0.0
    %vm6985 = vcmp.gt.f32.partialorder %v6773, 0.0
    %vm6986 = vcmp.gt.f32.partialorder %v6877, 0.0
    %vm6987 = vcmp.gt.f32.partialorder %v6981, 0.0
    %v6988 = vmul.f32 %v6669, 0.01
    %v6989 = vmul.f32 %v6773, 0.01
    %v6990 = vmul.f32 %v6877, 0.01
    %v6991 = vmul.f32 %v6981, 0.01
    %v6992 = vsel %vm6984, %v6669, %v6988
    %v6993 = vsel %vm6985, %v6773, %v6989
    %v6994 = vsel %vm6986, %v6877, %v6990
    %v6995 = vsel %vm6987, %v6981, %v6991
    %v6996 = vpack.c.bf16 %v6992, %v6992
    %v6997 = vpack.c.bf16 %v6993, %v6993
    %v6998 = vpack.c.bf16 %v6994, %v6994
    %v6999 = vpack.c.bf16 %v6995, %v6995
    %v7000 = vld [vmem:[%s7] sm:$0xf]
    %v7001 = vld [vmem:[%s7 + $0x4] sm:$0xf]
    %v7002 = vld [vmem:[%s7 + $0x8] sm:$0xf]
    %v7003 = vld [vmem:[%s7 + $0xc] sm:$0xf]
    %v7004 = vld [vmem:[%s7 + $0x10] sm:$0xf]
    %v7005 = vld [vmem:[%s7 + $0x14] sm:$0xf]
    %v7006 = vld [vmem:[%s7 + $0x18] sm:$0xf]
    %v7007 = vld [vmem:[%s7 + $0x1c] sm:$0xf]
    %v7008 = vld [vmem:[%s7 + $0x20] sm:$0xf]
    %v7009 = vld [vmem:[%s7 + $0x24] sm:$0xf]
    %v7010 = vld [vmem:[%s7 + $0x28] sm:$0xf]
    %v7011 = vld [vmem:[%s7 + $0x2c] sm:$0xf]
    %v7012 = vld [vmem:[%s7 + $0x30] sm:$0xf]
    %v7013 = vld [vmem:[%s7 + $0x34] sm:$0xf]
    %v7014 = vld [vmem:[%s7 + $0x38] sm:$0xf]
    %v7015 = vld [vmem:[%s7 + $0x3c] sm:$0xf]
    %v7016 = vld [vmem:[%s7 + $0x40] sm:$0xf]
    %v7017 = vld [vmem:[%s7 + $0x44] sm:$0xf]
    %v7018 = vld [vmem:[%s7 + $0x48] sm:$0xf]
    %v7019 = vld [vmem:[%s7 + $0x4c] sm:$0xf]
    %v7020 = vld [vmem:[%s7 + $0x50] sm:$0xf]
    %v7021 = vld [vmem:[%s7 + $0x54] sm:$0xf]
    %v7022 = vld [vmem:[%s7 + $0x58] sm:$0xf]
    %v7023 = vld [vmem:[%s7 + $0x5c] sm:$0xf]
    %v7024 = vld [vmem:[%s7 + $0x60] sm:$0xf]
    %v7025 = vld [vmem:[%s7 + $0x64] sm:$0xf]
    %v7026 = vld [vmem:[%s7 + $0x68] sm:$0xf]
    %v7027 = vld [vmem:[%s7 + $0x6c] sm:$0xf]
    %v7028 = vld [vmem:[%s7 + $0x70] sm:$0xf]
    %v7029 = vld [vmem:[%s7 + $0x74] sm:$0xf]
    %v7030 = vld [vmem:[%s7 + $0x78] sm:$0xf]
    %v7031 = vld [vmem:[%s7 + $0x7c] sm:$0xf]
    %v7032 = vld [vmem:[%s7 + $0x80] sm:$0xf]
    %v7033 = vld [vmem:[%s7 + $0x84] sm:$0xf]
    %v7034 = vld [vmem:[%s7 + $0x88] sm:$0xf]
    %v7035 = vld [vmem:[%s7 + $0x8c] sm:$0xf]
    %v7036 = vld [vmem:[%s7 + $0x90] sm:$0xf]
    %v7037 = vld [vmem:[%s7 + $0x94] sm:$0xf]
    %v7038 = vld [vmem:[%s7 + $0x98] sm:$0xf]
    %v7039 = vld [vmem:[%s7 + $0x9c] sm:$0xf]
    %v7040 = vld [vmem:[%s7 + $0xa0] sm:$0xf]
    %v7041 = vld [vmem:[%s7 + $0xa4] sm:$0xf]
    %v7042 = vld [vmem:[%s7 + $0xa8] sm:$0xf]
    %v7043 = vld [vmem:[%s7 + $0xac] sm:$0xf]
    %v7044 = vld [vmem:[%s7 + $0xb0] sm:$0xf]
    %v7045 = vld [vmem:[%s7 + $0xb4] sm:$0xf]
    %v7046 = vld [vmem:[%s7 + $0xb8] sm:$0xf]
    %v7047 = vld [vmem:[%s7 + $0xbc] sm:$0xf]
    %v7048 = vld [vmem:[%s7 + $0xc0] sm:$0xf]
    %v7049 = vld [vmem:[%s7 + $0xc4] sm:$0xf]
    %v7050 = vld [vmem:[%s7 + $0xc8] sm:$0xf]
    %v7051 = vld [vmem:[%s7 + $0xcc] sm:$0xf]
    %v7052 = vld [vmem:[%s7 + $0xd0] sm:$0xf]
    %v7053 = vld [vmem:[%s7 + $0xd4] sm:$0xf]
    %v7054 = vld [vmem:[%s7 + $0xd8] sm:$0xf]
    %v7055 = vld [vmem:[%s7 + $0xdc] sm:$0xf]
    %v7056 = vld [vmem:[%s7 + $0xe0] sm:$0xf]
    %v7057 = vld [vmem:[%s7 + $0xe4] sm:$0xf]
    %v7058 = vld [vmem:[%s7 + $0xe8] sm:$0xf]
    %v7059 = vld [vmem:[%s7 + $0xec] sm:$0xf]
    %v7060 = vld [vmem:[%s7 + $0xf0] sm:$0xf]
    %v7061 = vld [vmem:[%s7 + $0xf4] sm:$0xf]
    %v7062 = vld [vmem:[%s7 + $0xf8] sm:$0xf]
    %v7063 = vld [vmem:[%s7 + $0xfc] sm:$0xf]
    %v7064 = vld [vmem:[%s8] sm:$0x1]
    %v7066 = vperm.slane %v7064, 0
    %v7132 = vunpack.c.l.b16 %v7000
    %v7133 = vunpack.c.l.b16 %v7001
    %v7134 = vunpack.c.l.b16 %v7002
    %v7135 = vunpack.c.l.b16 %v7003
    %v7136 = vunpack.c.l.b16 %v7004
    %v7137 = vunpack.c.l.b16 %v7005
    %v7138 = vunpack.c.l.b16 %v7006
    %v7139 = vunpack.c.l.b16 %v7007
    %v7140 = vunpack.c.l.b16 %v7008
    %v7141 = vunpack.c.l.b16 %v7009
    %v7142 = vunpack.c.l.b16 %v7010
    %v7143 = vunpack.c.l.b16 %v7011
    %v7144 = vunpack.c.l.b16 %v7012
    %v7145 = vunpack.c.l.b16 %v7013
    %v7146 = vunpack.c.l.b16 %v7014
    %v7147 = vunpack.c.l.b16 %v7015
    %v7148 = vunpack.c.l.b16 %v7016
    %v7149 = vunpack.c.l.b16 %v7017
    %v7150 = vunpack.c.l.b16 %v7018
    %v7151 = vunpack.c.l.b16 %v7019
    %v7152 = vunpack.c.l.b16 %v7020
    %v7153 = vunpack.c.l.b16 %v7021
    %v7154 = vunpack.c.l.b16 %v7022
    %v7155 = vunpack.c.l.b16 %v7023
    %v7156 = vunpack.c.l.b16 %v7024
    %v7157 = vunpack.c.l.b16 %v7025
    %v7158 = vunpack.c.l.b16 %v7026
    %v7159 = vunpack.c.l.b16 %v7027
    %v7160 = vunpack.c.l.b16 %v7028
    %v7161 = vunpack.c.l.b16 %v7029
    %v7162 = vunpack.c.l.b16 %v7030
    %v7163 = vunpack.c.l.b16 %v7031
    %v7164 = vunpack.c.l.b16 %v7032
    %v7165 = vunpack.c.l.b16 %v7033
    %v7166 = vunpack.c.l.b16 %v7034
    %v7167 = vunpack.c.l.b16 %v7035
    %v7168 = vunpack.c.l.b16 %v7036
    %v7169 = vunpack.c.l.b16 %v7037
    %v7170 = vunpack.c.l.b16 %v7038
    %v7171 = vunpack.c.l.b16 %v7039
    %v7172 = vunpack.c.l.b16 %v7040
    %v7173 = vunpack.c.l.b16 %v7041
    %v7174 = vunpack.c.l.b16 %v7042
    %v7175 = vunpack.c.l.b16 %v7043
    %v7176 = vunpack.c.l.b16 %v7044
    %v7177 = vunpack.c.l.b16 %v7045
    %v7178 = vunpack.c.l.b16 %v7046
    %v7179 = vunpack.c.l.b16 %v7047
    %v7180 = vunpack.c.l.b16 %v7048
    %v7181 = vunpack.c.l.b16 %v7049
    %v7182 = vunpack.c.l.b16 %v7050
    %v7183 = vunpack.c.l.b16 %v7051
    %v7184 = vunpack.c.l.b16 %v7052
    %v7185 = vunpack.c.l.b16 %v7053
    %v7186 = vunpack.c.l.b16 %v7054
    %v7187 = vunpack.c.l.b16 %v7055
    %v7188 = vunpack.c.l.b16 %v7056
    %v7189 = vunpack.c.l.b16 %v7057
    %v7190 = vunpack.c.l.b16 %v7058
    %v7191 = vunpack.c.l.b16 %v7059
    %v7192 = vunpack.c.l.b16 %v7060
    %v7193 = vunpack.c.l.b16 %v7061
    %v7194 = vunpack.c.l.b16 %v7062
    %v7195 = vunpack.c.l.b16 %v7063
    %v7196 = vpack.c.b16 %v7133, %v7132
    %v7197 = vpack.c.b16 %v7135, %v7134
    %v7198 = vpack.c.b16 %v7137, %v7136
    %v7199 = vpack.c.b16 %v7139, %v7138
    %v7200 = vpack.c.b16 %v7141, %v7140
    %v7201 = vpack.c.b16 %v7143, %v7142
    %v7202 = vpack.c.b16 %v7145, %v7144
    %v7203 = vpack.c.b16 %v7147, %v7146
    %v7204 = vpack.c.b16 %v7149, %v7148
    %v7205 = vpack.c.b16 %v7151, %v7150
    %v7206 = vpack.c.b16 %v7153, %v7152
    %v7207 = vpack.c.b16 %v7155, %v7154
    %v7208 = vpack.c.b16 %v7157, %v7156
    %v7209 = vpack.c.b16 %v7159, %v7158
    %v7210 = vpack.c.b16 %v7161, %v7160
    %v7211 = vpack.c.b16 %v7163, %v7162
    %v7212 = vpack.c.b16 %v7165, %v7164
    %v7213 = vpack.c.b16 %v7167, %v7166
    %v7214 = vpack.c.b16 %v7169, %v7168
    %v7215 = vpack.c.b16 %v7171, %v7170
    %v7216 = vpack.c.b16 %v7173, %v7172
    %v7217 = vpack.c.b16 %v7175, %v7174
    %v7218 = vpack.c.b16 %v7177, %v7176
    %v7219 = vpack.c.b16 %v7179, %v7178
    %v7220 = vpack.c.b16 %v7181, %v7180
    %v7221 = vpack.c.b16 %v7183, %v7182
    %v7222 = vpack.c.b16 %v7185, %v7184
    %v7223 = vpack.c.b16 %v7187, %v7186
    %v7224 = vpack.c.b16 %v7189, %v7188
    %v7225 = vpack.c.b16 %v7191, %v7190
    %v7226 = vpack.c.b16 %v7193, %v7192
    %v7227 = vpack.c.b16 %v7195, %v7194
    %7260 = vmatpush.bf16.msra.mxu0 %v7203
    %7261 = vmatpush.bf16.msra.mxu0 %v7202
    %7262 = vmatpush.bf16.msra.mxu0 %v7201
    %7263 = vmatpush.bf16.msra.mxu0 %v7200
    %7264 = vmatpush.bf16.msra.mxu0 %v7199
    %7265 = vmatpush.bf16.msra.mxu0 %v7198
    %7266 = vmatpush.bf16.msra.mxu0 %v7197
    %7267 = vmatpush.bf16.msra.mxu0 %v7196
    %7268 = vmatmul.bf16.gmra.mxu0 %v6996
    %v7269 = vpop.f32.mrf.mxu0
    %v7270 = vadd.f32 %v7066, %v7269
    %v7271 = vpop.f32.mrf.mxu0
    %7272 = vdwg.mxu0
    %7273 = vmatpush.bf16.msra.mxu0 %v7211
    %7274 = vmatpush.bf16.msra.mxu0 %v7210
    %7275 = vmatpush.bf16.msra.mxu0 %v7209
    %7276 = vmatpush.bf16.msra.mxu0 %v7208
    %7277 = vmatpush.bf16.msra.mxu0 %v7207
    %7278 = vmatpush.bf16.msra.mxu0 %v7206
    %7279 = vmatpush.bf16.msra.mxu0 %v7205
    %7280 = vmatpush.bf16.msra.mxu0 %v7204
    %7281 = vmatmul.bf16.gmra.mxu0 %v6997
    %v7282 = vpop.f32.mrf.mxu0
    %v7283 = vadd.f32 %v7270, %v7282
    %v7284 = vpop.f32.mrf.mxu0
    %7285 = vdwg.mxu0
    %7286 = vmatpush.bf16.msra.mxu0 %v7219
    %7287 = vmatpush.bf16.msra.mxu0 %v7218
    %7288 = vmatpush.bf16.msra.mxu0 %v7217
    %7289 = vmatpush.bf16.msra.mxu0 %v7216
    %7290 = vmatpush.bf16.msra.mxu0 %v7215
    %7291 = vmatpush.bf16.msra.mxu0 %v7214
    %7292 = vmatpush.bf16.msra.mxu0 %v7213
    %7293 = vmatpush.bf16.msra.mxu0 %v7212
    %7294 = vmatmul.bf16.gmra.mxu0 %v6998
    %v7295 = vpop.f32.mrf.mxu0
    %v7296 = vadd.f32 %v7283, %v7295
    %v7297 = vpop.f32.mrf.mxu0
    %7298 = vdwg.mxu0
    %7299 = vmatpush.bf16.msra.mxu0 %v7227
    %7300 = vmatpush.bf16.msra.mxu0 %v7226
    %7301 = vmatpush.bf16.msra.mxu0 %v7225
    %7302 = vmatpush.bf16.msra.mxu0 %v7224
    %7303 = vmatpush.bf16.msra.mxu0 %v7223
    %7304 = vmatpush.bf16.msra.mxu0 %v7222
    %7305 = vmatpush.bf16.msra.mxu0 %v7221
    %7306 = vmatpush.bf16.msra.mxu0 %v7220
    %7307 = vmatmul.bf16.gmra.mxu0 %v6999
    %v7308 = vpop.f32.mrf.mxu0
    %v7309 = vadd.f32 %v7296, %v7308
    %v7310 = vpop.f32.mrf.mxu0
    %7311 = vdwg.mxu0
    %7312 = vst [vmem:[#allocation2] sm:$0x3] %v7309
    // Predicated region
    $region38: #{attention_dti_forward.3} parent=1 // pred_check
      _
    $region39: #{attention_dti_forward.3} parent=1 // pred_check_branch
      %7314 = sbr.rel (0) target = $region41
    $region40: #{attention_dti_forward.3} parent=1 // pred_region
      %7316 = vsyncadd [#allocation3], 0
      %s7318 = sshll.u32 [#allocation2], 4
      %s7319 = int_to_ptr.vmem [resolvable:$true] %s7318
      %s7320 = sshll.u32 %s9, 4
      %s7321 = int_to_ptr.hbm [resolvable:$true] %s7320
      %7323 = dma.vmem_to_hbm [thread:$0]  %s7319, 32, %s7321, [#allocation3]
    $region41: #{attention_dti_forward.3} parent=1 // pred_fallthru
      _
    // Predicated region
    $region42: #{attention_dti_forward.3} parent=1 // pred_check
      _
    $region43: #{attention_dti_forward.3} parent=1 // pred_check_branch
      %7325 = sbr.rel (0) target = $region45
    $region44: #{attention_dti_forward.3} parent=1 // pred_region
      %7327 = dma.done [#allocation3], 32
    $region45: #{attention_dti_forward.3} parent=1 // pred_fallthru
      _
    %7328 = vsyncpa [#allocation3], 1

</llo_original>
